<compile_context>
chip_gen: v6e
topology: v6e:2x2x1
jax: 0.10.0
libtpu: 0.0.40
codegen_flags: <defaults>
</compile_context>

<pallas_src>
import math

import jax
import jax.numpy as jnp
from jax import lax
from jax.experimental import pallas as pl
from jax.experimental.pallas import tpu as pltpu

# ---- small, module-consistent hyper-parameters ------------------------------
D_MODEL = 32        # torch default 1280
NHEAD = 4           # torch default 8
HEAD_DIM = D_MODEL // NHEAD
NUM_LAYERS = 2      # torch default 6
DIM_FF = 64         # torch default 1024
LN_EPS = 1e-5
BATCH = 2
SEQ_LEN = 8         # number of frame features; full length is SEQ_LEN + 1 (CLS)


# -----------------------------------------------------------------------------
# shared math helpers (pure jnp — used both inside the kernel and in the ref)
# -----------------------------------------------------------------------------
def _layer_norm(x, gamma, beta):
    mean = jnp.mean(x, axis=-1, keepdims=True)
    var = jnp.mean((x - mean) ** 2, axis=-1, keepdims=True)
    return (x - mean) * lax.rsqrt(var + LN_EPS) * gamma + beta


def _gelu_exact(x):
    # torch F.gelu with activation='gelu' default = exact erf-based GELU
    return 0.5 * x * (1.0 + lax.erf(x * (1.0 / math.sqrt(2.0))))


# -----------------------------------------------------------------------------
# Fused Pallas kernel: CLS concat + PE add + NUM_LAYERS encoder layers + head
# -----------------------------------------------------------------------------
def fused_forward_kernel(seq_ref, cls_ref, pe_ref,
                         in_w_ref, in_b_ref, out_w_ref, out_b_ref,
                         ln1_g_ref, ln1_b_ref, w1_ref, b1_ref, w2_ref, b2_ref,
                         ln2_g_ref, ln2_b_ref, clf_w_ref, clf_b_ref,
                         o_ref):
    B, S, D = seq_ref.shape
    SF = S + 1                                            # CLS + frames

    # ---- build the (B, SF, D) activation in-kernel (sublane concat) -------
    cls = jnp.broadcast_to(cls_ref[...], (B, 1, D))       # (B, 1, D)
    x = jnp.concatenate([cls, seq_ref[...]], axis=1)      # (B, SF, D)
    x = x + pe_ref[...][None, :, :]                       # pe is (SF, D)

    # flatten batch*seq onto sublanes: every projection is one 2-D matmul
    x2 = x.reshape(B * SF, D)                             # (B*SF, D)

    for l in range(NUM_LAYERS):                           # static unroll
        # ---- multi-head self-attention (QKV fused, 96 lanes) --------------
        # NOTE: in_w/in_b Q columns carry the 1/sqrt(HEAD_DIM) scale already.
        qkv = jnp.dot(x2, in_w_ref[l],
                      preferred_element_type=jnp.float32) + in_b_ref[l]
        q3 = qkv[:, :D].reshape(B, SF, D)
        k3 = qkv[:, D:2 * D].reshape(B, SF, D)
        v3 = qkv[:, 2 * D:].reshape(B, SF, D)

        ow = out_w_ref[l]                                  # (NHEAD, HEAD_DIM, D)
        attn2 = jnp.zeros((B * SF, D), jnp.float32)
        for h in range(NHEAD):                             # static, batched over B
            lo, hi = h * HEAD_DIM, (h + 1) * HEAD_DIM
            s = jnp.einsum('bqd,bkd->bqk', q3[..., lo:hi], k3[..., lo:hi],
                           preferred_element_type=jnp.float32)   # scale pre-folded
            s = s - jnp.max(s, axis=-1, keepdims=True)
            p = jnp.exp(s)
            p = p * pl.reciprocal(jnp.sum(p, axis=-1, keepdims=True), approx=True)
            ctx = jnp.einsum('bqk,bkd->bqd', p, v3[..., lo:hi],
                             preferred_element_type=jnp.float32)  # (B, SF, hd)
            # fold the output projection into the head loop (no lane concat)
            attn2 = attn2 + jnp.dot(ctx.reshape(B * SF, HEAD_DIM), ow[h],
                                    preferred_element_type=jnp.float32)
        attn2 = attn2 + out_b_ref[l]

        # ---- residual + LayerNorm 1 (dropout = identity, inference) -------
        x2 = _layer_norm(x2 + attn2, ln1_g_ref[l], ln1_b_ref[l])

        # ---- feed-forward (GELU) -------------------------------------------
        hid = _gelu_exact(jnp.dot(x2, w1_ref[l],
                                  preferred_element_type=jnp.float32) + b1_ref[l])
        ff = jnp.dot(hid, w2_ref[l],
                     preferred_element_type=jnp.float32) + b2_ref[l]

        # ---- residual + LayerNorm 2 ----------------------------------------
        x2 = _layer_norm(x2 + ff, ln2_g_ref[l], ln2_b_ref[l])

    # ---- classifier on the CLS token --------------------------------------
    cls_out = x2.reshape(B, SF, D)[:, 0, :]               # (B, D)
    logits = jnp.dot(cls_out, clf_w_ref[...],
                     preferred_element_type=jnp.float32) + clf_b_ref[...]
    o_ref[...] = (1.0 / (1.0 + jnp.exp(-logits))).astype(o_ref.dtype)


# -----------------------------------------------------------------------------
# Wrapper (single pallas_call, no grid, everything whole-array VMEM-resident)
# -----------------------------------------------------------------------------
KPARAM_ORDER = ("cls_token", "pe", "in_w", "in_b", "out_w", "out_b",
                "ln1_g", "ln1_b", "w1", "b1", "w2", "b2",
                "ln2_g", "ln2_b", "clf_w", "clf_b")


def fire_detection_transformer_forward(kparams, seq):
    B = seq.shape[0]
    inputs = [seq] + [kparams[k] for k in KPARAM_ORDER]
    vmem_spec = pl.BlockSpec(memory_space=pltpu.MemorySpace.VMEM)
    return pl.pallas_call(
        fused_forward_kernel,
        out_shape=jax.ShapeDtypeStruct((B, 1), seq.dtype),
        in_specs=[vmem_spec] * len(inputs),
        out_specs=vmem_spec,
    )(*inputs)


# -----------------------------------------------------------------------------
# Parameter construction (deterministic, synthetic, pre-transposed + stacked)
# -----------------------------------------------------------------------------
def make_positional_encoding(max_len, d_model):
    position = jnp.arange(max_len, dtype=jnp.float32)[:, None]
    div_term = jnp.exp(jnp.arange(0, d_model, 2, dtype=jnp.float32)
                       * (-math.log(10000.0) / d_model))
    pe = jnp.zeros((max_len, d_model), jnp.float32)
    pe = pe.at[:, 0::2].set(jnp.sin(position * div_term))
    pe = pe.at[:, 1::2].set(jnp.cos(position * div_term))
    return pe                                          # (max_len, d_model)


def init_params(key):
    def nrm(k, shape, scale=0.05):
        return (scale * jax.random.normal(k, shape)).astype(jnp.float32)

    keys = jax.random.split(key, NUM_LAYERS * 8 + 3)
    ki = 0
    stacks = {k: [] for k in ("in_w", "in_b", "out_w", "out_b",
                              "w1", "b1", "w2", "b2")}
    for _ in range(NUM_LAYERS):
        # weights stored PRE-TRANSPOSED: every matmul is x @ W
        stacks["in_w"].append(nrm(keys[ki + 0], (D_MODEL, 3 * D_MODEL)))
        stacks["in_b"].append(nrm(keys[ki + 1], (1, 3 * D_MODEL), 0.02))
        stacks["out_w"].append(nrm(keys[ki + 2], (D_MODEL, D_MODEL)))
        stacks["out_b"].append(nrm(keys[ki + 3], (1, D_MODEL), 0.02))
        stacks["w1"].append(nrm(keys[ki + 4], (D_MODEL, DIM_FF)))
        stacks["b1"].append(nrm(keys[ki + 5], (1, DIM_FF), 0.02))
        stacks["w2"].append(nrm(keys[ki + 6], (DIM_FF, D_MODEL)))
        stacks["b2"].append(nrm(keys[ki + 7], (1, D_MODEL), 0.02))
        ki += 8
    params = {k: jnp.stack(v) for k, v in stacks.items()}      # leading L axis
    params.update({
        "ln1_g": jnp.ones((NUM_LAYERS, 1, D_MODEL), jnp.float32),
        "ln1_b": jnp.zeros((NUM_LAYERS, 1, D_MODEL), jnp.float32),
        "ln2_g": jnp.ones((NUM_LAYERS, 1, D_MODEL), jnp.float32),
        "ln2_b": jnp.zeros((NUM_LAYERS, 1, D_MODEL), jnp.float32),
        "cls_token": nrm(keys[ki], (1, 1, D_MODEL), 1.0),      # torch.randn
        "clf_w": nrm(keys[ki + 1], (D_MODEL, 1)),              # pre-transposed
        "clf_b": nrm(keys[ki + 2], (1, 1), 0.02),
        "pe": make_positional_encoding(128, D_MODEL),
    })
    return params


def prepare_kernel_params(params, seq_len):
    """One-time, init-side transforms so the kernel does zero layout work:
       * fold 1/sqrt(HEAD_DIM) into the Q columns of in_w / in_b,
       * reshape out_w to (L, NHEAD, HEAD_DIM, D) for head-folded accumulation,
       * slice pe to the (seq_len + 1) rows actually used."""
    scale = 1.0 / math.sqrt(HEAD_DIM)
    kp = dict(params)
    kp["in_w"] = params["in_w"].at[:, :, :D_MODEL].multiply(scale)
    kp["in_b"] = params["in_b"].at[:, :, :D_MODEL].multiply(scale)
    kp["out_w"] = params["out_w"].reshape(NUM_LAYERS, NHEAD, HEAD_DIM, D_MODEL)
    kp["pe"] = params["pe"][:seq_len + 1]
    return kp


# -----------------------------------------------------------------------------
# Pure-JAX reference (mirrors FireDetectionTransformer.forward semantics,
# consumes the CANONICAL params — scale applied inside attention)
# -----------------------------------------------------------------------------
def reference_forward(params, seq):
    B, S, D = seq.shape
    cls_tokens = jnp.broadcast_to(params["cls_token"], (B, 1, D))
    x = jnp.concatenate([cls_tokens, seq], axis=1)
    x = x + params["pe"][:S + 1][None, :, :]
    scale = 1.0 / math.sqrt(HEAD_DIM)
    for l in range(NUM_LAYERS):
        qkv = jnp.einsum('bsd,df->bsf', x, params["in_w"][l]) + params["in_b"][l]
        q, k, v = qkv[..., :D], qkv[..., D:2 * D], qkv[..., 2 * D:]
        heads = []
        for h in range(NHEAD):
            lo, hi = h * HEAD_DIM, (h + 1) * HEAD_DIM
            s = jnp.einsum('bqd,bkd->bqk', q[..., lo:hi], k[..., lo:hi]) * scale
            p = jax.nn.softmax(s, axis=-1)
            heads.append(jnp.einsum('bqk,bkd->bqd', p, v[..., lo:hi]))
        attn = jnp.concatenate(heads, axis=-1)
        attn = jnp.einsum('bsd,de->bse', attn, params["out_w"][l]) + params["out_b"][l]
        x = _layer_norm(x + attn, params["ln1_g"][l], params["ln1_b"][l])
        hid = _gelu_exact(jnp.einsum('bsd,df->bsf', x, params["w1"][l]) + params["b1"][l])
        ff = jnp.einsum('bsf,fd->bsd', hid, params["w2"][l]) + params["b2"][l]
        x = _layer_norm(x + ff, params["ln2_g"][l], params["ln2_b"][l])
    cls_out = x[:, 0, :]
    logits = cls_out @ params["clf_w"] + params["clf_b"]
    return jax.nn.sigmoid(logits)


# TODO(synk): feature_extractor (EfficientNet backbone), train-mode dropout,
# optimizer/criterion and checkpoint I/O are outside the forward pass and not
# modeled.

if __name__ == "__main__":
    key = jax.random.PRNGKey(0)
    pkey, xkey = jax.random.split(key)
    params = init_params(pkey)
    kparams = prepare_kernel_params(params, SEQ_LEN)      # one-time setup
    seq = jax.random.normal(xkey, (BATCH, SEQ_LEN, D_MODEL), dtype=jnp.float32)

    pred = fire_detection_transformer_forward(kparams, seq)
    pred = jax.block_until_ready(pred)
    assert pred.shape == (BATCH, 1)
    assert bool(jnp.all(jnp.isfinite(pred)))
    assert bool(jnp.all((pred >= 0.0) & (pred <= 1.0)))

    ref = jax.block_until_ready(reference_forward(params, seq))
    assert bool(jnp.allclose(pred, ref, atol=5e-3, rtol=5e-3)), (pred, ref)
    print("KERNEL_OK")
</pallas_src>

<mosaic_0001>
module attributes {stable_mosaic.version = 11 : i64} {
  func.func @fused_forward_kernel(%arg0: memref<2x8x32xf32, #tpu.memory_space<vmem>>, %arg1: memref<1x1x32xf32, #tpu.memory_space<vmem>>, %arg2: memref<9x32xf32, #tpu.memory_space<vmem>>, %arg3: memref<2x32x96xf32, #tpu.memory_space<vmem>>, %arg4: memref<2x1x96xf32, #tpu.memory_space<vmem>>, %arg5: memref<2x4x8x32xf32, #tpu.memory_space<vmem>>, %arg6: memref<2x1x32xf32, #tpu.memory_space<vmem>>, %arg7: memref<2x1x32xf32, #tpu.memory_space<vmem>>, %arg8: memref<2x1x32xf32, #tpu.memory_space<vmem>>, %arg9: memref<2x32x64xf32, #tpu.memory_space<vmem>>, %arg10: memref<2x1x64xf32, #tpu.memory_space<vmem>>, %arg11: memref<2x64x32xf32, #tpu.memory_space<vmem>>, %arg12: memref<2x1x32xf32, #tpu.memory_space<vmem>>, %arg13: memref<2x1x32xf32, #tpu.memory_space<vmem>>, %arg14: memref<2x1x32xf32, #tpu.memory_space<vmem>>, %arg15: memref<32x1xf32, #tpu.memory_space<vmem>>, %arg16: memref<1x1xf32, #tpu.memory_space<vmem>>, %arg17: memref<2x1xf32, #tpu.memory_space<vmem>>) attributes {dimension_semantics = [], scalar_prefetch = 0 : i64, scratch_operands = 0 : i64, tpu.core_type = #tpu.core_type<tc>} {
    %c0 = arith.constant 0 : index
    %c0_0 = arith.constant 0 : index
    %c0_1 = arith.constant 0 : index
    %0 = vector.load %arg1[%c0, %c0_0, %c0_1] : memref<1x1x32xf32, #tpu.memory_space<vmem>>, vector<1x1x32xf32>
    %1 = vector.shape_cast %0 : vector<1x1x32xf32> to vector<1x1x32xf32>
    %2 = vector.broadcast %1 : vector<1x1x32xf32> to vector<2x1x32xf32>
    %c0_2 = arith.constant 0 : index
    %c0_3 = arith.constant 0 : index
    %c0_4 = arith.constant 0 : index
    %3 = vector.load %arg0[%c0_2, %c0_3, %c0_4] : memref<2x8x32xf32, #tpu.memory_space<vmem>>, vector<2x8x32xf32>
    %4 = tpu.concatenate %2, %3 in 1 : vector<2x1x32xf32>, vector<2x8x32xf32> -> vector<2x9x32xf32>
    %c0_5 = arith.constant 0 : index
    %c0_6 = arith.constant 0 : index
    %5 = vector.load %arg2[%c0_5, %c0_6] : memref<9x32xf32, #tpu.memory_space<vmem>>, vector<9x32xf32>
    %6 = vector.shape_cast %5 : vector<9x32xf32> to vector<1x9x32xf32>
    %7 = vector.broadcast %6 : vector<1x9x32xf32> to vector<2x9x32xf32>
    %8 = arith.addf %4, %7 : vector<2x9x32xf32>
    %9 = vector.shape_cast %8 : vector<2x9x32xf32> to vector<18x32xf32>
    %c0_7 = arith.constant 0 : index
    %c0_8 = arith.constant 0 : index
    %c0_9 = arith.constant 0 : index
    %10 = vector.load %arg3[%c0_7, %c0_8, %c0_9] : memref<2x32x96xf32, #tpu.memory_space<vmem>>, vector<1x32x96xf32>
    %11 = vector.shape_cast %10 : vector<1x32x96xf32> to vector<32x96xf32>
    %cst = arith.constant dense<0.000000e+00> : vector<18x96xf32>
    %12 = tpu.matmul %9, %11, %cst {dimension_numbers = #tpu.dot_dimension_numbers<[1], [0], [0], [1], [0, 0, 1, 1], [], []>} : vector<18x32xf32>, vector<32x96xf32>, vector<18x96xf32> -> vector<18x96xf32>
    %c0_10 = arith.constant 0 : index
    %c0_11 = arith.constant 0 : index
    %c0_12 = arith.constant 0 : index
    %13 = vector.load %arg4[%c0_10, %c0_11, %c0_12] : memref<2x1x96xf32, #tpu.memory_space<vmem>>, vector<1x1x96xf32>
    %14 = vector.shape_cast %13 : vector<1x1x96xf32> to vector<1x96xf32>
    %15 = vector.broadcast %14 : vector<1x96xf32> to vector<18x96xf32>
    %16 = arith.addf %12, %15 : vector<18x96xf32>
    %17 = vector.extract_strided_slice %16 {offsets = [0, 0], sizes = [18, 32], strides = [1, 1]} : vector<18x96xf32> to vector<18x32xf32>
    %18 = vector.shape_cast %17 : vector<18x32xf32> to vector<2x9x32xf32>
    %19 = vector.extract_strided_slice %16 {offsets = [0, 32], sizes = [18, 32], strides = [1, 1]} : vector<18x96xf32> to vector<18x32xf32>
    %20 = vector.shape_cast %19 : vector<18x32xf32> to vector<2x9x32xf32>
    %21 = vector.extract_strided_slice %16 {offsets = [0, 64], sizes = [18, 32], strides = [1, 1]} : vector<18x96xf32> to vector<18x32xf32>
    %22 = vector.shape_cast %21 : vector<18x32xf32> to vector<2x9x32xf32>
    %c0_13 = arith.constant 0 : index
    %c0_14 = arith.constant 0 : index
    %c0_15 = arith.constant 0 : index
    %c0_16 = arith.constant 0 : index
    %23 = vector.load %arg5[%c0_13, %c0_14, %c0_15, %c0_16] : memref<2x4x8x32xf32, #tpu.memory_space<vmem>>, vector<1x4x8x32xf32>
    %24 = vector.shape_cast %23 : vector<1x4x8x32xf32> to vector<4x8x32xf32>
    %cst_17 = arith.constant 0.000000e+00 : f32
    %25 = vector.broadcast %cst_17 : f32 to vector<18x32xf32>
    %26 = vector.extract_strided_slice %18 {offsets = [0, 0, 0], sizes = [2, 9, 8], strides = [1, 1, 1]} : vector<2x9x32xf32> to vector<2x9x8xf32>
    %27 = vector.extract_strided_slice %20 {offsets = [0, 0, 0], sizes = [2, 9, 8], strides = [1, 1, 1]} : vector<2x9x32xf32> to vector<2x9x8xf32>
    "tpu.trace_start"() <{level = 10 : i32, message = "bqd,bkd->bqk"}> : () -> ()
    %cst_18 = arith.constant dense<0.000000e+00> : vector<2x9x9xf32>
    %28 = tpu.matmul %26, %27, %cst_18 {dimension_numbers = #tpu.dot_dimension_numbers<[2], [2], [1], [1], [0, 0, 0, 1, 1, 1], [0], [0]>} : vector<2x9x8xf32>, vector<2x9x8xf32>, vector<2x9x9xf32> -> vector<2x9x9xf32>
    "tpu.trace_stop"() : () -> ()
    %cst_19 = arith.constant dense<0xFF800000> : vector<2x9xf32>
    %29 = vector.multi_reduction <maximumf>, %28, %cst_19 [2] : vector<2x9x9xf32> to vector<2x9xf32>
    %30 = vector.shape_cast %29 : vector<2x9xf32> to vector<2x9x1xf32>
    %31 = vector.broadcast %30 : vector<2x9x1xf32> to vector<2x9x9xf32>
    %32 = arith.subf %28, %31 : vector<2x9x9xf32>
    %33 = math.exp %32 : vector<2x9x9xf32>
    %cst_20 = arith.constant dense<0.000000e+00> : vector<2x9xf32>
    %34 = vector.multi_reduction <add>, %33, %cst_20 [2] : vector<2x9x9xf32> to vector<2x9xf32>
    %35 = vector.shape_cast %34 : vector<2x9xf32> to vector<2x9x1xf32>
    %36 = tpu.reciprocal %35 {approx = true} : vector<2x9x1xf32> -> vector<2x9x1xf32>
    %37 = vector.broadcast %36 : vector<2x9x1xf32> to vector<2x9x9xf32>
    %38 = arith.mulf %33, %37 : vector<2x9x9xf32>
    %39 = vector.extract_strided_slice %22 {offsets = [0, 0, 0], sizes = [2, 9, 8], strides = [1, 1, 1]} : vector<2x9x32xf32> to vector<2x9x8xf32>
    "tpu.trace_start"() <{level = 10 : i32, message = "bqk,bkd->bqd"}> : () -> ()
    %cst_21 = arith.constant dense<0.000000e+00> : vector<2x9x8xf32>
    %40 = tpu.matmul %38, %39, %cst_21 {dimension_numbers = #tpu.dot_dimension_numbers<[2], [1], [1], [2], [0, 0, 0, 1, 1, 2], [0], [0]>} : vector<2x9x9xf32>, vector<2x9x8xf32>, vector<2x9x8xf32> -> vector<2x9x8xf32>
    "tpu.trace_stop"() : () -> ()
    %41 = vector.shape_cast %40 : vector<2x9x8xf32> to vector<18x8xf32>
    %42 = vector.extract_strided_slice %24 {offsets = [0, 0, 0], sizes = [1, 8, 32], strides = [1, 1, 1]} : vector<4x8x32xf32> to vector<1x8x32xf32>
    %43 = vector.shape_cast %42 : vector<1x8x32xf32> to vector<8x32xf32>
    %cst_22 = arith.constant dense<0.000000e+00> : vector<18x32xf32>
    %44 = tpu.matmul %41, %43, %cst_22 {dimension_numbers = #tpu.dot_dimension_numbers<[1], [0], [0], [1], [0, 0, 1, 1], [], []>} : vector<18x8xf32>, vector<8x32xf32>, vector<18x32xf32> -> vector<18x32xf32>
    %45 = arith.addf %25, %44 : vector<18x32xf32>
    %46 = vector.extract_strided_slice %18 {offsets = [0, 0, 8], sizes = [2, 9, 8], strides = [1, 1, 1]} : vector<2x9x32xf32> to vector<2x9x8xf32>
    %47 = vector.extract_strided_slice %20 {offsets = [0, 0, 8], sizes = [2, 9, 8], strides = [1, 1, 1]} : vector<2x9x32xf32> to vector<2x9x8xf32>
    "tpu.trace_start"() <{level = 10 : i32, message = "bqd,bkd->bqk"}> : () -> ()
    %cst_23 = arith.constant dense<0.000000e+00> : vector<2x9x9xf32>
    %48 = tpu.matmul %46, %47, %cst_23 {dimension_numbers = #tpu.dot_dimension_numbers<[2], [2], [1], [1], [0, 0, 0, 1, 1, 1], [0], [0]>} : vector<2x9x8xf32>, vector<2x9x8xf32>, vector<2x9x9xf32> -> vector<2x9x9xf32>
    "tpu.trace_stop"() : () -> ()
    %cst_24 = arith.constant dense<0xFF800000> : vector<2x9xf32>
    %49 = vector.multi_reduction <maximumf>, %48, %cst_24 [2] : vector<2x9x9xf32> to vector<2x9xf32>
    %50 = vector.shape_cast %49 : vector<2x9xf32> to vector<2x9x1xf32>
    %51 = vector.broadcast %50 : vector<2x9x1xf32> to vector<2x9x9xf32>
    %52 = arith.subf %48, %51 : vector<2x9x9xf32>
    %53 = math.exp %52 : vector<2x9x9xf32>
    %cst_25 = arith.constant dense<0.000000e+00> : vector<2x9xf32>
    %54 = vector.multi_reduction <add>, %53, %cst_25 [2] : vector<2x9x9xf32> to vector<2x9xf32>
    %55 = vector.shape_cast %54 : vector<2x9xf32> to vector<2x9x1xf32>
    %56 = tpu.reciprocal %55 {approx = true} : vector<2x9x1xf32> -> vector<2x9x1xf32>
    %57 = vector.broadcast %56 : vector<2x9x1xf32> to vector<2x9x9xf32>
    %58 = arith.mulf %53, %57 : vector<2x9x9xf32>
    %59 = vector.extract_strided_slice %22 {offsets = [0, 0, 8], sizes = [2, 9, 8], strides = [1, 1, 1]} : vector<2x9x32xf32> to vector<2x9x8xf32>
    "tpu.trace_start"() <{level = 10 : i32, message = "bqk,bkd->bqd"}> : () -> ()
    %cst_26 = arith.constant dense<0.000000e+00> : vector<2x9x8xf32>
    %60 = tpu.matmul %58, %59, %cst_26 {dimension_numbers = #tpu.dot_dimension_numbers<[2], [1], [1], [2], [0, 0, 0, 1, 1, 2], [0], [0]>} : vector<2x9x9xf32>, vector<2x9x8xf32>, vector<2x9x8xf32> -> vector<2x9x8xf32>
    "tpu.trace_stop"() : () -> ()
    %61 = vector.shape_cast %60 : vector<2x9x8xf32> to vector<18x8xf32>
    %62 = vector.extract_strided_slice %24 {offsets = [1, 0, 0], sizes = [1, 8, 32], strides = [1, 1, 1]} : vector<4x8x32xf32> to vector<1x8x32xf32>
    %63 = vector.shape_cast %62 : vector<1x8x32xf32> to vector<8x32xf32>
    %cst_27 = arith.constant dense<0.000000e+00> : vector<18x32xf32>
    %64 = tpu.matmul %61, %63, %cst_27 {dimension_numbers = #tpu.dot_dimension_numbers<[1], [0], [0], [1], [0, 0, 1, 1], [], []>} : vector<18x8xf32>, vector<8x32xf32>, vector<18x32xf32> -> vector<18x32xf32>
    %65 = arith.addf %45, %64 : vector<18x32xf32>
    %66 = vector.extract_strided_slice %18 {offsets = [0, 0, 16], sizes = [2, 9, 8], strides = [1, 1, 1]} : vector<2x9x32xf32> to vector<2x9x8xf32>
    %67 = vector.extract_strided_slice %20 {offsets = [0, 0, 16], sizes = [2, 9, 8], strides = [1, 1, 1]} : vector<2x9x32xf32> to vector<2x9x8xf32>
    "tpu.trace_start"() <{level = 10 : i32, message = "bqd,bkd->bqk"}> : () -> ()
    %cst_28 = arith.constant dense<0.000000e+00> : vector<2x9x9xf32>
    %68 = tpu.matmul %66, %67, %cst_28 {dimension_numbers = #tpu.dot_dimension_numbers<[2], [2], [1], [1], [0, 0, 0, 1, 1, 1], [0], [0]>} : vector<2x9x8xf32>, vector<2x9x8xf32>, vector<2x9x9xf32> -> vector<2x9x9xf32>
    "tpu.trace_stop"() : () -> ()
    %cst_29 = arith.constant dense<0xFF800000> : vector<2x9xf32>
    %69 = vector.multi_reduction <maximumf>, %68, %cst_29 [2] : vector<2x9x9xf32> to vector<2x9xf32>
    %70 = vector.shape_cast %69 : vector<2x9xf32> to vector<2x9x1xf32>
    %71 = vector.broadcast %70 : vector<2x9x1xf32> to vector<2x9x9xf32>
    %72 = arith.subf %68, %71 : vector<2x9x9xf32>
    %73 = math.exp %72 : vector<2x9x9xf32>
    %cst_30 = arith.constant dense<0.000000e+00> : vector<2x9xf32>
    %74 = vector.multi_reduction <add>, %73, %cst_30 [2] : vector<2x9x9xf32> to vector<2x9xf32>
    %75 = vector.shape_cast %74 : vector<2x9xf32> to vector<2x9x1xf32>
    %76 = tpu.reciprocal %75 {approx = true} : vector<2x9x1xf32> -> vector<2x9x1xf32>
    %77 = vector.broadcast %76 : vector<2x9x1xf32> to vector<2x9x9xf32>
    %78 = arith.mulf %73, %77 : vector<2x9x9xf32>
    %79 = vector.extract_strided_slice %22 {offsets = [0, 0, 16], sizes = [2, 9, 8], strides = [1, 1, 1]} : vector<2x9x32xf32> to vector<2x9x8xf32>
    "tpu.trace_start"() <{level = 10 : i32, message = "bqk,bkd->bqd"}> : () -> ()
    %cst_31 = arith.constant dense<0.000000e+00> : vector<2x9x8xf32>
    %80 = tpu.matmul %78, %79, %cst_31 {dimension_numbers = #tpu.dot_dimension_numbers<[2], [1], [1], [2], [0, 0, 0, 1, 1, 2], [0], [0]>} : vector<2x9x9xf32>, vector<2x9x8xf32>, vector<2x9x8xf32> -> vector<2x9x8xf32>
    "tpu.trace_stop"() : () -> ()
    %81 = vector.shape_cast %80 : vector<2x9x8xf32> to vector<18x8xf32>
    %82 = vector.extract_strided_slice %24 {offsets = [2, 0, 0], sizes = [1, 8, 32], strides = [1, 1, 1]} : vector<4x8x32xf32> to vector<1x8x32xf32>
    %83 = vector.shape_cast %82 : vector<1x8x32xf32> to vector<8x32xf32>
    %cst_32 = arith.constant dense<0.000000e+00> : vector<18x32xf32>
    %84 = tpu.matmul %81, %83, %cst_32 {dimension_numbers = #tpu.dot_dimension_numbers<[1], [0], [0], [1], [0, 0, 1, 1], [], []>} : vector<18x8xf32>, vector<8x32xf32>, vector<18x32xf32> -> vector<18x32xf32>
    %85 = arith.addf %65, %84 : vector<18x32xf32>
    %86 = vector.extract_strided_slice %18 {offsets = [0, 0, 24], sizes = [2, 9, 8], strides = [1, 1, 1]} : vector<2x9x32xf32> to vector<2x9x8xf32>
    %87 = vector.extract_strided_slice %20 {offsets = [0, 0, 24], sizes = [2, 9, 8], strides = [1, 1, 1]} : vector<2x9x32xf32> to vector<2x9x8xf32>
    "tpu.trace_start"() <{level = 10 : i32, message = "bqd,bkd->bqk"}> : () -> ()
    %cst_33 = arith.constant dense<0.000000e+00> : vector<2x9x9xf32>
    %88 = tpu.matmul %86, %87, %cst_33 {dimension_numbers = #tpu.dot_dimension_numbers<[2], [2], [1], [1], [0, 0, 0, 1, 1, 1], [0], [0]>} : vector<2x9x8xf32>, vector<2x9x8xf32>, vector<2x9x9xf32> -> vector<2x9x9xf32>
    "tpu.trace_stop"() : () -> ()
    %cst_34 = arith.constant dense<0xFF800000> : vector<2x9xf32>
    %89 = vector.multi_reduction <maximumf>, %88, %cst_34 [2] : vector<2x9x9xf32> to vector<2x9xf32>
    %90 = vector.shape_cast %89 : vector<2x9xf32> to vector<2x9x1xf32>
    %91 = vector.broadcast %90 : vector<2x9x1xf32> to vector<2x9x9xf32>
    %92 = arith.subf %88, %91 : vector<2x9x9xf32>
    %93 = math.exp %92 : vector<2x9x9xf32>
    %cst_35 = arith.constant dense<0.000000e+00> : vector<2x9xf32>
    %94 = vector.multi_reduction <add>, %93, %cst_35 [2] : vector<2x9x9xf32> to vector<2x9xf32>
    %95 = vector.shape_cast %94 : vector<2x9xf32> to vector<2x9x1xf32>
    %96 = tpu.reciprocal %95 {approx = true} : vector<2x9x1xf32> -> vector<2x9x1xf32>
    %97 = vector.broadcast %96 : vector<2x9x1xf32> to vector<2x9x9xf32>
    %98 = arith.mulf %93, %97 : vector<2x9x9xf32>
    %99 = vector.extract_strided_slice %22 {offsets = [0, 0, 24], sizes = [2, 9, 8], strides = [1, 1, 1]} : vector<2x9x32xf32> to vector<2x9x8xf32>
    "tpu.trace_start"() <{level = 10 : i32, message = "bqk,bkd->bqd"}> : () -> ()
    %cst_36 = arith.constant dense<0.000000e+00> : vector<2x9x8xf32>
    %100 = tpu.matmul %98, %99, %cst_36 {dimension_numbers = #tpu.dot_dimension_numbers<[2], [1], [1], [2], [0, 0, 0, 1, 1, 2], [0], [0]>} : vector<2x9x9xf32>, vector<2x9x8xf32>, vector<2x9x8xf32> -> vector<2x9x8xf32>
    "tpu.trace_stop"() : () -> ()
    %101 = vector.shape_cast %100 : vector<2x9x8xf32> to vector<18x8xf32>
    %102 = vector.extract_strided_slice %24 {offsets = [3, 0, 0], sizes = [1, 8, 32], strides = [1, 1, 1]} : vector<4x8x32xf32> to vector<1x8x32xf32>
    %103 = vector.shape_cast %102 : vector<1x8x32xf32> to vector<8x32xf32>
    %cst_37 = arith.constant dense<0.000000e+00> : vector<18x32xf32>
    %104 = tpu.matmul %101, %103, %cst_37 {dimension_numbers = #tpu.dot_dimension_numbers<[1], [0], [0], [1], [0, 0, 1, 1], [], []>} : vector<18x8xf32>, vector<8x32xf32>, vector<18x32xf32> -> vector<18x32xf32>
    %105 = arith.addf %85, %104 : vector<18x32xf32>
    %c0_38 = arith.constant 0 : index
    %c0_39 = arith.constant 0 : index
    %c0_40 = arith.constant 0 : index
    %106 = vector.load %arg6[%c0_38, %c0_39, %c0_40] : memref<2x1x32xf32, #tpu.memory_space<vmem>>, vector<1x1x32xf32>
    %107 = vector.shape_cast %106 : vector<1x1x32xf32> to vector<1x32xf32>
    %108 = vector.broadcast %107 : vector<1x32xf32> to vector<18x32xf32>
    %109 = arith.addf %105, %108 : vector<18x32xf32>
    %110 = arith.addf %9, %109 : vector<18x32xf32>
    %c0_41 = arith.constant 0 : index
    %c0_42 = arith.constant 0 : index
    %c0_43 = arith.constant 0 : index
    %111 = vector.load %arg7[%c0_41, %c0_42, %c0_43] : memref<2x1x32xf32, #tpu.memory_space<vmem>>, vector<1x1x32xf32>
    %112 = vector.shape_cast %111 : vector<1x1x32xf32> to vector<1x32xf32>
    %c0_44 = arith.constant 0 : index
    %c0_45 = arith.constant 0 : index
    %c0_46 = arith.constant 0 : index
    %113 = vector.load %arg8[%c0_44, %c0_45, %c0_46] : memref<2x1x32xf32, #tpu.memory_space<vmem>>, vector<1x1x32xf32>
    %114 = vector.shape_cast %113 : vector<1x1x32xf32> to vector<1x32xf32>
    %cst_47 = arith.constant dense<0.000000e+00> : vector<18xf32>
    %115 = vector.multi_reduction <add>, %110, %cst_47 [1] : vector<18x32xf32> to vector<18xf32>
    %116 = vector.shape_cast %115 : vector<18xf32> to vector<18x1xf32>
    %cst_48 = arith.constant 3.200000e+01 : f32
    %117 = vector.broadcast %cst_48 : f32 to vector<18x1xf32>
    %118 = arith.divf %116, %117 : vector<18x1xf32>
    %119 = vector.broadcast %118 : vector<18x1xf32> to vector<18x32xf32>
    %120 = arith.subf %110, %119 : vector<18x32xf32>
    %121 = arith.mulf %120, %120 : vector<18x32xf32>
    %cst_49 = arith.constant dense<0.000000e+00> : vector<18xf32>
    %122 = vector.multi_reduction <add>, %121, %cst_49 [1] : vector<18x32xf32> to vector<18xf32>
    %123 = vector.shape_cast %122 : vector<18xf32> to vector<18x1xf32>
    %cst_50 = arith.constant 3.200000e+01 : f32
    %124 = vector.broadcast %cst_50 : f32 to vector<18x1xf32>
    %125 = arith.divf %123, %124 : vector<18x1xf32>
    %126 = vector.broadcast %118 : vector<18x1xf32> to vector<18x32xf32>
    %127 = arith.subf %110, %126 : vector<18x32xf32>
    %cst_51 = arith.constant 9.99999974E-6 : f32
    %128 = vector.broadcast %cst_51 : f32 to vector<18x1xf32>
    %129 = arith.addf %125, %128 : vector<18x1xf32>
    %130 = math.rsqrt %129 : vector<18x1xf32>
    %131 = vector.broadcast %130 : vector<18x1xf32> to vector<18x32xf32>
    %132 = arith.mulf %127, %131 : vector<18x32xf32>
    %133 = vector.broadcast %112 : vector<1x32xf32> to vector<18x32xf32>
    %134 = arith.mulf %132, %133 : vector<18x32xf32>
    %135 = vector.broadcast %114 : vector<1x32xf32> to vector<18x32xf32>
    %136 = arith.addf %134, %135 : vector<18x32xf32>
    %c0_52 = arith.constant 0 : index
    %c0_53 = arith.constant 0 : index
    %c0_54 = arith.constant 0 : index
    %137 = vector.load %arg9[%c0_52, %c0_53, %c0_54] : memref<2x32x64xf32, #tpu.memory_space<vmem>>, vector<1x32x64xf32>
    %138 = vector.shape_cast %137 : vector<1x32x64xf32> to vector<32x64xf32>
    %cst_55 = arith.constant dense<0.000000e+00> : vector<18x64xf32>
    %139 = tpu.matmul %136, %138, %cst_55 {dimension_numbers = #tpu.dot_dimension_numbers<[1], [0], [0], [1], [0, 0, 1, 1], [], []>} : vector<18x32xf32>, vector<32x64xf32>, vector<18x64xf32> -> vector<18x64xf32>
    %c0_56 = arith.constant 0 : index
    %c0_57 = arith.constant 0 : index
    %c0_58 = arith.constant 0 : index
    %140 = vector.load %arg10[%c0_56, %c0_57, %c0_58] : memref<2x1x64xf32, #tpu.memory_space<vmem>>, vector<1x1x64xf32>
    %141 = vector.shape_cast %140 : vector<1x1x64xf32> to vector<1x64xf32>
    %142 = vector.broadcast %141 : vector<1x64xf32> to vector<18x64xf32>
    %143 = arith.addf %139, %142 : vector<18x64xf32>
    %cst_59 = arith.constant 5.000000e-01 : f32
    %144 = vector.broadcast %cst_59 : f32 to vector<18x64xf32>
    %145 = arith.mulf %144, %143 : vector<18x64xf32>
    %cst_60 = arith.constant 0.707106769 : f32
    %146 = vector.broadcast %cst_60 : f32 to vector<18x64xf32>
    %147 = arith.mulf %143, %146 : vector<18x64xf32>
    %148 = math.erf %147 : vector<18x64xf32>
    %cst_61 = arith.constant 1.000000e+00 : f32
    %149 = vector.broadcast %cst_61 : f32 to vector<18x64xf32>
    %150 = arith.addf %149, %148 : vector<18x64xf32>
    %151 = arith.mulf %145, %150 : vector<18x64xf32>
    %c0_62 = arith.constant 0 : index
    %c0_63 = arith.constant 0 : index
    %c0_64 = arith.constant 0 : index
    %152 = vector.load %arg11[%c0_62, %c0_63, %c0_64] : memref<2x64x32xf32, #tpu.memory_space<vmem>>, vector<1x64x32xf32>
    %153 = vector.shape_cast %152 : vector<1x64x32xf32> to vector<64x32xf32>
    %cst_65 = arith.constant dense<0.000000e+00> : vector<18x32xf32>
    %154 = tpu.matmul %151, %153, %cst_65 {dimension_numbers = #tpu.dot_dimension_numbers<[1], [0], [0], [1], [0, 0, 1, 1], [], []>} : vector<18x64xf32>, vector<64x32xf32>, vector<18x32xf32> -> vector<18x32xf32>
    %c0_66 = arith.constant 0 : index
    %c0_67 = arith.constant 0 : index
    %c0_68 = arith.constant 0 : index
    %155 = vector.load %arg12[%c0_66, %c0_67, %c0_68] : memref<2x1x32xf32, #tpu.memory_space<vmem>>, vector<1x1x32xf32>
    %156 = vector.shape_cast %155 : vector<1x1x32xf32> to vector<1x32xf32>
    %157 = vector.broadcast %156 : vector<1x32xf32> to vector<18x32xf32>
    %158 = arith.addf %154, %157 : vector<18x32xf32>
    %159 = arith.addf %136, %158 : vector<18x32xf32>
    %c0_69 = arith.constant 0 : index
    %c0_70 = arith.constant 0 : index
    %c0_71 = arith.constant 0 : index
    %160 = vector.load %arg13[%c0_69, %c0_70, %c0_71] : memref<2x1x32xf32, #tpu.memory_space<vmem>>, vector<1x1x32xf32>
    %161 = vector.shape_cast %160 : vector<1x1x32xf32> to vector<1x32xf32>
    %c0_72 = arith.constant 0 : index
    %c0_73 = arith.constant 0 : index
    %c0_74 = arith.constant 0 : index
    %162 = vector.load %arg14[%c0_72, %c0_73, %c0_74] : memref<2x1x32xf32, #tpu.memory_space<vmem>>, vector<1x1x32xf32>
    %163 = vector.shape_cast %162 : vector<1x1x32xf32> to vector<1x32xf32>
    %cst_75 = arith.constant dense<0.000000e+00> : vector<18xf32>
    %164 = vector.multi_reduction <add>, %159, %cst_75 [1] : vector<18x32xf32> to vector<18xf32>
    %165 = vector.shape_cast %164 : vector<18xf32> to vector<18x1xf32>
    %cst_76 = arith.constant 3.200000e+01 : f32
    %166 = vector.broadcast %cst_76 : f32 to vector<18x1xf32>
    %167 = arith.divf %165, %166 : vector<18x1xf32>
    %168 = vector.broadcast %167 : vector<18x1xf32> to vector<18x32xf32>
    %169 = arith.subf %159, %168 : vector<18x32xf32>
    %170 = arith.mulf %169, %169 : vector<18x32xf32>
    %cst_77 = arith.constant dense<0.000000e+00> : vector<18xf32>
    %171 = vector.multi_reduction <add>, %170, %cst_77 [1] : vector<18x32xf32> to vector<18xf32>
    %172 = vector.shape_cast %171 : vector<18xf32> to vector<18x1xf32>
    %cst_78 = arith.constant 3.200000e+01 : f32
    %173 = vector.broadcast %cst_78 : f32 to vector<18x1xf32>
    %174 = arith.divf %172, %173 : vector<18x1xf32>
    %175 = vector.broadcast %167 : vector<18x1xf32> to vector<18x32xf32>
    %176 = arith.subf %159, %175 : vector<18x32xf32>
    %cst_79 = arith.constant 9.99999974E-6 : f32
    %177 = vector.broadcast %cst_79 : f32 to vector<18x1xf32>
    %178 = arith.addf %174, %177 : vector<18x1xf32>
    %179 = math.rsqrt %178 : vector<18x1xf32>
    %180 = vector.broadcast %179 : vector<18x1xf32> to vector<18x32xf32>
    %181 = arith.mulf %176, %180 : vector<18x32xf32>
    %182 = vector.broadcast %161 : vector<1x32xf32> to vector<18x32xf32>
    %183 = arith.mulf %181, %182 : vector<18x32xf32>
    %184 = vector.broadcast %163 : vector<1x32xf32> to vector<18x32xf32>
    %185 = arith.addf %183, %184 : vector<18x32xf32>
    %c1 = arith.constant 1 : index
    %c0_80 = arith.constant 0 : index
    %c0_81 = arith.constant 0 : index
    %186 = vector.load %arg3[%c1, %c0_80, %c0_81] : memref<2x32x96xf32, #tpu.memory_space<vmem>>, vector<1x32x96xf32>
    %187 = vector.shape_cast %186 : vector<1x32x96xf32> to vector<32x96xf32>
    %cst_82 = arith.constant dense<0.000000e+00> : vector<18x96xf32>
    %188 = tpu.matmul %185, %187, %cst_82 {dimension_numbers = #tpu.dot_dimension_numbers<[1], [0], [0], [1], [0, 0, 1, 1], [], []>} : vector<18x32xf32>, vector<32x96xf32>, vector<18x96xf32> -> vector<18x96xf32>
    %c1_83 = arith.constant 1 : index
    %c0_84 = arith.constant 0 : index
    %c0_85 = arith.constant 0 : index
    %189 = vector.load %arg4[%c1_83, %c0_84, %c0_85] : memref<2x1x96xf32, #tpu.memory_space<vmem>>, vector<1x1x96xf32>
    %190 = vector.shape_cast %189 : vector<1x1x96xf32> to vector<1x96xf32>
    %191 = vector.broadcast %190 : vector<1x96xf32> to vector<18x96xf32>
    %192 = arith.addf %188, %191 : vector<18x96xf32>
    %193 = vector.extract_strided_slice %192 {offsets = [0, 0], sizes = [18, 32], strides = [1, 1]} : vector<18x96xf32> to vector<18x32xf32>
    %194 = vector.shape_cast %193 : vector<18x32xf32> to vector<2x9x32xf32>
    %195 = vector.extract_strided_slice %192 {offsets = [0, 32], sizes = [18, 32], strides = [1, 1]} : vector<18x96xf32> to vector<18x32xf32>
    %196 = vector.shape_cast %195 : vector<18x32xf32> to vector<2x9x32xf32>
    %197 = vector.extract_strided_slice %192 {offsets = [0, 64], sizes = [18, 32], strides = [1, 1]} : vector<18x96xf32> to vector<18x32xf32>
    %198 = vector.shape_cast %197 : vector<18x32xf32> to vector<2x9x32xf32>
    %c1_86 = arith.constant 1 : index
    %c0_87 = arith.constant 0 : index
    %c0_88 = arith.constant 0 : index
    %c0_89 = arith.constant 0 : index
    %199 = vector.load %arg5[%c1_86, %c0_87, %c0_88, %c0_89] : memref<2x4x8x32xf32, #tpu.memory_space<vmem>>, vector<1x4x8x32xf32>
    %200 = vector.shape_cast %199 : vector<1x4x8x32xf32> to vector<4x8x32xf32>
    %cst_90 = arith.constant 0.000000e+00 : f32
    %201 = vector.broadcast %cst_90 : f32 to vector<18x32xf32>
    %202 = vector.extract_strided_slice %194 {offsets = [0, 0, 0], sizes = [2, 9, 8], strides = [1, 1, 1]} : vector<2x9x32xf32> to vector<2x9x8xf32>
    %203 = vector.extract_strided_slice %196 {offsets = [0, 0, 0], sizes = [2, 9, 8], strides = [1, 1, 1]} : vector<2x9x32xf32> to vector<2x9x8xf32>
    "tpu.trace_start"() <{level = 10 : i32, message = "bqd,bkd->bqk"}> : () -> ()
    %cst_91 = arith.constant dense<0.000000e+00> : vector<2x9x9xf32>
    %204 = tpu.matmul %202, %203, %cst_91 {dimension_numbers = #tpu.dot_dimension_numbers<[2], [2], [1], [1], [0, 0, 0, 1, 1, 1], [0], [0]>} : vector<2x9x8xf32>, vector<2x9x8xf32>, vector<2x9x9xf32> -> vector<2x9x9xf32>
    "tpu.trace_stop"() : () -> ()
    %cst_92 = arith.constant dense<0xFF800000> : vector<2x9xf32>
    %205 = vector.multi_reduction <maximumf>, %204, %cst_92 [2] : vector<2x9x9xf32> to vector<2x9xf32>
    %206 = vector.shape_cast %205 : vector<2x9xf32> to vector<2x9x1xf32>
    %207 = vector.broadcast %206 : vector<2x9x1xf32> to vector<2x9x9xf32>
    %208 = arith.subf %204, %207 : vector<2x9x9xf32>
    %209 = math.exp %208 : vector<2x9x9xf32>
    %cst_93 = arith.constant dense<0.000000e+00> : vector<2x9xf32>
    %210 = vector.multi_reduction <add>, %209, %cst_93 [2] : vector<2x9x9xf32> to vector<2x9xf32>
    %211 = vector.shape_cast %210 : vector<2x9xf32> to vector<2x9x1xf32>
    %212 = tpu.reciprocal %211 {approx = true} : vector<2x9x1xf32> -> vector<2x9x1xf32>
    %213 = vector.broadcast %212 : vector<2x9x1xf32> to vector<2x9x9xf32>
    %214 = arith.mulf %209, %213 : vector<2x9x9xf32>
    %215 = vector.extract_strided_slice %198 {offsets = [0, 0, 0], sizes = [2, 9, 8], strides = [1, 1, 1]} : vector<2x9x32xf32> to vector<2x9x8xf32>
    "tpu.trace_start"() <{level = 10 : i32, message = "bqk,bkd->bqd"}> : () -> ()
    %cst_94 = arith.constant dense<0.000000e+00> : vector<2x9x8xf32>
    %216 = tpu.matmul %214, %215, %cst_94 {dimension_numbers = #tpu.dot_dimension_numbers<[2], [1], [1], [2], [0, 0, 0, 1, 1, 2], [0], [0]>} : vector<2x9x9xf32>, vector<2x9x8xf32>, vector<2x9x8xf32> -> vector<2x9x8xf32>
    "tpu.trace_stop"() : () -> ()
    %217 = vector.shape_cast %216 : vector<2x9x8xf32> to vector<18x8xf32>
    %218 = vector.extract_strided_slice %200 {offsets = [0, 0, 0], sizes = [1, 8, 32], strides = [1, 1, 1]} : vector<4x8x32xf32> to vector<1x8x32xf32>
    %219 = vector.shape_cast %218 : vector<1x8x32xf32> to vector<8x32xf32>
    %cst_95 = arith.constant dense<0.000000e+00> : vector<18x32xf32>
    %220 = tpu.matmul %217, %219, %cst_95 {dimension_numbers = #tpu.dot_dimension_numbers<[1], [0], [0], [1], [0, 0, 1, 1], [], []>} : vector<18x8xf32>, vector<8x32xf32>, vector<18x32xf32> -> vector<18x32xf32>
    %221 = arith.addf %201, %220 : vector<18x32xf32>
    %222 = vector.extract_strided_slice %194 {offsets = [0, 0, 8], sizes = [2, 9, 8], strides = [1, 1, 1]} : vector<2x9x32xf32> to vector<2x9x8xf32>
    %223 = vector.extract_strided_slice %196 {offsets = [0, 0, 8], sizes = [2, 9, 8], strides = [1, 1, 1]} : vector<2x9x32xf32> to vector<2x9x8xf32>
    "tpu.trace_start"() <{level = 10 : i32, message = "bqd,bkd->bqk"}> : () -> ()
    %cst_96 = arith.constant dense<0.000000e+00> : vector<2x9x9xf32>
    %224 = tpu.matmul %222, %223, %cst_96 {dimension_numbers = #tpu.dot_dimension_numbers<[2], [2], [1], [1], [0, 0, 0, 1, 1, 1], [0], [0]>} : vector<2x9x8xf32>, vector<2x9x8xf32>, vector<2x9x9xf32> -> vector<2x9x9xf32>
    "tpu.trace_stop"() : () -> ()
    %cst_97 = arith.constant dense<0xFF800000> : vector<2x9xf32>
    %225 = vector.multi_reduction <maximumf>, %224, %cst_97 [2] : vector<2x9x9xf32> to vector<2x9xf32>
    %226 = vector.shape_cast %225 : vector<2x9xf32> to vector<2x9x1xf32>
    %227 = vector.broadcast %226 : vector<2x9x1xf32> to vector<2x9x9xf32>
    %228 = arith.subf %224, %227 : vector<2x9x9xf32>
    %229 = math.exp %228 : vector<2x9x9xf32>
    %cst_98 = arith.constant dense<0.000000e+00> : vector<2x9xf32>
    %230 = vector.multi_reduction <add>, %229, %cst_98 [2] : vector<2x9x9xf32> to vector<2x9xf32>
    %231 = vector.shape_cast %230 : vector<2x9xf32> to vector<2x9x1xf32>
    %232 = tpu.reciprocal %231 {approx = true} : vector<2x9x1xf32> -> vector<2x9x1xf32>
    %233 = vector.broadcast %232 : vector<2x9x1xf32> to vector<2x9x9xf32>
    %234 = arith.mulf %229, %233 : vector<2x9x9xf32>
    %235 = vector.extract_strided_slice %198 {offsets = [0, 0, 8], sizes = [2, 9, 8], strides = [1, 1, 1]} : vector<2x9x32xf32> to vector<2x9x8xf32>
    "tpu.trace_start"() <{level = 10 : i32, message = "bqk,bkd->bqd"}> : () -> ()
    %cst_99 = arith.constant dense<0.000000e+00> : vector<2x9x8xf32>
    %236 = tpu.matmul %234, %235, %cst_99 {dimension_numbers = #tpu.dot_dimension_numbers<[2], [1], [1], [2], [0, 0, 0, 1, 1, 2], [0], [0]>} : vector<2x9x9xf32>, vector<2x9x8xf32>, vector<2x9x8xf32> -> vector<2x9x8xf32>
    "tpu.trace_stop"() : () -> ()
    %237 = vector.shape_cast %236 : vector<2x9x8xf32> to vector<18x8xf32>
    %238 = vector.extract_strided_slice %200 {offsets = [1, 0, 0], sizes = [1, 8, 32], strides = [1, 1, 1]} : vector<4x8x32xf32> to vector<1x8x32xf32>
    %239 = vector.shape_cast %238 : vector<1x8x32xf32> to vector<8x32xf32>
    %cst_100 = arith.constant dense<0.000000e+00> : vector<18x32xf32>
    %240 = tpu.matmul %237, %239, %cst_100 {dimension_numbers = #tpu.dot_dimension_numbers<[1], [0], [0], [1], [0, 0, 1, 1], [], []>} : vector<18x8xf32>, vector<8x32xf32>, vector<18x32xf32> -> vector<18x32xf32>
    %241 = arith.addf %221, %240 : vector<18x32xf32>
    %242 = vector.extract_strided_slice %194 {offsets = [0, 0, 16], sizes = [2, 9, 8], strides = [1, 1, 1]} : vector<2x9x32xf32> to vector<2x9x8xf32>
    %243 = vector.extract_strided_slice %196 {offsets = [0, 0, 16], sizes = [2, 9, 8], strides = [1, 1, 1]} : vector<2x9x32xf32> to vector<2x9x8xf32>
    "tpu.trace_start"() <{level = 10 : i32, message = "bqd,bkd->bqk"}> : () -> ()
    %cst_101 = arith.constant dense<0.000000e+00> : vector<2x9x9xf32>
    %244 = tpu.matmul %242, %243, %cst_101 {dimension_numbers = #tpu.dot_dimension_numbers<[2], [2], [1], [1], [0, 0, 0, 1, 1, 1], [0], [0]>} : vector<2x9x8xf32>, vector<2x9x8xf32>, vector<2x9x9xf32> -> vector<2x9x9xf32>
    "tpu.trace_stop"() : () -> ()
    %cst_102 = arith.constant dense<0xFF800000> : vector<2x9xf32>
    %245 = vector.multi_reduction <maximumf>, %244, %cst_102 [2] : vector<2x9x9xf32> to vector<2x9xf32>
    %246 = vector.shape_cast %245 : vector<2x9xf32> to vector<2x9x1xf32>
    %247 = vector.broadcast %246 : vector<2x9x1xf32> to vector<2x9x9xf32>
    %248 = arith.subf %244, %247 : vector<2x9x9xf32>
    %249 = math.exp %248 : vector<2x9x9xf32>
    %cst_103 = arith.constant dense<0.000000e+00> : vector<2x9xf32>
    %250 = vector.multi_reduction <add>, %249, %cst_103 [2] : vector<2x9x9xf32> to vector<2x9xf32>
    %251 = vector.shape_cast %250 : vector<2x9xf32> to vector<2x9x1xf32>
    %252 = tpu.reciprocal %251 {approx = true} : vector<2x9x1xf32> -> vector<2x9x1xf32>
    %253 = vector.broadcast %252 : vector<2x9x1xf32> to vector<2x9x9xf32>
    %254 = arith.mulf %249, %253 : vector<2x9x9xf32>
    %255 = vector.extract_strided_slice %198 {offsets = [0, 0, 16], sizes = [2, 9, 8], strides = [1, 1, 1]} : vector<2x9x32xf32> to vector<2x9x8xf32>
    "tpu.trace_start"() <{level = 10 : i32, message = "bqk,bkd->bqd"}> : () -> ()
    %cst_104 = arith.constant dense<0.000000e+00> : vector<2x9x8xf32>
    %256 = tpu.matmul %254, %255, %cst_104 {dimension_numbers = #tpu.dot_dimension_numbers<[2], [1], [1], [2], [0, 0, 0, 1, 1, 2], [0], [0]>} : vector<2x9x9xf32>, vector<2x9x8xf32>, vector<2x9x8xf32> -> vector<2x9x8xf32>
    "tpu.trace_stop"() : () -> ()
    %257 = vector.shape_cast %256 : vector<2x9x8xf32> to vector<18x8xf32>
    %258 = vector.extract_strided_slice %200 {offsets = [2, 0, 0], sizes = [1, 8, 32], strides = [1, 1, 1]} : vector<4x8x32xf32> to vector<1x8x32xf32>
    %259 = vector.shape_cast %258 : vector<1x8x32xf32> to vector<8x32xf32>
    %cst_105 = arith.constant dense<0.000000e+00> : vector<18x32xf32>
    %260 = tpu.matmul %257, %259, %cst_105 {dimension_numbers = #tpu.dot_dimension_numbers<[1], [0], [0], [1], [0, 0, 1, 1], [], []>} : vector<18x8xf32>, vector<8x32xf32>, vector<18x32xf32> -> vector<18x32xf32>
    %261 = arith.addf %241, %260 : vector<18x32xf32>
    %262 = vector.extract_strided_slice %194 {offsets = [0, 0, 24], sizes = [2, 9, 8], strides = [1, 1, 1]} : vector<2x9x32xf32> to vector<2x9x8xf32>
    %263 = vector.extract_strided_slice %196 {offsets = [0, 0, 24], sizes = [2, 9, 8], strides = [1, 1, 1]} : vector<2x9x32xf32> to vector<2x9x8xf32>
    "tpu.trace_start"() <{level = 10 : i32, message = "bqd,bkd->bqk"}> : () -> ()
    %cst_106 = arith.constant dense<0.000000e+00> : vector<2x9x9xf32>
    %264 = tpu.matmul %262, %263, %cst_106 {dimension_numbers = #tpu.dot_dimension_numbers<[2], [2], [1], [1], [0, 0, 0, 1, 1, 1], [0], [0]>} : vector<2x9x8xf32>, vector<2x9x8xf32>, vector<2x9x9xf32> -> vector<2x9x9xf32>
    "tpu.trace_stop"() : () -> ()
    %cst_107 = arith.constant dense<0xFF800000> : vector<2x9xf32>
    %265 = vector.multi_reduction <maximumf>, %264, %cst_107 [2] : vector<2x9x9xf32> to vector<2x9xf32>
    %266 = vector.shape_cast %265 : vector<2x9xf32> to vector<2x9x1xf32>
    %267 = vector.broadcast %266 : vector<2x9x1xf32> to vector<2x9x9xf32>
    %268 = arith.subf %264, %267 : vector<2x9x9xf32>
    %269 = math.exp %268 : vector<2x9x9xf32>
    %cst_108 = arith.constant dense<0.000000e+00> : vector<2x9xf32>
    %270 = vector.multi_reduction <add>, %269, %cst_108 [2] : vector<2x9x9xf32> to vector<2x9xf32>
    %271 = vector.shape_cast %270 : vector<2x9xf32> to vector<2x9x1xf32>
    %272 = tpu.reciprocal %271 {approx = true} : vector<2x9x1xf32> -> vector<2x9x1xf32>
    %273 = vector.broadcast %272 : vector<2x9x1xf32> to vector<2x9x9xf32>
    %274 = arith.mulf %269, %273 : vector<2x9x9xf32>
    %275 = vector.extract_strided_slice %198 {offsets = [0, 0, 24], sizes = [2, 9, 8], strides = [1, 1, 1]} : vector<2x9x32xf32> to vector<2x9x8xf32>
    "tpu.trace_start"() <{level = 10 : i32, message = "bqk,bkd->bqd"}> : () -> ()
    %cst_109 = arith.constant dense<0.000000e+00> : vector<2x9x8xf32>
    %276 = tpu.matmul %274, %275, %cst_109 {dimension_numbers = #tpu.dot_dimension_numbers<[2], [1], [1], [2], [0, 0, 0, 1, 1, 2], [0], [0]>} : vector<2x9x9xf32>, vector<2x9x8xf32>, vector<2x9x8xf32> -> vector<2x9x8xf32>
    "tpu.trace_stop"() : () -> ()
    %277 = vector.shape_cast %276 : vector<2x9x8xf32> to vector<18x8xf32>
    %278 = vector.extract_strided_slice %200 {offsets = [3, 0, 0], sizes = [1, 8, 32], strides = [1, 1, 1]} : vector<4x8x32xf32> to vector<1x8x32xf32>
    %279 = vector.shape_cast %278 : vector<1x8x32xf32> to vector<8x32xf32>
    %cst_110 = arith.constant dense<0.000000e+00> : vector<18x32xf32>
    %280 = tpu.matmul %277, %279, %cst_110 {dimension_numbers = #tpu.dot_dimension_numbers<[1], [0], [0], [1], [0, 0, 1, 1], [], []>} : vector<18x8xf32>, vector<8x32xf32>, vector<18x32xf32> -> vector<18x32xf32>
    %281 = arith.addf %261, %280 : vector<18x32xf32>
    %c1_111 = arith.constant 1 : index
    %c0_112 = arith.constant 0 : index
    %c0_113 = arith.constant 0 : index
    %282 = vector.load %arg6[%c1_111, %c0_112, %c0_113] : memref<2x1x32xf32, #tpu.memory_space<vmem>>, vector<1x1x32xf32>
    %283 = vector.shape_cast %282 : vector<1x1x32xf32> to vector<1x32xf32>
    %284 = vector.broadcast %283 : vector<1x32xf32> to vector<18x32xf32>
    %285 = arith.addf %281, %284 : vector<18x32xf32>
    %286 = arith.addf %185, %285 : vector<18x32xf32>
    %c1_114 = arith.constant 1 : index
    %c0_115 = arith.constant 0 : index
    %c0_116 = arith.constant 0 : index
    %287 = vector.load %arg7[%c1_114, %c0_115, %c0_116] : memref<2x1x32xf32, #tpu.memory_space<vmem>>, vector<1x1x32xf32>
    %288 = vector.shape_cast %287 : vector<1x1x32xf32> to vector<1x32xf32>
    %c1_117 = arith.constant 1 : index
    %c0_118 = arith.constant 0 : index
    %c0_119 = arith.constant 0 : index
    %289 = vector.load %arg8[%c1_117, %c0_118, %c0_119] : memref<2x1x32xf32, #tpu.memory_space<vmem>>, vector<1x1x32xf32>
    %290 = vector.shape_cast %289 : vector<1x1x32xf32> to vector<1x32xf32>
    %cst_120 = arith.constant dense<0.000000e+00> : vector<18xf32>
    %291 = vector.multi_reduction <add>, %286, %cst_120 [1] : vector<18x32xf32> to vector<18xf32>
    %292 = vector.shape_cast %291 : vector<18xf32> to vector<18x1xf32>
    %cst_121 = arith.constant 3.200000e+01 : f32
    %293 = vector.broadcast %cst_121 : f32 to vector<18x1xf32>
    %294 = arith.divf %292, %293 : vector<18x1xf32>
    %295 = vector.broadcast %294 : vector<18x1xf32> to vector<18x32xf32>
    %296 = arith.subf %286, %295 : vector<18x32xf32>
    %297 = arith.mulf %296, %296 : vector<18x32xf32>
    %cst_122 = arith.constant dense<0.000000e+00> : vector<18xf32>
    %298 = vector.multi_reduction <add>, %297, %cst_122 [1] : vector<18x32xf32> to vector<18xf32>
    %299 = vector.shape_cast %298 : vector<18xf32> to vector<18x1xf32>
    %cst_123 = arith.constant 3.200000e+01 : f32
    %300 = vector.broadcast %cst_123 : f32 to vector<18x1xf32>
    %301 = arith.divf %299, %300 : vector<18x1xf32>
    %302 = vector.broadcast %294 : vector<18x1xf32> to vector<18x32xf32>
    %303 = arith.subf %286, %302 : vector<18x32xf32>
    %cst_124 = arith.constant 9.99999974E-6 : f32
    %304 = vector.broadcast %cst_124 : f32 to vector<18x1xf32>
    %305 = arith.addf %301, %304 : vector<18x1xf32>
    %306 = math.rsqrt %305 : vector<18x1xf32>
    %307 = vector.broadcast %306 : vector<18x1xf32> to vector<18x32xf32>
    %308 = arith.mulf %303, %307 : vector<18x32xf32>
    %309 = vector.broadcast %288 : vector<1x32xf32> to vector<18x32xf32>
    %310 = arith.mulf %308, %309 : vector<18x32xf32>
    %311 = vector.broadcast %290 : vector<1x32xf32> to vector<18x32xf32>
    %312 = arith.addf %310, %311 : vector<18x32xf32>
    %c1_125 = arith.constant 1 : index
    %c0_126 = arith.constant 0 : index
    %c0_127 = arith.constant 0 : index
    %313 = vector.load %arg9[%c1_125, %c0_126, %c0_127] : memref<2x32x64xf32, #tpu.memory_space<vmem>>, vector<1x32x64xf32>
    %314 = vector.shape_cast %313 : vector<1x32x64xf32> to vector<32x64xf32>
    %cst_128 = arith.constant dense<0.000000e+00> : vector<18x64xf32>
    %315 = tpu.matmul %312, %314, %cst_128 {dimension_numbers = #tpu.dot_dimension_numbers<[1], [0], [0], [1], [0, 0, 1, 1], [], []>} : vector<18x32xf32>, vector<32x64xf32>, vector<18x64xf32> -> vector<18x64xf32>
    %c1_129 = arith.constant 1 : index
    %c0_130 = arith.constant 0 : index
    %c0_131 = arith.constant 0 : index
    %316 = vector.load %arg10[%c1_129, %c0_130, %c0_131] : memref<2x1x64xf32, #tpu.memory_space<vmem>>, vector<1x1x64xf32>
    %317 = vector.shape_cast %316 : vector<1x1x64xf32> to vector<1x64xf32>
    %318 = vector.broadcast %317 : vector<1x64xf32> to vector<18x64xf32>
    %319 = arith.addf %315, %318 : vector<18x64xf32>
    %cst_132 = arith.constant 5.000000e-01 : f32
    %320 = vector.broadcast %cst_132 : f32 to vector<18x64xf32>
    %321 = arith.mulf %320, %319 : vector<18x64xf32>
    %cst_133 = arith.constant 0.707106769 : f32
    %322 = vector.broadcast %cst_133 : f32 to vector<18x64xf32>
    %323 = arith.mulf %319, %322 : vector<18x64xf32>
    %324 = math.erf %323 : vector<18x64xf32>
    %cst_134 = arith.constant 1.000000e+00 : f32
    %325 = vector.broadcast %cst_134 : f32 to vector<18x64xf32>
    %326 = arith.addf %325, %324 : vector<18x64xf32>
    %327 = arith.mulf %321, %326 : vector<18x64xf32>
    %c1_135 = arith.constant 1 : index
    %c0_136 = arith.constant 0 : index
    %c0_137 = arith.constant 0 : index
    %328 = vector.load %arg11[%c1_135, %c0_136, %c0_137] : memref<2x64x32xf32, #tpu.memory_space<vmem>>, vector<1x64x32xf32>
    %329 = vector.shape_cast %328 : vector<1x64x32xf32> to vector<64x32xf32>
    %cst_138 = arith.constant dense<0.000000e+00> : vector<18x32xf32>
    %330 = tpu.matmul %327, %329, %cst_138 {dimension_numbers = #tpu.dot_dimension_numbers<[1], [0], [0], [1], [0, 0, 1, 1], [], []>} : vector<18x64xf32>, vector<64x32xf32>, vector<18x32xf32> -> vector<18x32xf32>
    %c1_139 = arith.constant 1 : index
    %c0_140 = arith.constant 0 : index
    %c0_141 = arith.constant 0 : index
    %331 = vector.load %arg12[%c1_139, %c0_140, %c0_141] : memref<2x1x32xf32, #tpu.memory_space<vmem>>, vector<1x1x32xf32>
    %332 = vector.shape_cast %331 : vector<1x1x32xf32> to vector<1x32xf32>
    %333 = vector.broadcast %332 : vector<1x32xf32> to vector<18x32xf32>
    %334 = arith.addf %330, %333 : vector<18x32xf32>
    %335 = arith.addf %312, %334 : vector<18x32xf32>
    %c1_142 = arith.constant 1 : index
    %c0_143 = arith.constant 0 : index
    %c0_144 = arith.constant 0 : index
    %336 = vector.load %arg13[%c1_142, %c0_143, %c0_144] : memref<2x1x32xf32, #tpu.memory_space<vmem>>, vector<1x1x32xf32>
    %337 = vector.shape_cast %336 : vector<1x1x32xf32> to vector<1x32xf32>
    %c1_145 = arith.constant 1 : index
    %c0_146 = arith.constant 0 : index
    %c0_147 = arith.constant 0 : index
    %338 = vector.load %arg14[%c1_145, %c0_146, %c0_147] : memref<2x1x32xf32, #tpu.memory_space<vmem>>, vector<1x1x32xf32>
    %339 = vector.shape_cast %338 : vector<1x1x32xf32> to vector<1x32xf32>
    %cst_148 = arith.constant dense<0.000000e+00> : vector<18xf32>
    %340 = vector.multi_reduction <add>, %335, %cst_148 [1] : vector<18x32xf32> to vector<18xf32>
    %341 = vector.shape_cast %340 : vector<18xf32> to vector<18x1xf32>
    %cst_149 = arith.constant 3.200000e+01 : f32
    %342 = vector.broadcast %cst_149 : f32 to vector<18x1xf32>
    %343 = arith.divf %341, %342 : vector<18x1xf32>
    %344 = vector.broadcast %343 : vector<18x1xf32> to vector<18x32xf32>
    %345 = arith.subf %335, %344 : vector<18x32xf32>
    %346 = arith.mulf %345, %345 : vector<18x32xf32>
    %cst_150 = arith.constant dense<0.000000e+00> : vector<18xf32>
    %347 = vector.multi_reduction <add>, %346, %cst_150 [1] : vector<18x32xf32> to vector<18xf32>
    %348 = vector.shape_cast %347 : vector<18xf32> to vector<18x1xf32>
    %cst_151 = arith.constant 3.200000e+01 : f32
    %349 = vector.broadcast %cst_151 : f32 to vector<18x1xf32>
    %350 = arith.divf %348, %349 : vector<18x1xf32>
    %351 = vector.broadcast %343 : vector<18x1xf32> to vector<18x32xf32>
    %352 = arith.subf %335, %351 : vector<18x32xf32>
    %cst_152 = arith.constant 9.99999974E-6 : f32
    %353 = vector.broadcast %cst_152 : f32 to vector<18x1xf32>
    %354 = arith.addf %350, %353 : vector<18x1xf32>
    %355 = math.rsqrt %354 : vector<18x1xf32>
    %356 = vector.broadcast %355 : vector<18x1xf32> to vector<18x32xf32>
    %357 = arith.mulf %352, %356 : vector<18x32xf32>
    %358 = vector.broadcast %337 : vector<1x32xf32> to vector<18x32xf32>
    %359 = arith.mulf %357, %358 : vector<18x32xf32>
    %360 = vector.broadcast %339 : vector<1x32xf32> to vector<18x32xf32>
    %361 = arith.addf %359, %360 : vector<18x32xf32>
    %362 = vector.shape_cast %361 : vector<18x32xf32> to vector<2x9x32xf32>
    %363 = vector.extract_strided_slice %362 {offsets = [0, 0, 0], sizes = [2, 1, 32], strides = [1, 1, 1]} : vector<2x9x32xf32> to vector<2x1x32xf32>
    %364 = vector.shape_cast %363 : vector<2x1x32xf32> to vector<2x32xf32>
    %c0_153 = arith.constant 0 : index
    %c0_154 = arith.constant 0 : index
    %365 = vector.load %arg15[%c0_153, %c0_154] : memref<32x1xf32, #tpu.memory_space<vmem>>, vector<32x1xf32>
    %cst_155 = arith.constant dense<0.000000e+00> : vector<2x1xf32>
    %366 = tpu.matmul %364, %365, %cst_155 {dimension_numbers = #tpu.dot_dimension_numbers<[1], [0], [0], [1], [0, 0, 1, 1], [], []>} : vector<2x32xf32>, vector<32x1xf32>, vector<2x1xf32> -> vector<2x1xf32>
    %c0_156 = arith.constant 0 : index
    %c0_157 = arith.constant 0 : index
    %367 = vector.load %arg16[%c0_156, %c0_157] : memref<1x1xf32, #tpu.memory_space<vmem>>, vector<1x1xf32>
    %368 = vector.broadcast %367 : vector<1x1xf32> to vector<2x1xf32>
    %369 = arith.addf %366, %368 : vector<2x1xf32>
    %cst_158 = arith.constant 0.000000e+00 : f32
    %370 = vector.broadcast %cst_158 : f32 to vector<2x1xf32>
    %371 = arith.subf %370, %369 : vector<2x1xf32>
    %372 = math.exp %371 : vector<2x1xf32>
    %cst_159 = arith.constant 1.000000e+00 : f32
    %373 = vector.broadcast %cst_159 : f32 to vector<2x1xf32>
    %374 = arith.addf %373, %372 : vector<2x1xf32>
    %cst_160 = arith.constant 1.000000e+00 : f32
    %375 = vector.broadcast %cst_160 : f32 to vector<2x1xf32>
    %376 = arith.divf %375, %374 : vector<2x1xf32>
    %c0_161 = arith.constant 0 : index
    %c0_162 = arith.constant 0 : index
    %377 = vector.load %arg17[%c0_161, %c0_162] : memref<2x1xf32, #tpu.memory_space<vmem>>, vector<2x1xf32>
    tpu.vector_store %arg17[%c0_161, %c0_162], %376 {strides = array<i32>} : memref<2x1xf32, #tpu.memory_space<vmem>>, vector<2x1xf32>,
    return
  }
}

</mosaic_0001>

<llo_original>
// kernel: tpu_custom_call.1
$region0: #{tpu_custom_call.1}
  #allocation0 [shape = 'u32[]', space=smem, size = 0x4, offset = 0x4, fixed_abs, tag = 'smem constant byte address 0x4 - core index']
  #allocation1 [shape = 'u32[144,128]{1,0:T(1,128)}', space=vmem, size = 0x12000, scoped, tag = 'internal scratch']
  #allocation2 [shape = 'f32[1,1]{1,0:T(1,128)S(1)}', space=vmem, size = 0x200, scoped, tag = 'scoped memory for tpu_custom_call.1']
  %s0 = inlined_call_operand.vmem [shape: f32[2,8,32], index: 0, kind: input, shape index: {}]
  %s1 = inlined_call_operand.hbm [shape: f32[1,1,32], index: 1, kind: input, shape index: {}]
  %s2 = inlined_call_operand.vmem [shape: f32[9,32], index: 2, kind: input, shape index: {}]
  %s3 = inlined_call_operand.vmem [shape: f32[2,32,96], index: 3, kind: input, shape index: {}]
  %s4 = inlined_call_operand.vmem [shape: f32[2,1,96], index: 4, kind: input, shape index: {}]
  %s5 = inlined_call_operand.vmem [shape: f32[2,4,8,32], index: 5, kind: input, shape index: {}]
  %s6 = inlined_call_operand.vmem [shape: f32[2,1,32], index: 6, kind: input, shape index: {}]
  %s7 = inlined_call_operand.vmem [shape: f32[2,1,32], index: 7, kind: input, shape index: {}]
  %s8 = inlined_call_operand.vmem [shape: f32[2,1,32], index: 8, kind: input, shape index: {}]
  %s9 = inlined_call_operand.vmem [shape: f32[2,32,64], index: 9, kind: input, shape index: {}]
  %s10 = inlined_call_operand.vmem [shape: f32[2,1,64], index: 10, kind: input, shape index: {}]
  %s11 = inlined_call_operand.vmem [shape: f32[2,64,32], index: 11, kind: input, shape index: {}]
  %s12 = inlined_call_operand.vmem [shape: f32[2,1,32], index: 12, kind: input, shape index: {}]
  %s13 = inlined_call_operand.vmem [shape: f32[2,1,32], index: 13, kind: input, shape index: {}]
  %s14 = inlined_call_operand.vmem [shape: f32[2,1,32], index: 14, kind: input, shape index: {}]
  %s15 = inlined_call_operand.vmem [shape: f32[32,1], index: 15, kind: input, shape index: {}]
  %s16 = inlined_call_operand.<no memory space> [shape: f32[1,1], index: 16, kind: input, shape index: {}]
  %s17 = inlined_call_operand.vmem [shape: f32[2,1], index: 17, kind: output, shape index: {}]
  %s18 = sld [smem:[#allocation0]]
  $region82: #{tpu_custom_call.1} parent=0
    _
  %s20 = ssub.s32 1, %s18
  %s21 = scalar_select 0, %s20, %s18
  %v22 = vstv %s16
  %23 = vst [vmem:[#allocation2] sm:$0x1] %v22
  $region1: #{tpu_custom_call.1} parent=0
    #allocation3 [shape = 'u8[512]{0}', space=vmem, size = 0x400, scoped, tag = 'input window, operand 1, single buffered']
    #allocation4 [shape = 's32[1]{0}', space=sflag, size = 0x4, scoped, tag = 'scoped memory for tpu_custom_call.1']
    %24 = vsyncpa [#allocation4], 0
    // Predicated region
    $region2: #{tpu_custom_call.1} parent=1 // pred_check
      _
    $region3: #{tpu_custom_call.1} parent=1 // pred_check_branch
      %26 = sbr.rel (0) target = $region5
    $region4: #{tpu_custom_call.1} parent=1 // pred_region
      _
    $region5: #{tpu_custom_call.1} parent=1 // pred_fallthru
      _
    // Predicated region
    $region6: #{tpu_custom_call.1} parent=1 // pred_check
      _
    $region7: #{tpu_custom_call.1} parent=1 // pred_check_branch
      %28 = sbr.rel (0) target = $region9
    $region8: #{tpu_custom_call.1} parent=1 // pred_region
      %s30 = ssub.s32 16, 16
      %31 = vsyncadd [#allocation4], %s30
      %s33 = sshll.u32 [#allocation3], 4
      %s34 = int_to_ptr.vmem [resolvable:$true] %s33
      %36 = dma.hbm_to_vmem [thread:$0]  %s1, 16, %s34, [#allocation4]
    $region9: #{tpu_custom_call.1} parent=1 // pred_fallthru
      _
    // Predicated region
    $region10: #{tpu_custom_call.1} parent=1 // pred_check
      _
    $region11: #{tpu_custom_call.1} parent=1 // pred_check_branch
      %38 = sbr.rel (0) target = $region13
    $region12: #{tpu_custom_call.1} parent=1 // pred_region
      _
    $region13: #{tpu_custom_call.1} parent=1 // pred_fallthru
      _
    // Predicated region
    $region14: #{tpu_custom_call.1} parent=1 // pred_check
      _
    $region15: #{tpu_custom_call.1} parent=1 // pred_check_branch
      %40 = sbr.rel (0) target = $region17
    $region16: #{tpu_custom_call.1} parent=1 // pred_region
      _
    $region17: #{tpu_custom_call.1} parent=1 // pred_fallthru
      _
    // Predicated region
    $region18: #{tpu_custom_call.1} parent=1 // pred_check
      _
    $region19: #{tpu_custom_call.1} parent=1 // pred_check_branch
      %42 = sbr.rel (0) target = $region21
    $region20: #{tpu_custom_call.1} parent=1 // pred_region
      _
    $region21: #{tpu_custom_call.1} parent=1 // pred_fallthru
      _
    // Predicated region
    $region22: #{tpu_custom_call.1} parent=1 // pred_check
      _
    $region23: #{tpu_custom_call.1} parent=1 // pred_check_branch
      %44 = sbr.rel (0) target = $region25
    $region24: #{tpu_custom_call.1} parent=1 // pred_region
      _
    $region25: #{tpu_custom_call.1} parent=1 // pred_fallthru
      _
    // Predicated region
    $region26: #{tpu_custom_call.1} parent=1 // pred_check
      _
    $region27: #{tpu_custom_call.1} parent=1 // pred_check_branch
      %46 = sbr.rel (0) target = $region29
    $region28: #{tpu_custom_call.1} parent=1 // pred_region
      _
    $region29: #{tpu_custom_call.1} parent=1 // pred_fallthru
      _
    // Predicated region
    $region30: #{tpu_custom_call.1} parent=1 // pred_check
      _
    $region31: #{tpu_custom_call.1} parent=1 // pred_check_branch
      %48 = sbr.rel (0) target = $region33
    $region32: #{tpu_custom_call.1} parent=1 // pred_region
      _
    $region33: #{tpu_custom_call.1} parent=1 // pred_fallthru
      _
    // Predicated region
    $region34: #{tpu_custom_call.1} parent=1 // pred_check
      _
    $region35: #{tpu_custom_call.1} parent=1 // pred_check_branch
      %50 = sbr.rel (0) target = $region37
    $region36: #{tpu_custom_call.1} parent=1 // pred_region
      _
    $region37: #{tpu_custom_call.1} parent=1 // pred_fallthru
      _
    // Predicated region
    $region38: #{tpu_custom_call.1} parent=1 // pred_check
      _
    $region39: #{tpu_custom_call.1} parent=1 // pred_check_branch
      %52 = sbr.rel (0) target = $region41
    $region40: #{tpu_custom_call.1} parent=1 // pred_region
      _
    $region41: #{tpu_custom_call.1} parent=1 // pred_fallthru
      _
    // Predicated region
    $region42: #{tpu_custom_call.1} parent=1 // pred_check
      _
    $region43: #{tpu_custom_call.1} parent=1 // pred_check_branch
      %54 = sbr.rel (0) target = $region45
    $region44: #{tpu_custom_call.1} parent=1 // pred_region
      _
    $region45: #{tpu_custom_call.1} parent=1 // pred_fallthru
      _
    // Predicated region
    $region46: #{tpu_custom_call.1} parent=1 // pred_check
      _
    $region47: #{tpu_custom_call.1} parent=1 // pred_check_branch
      %56 = sbr.rel (0) target = $region49
    $region48: #{tpu_custom_call.1} parent=1 // pred_region
      _
    $region49: #{tpu_custom_call.1} parent=1 // pred_fallthru
      _
    // Predicated region
    $region50: #{tpu_custom_call.1} parent=1 // pred_check
      _
    $region51: #{tpu_custom_call.1} parent=1 // pred_check_branch
      %58 = sbr.rel (0) target = $region53
    $region52: #{tpu_custom_call.1} parent=1 // pred_region
      _
    $region53: #{tpu_custom_call.1} parent=1 // pred_fallthru
      _
    // Predicated region
    $region54: #{tpu_custom_call.1} parent=1 // pred_check
      _
    $region55: #{tpu_custom_call.1} parent=1 // pred_check_branch
      %60 = sbr.rel (0) target = $region57
    $region56: #{tpu_custom_call.1} parent=1 // pred_region
      _
    $region57: #{tpu_custom_call.1} parent=1 // pred_fallthru
      _
    // Predicated region
    $region58: #{tpu_custom_call.1} parent=1 // pred_check
      _
    $region59: #{tpu_custom_call.1} parent=1 // pred_check_branch
      %62 = sbr.rel (0) target = $region61
    $region60: #{tpu_custom_call.1} parent=1 // pred_region
      _
    $region61: #{tpu_custom_call.1} parent=1 // pred_fallthru
      _
    // Predicated region
    $region62: #{tpu_custom_call.1} parent=1 // pred_check
      _
    $region63: #{tpu_custom_call.1} parent=1 // pred_check_branch
      %64 = sbr.rel (0) target = $region65
    $region64: #{tpu_custom_call.1} parent=1 // pred_region
      _
    $region65: #{tpu_custom_call.1} parent=1 // pred_fallthru
      _
    // Predicated region
    $region66: #{tpu_custom_call.1} parent=1 // pred_check
      _
    $region67: #{tpu_custom_call.1} parent=1 // pred_check_branch
      %66 = sbr.rel (0) target = $region69
    $region68: #{tpu_custom_call.1} parent=1 // pred_region
      _
    $region69: #{tpu_custom_call.1} parent=1 // pred_fallthru
      _
    // Predicated region
    $region70: #{tpu_custom_call.1} parent=1 // pred_check
      _
    $region71: #{tpu_custom_call.1} parent=1 // pred_check_branch
      %68 = sbr.rel (0) target = $region73
    $region72: #{tpu_custom_call.1} parent=1 // pred_region
      %69 = dma.done [#allocation4], 16
    $region73: #{tpu_custom_call.1} parent=1 // pred_fallthru
      _
    %v70 = vld [vmem:[#allocation3] sm:$0x1]
    %v71 = vld [vmem:[%s0] sm:$0xff]
    %v72 = vld [vmem:[%s0 + $0x8] sm:$0xff]
    %v75 = vrot.slane %v71, 7
    %v76 = vrot.slane %v72, 7
    %vm79 = vcmask 1040384
    %v80 = vsel %vm79, %v70, %v75
    %v81 = vsel %vm79, %v70, %v76
    %v82 = vld [vmem:[%s2] sm:$0xff]
    %v83 = vld [vmem:[%s2 + $0x8] sm:$0x1]
    %v84 = vadd.f32 %v80, %v82
    %v85 = vadd.f32 %v75, %v83
    %v86 = vadd.f32 %v81, %v82
    %v87 = vadd.f32 %v76, %v83
    %v92 = vcombine.high %v84, %v84
    %v94 = vunpack.c.l.s4 1966171168
    %v95 = vunpack.c.0.s8 %v94
    %v96 = vlaneseq
    %v97 = vshrl.u32 %v96, 7
    %v98 = vsub.s32 %v95, %v97
    %v99 = vrot.slane %v84, %v98
    %v101 = vunpack.c.l.s4 1966171168
    %v102 = vunpack.c.0.s8 %v101
    %v103 = vlaneseq
    %v104 = vshrl.u32 %v103, 7
    %v105 = vsub.s32 %v102, %v104
    %v106 = vrot.slane %v92, %v105
    %v107 = vcombine.high %v99, %v99
    %v108 = vcombine.high %v106, %v106
    %v110 = vunpack.c.l.s4 1966171168
    %v111 = vunpack.c.0.s8 %v110
    %v112 = vlaneseq
    %v113 = vshrl.u32 %v112, 7
    %v114 = vsub.s32 %v111, %v113
    %v115 = vrot.slane %v99, %v114
    %v117 = vunpack.c.l.s4 1966171168
    %v118 = vunpack.c.0.s8 %v117
    %v119 = vlaneseq
    %v120 = vshrl.u32 %v119, 7
    %v121 = vsub.s32 %v118, %v120
    %v122 = vrot.slane %v106, %v121
    %v124 = vunpack.c.l.s4 1966171168
    %v125 = vunpack.c.0.s8 %v124
    %v126 = vlaneseq
    %v127 = vshrl.u32 %v126, 7
    %v128 = vsub.s32 %v125, %v127
    %v129 = vrot.slane %v107, %v128
    %v131 = vunpack.c.l.s4 1966171168
    %v132 = vunpack.c.0.s8 %v131
    %v133 = vlaneseq
    %v134 = vshrl.u32 %v133, 7
    %v135 = vsub.s32 %v132, %v134
    %v136 = vrot.slane %v108, %v135
    %v137 = vcombine.high %v115, %v115
    %v138 = vcombine.high %v122, %v122
    %v139 = vcombine.high %v129, %v129
    %v140 = vcombine.high %v136, %v136
    %v142 = vunpack.c.l.s4 1966171168
    %v143 = vunpack.c.0.s8 %v142
    %v144 = vlaneseq
    %v145 = vshrl.u32 %v144, 7
    %v146 = vsub.s32 %v143, %v145
    %v147 = vrot.slane %v85, %v146
    %v149 = vunpack.c.l.s4 1966171168
    %v150 = vunpack.c.0.s8 %v149
    %v151 = vlaneseq
    %v152 = vshrl.u32 %v151, 7
    %v153 = vsub.s32 %v150, %v152
    %v154 = vrot.slane %v147, %v153
    %v155 = vcombine.high %v86, %v86
    %v157 = vunpack.c.l.s4 1966171168
    %v158 = vunpack.c.0.s8 %v157
    %v159 = vlaneseq
    %v160 = vshrl.u32 %v159, 7
    %v161 = vsub.s32 %v158, %v160
    %v162 = vrot.slane %v86, %v161
    %v164 = vunpack.c.l.s4 1966171168
    %v165 = vunpack.c.0.s8 %v164
    %v166 = vlaneseq
    %v167 = vshrl.u32 %v166, 7
    %v168 = vsub.s32 %v165, %v167
    %v169 = vrot.slane %v155, %v168
    %v170 = vcombine.high %v162, %v162
    %v171 = vcombine.high %v169, %v169
    %v173 = vunpack.c.l.s4 1966171168
    %v174 = vunpack.c.0.s8 %v173
    %v175 = vlaneseq
    %v176 = vshrl.u32 %v175, 7
    %v177 = vsub.s32 %v174, %v176
    %v178 = vrot.slane %v162, %v177
    %v180 = vunpack.c.l.s4 1966171168
    %v181 = vunpack.c.0.s8 %v180
    %v182 = vlaneseq
    %v183 = vshrl.u32 %v182, 7
    %v184 = vsub.s32 %v181, %v183
    %v185 = vrot.slane %v169, %v184
    %v187 = vunpack.c.l.s4 1966171168
    %v188 = vunpack.c.0.s8 %v187
    %v189 = vlaneseq
    %v190 = vshrl.u32 %v189, 7
    %v191 = vsub.s32 %v188, %v190
    %v192 = vrot.slane %v170, %v191
    %v194 = vunpack.c.l.s4 1966171168
    %v195 = vunpack.c.0.s8 %v194
    %v196 = vlaneseq
    %v197 = vshrl.u32 %v196, 7
    %v198 = vsub.s32 %v195, %v197
    %v199 = vrot.slane %v171, %v198
    %v200 = vcombine.high %v178, %v178
    %v201 = vcombine.high %v185, %v185
    %v202 = vcombine.high %v192, %v192
    %v203 = vcombine.high %v199, %v199
    %v205 = vunpack.c.l.s4 1966171168
    %v206 = vunpack.c.0.s8 %v205
    %v207 = vlaneseq
    %v208 = vshrl.u32 %v207, 7
    %v209 = vsub.s32 %v206, %v208
    %v210 = vrot.slane %v87, %v209
    %v212 = vunpack.c.l.s4 1966171168
    %v213 = vunpack.c.0.s8 %v212
    %v214 = vlaneseq
    %v215 = vshrl.u32 %v214, 7
    %v216 = vsub.s32 %v213, %v215
    %v217 = vrot.slane %v210, %v216
    %v236 = vld [vmem:[%s3] sm:$0xff]
    %v237 = vld [vmem:[%s3 + $0x8] sm:$0xff]
    %v238 = vld [vmem:[%s3 + $0x10] sm:$0xff]
    %v239 = vld [vmem:[%s3 + $0x18] sm:$0xff]
    %v240 = vld [vmem:[%s4] sm:$0x1]
    %v242 = vlaneseq
    %v243 = vshrl.u32 %v242, 7
    %v244 = vsub.s32 0, %v243
    %v245 = vrot.slane %v240, %v244
    %v247 = vcombine.low %v115, %v129
    %v248 = vcombine.low %v137, %v139
    %v249 = vcombine.low %v122, %v136
    %v250 = vcombine.low %v138, %v140
    %v252 = vunpack.c.l.s4 1966171168
    %v253 = vunpack.c.0.s8 %v252
    %v254 = vlaneseq
    %v255 = vshrl.u32 %v254, 7
    %v256 = vsub.s32 %v253, %v255
    %v257 = vrot.slane %v247, %v256
    %v259 = vunpack.c.l.s4 1966171168
    %v260 = vunpack.c.0.s8 %v259
    %v261 = vlaneseq
    %v262 = vshrl.u32 %v261, 7
    %v263 = vsub.s32 %v260, %v262
    %v264 = vrot.slane %v248, %v263
    %v266 = vunpack.c.l.s4 1966171168
    %v267 = vunpack.c.0.s8 %v266
    %v268 = vlaneseq
    %v269 = vshrl.u32 %v268, 7
    %v270 = vsub.s32 %v267, %v269
    %v271 = vrot.slane %v249, %v270
    %v273 = vunpack.c.l.s4 1966171168
    %v274 = vunpack.c.0.s8 %v273
    %v275 = vlaneseq
    %v276 = vshrl.u32 %v275, 7
    %v277 = vsub.s32 %v274, %v276
    %v278 = vrot.slane %v250, %v277
    %v279 = vcombine.low %v257, %v264
    %v280 = vcombine.low %v271, %v278
    %v282 = vunpack.c.l.s4 1966171168
    %v283 = vunpack.c.0.s8 %v282
    %v284 = vlaneseq
    %v285 = vshrl.u32 %v284, 7
    %v286 = vsub.s32 %v283, %v285
    %v287 = vrot.slane %v279, %v286
    %v289 = vunpack.c.l.s4 1966171168
    %v290 = vunpack.c.0.s8 %v289
    %v291 = vlaneseq
    %v292 = vshrl.u32 %v291, 7
    %v293 = vsub.s32 %v290, %v292
    %v294 = vrot.slane %v280, %v293
    %v295 = vcombine.low %v287, %v294
    %v296 = vcombine.low %v154, %v178
    %v297 = vcombine.low %v192, %v200
    %v298 = vcombine.low %v202, %v185
    %v299 = vcombine.low %v199, %v201
    %v301 = vunpack.c.l.s4 1966171168
    %v302 = vunpack.c.0.s8 %v301
    %v303 = vlaneseq
    %v304 = vshrl.u32 %v303, 7
    %v305 = vsub.s32 %v302, %v304
    %v306 = vrot.slane %v296, %v305
    %v308 = vunpack.c.l.s4 1966171168
    %v309 = vunpack.c.0.s8 %v308
    %v310 = vlaneseq
    %v311 = vshrl.u32 %v310, 7
    %v312 = vsub.s32 %v309, %v311
    %v313 = vrot.slane %v297, %v312
    %v315 = vunpack.c.l.s4 1966171168
    %v316 = vunpack.c.0.s8 %v315
    %v317 = vlaneseq
    %v318 = vshrl.u32 %v317, 7
    %v319 = vsub.s32 %v316, %v318
    %v320 = vrot.slane %v298, %v319
    %v322 = vunpack.c.l.s4 1966171168
    %v323 = vunpack.c.0.s8 %v322
    %v324 = vlaneseq
    %v325 = vshrl.u32 %v324, 7
    %v326 = vsub.s32 %v323, %v325
    %v327 = vrot.slane %v299, %v326
    %v328 = vcombine.low %v306, %v313
    %v329 = vcombine.low %v320, %v327
    %v331 = vunpack.c.l.s4 1966171168
    %v332 = vunpack.c.0.s8 %v331
    %v333 = vlaneseq
    %v334 = vshrl.u32 %v333, 7
    %v335 = vsub.s32 %v332, %v334
    %v336 = vrot.slane %v328, %v335
    %v338 = vunpack.c.l.s4 1966171168
    %v339 = vunpack.c.0.s8 %v338
    %v340 = vlaneseq
    %v341 = vshrl.u32 %v340, 7
    %v342 = vsub.s32 %v339, %v341
    %v343 = vrot.slane %v329, %v342
    %v344 = vcombine.low %v336, %v343
    %v345 = vcombine.low %v203, %v217
    %v347 = vunpack.c.l.s4 1966171168
    %v348 = vunpack.c.0.s8 %v347
    %v349 = vlaneseq
    %v350 = vshrl.u32 %v349, 7
    %v351 = vsub.s32 %v348, %v350
    %v352 = vrot.slane %v345, %v351
    %v354 = vunpack.c.l.s4 1966171168
    %v355 = vunpack.c.0.s8 %v354
    %v356 = vlaneseq
    %v357 = vshrl.u32 %v356, 7
    %v358 = vsub.s32 %v355, %v357
    %v359 = vrot.slane %v352, %v358
    %vm360 = vcmask 261120
    %v361 = vsel %vm360, %v295, 0
    %v363 = vsel %vm360, %v344, 0
    %v365 = vsel %vm360, %v359, 0
    %367 = vmatprep.subr.mxu0 0.0
    %368 = vmatpush1.msra.mxu0 0.0
    %369 = vmatprep.subr.mxu0 0.0
    %370 = vmatpush1.msra.mxu0 0.0
    %371 = vmatprep.subr.mxu0 0.0
    %372 = vmatpush1.msra.mxu0 0.0
    %373 = vmatprep.subr.mxu0 0.0
    %374 = vmatpush1.msra.mxu0 0.0
    %375 = vmatprep.subr.mxu0 0.0
    %376 = vmatpush1.msra.mxu0 0.0
    %377 = vmatprep.subr.mxu0 0.0
    %378 = vmatpush1.msra.mxu0 0.0
    %379 = vmatprep.subr.mxu0 0.0
    %380 = vmatpush1.msra.mxu0 0.0
    %381 = vmatprep.subr.mxu0 0.0
    %382 = vmatpush1.msra.mxu0 0.0
    %383 = vmatprep.subr.mxu0 0.0
    %384 = vmatpush1.msra.mxu0 0.0
    %385 = vmatprep.subr.mxu0 0.0
    %386 = vmatpush1.msra.mxu0 0.0
    %387 = vmatprep.subr.mxu0 0.0
    %388 = vmatpush1.msra.mxu0 0.0
    %389 = vmatprep.subr.mxu0 0.0
    %390 = vmatpush1.msra.mxu0 0.0
    %391 = vmatprep.subr.mxu0 0.0
    %392 = vmatpush1.msra.mxu0 %v239
    %393 = vmatprep.subr.mxu0 0.0
    %394 = vmatpush1.msra.mxu0 %v238
    %395 = vmatprep.subr.mxu0 0.0
    %396 = vmatpush1.msra.mxu0 %v237
    %397 = vmatprep.subr.mxu0 0.0
    %398 = vmatpush1.msra.mxu0 %v236
    %399 = vmatprep.subr.mxu0 0.0
    %400 = vmatpush2.msra.mxu0 0.0
    %401 = vmatprep.subr.mxu0 0.0
    %402 = vmatpush2.msra.mxu0 0.0
    %403 = vmatprep.subr.mxu0 0.0
    %404 = vmatpush2.msra.mxu0 0.0
    %405 = vmatprep.subr.mxu0 0.0
    %406 = vmatpush2.msra.mxu0 0.0
    %407 = vmatprep.subr.mxu0 0.0
    %408 = vmatpush2.msra.mxu0 0.0
    %409 = vmatprep.subr.mxu0 0.0
    %410 = vmatpush2.msra.mxu0 0.0
    %411 = vmatprep.subr.mxu0 0.0
    %412 = vmatpush2.msra.mxu0 0.0
    %413 = vmatprep.subr.mxu0 0.0
    %414 = vmatpush2.msra.mxu0 0.0
    %415 = vmatprep.subr.mxu0 0.0
    %416 = vmatpush2.msra.mxu0 0.0
    %417 = vmatprep.subr.mxu0 0.0
    %418 = vmatpush2.msra.mxu0 0.0
    %419 = vmatprep.subr.mxu0 0.0
    %420 = vmatpush2.msra.mxu0 0.0
    %421 = vmatprep.subr.mxu0 0.0
    %422 = vmatpush2.msra.mxu0 0.0
    %423 = vmatprep.subr.mxu0 0.0
    %424 = vmatpush2.msra.mxu0 0.0
    %425 = vmatprep.subr.mxu0 0.0
    %426 = vmatpush2.msra.mxu0 0.0
    %427 = vmatprep.subr.mxu0 0.0
    %428 = vmatpush2.msra.mxu0 0.0
    %429 = vmatprep.subr.mxu0 0.0
    %430 = vmatpush2.msra.mxu0 0.0
    %431 = vmatprep.mubr.f32.mxu0 0.0
    %432 = vmatmul.mubr.f32.gmra.mxu0 %v361
    %v433 = vpop.f32.mrf.mxu0
    %v434 = vadd.f32 %v245, %v433
    %v435 = vpop.f32.mrf.mxu0
    %436 = vmatprep.mubr.f32.mxu0 0.0
    %437 = vmatmul.mubr.f32.gmra.mxu0 %v363
    %v438 = vpop.f32.mrf.mxu0
    %v439 = vadd.f32 %v245, %v438
    %v440 = vpop.f32.mrf.mxu0
    %441 = vmatprep.mubr.f32.mxu0 0.0
    %442 = vmatmul.mubr.f32.gmra.mxu0 %v365
    %v443 = vpop.f32.mrf.mxu0
    %v444 = vadd.f32 %v245, %v443
    %v445 = vpop.f32.mrf.mxu0
    %446 = vdwg.mxu0
    %v450 = vcombine.high %v434, %v434
    %v452 = vunpack.c.l.s4 1966171168
    %v453 = vunpack.c.0.s8 %v452
    %v454 = vlaneseq
    %v455 = vshrl.u32 %v454, 7
    %v456 = vsub.s32 %v453, %v455
    %v457 = vrot.slane %v434, %v456
    %v459 = vunpack.c.l.s4 1966171168
    %v460 = vunpack.c.0.s8 %v459
    %v461 = vlaneseq
    %v462 = vshrl.u32 %v461, 7
    %v463 = vsub.s32 %v460, %v462
    %v464 = vrot.slane %v450, %v463
    %v465 = vcombine.high %v457, %v457
    %v466 = vcombine.high %v464, %v464
    %v468 = vunpack.c.l.s4 1966171168
    %v469 = vunpack.c.0.s8 %v468
    %v470 = vlaneseq
    %v471 = vshrl.u32 %v470, 7
    %v472 = vsub.s32 %v469, %v471
    %v473 = vrot.slane %v457, %v472
    %v475 = vunpack.c.l.s4 1966171168
    %v476 = vunpack.c.0.s8 %v475
    %v477 = vlaneseq
    %v478 = vshrl.u32 %v477, 7
    %v479 = vsub.s32 %v476, %v478
    %v480 = vrot.slane %v464, %v479
    %v482 = vunpack.c.l.s4 1966171168
    %v483 = vunpack.c.0.s8 %v482
    %v484 = vlaneseq
    %v485 = vshrl.u32 %v484, 7
    %v486 = vsub.s32 %v483, %v485
    %v487 = vrot.slane %v465, %v486
    %v489 = vunpack.c.l.s4 1966171168
    %v490 = vunpack.c.0.s8 %v489
    %v491 = vlaneseq
    %v492 = vshrl.u32 %v491, 7
    %v493 = vsub.s32 %v490, %v492
    %v494 = vrot.slane %v466, %v493
    %v495 = vcombine.high %v473, %v473
    %v496 = vcombine.high %v480, %v480
    %v497 = vcombine.high %v487, %v487
    %v498 = vcombine.high %v494, %v494
    %v499 = vcombine.high %v439, %v439
    %v501 = vunpack.c.l.s4 1966171168
    %v502 = vunpack.c.0.s8 %v501
    %v503 = vlaneseq
    %v504 = vshrl.u32 %v503, 7
    %v505 = vsub.s32 %v502, %v504
    %v506 = vrot.slane %v439, %v505
    %v508 = vunpack.c.l.s4 1966171168
    %v509 = vunpack.c.0.s8 %v508
    %v510 = vlaneseq
    %v511 = vshrl.u32 %v510, 7
    %v512 = vsub.s32 %v509, %v511
    %v513 = vrot.slane %v499, %v512
    %v514 = vcombine.high %v506, %v506
    %v515 = vcombine.high %v513, %v513
    %v517 = vunpack.c.l.s4 1966171168
    %v518 = vunpack.c.0.s8 %v517
    %v519 = vlaneseq
    %v520 = vshrl.u32 %v519, 7
    %v521 = vsub.s32 %v518, %v520
    %v522 = vrot.slane %v506, %v521
    %v524 = vunpack.c.l.s4 1966171168
    %v525 = vunpack.c.0.s8 %v524
    %v526 = vlaneseq
    %v527 = vshrl.u32 %v526, 7
    %v528 = vsub.s32 %v525, %v527
    %v529 = vrot.slane %v513, %v528
    %v531 = vunpack.c.l.s4 1966171168
    %v532 = vunpack.c.0.s8 %v531
    %v533 = vlaneseq
    %v534 = vshrl.u32 %v533, 7
    %v535 = vsub.s32 %v532, %v534
    %v536 = vrot.slane %v514, %v535
    %v538 = vunpack.c.l.s4 1966171168
    %v539 = vunpack.c.0.s8 %v538
    %v540 = vlaneseq
    %v541 = vshrl.u32 %v540, 7
    %v542 = vsub.s32 %v539, %v541
    %v543 = vrot.slane %v515, %v542
    %v544 = vcombine.high %v522, %v522
    %v545 = vcombine.high %v529, %v529
    %v546 = vcombine.high %v536, %v536
    %v547 = vcombine.high %v543, %v543
    %v549 = vunpack.c.l.s4 1966171168
    %v550 = vunpack.c.0.s8 %v549
    %v551 = vlaneseq
    %v552 = vshrl.u32 %v551, 7
    %v553 = vsub.s32 %v550, %v552
    %v554 = vrot.slane %v444, %v553
    %v555 = vcombine.high %v554, %v554
    %v557 = vunpack.c.l.s4 1966171168
    %v558 = vunpack.c.0.s8 %v557
    %v559 = vlaneseq
    %v560 = vshrl.u32 %v559, 7
    %v561 = vsub.s32 %v558, %v560
    %v562 = vrot.slane %v554, %v561
    %v564 = vunpack.c.l.s4 1966171168
    %v565 = vunpack.c.0.s8 %v564
    %v566 = vlaneseq
    %v567 = vshrl.u32 %v566, 7
    %v568 = vsub.s32 %v565, %v567
    %v569 = vrot.slane %v555, %v568
    %v570 = vld [vmem:[%s5] sm:$0xff]
    %v571 = vld [vmem:[%s5 + $0x8] sm:$0xff]
    %v572 = vld [vmem:[%s5 + $0x10] sm:$0xff]
    %v573 = vld [vmem:[%s5 + $0x18] sm:$0xff]
    %v574 = vcombine.low %v473, %v487
    %v575 = vcombine.low %v495, %v497
    %v576 = vcombine.low %v480, %v494
    %v577 = vcombine.low %v496, %v498
    %v579 = vunpack.c.l.s4 1966171168
    %v580 = vunpack.c.0.s8 %v579
    %v581 = vlaneseq
    %v582 = vshrl.u32 %v581, 7
    %v583 = vsub.s32 %v580, %v582
    %v584 = vrot.slane %v574, %v583
    %v586 = vunpack.c.l.s4 1966171168
    %v587 = vunpack.c.0.s8 %v586
    %v588 = vlaneseq
    %v589 = vshrl.u32 %v588, 7
    %v590 = vsub.s32 %v587, %v589
    %v591 = vrot.slane %v575, %v590
    %v593 = vunpack.c.l.s4 1966171168
    %v594 = vunpack.c.0.s8 %v593
    %v595 = vlaneseq
    %v596 = vshrl.u32 %v595, 7
    %v597 = vsub.s32 %v594, %v596
    %v598 = vrot.slane %v576, %v597
    %v600 = vunpack.c.l.s4 1966171168
    %v601 = vunpack.c.0.s8 %v600
    %v602 = vlaneseq
    %v603 = vshrl.u32 %v602, 7
    %v604 = vsub.s32 %v601, %v603
    %v605 = vrot.slane %v577, %v604
    %v606 = vcombine.low %v584, %v591
    %v607 = vcombine.low %v598, %v605
    %v609 = vunpack.c.l.s4 1966171168
    %v610 = vunpack.c.0.s8 %v609
    %v611 = vlaneseq
    %v612 = vshrl.u32 %v611, 7
    %v613 = vsub.s32 %v610, %v612
    %v614 = vrot.slane %v606, %v613
    %v616 = vunpack.c.l.s4 1966171168
    %v617 = vunpack.c.0.s8 %v616
    %v618 = vlaneseq
    %v619 = vshrl.u32 %v618, 7
    %v620 = vsub.s32 %v617, %v619
    %v621 = vrot.slane %v607, %v620
    %v622 = vcombine.low %v614, %v621
    %v624 = vunpack.c.l.s4 1966171168
    %v625 = vunpack.c.0.s8 %v624
    %v626 = vlaneseq
    %v627 = vshrl.u32 %v626, 7
    %v628 = vsub.s32 %v625, %v627
    %v629 = vrot.slane %v522, %v628
    %v631 = vunpack.c.l.s4 1966171168
    %v632 = vunpack.c.0.s8 %v631
    %v633 = vlaneseq
    %v634 = vshrl.u32 %v633, 7
    %v635 = vsub.s32 %v632, %v634
    %v636 = vrot.slane %v629, %v635
    %637 = vrot.lane.b32.xlu0 %v622, 96
    %v638 = vpop.permute.xlu0 %637
    %639 = vrot.lane.b32.xlu0 %v636, 96
    %v640 = vpop.permute.xlu0 %639
    %vm641 = vcmask 64512
    %v642 = vsel %vm641, %v622, 0
    %v644 = vsel %vm641, %v636, 0
    %v646 = vsel %vm641, %v638, 0
    %v648 = vsel %vm641, %v640, 0
    %650 = vmatprep.subr.mxu0 0.0
    %651 = vmatpush1.xpose.msra.mxu0 0.0
    %652 = vmatprep.subr.mxu0 0.0
    %653 = vmatpush1.xpose.msra.mxu0 0.0
    %654 = vmatprep.subr.mxu0 0.0
    %655 = vmatpush1.xpose.msra.mxu0 0.0
    %656 = vmatprep.subr.mxu0 0.0
    %657 = vmatpush1.xpose.msra.mxu0 0.0
    %658 = vmatprep.subr.mxu0 0.0
    %659 = vmatpush1.xpose.msra.mxu0 0.0
    %660 = vmatprep.subr.mxu0 0.0
    %661 = vmatpush1.xpose.msra.mxu0 0.0
    %662 = vmatprep.subr.mxu0 0.0
    %663 = vmatpush1.xpose.msra.mxu0 0.0
    %664 = vmatprep.subr.mxu0 0.0
    %665 = vmatpush1.xpose.msra.mxu0 0.0
    %666 = vmatprep.subr.mxu0 0.0
    %667 = vmatpush1.xpose.msra.mxu0 0.0
    %668 = vmatprep.subr.mxu0 0.0
    %669 = vmatpush1.xpose.msra.mxu0 0.0
    %670 = vmatprep.subr.mxu0 0.0
    %671 = vmatpush1.xpose.msra.mxu0 0.0
    %672 = vmatprep.subr.mxu0 0.0
    %673 = vmatpush1.xpose.msra.mxu0 0.0
    %674 = vmatprep.subr.mxu0 0.0
    %675 = vmatpush1.xpose.msra.mxu0 0.0
    %676 = vmatprep.subr.mxu0 0.0
    %677 = vmatpush1.xpose.msra.mxu0 0.0
    %678 = vmatprep.subr.mxu0 0.0
    %679 = vmatpush1.xpose.msra.mxu0 %v648
    %680 = vmatprep.subr.mxu0 0.0
    %681 = vmatpush1.xpose.msra.mxu0 %v646
    %682 = vmatprep.subr.mxu0 0.0
    %683 = vmatpush2.xpose.msra.mxu0 0.0
    %684 = vmatprep.subr.mxu0 0.0
    %685 = vmatpush2.xpose.msra.mxu0 0.0
    %686 = vmatprep.subr.mxu0 0.0
    %687 = vmatpush2.xpose.msra.mxu0 0.0
    %688 = vmatprep.subr.mxu0 0.0
    %689 = vmatpush2.xpose.msra.mxu0 0.0
    %690 = vmatprep.subr.mxu0 0.0
    %691 = vmatpush2.xpose.msra.mxu0 0.0
    %692 = vmatprep.subr.mxu0 0.0
    %693 = vmatpush2.xpose.msra.mxu0 0.0
    %694 = vmatprep.subr.mxu0 0.0
    %695 = vmatpush2.xpose.msra.mxu0 0.0
    %696 = vmatprep.subr.mxu0 0.0
    %697 = vmatpush2.xpose.msra.mxu0 0.0
    %698 = vmatprep.subr.mxu0 0.0
    %699 = vmatpush2.xpose.msra.mxu0 0.0
    %700 = vmatprep.subr.mxu0 0.0
    %701 = vmatpush2.xpose.msra.mxu0 0.0
    %702 = vmatprep.subr.mxu0 0.0
    %703 = vmatpush2.xpose.msra.mxu0 0.0
    %704 = vmatprep.subr.mxu0 0.0
    %705 = vmatpush2.xpose.msra.mxu0 0.0
    %706 = vmatprep.subr.mxu0 0.0
    %707 = vmatpush2.xpose.msra.mxu0 0.0
    %708 = vmatprep.subr.mxu0 0.0
    %709 = vmatpush2.xpose.msra.mxu0 0.0
    %710 = vmatprep.subr.mxu0 0.0
    %711 = vmatpush2.xpose.msra.mxu0 0.0
    %712 = vmatprep.subr.mxu0 0.0
    %713 = vmatpush2.xpose.msra.mxu0 0.0
    %714 = vmatprep.mubr.f32.mxu0 0.0
    %715 = vmatmul.mubr.f32.gmra.mxu0 %v642
    %v716 = vpop.f32.mrf.mxu0
    %v717 = vadd.f32 0.0, %v716
    %v718 = vpop.f32.mrf.mxu0
    %719 = vmatprep.mubr.f32.mxu0 0.0
    %720 = vmatmul.mubr.f32.gmra.mxu0 %v644
    %v721 = vpop.f32.mrf.mxu0
    %v722 = vadd.f32 0.0, %v721
    %v723 = vpop.f32.mrf.mxu0
    %724 = vdwg.mxu0
    %v725 = vcombine.low %v536, %v544
    %v726 = vcombine.low %v546, %v529
    %v727 = vcombine.low %v543, %v545
    %v728 = vcombine.low %v547, %v562
    %v730 = vunpack.c.l.s4 1966171168
    %v731 = vunpack.c.0.s8 %v730
    %v732 = vlaneseq
    %v733 = vshrl.u32 %v732, 7
    %v734 = vsub.s32 %v731, %v733
    %v735 = vrot.slane %v725, %v734
    %v737 = vunpack.c.l.s4 1966171168
    %v738 = vunpack.c.0.s8 %v737
    %v739 = vlaneseq
    %v740 = vshrl.u32 %v739, 7
    %v741 = vsub.s32 %v738, %v740
    %v742 = vrot.slane %v726, %v741
    %v744 = vunpack.c.l.s4 1966171168
    %v745 = vunpack.c.0.s8 %v744
    %v746 = vlaneseq
    %v747 = vshrl.u32 %v746, 7
    %v748 = vsub.s32 %v745, %v747
    %v749 = vrot.slane %v727, %v748
    %v751 = vunpack.c.l.s4 1966171168
    %v752 = vunpack.c.0.s8 %v751
    %v753 = vlaneseq
    %v754 = vshrl.u32 %v753, 7
    %v755 = vsub.s32 %v752, %v754
    %v756 = vrot.slane %v728, %v755
    %v757 = vcombine.low %v735, %v742
    %v758 = vcombine.low %v749, %v756
    %v760 = vunpack.c.l.s4 1966171168
    %v761 = vunpack.c.0.s8 %v760
    %v762 = vlaneseq
    %v763 = vshrl.u32 %v762, 7
    %v764 = vsub.s32 %v761, %v763
    %v765 = vrot.slane %v757, %v764
    %v767 = vunpack.c.l.s4 1966171168
    %v768 = vunpack.c.0.s8 %v767
    %v769 = vlaneseq
    %v770 = vshrl.u32 %v769, 7
    %v771 = vsub.s32 %v768, %v770
    %v772 = vrot.slane %v758, %v771
    %v773 = vcombine.low %v765, %v772
    %v775 = vunpack.c.l.s4 1966171168
    %v776 = vunpack.c.0.s8 %v775
    %v777 = vlaneseq
    %v778 = vshrl.u32 %v777, 7
    %v779 = vsub.s32 %v776, %v778
    %v780 = vrot.slane %v569, %v779
    %v782 = vunpack.c.l.s4 1966171168
    %v783 = vunpack.c.0.s8 %v782
    %v784 = vlaneseq
    %v785 = vshrl.u32 %v784, 7
    %v786 = vsub.s32 %v783, %v785
    %v787 = vrot.slane %v780, %v786
    %788 = vrot.lane.b32.xlu0 %v773, 96
    %v789 = vpop.permute.xlu0 %788
    %790 = vrot.lane.b32.xlu0 %v787, 96
    %v791 = vpop.permute.xlu0 %790
    %v792 = vsel %vm641, %v773, 0
    %v794 = vsel %vm641, %v787, 0
    %v796 = vsel %vm641, %v789, 0
    %v798 = vsel %vm641, %v791, 0
    %800 = vmatprep.subr.mxu0 0.0
    %801 = vmatpush1.xpose.msra.mxu0 0.0
    %802 = vmatprep.subr.mxu0 0.0
    %803 = vmatpush1.xpose.msra.mxu0 0.0
    %804 = vmatprep.subr.mxu0 0.0
    %805 = vmatpush1.xpose.msra.mxu0 0.0
    %806 = vmatprep.subr.mxu0 0.0
    %807 = vmatpush1.xpose.msra.mxu0 0.0
    %808 = vmatprep.subr.mxu0 0.0
    %809 = vmatpush1.xpose.msra.mxu0 0.0
    %810 = vmatprep.subr.mxu0 0.0
    %811 = vmatpush1.xpose.msra.mxu0 0.0
    %812 = vmatprep.subr.mxu0 0.0
    %813 = vmatpush1.xpose.msra.mxu0 0.0
    %814 = vmatprep.subr.mxu0 0.0
    %815 = vmatpush1.xpose.msra.mxu0 0.0
    %816 = vmatprep.subr.mxu0 0.0
    %817 = vmatpush1.xpose.msra.mxu0 0.0
    %818 = vmatprep.subr.mxu0 0.0
    %819 = vmatpush1.xpose.msra.mxu0 0.0
    %820 = vmatprep.subr.mxu0 0.0
    %821 = vmatpush1.xpose.msra.mxu0 0.0
    %822 = vmatprep.subr.mxu0 0.0
    %823 = vmatpush1.xpose.msra.mxu0 0.0
    %824 = vmatprep.subr.mxu0 0.0
    %825 = vmatpush1.xpose.msra.mxu0 0.0
    %826 = vmatprep.subr.mxu0 0.0
    %827 = vmatpush1.xpose.msra.mxu0 0.0
    %828 = vmatprep.subr.mxu0 0.0
    %829 = vmatpush1.xpose.msra.mxu0 %v798
    %830 = vmatprep.subr.mxu0 0.0
    %831 = vmatpush1.xpose.msra.mxu0 %v796
    %832 = vmatprep.subr.mxu0 0.0
    %833 = vmatpush2.xpose.msra.mxu0 0.0
    %834 = vmatprep.subr.mxu0 0.0
    %835 = vmatpush2.xpose.msra.mxu0 0.0
    %836 = vmatprep.subr.mxu0 0.0
    %837 = vmatpush2.xpose.msra.mxu0 0.0
    %838 = vmatprep.subr.mxu0 0.0
    %839 = vmatpush2.xpose.msra.mxu0 0.0
    %840 = vmatprep.subr.mxu0 0.0
    %841 = vmatpush2.xpose.msra.mxu0 0.0
    %842 = vmatprep.subr.mxu0 0.0
    %843 = vmatpush2.xpose.msra.mxu0 0.0
    %844 = vmatprep.subr.mxu0 0.0
    %845 = vmatpush2.xpose.msra.mxu0 0.0
    %846 = vmatprep.subr.mxu0 0.0
    %847 = vmatpush2.xpose.msra.mxu0 0.0
    %848 = vmatprep.subr.mxu0 0.0
    %849 = vmatpush2.xpose.msra.mxu0 0.0
    %850 = vmatprep.subr.mxu0 0.0
    %851 = vmatpush2.xpose.msra.mxu0 0.0
    %852 = vmatprep.subr.mxu0 0.0
    %853 = vmatpush2.xpose.msra.mxu0 0.0
    %854 = vmatprep.subr.mxu0 0.0
    %855 = vmatpush2.xpose.msra.mxu0 0.0
    %856 = vmatprep.subr.mxu0 0.0
    %857 = vmatpush2.xpose.msra.mxu0 0.0
    %858 = vmatprep.subr.mxu0 0.0
    %859 = vmatpush2.xpose.msra.mxu0 0.0
    %860 = vmatprep.subr.mxu0 0.0
    %861 = vmatpush2.xpose.msra.mxu0 0.0
    %862 = vmatprep.subr.mxu0 0.0
    %863 = vmatpush2.xpose.msra.mxu0 0.0
    %864 = vmatprep.mubr.f32.mxu0 0.0
    %865 = vmatmul.mubr.f32.gmra.mxu0 %v792
    %v866 = vpop.f32.mrf.mxu0
    %v867 = vadd.f32 0.0, %v866
    %v868 = vpop.f32.mrf.mxu0
    %869 = vmatprep.mubr.f32.mxu0 0.0
    %870 = vmatmul.mubr.f32.gmra.mxu0 %v794
    %v871 = vpop.f32.mrf.mxu0
    %v872 = vadd.f32 0.0, %v871
    %v873 = vpop.f32.mrf.mxu0
    %874 = vdwg.mxu0
    %vm875 = vcmask 72704
    %v876 = vsel %vm875, %v717, -inf
    %877 = vmax.xlane.f32.xlu0 %v876
    %v878 = vpop.xlane.xlu0 %877
    %vm879 = vcmask 65536
    %v880 = vsel %vm879, %v722, -inf
    %881 = vmax.xlane.f32.xlu0 %v880
    %v882 = vpop.xlane.xlu0 %881
    %v883 = vsel %vm875, %v867, -inf
    %884 = vmax.xlane.f32.xlu0 %v883
    %v885 = vpop.xlane.xlu0 %884
    %v886 = vsel %vm879, %v872, -inf
    %887 = vmax.xlane.f32.xlu0 %v886
    %v888 = vpop.xlane.xlu0 %887
    %v889 = vsub.f32 %v717, %v878
    %v890 = vsub.f32 %v722, %v882
    %v891 = vsub.f32 %v867, %v885
    %v892 = vsub.f32 %v872, %v888
    %v893 = vmul.f32 %v889, 1.442695
    %v894 = vpow.pop %v893
    %v895 = vmul.f32 %v890, 1.442695
    %v896 = vpow.pop %v895
    %v897 = vmul.f32 %v891, 1.442695
    %v898 = vpow.pop %v897
    %v899 = vmul.f32 %v892, 1.442695
    %v900 = vpow.pop %v899
    %v901 = vsel %vm875, %v894, 0.0
    %902 = vadd.xlane.f32.xlu0 %v901
    %v903 = vpop.xlane.xlu0 %902
    %v904 = vsel %vm879, %v896, 0.0
    %905 = vadd.xlane.f32.xlu0 %v904
    %v906 = vpop.xlane.xlu0 %905
    %v907 = vsel %vm875, %v898, 0.0
    %908 = vadd.xlane.f32.xlu0 %v907
    %v909 = vpop.xlane.xlu0 %908
    %v910 = vsel %vm879, %v900, 0.0
    %911 = vadd.xlane.f32.xlu0 %v910
    %v912 = vpop.xlane.xlu0 %911
    %v913 = vrcp.pop %v903
    %v914 = vrcp.pop %v906
    %v915 = vrcp.pop %v909
    %v916 = vrcp.pop %v912
    %v917 = vmul.f32 %v894, %v913
    %v918 = vmul.f32 %v896, %v914
    %v919 = vmul.f32 %v898, %v915
    %v920 = vmul.f32 %v900, %v916
    %921 = vrot.lane.b32.xlu0 %v622, 64
    %v922 = vpop.permute.xlu0 %921
    %923 = vrot.lane.b32.xlu0 %v636, 64
    %v924 = vpop.permute.xlu0 %923
    %v927 = vsel %vm875, %v917, 0
    %v930 = vsel %vm875, %v918, 0
    %v932 = vsel %vm79, %v924, 0
    %934 = vmatprep.subr.mxu0 0.0
    %935 = vmatpush1.msra.mxu0 0.0
    %936 = vmatprep.subr.mxu0 0.0
    %937 = vmatpush1.msra.mxu0 0.0
    %938 = vmatprep.subr.mxu0 0.0
    %939 = vmatpush1.msra.mxu0 0.0
    %940 = vmatprep.subr.mxu0 0.0
    %941 = vmatpush1.msra.mxu0 0.0
    %942 = vmatprep.subr.mxu0 0.0
    %943 = vmatpush1.msra.mxu0 0.0
    %944 = vmatprep.subr.mxu0 0.0
    %945 = vmatpush1.msra.mxu0 0.0
    %946 = vmatprep.subr.mxu0 0.0
    %947 = vmatpush1.msra.mxu0 0.0
    %948 = vmatprep.subr.mxu0 0.0
    %949 = vmatpush1.msra.mxu0 0.0
    %950 = vmatprep.subr.mxu0 0.0
    %951 = vmatpush1.msra.mxu0 0.0
    %952 = vmatprep.subr.mxu0 0.0
    %953 = vmatpush1.msra.mxu0 0.0
    %954 = vmatprep.subr.mxu0 0.0
    %955 = vmatpush1.msra.mxu0 0.0
    %956 = vmatprep.subr.mxu0 0.0
    %957 = vmatpush1.msra.mxu0 0.0
    %958 = vmatprep.subr.mxu0 0.0
    %959 = vmatpush1.msra.mxu0 0.0
    %960 = vmatprep.subr.mxu0 0.0
    %961 = vmatpush1.msra.mxu0 0.0
    %962 = vmatprep.subr.mxu0 0.0
    %963 = vmatpush1.msra.mxu0 %v932
    %964 = vmatprep.subr.mxu0 0.0
    %965 = vmatpush1.msra.mxu0 %v922
    %966 = vmatprep.subr.mxu0 0.0
    %967 = vmatpush2.msra.mxu0 0.0
    %968 = vmatprep.subr.mxu0 0.0
    %969 = vmatpush2.msra.mxu0 0.0
    %970 = vmatprep.subr.mxu0 0.0
    %971 = vmatpush2.msra.mxu0 0.0
    %972 = vmatprep.subr.mxu0 0.0
    %973 = vmatpush2.msra.mxu0 0.0
    %974 = vmatprep.subr.mxu0 0.0
    %975 = vmatpush2.msra.mxu0 0.0
    %976 = vmatprep.subr.mxu0 0.0
    %977 = vmatpush2.msra.mxu0 0.0
    %978 = vmatprep.subr.mxu0 0.0
    %979 = vmatpush2.msra.mxu0 0.0
    %980 = vmatprep.subr.mxu0 0.0
    %981 = vmatpush2.msra.mxu0 0.0
    %982 = vmatprep.subr.mxu0 0.0
    %983 = vmatpush2.msra.mxu0 0.0
    %984 = vmatprep.subr.mxu0 0.0
    %985 = vmatpush2.msra.mxu0 0.0
    %986 = vmatprep.subr.mxu0 0.0
    %987 = vmatpush2.msra.mxu0 0.0
    %988 = vmatprep.subr.mxu0 0.0
    %989 = vmatpush2.msra.mxu0 0.0
    %990 = vmatprep.subr.mxu0 0.0
    %991 = vmatpush2.msra.mxu0 0.0
    %992 = vmatprep.subr.mxu0 0.0
    %993 = vmatpush2.msra.mxu0 0.0
    %994 = vmatprep.subr.mxu0 0.0
    %995 = vmatpush2.msra.mxu0 0.0
    %996 = vmatprep.subr.mxu0 0.0
    %997 = vmatpush2.msra.mxu0 0.0
    %998 = vmatprep.mubr.f32.mxu0 0.0
    %999 = vmatmul.mubr.f32.gmra.mxu0 %v927
    %v1000 = vpop.f32.mrf.mxu0
    %v1001 = vadd.f32 0.0, %v1000
    %v1002 = vpop.f32.mrf.mxu0
    %1003 = vmatprep.mubr.f32.mxu0 0.0
    %1004 = vmatmul.mubr.f32.gmra.mxu0 %v930
    %v1005 = vpop.f32.mrf.mxu0
    %v1006 = vadd.f32 0.0, %v1005
    %v1007 = vpop.f32.mrf.mxu0
    %1008 = vdwg.mxu0
    %1009 = vrot.lane.b32.xlu0 %v773, 64
    %v1010 = vpop.permute.xlu0 %1009
    %1011 = vrot.lane.b32.xlu0 %v787, 64
    %v1012 = vpop.permute.xlu0 %1011
    %v1015 = vsel %vm875, %v919, 0
    %v1018 = vsel %vm875, %v920, 0
    %v1020 = vsel %vm79, %v1012, 0
    %1022 = vmatprep.subr.mxu0 0.0
    %1023 = vmatpush1.msra.mxu0 0.0
    %1024 = vmatprep.subr.mxu0 0.0
    %1025 = vmatpush1.msra.mxu0 0.0
    %1026 = vmatprep.subr.mxu0 0.0
    %1027 = vmatpush1.msra.mxu0 0.0
    %1028 = vmatprep.subr.mxu0 0.0
    %1029 = vmatpush1.msra.mxu0 0.0
    %1030 = vmatprep.subr.mxu0 0.0
    %1031 = vmatpush1.msra.mxu0 0.0
    %1032 = vmatprep.subr.mxu0 0.0
    %1033 = vmatpush1.msra.mxu0 0.0
    %1034 = vmatprep.subr.mxu0 0.0
    %1035 = vmatpush1.msra.mxu0 0.0
    %1036 = vmatprep.subr.mxu0 0.0
    %1037 = vmatpush1.msra.mxu0 0.0
    %1038 = vmatprep.subr.mxu0 0.0
    %1039 = vmatpush1.msra.mxu0 0.0
    %1040 = vmatprep.subr.mxu0 0.0
    %1041 = vmatpush1.msra.mxu0 0.0
    %1042 = vmatprep.subr.mxu0 0.0
    %1043 = vmatpush1.msra.mxu0 0.0
    %1044 = vmatprep.subr.mxu0 0.0
    %1045 = vmatpush1.msra.mxu0 0.0
    %1046 = vmatprep.subr.mxu0 0.0
    %1047 = vmatpush1.msra.mxu0 0.0
    %1048 = vmatprep.subr.mxu0 0.0
    %1049 = vmatpush1.msra.mxu0 0.0
    %1050 = vmatprep.subr.mxu0 0.0
    %1051 = vmatpush1.msra.mxu0 %v1020
    %1052 = vmatprep.subr.mxu0 0.0
    %1053 = vmatpush1.msra.mxu0 %v1010
    %1054 = vmatprep.subr.mxu0 0.0
    %1055 = vmatpush2.msra.mxu0 0.0
    %1056 = vmatprep.subr.mxu0 0.0
    %1057 = vmatpush2.msra.mxu0 0.0
    %1058 = vmatprep.subr.mxu0 0.0
    %1059 = vmatpush2.msra.mxu0 0.0
    %1060 = vmatprep.subr.mxu0 0.0
    %1061 = vmatpush2.msra.mxu0 0.0
    %1062 = vmatprep.subr.mxu0 0.0
    %1063 = vmatpush2.msra.mxu0 0.0
    %1064 = vmatprep.subr.mxu0 0.0
    %1065 = vmatpush2.msra.mxu0 0.0
    %1066 = vmatprep.subr.mxu0 0.0
    %1067 = vmatpush2.msra.mxu0 0.0
    %1068 = vmatprep.subr.mxu0 0.0
    %1069 = vmatpush2.msra.mxu0 0.0
    %1070 = vmatprep.subr.mxu0 0.0
    %1071 = vmatpush2.msra.mxu0 0.0
    %1072 = vmatprep.subr.mxu0 0.0
    %1073 = vmatpush2.msra.mxu0 0.0
    %1074 = vmatprep.subr.mxu0 0.0
    %1075 = vmatpush2.msra.mxu0 0.0
    %1076 = vmatprep.subr.mxu0 0.0
    %1077 = vmatpush2.msra.mxu0 0.0
    %1078 = vmatprep.subr.mxu0 0.0
    %1079 = vmatpush2.msra.mxu0 0.0
    %1080 = vmatprep.subr.mxu0 0.0
    %1081 = vmatpush2.msra.mxu0 0.0
    %1082 = vmatprep.subr.mxu0 0.0
    %1083 = vmatpush2.msra.mxu0 0.0
    %1084 = vmatprep.subr.mxu0 0.0
    %1085 = vmatpush2.msra.mxu0 0.0
    %1086 = vmatprep.mubr.f32.mxu0 0.0
    %1087 = vmatmul.mubr.f32.gmra.mxu0 %v1015
    %v1088 = vpop.f32.mrf.mxu0
    %v1089 = vadd.f32 0.0, %v1088
    %v1090 = vpop.f32.mrf.mxu0
    %1091 = vmatprep.mubr.f32.mxu0 0.0
    %1092 = vmatmul.mubr.f32.gmra.mxu0 %v1018
    %v1093 = vpop.f32.mrf.mxu0
    %v1094 = vadd.f32 0.0, %v1093
    %v1095 = vpop.f32.mrf.mxu0
    %1096 = vdwg.mxu0
    %v1101 = vcombine.high %v1001, %v1001
    %v1103 = vunpack.c.l.s4 1966171168
    %v1104 = vunpack.c.0.s8 %v1103
    %v1105 = vlaneseq
    %v1106 = vshrl.u32 %v1105, 7
    %v1107 = vsub.s32 %v1104, %v1106
    %v1108 = vrot.slane %v1001, %v1107
    %v1110 = vunpack.c.l.s4 1966171168
    %v1111 = vunpack.c.0.s8 %v1110
    %v1112 = vlaneseq
    %v1113 = vshrl.u32 %v1112, 7
    %v1114 = vsub.s32 %v1111, %v1113
    %v1115 = vrot.slane %v1101, %v1114
    %v1116 = vcombine.high %v1108, %v1108
    %v1117 = vcombine.high %v1115, %v1115
    %v1119 = vunpack.c.l.s4 1966171168
    %v1120 = vunpack.c.0.s8 %v1119
    %v1121 = vlaneseq
    %v1122 = vshrl.u32 %v1121, 7
    %v1123 = vsub.s32 %v1120, %v1122
    %v1124 = vrot.slane %v1108, %v1123
    %v1126 = vunpack.c.l.s4 1966171168
    %v1127 = vunpack.c.0.s8 %v1126
    %v1128 = vlaneseq
    %v1129 = vshrl.u32 %v1128, 7
    %v1130 = vsub.s32 %v1127, %v1129
    %v1131 = vrot.slane %v1115, %v1130
    %v1133 = vunpack.c.l.s4 1966171168
    %v1134 = vunpack.c.0.s8 %v1133
    %v1135 = vlaneseq
    %v1136 = vshrl.u32 %v1135, 7
    %v1137 = vsub.s32 %v1134, %v1136
    %v1138 = vrot.slane %v1116, %v1137
    %v1140 = vunpack.c.l.s4 1966171168
    %v1141 = vunpack.c.0.s8 %v1140
    %v1142 = vlaneseq
    %v1143 = vshrl.u32 %v1142, 7
    %v1144 = vsub.s32 %v1141, %v1143
    %v1145 = vrot.slane %v1117, %v1144
    %v1146 = vcombine.high %v1124, %v1124
    %v1147 = vcombine.high %v1131, %v1131
    %v1148 = vcombine.high %v1138, %v1138
    %v1149 = vcombine.high %v1145, %v1145
    %v1151 = vunpack.c.l.s4 1966171168
    %v1152 = vunpack.c.0.s8 %v1151
    %v1153 = vlaneseq
    %v1154 = vshrl.u32 %v1153, 7
    %v1155 = vsub.s32 %v1152, %v1154
    %v1156 = vrot.slane %v1006, %v1155
    %v1158 = vunpack.c.l.s4 1966171168
    %v1159 = vunpack.c.0.s8 %v1158
    %v1160 = vlaneseq
    %v1161 = vshrl.u32 %v1160, 7
    %v1162 = vsub.s32 %v1159, %v1161
    %v1163 = vrot.slane %v1156, %v1162
    %v1164 = vcombine.high %v1089, %v1089
    %v1166 = vunpack.c.l.s4 1966171168
    %v1167 = vunpack.c.0.s8 %v1166
    %v1168 = vlaneseq
    %v1169 = vshrl.u32 %v1168, 7
    %v1170 = vsub.s32 %v1167, %v1169
    %v1171 = vrot.slane %v1089, %v1170
    %v1173 = vunpack.c.l.s4 1966171168
    %v1174 = vunpack.c.0.s8 %v1173
    %v1175 = vlaneseq
    %v1176 = vshrl.u32 %v1175, 7
    %v1177 = vsub.s32 %v1174, %v1176
    %v1178 = vrot.slane %v1164, %v1177
    %v1179 = vcombine.high %v1171, %v1171
    %v1180 = vcombine.high %v1178, %v1178
    %v1182 = vunpack.c.l.s4 1966171168
    %v1183 = vunpack.c.0.s8 %v1182
    %v1184 = vlaneseq
    %v1185 = vshrl.u32 %v1184, 7
    %v1186 = vsub.s32 %v1183, %v1185
    %v1187 = vrot.slane %v1171, %v1186
    %v1189 = vunpack.c.l.s4 1966171168
    %v1190 = vunpack.c.0.s8 %v1189
    %v1191 = vlaneseq
    %v1192 = vshrl.u32 %v1191, 7
    %v1193 = vsub.s32 %v1190, %v1192
    %v1194 = vrot.slane %v1178, %v1193
    %v1196 = vunpack.c.l.s4 1966171168
    %v1197 = vunpack.c.0.s8 %v1196
    %v1198 = vlaneseq
    %v1199 = vshrl.u32 %v1198, 7
    %v1200 = vsub.s32 %v1197, %v1199
    %v1201 = vrot.slane %v1179, %v1200
    %v1203 = vunpack.c.l.s4 1966171168
    %v1204 = vunpack.c.0.s8 %v1203
    %v1205 = vlaneseq
    %v1206 = vshrl.u32 %v1205, 7
    %v1207 = vsub.s32 %v1204, %v1206
    %v1208 = vrot.slane %v1180, %v1207
    %v1209 = vcombine.high %v1187, %v1187
    %v1210 = vcombine.high %v1194, %v1194
    %v1211 = vcombine.high %v1201, %v1201
    %v1212 = vcombine.high %v1208, %v1208
    %v1214 = vunpack.c.l.s4 1966171168
    %v1215 = vunpack.c.0.s8 %v1214
    %v1216 = vlaneseq
    %v1217 = vshrl.u32 %v1216, 7
    %v1218 = vsub.s32 %v1215, %v1217
    %v1219 = vrot.slane %v1094, %v1218
    %v1221 = vunpack.c.l.s4 1966171168
    %v1222 = vunpack.c.0.s8 %v1221
    %v1223 = vlaneseq
    %v1224 = vshrl.u32 %v1223, 7
    %v1225 = vsub.s32 %v1222, %v1224
    %v1226 = vrot.slane %v1219, %v1225
    %1227 = vrot.lane.b32.xlu0 %v622, 120
    %v1228 = vpop.permute.xlu0 %1227
    %1229 = vrot.lane.b32.xlu0 %v636, 120
    %v1230 = vpop.permute.xlu0 %1229
    %1231 = vrot.lane.b32.xlu0 %v622, 88
    %v1232 = vpop.permute.xlu0 %1231
    %1233 = vrot.lane.b32.xlu0 %v636, 88
    %v1234 = vpop.permute.xlu0 %1233
    %v1235 = vsel %vm641, %v1228, 0
    %v1237 = vsel %vm641, %v1230, 0
    %v1239 = vsel %vm641, %v1232, 0
    %v1241 = vsel %vm641, %v1234, 0
    %1243 = vmatprep.subr.mxu0 0.0
    %1244 = vmatpush1.xpose.msra.mxu0 0.0
    %1245 = vmatprep.subr.mxu0 0.0
    %1246 = vmatpush1.xpose.msra.mxu0 0.0
    %1247 = vmatprep.subr.mxu0 0.0
    %1248 = vmatpush1.xpose.msra.mxu0 0.0
    %1249 = vmatprep.subr.mxu0 0.0
    %1250 = vmatpush1.xpose.msra.mxu0 0.0
    %1251 = vmatprep.subr.mxu0 0.0
    %1252 = vmatpush1.xpose.msra.mxu0 0.0
    %1253 = vmatprep.subr.mxu0 0.0
    %1254 = vmatpush1.xpose.msra.mxu0 0.0
    %1255 = vmatprep.subr.mxu0 0.0
    %1256 = vmatpush1.xpose.msra.mxu0 0.0
    %1257 = vmatprep.subr.mxu0 0.0
    %1258 = vmatpush1.xpose.msra.mxu0 0.0
    %1259 = vmatprep.subr.mxu0 0.0
    %1260 = vmatpush1.xpose.msra.mxu0 0.0
    %1261 = vmatprep.subr.mxu0 0.0
    %1262 = vmatpush1.xpose.msra.mxu0 0.0
    %1263 = vmatprep.subr.mxu0 0.0
    %1264 = vmatpush1.xpose.msra.mxu0 0.0
    %1265 = vmatprep.subr.mxu0 0.0
    %1266 = vmatpush1.xpose.msra.mxu0 0.0
    %1267 = vmatprep.subr.mxu0 0.0
    %1268 = vmatpush1.xpose.msra.mxu0 0.0
    %1269 = vmatprep.subr.mxu0 0.0
    %1270 = vmatpush1.xpose.msra.mxu0 0.0
    %1271 = vmatprep.subr.mxu0 0.0
    %1272 = vmatpush1.xpose.msra.mxu0 %v1241
    %1273 = vmatprep.subr.mxu0 0.0
    %1274 = vmatpush1.xpose.msra.mxu0 %v1239
    %1275 = vmatprep.subr.mxu0 0.0
    %1276 = vmatpush2.xpose.msra.mxu0 0.0
    %1277 = vmatprep.subr.mxu0 0.0
    %1278 = vmatpush2.xpose.msra.mxu0 0.0
    %1279 = vmatprep.subr.mxu0 0.0
    %1280 = vmatpush2.xpose.msra.mxu0 0.0
    %1281 = vmatprep.subr.mxu0 0.0
    %1282 = vmatpush2.xpose.msra.mxu0 0.0
    %1283 = vmatprep.subr.mxu0 0.0
    %1284 = vmatpush2.xpose.msra.mxu0 0.0
    %1285 = vmatprep.subr.mxu0 0.0
    %1286 = vmatpush2.xpose.msra.mxu0 0.0
    %1287 = vmatprep.subr.mxu0 0.0
    %1288 = vmatpush2.xpose.msra.mxu0 0.0
    %1289 = vmatprep.subr.mxu0 0.0
    %1290 = vmatpush2.xpose.msra.mxu0 0.0
    %1291 = vmatprep.subr.mxu0 0.0
    %1292 = vmatpush2.xpose.msra.mxu0 0.0
    %1293 = vmatprep.subr.mxu0 0.0
    %1294 = vmatpush2.xpose.msra.mxu0 0.0
    %1295 = vmatprep.subr.mxu0 0.0
    %1296 = vmatpush2.xpose.msra.mxu0 0.0
    %1297 = vmatprep.subr.mxu0 0.0
    %1298 = vmatpush2.xpose.msra.mxu0 0.0
    %1299 = vmatprep.subr.mxu0 0.0
    %1300 = vmatpush2.xpose.msra.mxu0 0.0
    %1301 = vmatprep.subr.mxu0 0.0
    %1302 = vmatpush2.xpose.msra.mxu0 0.0
    %1303 = vmatprep.subr.mxu0 0.0
    %1304 = vmatpush2.xpose.msra.mxu0 0.0
    %1305 = vmatprep.subr.mxu0 0.0
    %1306 = vmatpush2.xpose.msra.mxu0 0.0
    %1307 = vmatprep.mubr.f32.mxu0 0.0
    %1308 = vmatmul.mubr.f32.gmra.mxu0 %v1235
    %v1309 = vpop.f32.mrf.mxu0
    %v1310 = vadd.f32 0.0, %v1309
    %v1311 = vpop.f32.mrf.mxu0
    %1312 = vmatprep.mubr.f32.mxu0 0.0
    %1313 = vmatmul.mubr.f32.gmra.mxu0 %v1237
    %v1314 = vpop.f32.mrf.mxu0
    %v1315 = vadd.f32 0.0, %v1314
    %v1316 = vpop.f32.mrf.mxu0
    %1317 = vdwg.mxu0
    %1318 = vrot.lane.b32.xlu0 %v773, 120
    %v1319 = vpop.permute.xlu0 %1318
    %1320 = vrot.lane.b32.xlu0 %v787, 120
    %v1321 = vpop.permute.xlu0 %1320
    %1322 = vrot.lane.b32.xlu0 %v773, 88
    %v1323 = vpop.permute.xlu0 %1322
    %1324 = vrot.lane.b32.xlu0 %v787, 88
    %v1325 = vpop.permute.xlu0 %1324
    %v1326 = vsel %vm641, %v1319, 0
    %v1328 = vsel %vm641, %v1321, 0
    %v1330 = vsel %vm641, %v1323, 0
    %v1332 = vsel %vm641, %v1325, 0
    %1334 = vmatprep.subr.mxu0 0.0
    %1335 = vmatpush1.xpose.msra.mxu0 0.0
    %1336 = vmatprep.subr.mxu0 0.0
    %1337 = vmatpush1.xpose.msra.mxu0 0.0
    %1338 = vmatprep.subr.mxu0 0.0
    %1339 = vmatpush1.xpose.msra.mxu0 0.0
    %1340 = vmatprep.subr.mxu0 0.0
    %1341 = vmatpush1.xpose.msra.mxu0 0.0
    %1342 = vmatprep.subr.mxu0 0.0
    %1343 = vmatpush1.xpose.msra.mxu0 0.0
    %1344 = vmatprep.subr.mxu0 0.0
    %1345 = vmatpush1.xpose.msra.mxu0 0.0
    %1346 = vmatprep.subr.mxu0 0.0
    %1347 = vmatpush1.xpose.msra.mxu0 0.0
    %1348 = vmatprep.subr.mxu0 0.0
    %1349 = vmatpush1.xpose.msra.mxu0 0.0
    %1350 = vmatprep.subr.mxu0 0.0
    %1351 = vmatpush1.xpose.msra.mxu0 0.0
    %1352 = vmatprep.subr.mxu0 0.0
    %1353 = vmatpush1.xpose.msra.mxu0 0.0
    %1354 = vmatprep.subr.mxu0 0.0
    %1355 = vmatpush1.xpose.msra.mxu0 0.0
    %1356 = vmatprep.subr.mxu0 0.0
    %1357 = vmatpush1.xpose.msra.mxu0 0.0
    %1358 = vmatprep.subr.mxu0 0.0
    %1359 = vmatpush1.xpose.msra.mxu0 0.0
    %1360 = vmatprep.subr.mxu0 0.0
    %1361 = vmatpush1.xpose.msra.mxu0 0.0
    %1362 = vmatprep.subr.mxu0 0.0
    %1363 = vmatpush1.xpose.msra.mxu0 %v1332
    %1364 = vmatprep.subr.mxu0 0.0
    %1365 = vmatpush1.xpose.msra.mxu0 %v1330
    %1366 = vmatprep.subr.mxu0 0.0
    %1367 = vmatpush2.xpose.msra.mxu0 0.0
    %1368 = vmatprep.subr.mxu0 0.0
    %1369 = vmatpush2.xpose.msra.mxu0 0.0
    %1370 = vmatprep.subr.mxu0 0.0
    %1371 = vmatpush2.xpose.msra.mxu0 0.0
    %1372 = vmatprep.subr.mxu0 0.0
    %1373 = vmatpush2.xpose.msra.mxu0 0.0
    %1374 = vmatprep.subr.mxu0 0.0
    %1375 = vmatpush2.xpose.msra.mxu0 0.0
    %1376 = vmatprep.subr.mxu0 0.0
    %1377 = vmatpush2.xpose.msra.mxu0 0.0
    %1378 = vmatprep.subr.mxu0 0.0
    %1379 = vmatpush2.xpose.msra.mxu0 0.0
    %1380 = vmatprep.subr.mxu0 0.0
    %1381 = vmatpush2.xpose.msra.mxu0 0.0
    %1382 = vmatprep.subr.mxu0 0.0
    %1383 = vmatpush2.xpose.msra.mxu0 0.0
    %1384 = vmatprep.subr.mxu0 0.0
    %1385 = vmatpush2.xpose.msra.mxu0 0.0
    %1386 = vmatprep.subr.mxu0 0.0
    %1387 = vmatpush2.xpose.msra.mxu0 0.0
    %1388 = vmatprep.subr.mxu0 0.0
    %1389 = vmatpush2.xpose.msra.mxu0 0.0
    %1390 = vmatprep.subr.mxu0 0.0
    %1391 = vmatpush2.xpose.msra.mxu0 0.0
    %1392 = vmatprep.subr.mxu0 0.0
    %1393 = vmatpush2.xpose.msra.mxu0 0.0
    %1394 = vmatprep.subr.mxu0 0.0
    %1395 = vmatpush2.xpose.msra.mxu0 0.0
    %1396 = vmatprep.subr.mxu0 0.0
    %1397 = vmatpush2.xpose.msra.mxu0 0.0
    %1398 = vmatprep.mubr.f32.mxu0 0.0
    %1399 = vmatmul.mubr.f32.gmra.mxu0 %v1326
    %v1400 = vpop.f32.mrf.mxu0
    %v1401 = vadd.f32 0.0, %v1400
    %v1402 = vpop.f32.mrf.mxu0
    %1403 = vmatprep.mubr.f32.mxu0 0.0
    %1404 = vmatmul.mubr.f32.gmra.mxu0 %v1328
    %v1405 = vpop.f32.mrf.mxu0
    %v1406 = vadd.f32 0.0, %v1405
    %v1407 = vpop.f32.mrf.mxu0
    %1408 = vdwg.mxu0
    %v1409 = vsel %vm875, %v1310, -inf
    %1410 = vmax.xlane.f32.xlu0 %v1409
    %v1411 = vpop.xlane.xlu0 %1410
    %v1412 = vsel %vm879, %v1315, -inf
    %1413 = vmax.xlane.f32.xlu0 %v1412
    %v1414 = vpop.xlane.xlu0 %1413
    %v1415 = vsel %vm875, %v1401, -inf
    %1416 = vmax.xlane.f32.xlu0 %v1415
    %v1417 = vpop.xlane.xlu0 %1416
    %v1418 = vsel %vm879, %v1406, -inf
    %1419 = vmax.xlane.f32.xlu0 %v1418
    %v1420 = vpop.xlane.xlu0 %1419
    %v1421 = vsub.f32 %v1310, %v1411
    %v1422 = vsub.f32 %v1315, %v1414
    %v1423 = vsub.f32 %v1401, %v1417
    %v1424 = vsub.f32 %v1406, %v1420
    %v1425 = vmul.f32 %v1421, 1.442695
    %v1426 = vpow.pop %v1425
    %v1427 = vmul.f32 %v1422, 1.442695
    %v1428 = vpow.pop %v1427
    %v1429 = vmul.f32 %v1423, 1.442695
    %v1430 = vpow.pop %v1429
    %v1431 = vmul.f32 %v1424, 1.442695
    %v1432 = vpow.pop %v1431
    %v1433 = vsel %vm875, %v1426, 0.0
    %1434 = vadd.xlane.f32.xlu0 %v1433
    %v1435 = vpop.xlane.xlu0 %1434
    %v1436 = vsel %vm879, %v1428, 0.0
    %1437 = vadd.xlane.f32.xlu0 %v1436
    %v1438 = vpop.xlane.xlu0 %1437
    %v1439 = vsel %vm875, %v1430, 0.0
    %1440 = vadd.xlane.f32.xlu0 %v1439
    %v1441 = vpop.xlane.xlu0 %1440
    %v1442 = vsel %vm879, %v1432, 0.0
    %1443 = vadd.xlane.f32.xlu0 %v1442
    %v1444 = vpop.xlane.xlu0 %1443
    %v1445 = vrcp.pop %v1435
    %v1446 = vrcp.pop %v1438
    %v1447 = vrcp.pop %v1441
    %v1448 = vrcp.pop %v1444
    %v1449 = vmul.f32 %v1426, %v1445
    %v1450 = vmul.f32 %v1428, %v1446
    %v1451 = vmul.f32 %v1430, %v1447
    %v1452 = vmul.f32 %v1432, %v1448
    %1453 = vrot.lane.b32.xlu0 %v622, 56
    %v1454 = vpop.permute.xlu0 %1453
    %1455 = vrot.lane.b32.xlu0 %v636, 56
    %v1456 = vpop.permute.xlu0 %1455
    %v1459 = vsel %vm875, %v1449, 0
    %v1462 = vsel %vm875, %v1450, 0
    %v1464 = vsel %vm79, %v1456, 0
    %1466 = vmatprep.subr.mxu0 0.0
    %1467 = vmatpush1.msra.mxu0 0.0
    %1468 = vmatprep.subr.mxu0 0.0
    %1469 = vmatpush1.msra.mxu0 0.0
    %1470 = vmatprep.subr.mxu0 0.0
    %1471 = vmatpush1.msra.mxu0 0.0
    %1472 = vmatprep.subr.mxu0 0.0
    %1473 = vmatpush1.msra.mxu0 0.0
    %1474 = vmatprep.subr.mxu0 0.0
    %1475 = vmatpush1.msra.mxu0 0.0
    %1476 = vmatprep.subr.mxu0 0.0
    %1477 = vmatpush1.msra.mxu0 0.0
    %1478 = vmatprep.subr.mxu0 0.0
    %1479 = vmatpush1.msra.mxu0 0.0
    %1480 = vmatprep.subr.mxu0 0.0
    %1481 = vmatpush1.msra.mxu0 0.0
    %1482 = vmatprep.subr.mxu0 0.0
    %1483 = vmatpush1.msra.mxu0 0.0
    %1484 = vmatprep.subr.mxu0 0.0
    %1485 = vmatpush1.msra.mxu0 0.0
    %1486 = vmatprep.subr.mxu0 0.0
    %1487 = vmatpush1.msra.mxu0 0.0
    %1488 = vmatprep.subr.mxu0 0.0
    %1489 = vmatpush1.msra.mxu0 0.0
    %1490 = vmatprep.subr.mxu0 0.0
    %1491 = vmatpush1.msra.mxu0 0.0
    %1492 = vmatprep.subr.mxu0 0.0
    %1493 = vmatpush1.msra.mxu0 0.0
    %1494 = vmatprep.subr.mxu0 0.0
    %1495 = vmatpush1.msra.mxu0 %v1464
    %1496 = vmatprep.subr.mxu0 0.0
    %1497 = vmatpush1.msra.mxu0 %v1454
    %1498 = vmatprep.subr.mxu0 0.0
    %1499 = vmatpush2.msra.mxu0 0.0
    %1500 = vmatprep.subr.mxu0 0.0
    %1501 = vmatpush2.msra.mxu0 0.0
    %1502 = vmatprep.subr.mxu0 0.0
    %1503 = vmatpush2.msra.mxu0 0.0
    %1504 = vmatprep.subr.mxu0 0.0
    %1505 = vmatpush2.msra.mxu0 0.0
    %1506 = vmatprep.subr.mxu0 0.0
    %1507 = vmatpush2.msra.mxu0 0.0
    %1508 = vmatprep.subr.mxu0 0.0
    %1509 = vmatpush2.msra.mxu0 0.0
    %1510 = vmatprep.subr.mxu0 0.0
    %1511 = vmatpush2.msra.mxu0 0.0
    %1512 = vmatprep.subr.mxu0 0.0
    %1513 = vmatpush2.msra.mxu0 0.0
    %1514 = vmatprep.subr.mxu0 0.0
    %1515 = vmatpush2.msra.mxu0 0.0
    %1516 = vmatprep.subr.mxu0 0.0
    %1517 = vmatpush2.msra.mxu0 0.0
    %1518 = vmatprep.subr.mxu0 0.0
    %1519 = vmatpush2.msra.mxu0 0.0
    %1520 = vmatprep.subr.mxu0 0.0
    %1521 = vmatpush2.msra.mxu0 0.0
    %1522 = vmatprep.subr.mxu0 0.0
    %1523 = vmatpush2.msra.mxu0 0.0
    %1524 = vmatprep.subr.mxu0 0.0
    %1525 = vmatpush2.msra.mxu0 0.0
    %1526 = vmatprep.subr.mxu0 0.0
    %1527 = vmatpush2.msra.mxu0 0.0
    %1528 = vmatprep.subr.mxu0 0.0
    %1529 = vmatpush2.msra.mxu0 0.0
    %1530 = vmatprep.mubr.f32.mxu0 0.0
    %1531 = vmatmul.mubr.f32.gmra.mxu0 %v1459
    %v1532 = vpop.f32.mrf.mxu0
    %v1533 = vadd.f32 0.0, %v1532
    %v1534 = vpop.f32.mrf.mxu0
    %1535 = vmatprep.mubr.f32.mxu0 0.0
    %1536 = vmatmul.mubr.f32.gmra.mxu0 %v1462
    %v1537 = vpop.f32.mrf.mxu0
    %v1538 = vadd.f32 0.0, %v1537
    %v1539 = vpop.f32.mrf.mxu0
    %1540 = vdwg.mxu0
    %1541 = vrot.lane.b32.xlu0 %v773, 56
    %v1542 = vpop.permute.xlu0 %1541
    %1543 = vrot.lane.b32.xlu0 %v787, 56
    %v1544 = vpop.permute.xlu0 %1543
    %v1547 = vsel %vm875, %v1451, 0
    %v1550 = vsel %vm875, %v1452, 0
    %v1552 = vsel %vm79, %v1544, 0
    %1554 = vmatprep.subr.mxu0 0.0
    %1555 = vmatpush1.msra.mxu0 0.0
    %1556 = vmatprep.subr.mxu0 0.0
    %1557 = vmatpush1.msra.mxu0 0.0
    %1558 = vmatprep.subr.mxu0 0.0
    %1559 = vmatpush1.msra.mxu0 0.0
    %1560 = vmatprep.subr.mxu0 0.0
    %1561 = vmatpush1.msra.mxu0 0.0
    %1562 = vmatprep.subr.mxu0 0.0
    %1563 = vmatpush1.msra.mxu0 0.0
    %1564 = vmatprep.subr.mxu0 0.0
    %1565 = vmatpush1.msra.mxu0 0.0
    %1566 = vmatprep.subr.mxu0 0.0
    %1567 = vmatpush1.msra.mxu0 0.0
    %1568 = vmatprep.subr.mxu0 0.0
    %1569 = vmatpush1.msra.mxu0 0.0
    %1570 = vmatprep.subr.mxu0 0.0
    %1571 = vmatpush1.msra.mxu0 0.0
    %1572 = vmatprep.subr.mxu0 0.0
    %1573 = vmatpush1.msra.mxu0 0.0
    %1574 = vmatprep.subr.mxu0 0.0
    %1575 = vmatpush1.msra.mxu0 0.0
    %1576 = vmatprep.subr.mxu0 0.0
    %1577 = vmatpush1.msra.mxu0 0.0
    %1578 = vmatprep.subr.mxu0 0.0
    %1579 = vmatpush1.msra.mxu0 0.0
    %1580 = vmatprep.subr.mxu0 0.0
    %1581 = vmatpush1.msra.mxu0 0.0
    %1582 = vmatprep.subr.mxu0 0.0
    %1583 = vmatpush1.msra.mxu0 %v1552
    %1584 = vmatprep.subr.mxu0 0.0
    %1585 = vmatpush1.msra.mxu0 %v1542
    %1586 = vmatprep.subr.mxu0 0.0
    %1587 = vmatpush2.msra.mxu0 0.0
    %1588 = vmatprep.subr.mxu0 0.0
    %1589 = vmatpush2.msra.mxu0 0.0
    %1590 = vmatprep.subr.mxu0 0.0
    %1591 = vmatpush2.msra.mxu0 0.0
    %1592 = vmatprep.subr.mxu0 0.0
    %1593 = vmatpush2.msra.mxu0 0.0
    %1594 = vmatprep.subr.mxu0 0.0
    %1595 = vmatpush2.msra.mxu0 0.0
    %1596 = vmatprep.subr.mxu0 0.0
    %1597 = vmatpush2.msra.mxu0 0.0
    %1598 = vmatprep.subr.mxu0 0.0
    %1599 = vmatpush2.msra.mxu0 0.0
    %1600 = vmatprep.subr.mxu0 0.0
    %1601 = vmatpush2.msra.mxu0 0.0
    %1602 = vmatprep.subr.mxu0 0.0
    %1603 = vmatpush2.msra.mxu0 0.0
    %1604 = vmatprep.subr.mxu0 0.0
    %1605 = vmatpush2.msra.mxu0 0.0
    %1606 = vmatprep.subr.mxu0 0.0
    %1607 = vmatpush2.msra.mxu0 0.0
    %1608 = vmatprep.subr.mxu0 0.0
    %1609 = vmatpush2.msra.mxu0 0.0
    %1610 = vmatprep.subr.mxu0 0.0
    %1611 = vmatpush2.msra.mxu0 0.0
    %1612 = vmatprep.subr.mxu0 0.0
    %1613 = vmatpush2.msra.mxu0 0.0
    %1614 = vmatprep.subr.mxu0 0.0
    %1615 = vmatpush2.msra.mxu0 0.0
    %1616 = vmatprep.subr.mxu0 0.0
    %1617 = vmatpush2.msra.mxu0 0.0
    %1618 = vmatprep.mubr.f32.mxu0 0.0
    %1619 = vmatmul.mubr.f32.gmra.mxu0 %v1547
    %v1620 = vpop.f32.mrf.mxu0
    %v1621 = vadd.f32 0.0, %v1620
    %v1622 = vpop.f32.mrf.mxu0
    %1623 = vmatprep.mubr.f32.mxu0 0.0
    %1624 = vmatmul.mubr.f32.gmra.mxu0 %v1550
    %v1625 = vpop.f32.mrf.mxu0
    %v1626 = vadd.f32 0.0, %v1625
    %v1627 = vpop.f32.mrf.mxu0
    %1628 = vdwg.mxu0
    %v1633 = vcombine.high %v1533, %v1533
    %v1635 = vunpack.c.l.s4 1966171168
    %v1636 = vunpack.c.0.s8 %v1635
    %v1637 = vlaneseq
    %v1638 = vshrl.u32 %v1637, 7
    %v1639 = vsub.s32 %v1636, %v1638
    %v1640 = vrot.slane %v1533, %v1639
    %v1642 = vunpack.c.l.s4 1966171168
    %v1643 = vunpack.c.0.s8 %v1642
    %v1644 = vlaneseq
    %v1645 = vshrl.u32 %v1644, 7
    %v1646 = vsub.s32 %v1643, %v1645
    %v1647 = vrot.slane %v1633, %v1646
    %v1648 = vcombine.high %v1640, %v1640
    %v1649 = vcombine.high %v1647, %v1647
    %v1651 = vunpack.c.l.s4 1966171168
    %v1652 = vunpack.c.0.s8 %v1651
    %v1653 = vlaneseq
    %v1654 = vshrl.u32 %v1653, 7
    %v1655 = vsub.s32 %v1652, %v1654
    %v1656 = vrot.slane %v1640, %v1655
    %v1658 = vunpack.c.l.s4 1966171168
    %v1659 = vunpack.c.0.s8 %v1658
    %v1660 = vlaneseq
    %v1661 = vshrl.u32 %v1660, 7
    %v1662 = vsub.s32 %v1659, %v1661
    %v1663 = vrot.slane %v1647, %v1662
    %v1665 = vunpack.c.l.s4 1966171168
    %v1666 = vunpack.c.0.s8 %v1665
    %v1667 = vlaneseq
    %v1668 = vshrl.u32 %v1667, 7
    %v1669 = vsub.s32 %v1666, %v1668
    %v1670 = vrot.slane %v1648, %v1669
    %v1672 = vunpack.c.l.s4 1966171168
    %v1673 = vunpack.c.0.s8 %v1672
    %v1674 = vlaneseq
    %v1675 = vshrl.u32 %v1674, 7
    %v1676 = vsub.s32 %v1673, %v1675
    %v1677 = vrot.slane %v1649, %v1676
    %v1678 = vcombine.high %v1656, %v1656
    %v1679 = vcombine.high %v1663, %v1663
    %v1680 = vcombine.high %v1670, %v1670
    %v1681 = vcombine.high %v1677, %v1677
    %v1683 = vunpack.c.l.s4 1966171168
    %v1684 = vunpack.c.0.s8 %v1683
    %v1685 = vlaneseq
    %v1686 = vshrl.u32 %v1685, 7
    %v1687 = vsub.s32 %v1684, %v1686
    %v1688 = vrot.slane %v1538, %v1687
    %v1690 = vunpack.c.l.s4 1966171168
    %v1691 = vunpack.c.0.s8 %v1690
    %v1692 = vlaneseq
    %v1693 = vshrl.u32 %v1692, 7
    %v1694 = vsub.s32 %v1691, %v1693
    %v1695 = vrot.slane %v1688, %v1694
    %v1696 = vcombine.high %v1621, %v1621
    %v1698 = vunpack.c.l.s4 1966171168
    %v1699 = vunpack.c.0.s8 %v1698
    %v1700 = vlaneseq
    %v1701 = vshrl.u32 %v1700, 7
    %v1702 = vsub.s32 %v1699, %v1701
    %v1703 = vrot.slane %v1621, %v1702
    %v1705 = vunpack.c.l.s4 1966171168
    %v1706 = vunpack.c.0.s8 %v1705
    %v1707 = vlaneseq
    %v1708 = vshrl.u32 %v1707, 7
    %v1709 = vsub.s32 %v1706, %v1708
    %v1710 = vrot.slane %v1696, %v1709
    %v1711 = vcombine.high %v1703, %v1703
    %v1712 = vcombine.high %v1710, %v1710
    %v1714 = vunpack.c.l.s4 1966171168
    %v1715 = vunpack.c.0.s8 %v1714
    %v1716 = vlaneseq
    %v1717 = vshrl.u32 %v1716, 7
    %v1718 = vsub.s32 %v1715, %v1717
    %v1719 = vrot.slane %v1703, %v1718
    %v1721 = vunpack.c.l.s4 1966171168
    %v1722 = vunpack.c.0.s8 %v1721
    %v1723 = vlaneseq
    %v1724 = vshrl.u32 %v1723, 7
    %v1725 = vsub.s32 %v1722, %v1724
    %v1726 = vrot.slane %v1710, %v1725
    %v1728 = vunpack.c.l.s4 1966171168
    %v1729 = vunpack.c.0.s8 %v1728
    %v1730 = vlaneseq
    %v1731 = vshrl.u32 %v1730, 7
    %v1732 = vsub.s32 %v1729, %v1731
    %v1733 = vrot.slane %v1711, %v1732
    %v1735 = vunpack.c.l.s4 1966171168
    %v1736 = vunpack.c.0.s8 %v1735
    %v1737 = vlaneseq
    %v1738 = vshrl.u32 %v1737, 7
    %v1739 = vsub.s32 %v1736, %v1738
    %v1740 = vrot.slane %v1712, %v1739
    %v1741 = vcombine.high %v1719, %v1719
    %v1742 = vcombine.high %v1726, %v1726
    %v1743 = vcombine.high %v1733, %v1733
    %v1744 = vcombine.high %v1740, %v1740
    %v1746 = vunpack.c.l.s4 1966171168
    %v1747 = vunpack.c.0.s8 %v1746
    %v1748 = vlaneseq
    %v1749 = vshrl.u32 %v1748, 7
    %v1750 = vsub.s32 %v1747, %v1749
    %v1751 = vrot.slane %v1626, %v1750
    %v1753 = vunpack.c.l.s4 1966171168
    %v1754 = vunpack.c.0.s8 %v1753
    %v1755 = vlaneseq
    %v1756 = vshrl.u32 %v1755, 7
    %v1757 = vsub.s32 %v1754, %v1756
    %v1758 = vrot.slane %v1751, %v1757
    %v1759 = vcombine.low %v1656, %v1670
    %v1760 = vcombine.low %v1678, %v1680
    %v1761 = vcombine.low %v1663, %v1677
    %v1762 = vcombine.low %v1679, %v1681
    %v1764 = vunpack.c.l.s4 1966171168
    %v1765 = vunpack.c.0.s8 %v1764
    %v1766 = vlaneseq
    %v1767 = vshrl.u32 %v1766, 7
    %v1768 = vsub.s32 %v1765, %v1767
    %v1769 = vrot.slane %v1759, %v1768
    %v1771 = vunpack.c.l.s4 1966171168
    %v1772 = vunpack.c.0.s8 %v1771
    %v1773 = vlaneseq
    %v1774 = vshrl.u32 %v1773, 7
    %v1775 = vsub.s32 %v1772, %v1774
    %v1776 = vrot.slane %v1760, %v1775
    %v1778 = vunpack.c.l.s4 1966171168
    %v1779 = vunpack.c.0.s8 %v1778
    %v1780 = vlaneseq
    %v1781 = vshrl.u32 %v1780, 7
    %v1782 = vsub.s32 %v1779, %v1781
    %v1783 = vrot.slane %v1761, %v1782
    %v1785 = vunpack.c.l.s4 1966171168
    %v1786 = vunpack.c.0.s8 %v1785
    %v1787 = vlaneseq
    %v1788 = vshrl.u32 %v1787, 7
    %v1789 = vsub.s32 %v1786, %v1788
    %v1790 = vrot.slane %v1762, %v1789
    %v1791 = vcombine.low %v1769, %v1776
    %v1792 = vcombine.low %v1783, %v1790
    %v1794 = vunpack.c.l.s4 1966171168
    %v1795 = vunpack.c.0.s8 %v1794
    %v1796 = vlaneseq
    %v1797 = vshrl.u32 %v1796, 7
    %v1798 = vsub.s32 %v1795, %v1797
    %v1799 = vrot.slane %v1791, %v1798
    %v1801 = vunpack.c.l.s4 1966171168
    %v1802 = vunpack.c.0.s8 %v1801
    %v1803 = vlaneseq
    %v1804 = vshrl.u32 %v1803, 7
    %v1805 = vsub.s32 %v1802, %v1804
    %v1806 = vrot.slane %v1792, %v1805
    %v1807 = vcombine.low %v1799, %v1806
    %v1808 = vcombine.low %v1695, %v1719
    %v1809 = vcombine.low %v1733, %v1741
    %v1810 = vcombine.low %v1743, %v1726
    %v1811 = vcombine.low %v1740, %v1742
    %v1813 = vunpack.c.l.s4 1966171168
    %v1814 = vunpack.c.0.s8 %v1813
    %v1815 = vlaneseq
    %v1816 = vshrl.u32 %v1815, 7
    %v1817 = vsub.s32 %v1814, %v1816
    %v1818 = vrot.slane %v1808, %v1817
    %v1820 = vunpack.c.l.s4 1966171168
    %v1821 = vunpack.c.0.s8 %v1820
    %v1822 = vlaneseq
    %v1823 = vshrl.u32 %v1822, 7
    %v1824 = vsub.s32 %v1821, %v1823
    %v1825 = vrot.slane %v1809, %v1824
    %v1827 = vunpack.c.l.s4 1966171168
    %v1828 = vunpack.c.0.s8 %v1827
    %v1829 = vlaneseq
    %v1830 = vshrl.u32 %v1829, 7
    %v1831 = vsub.s32 %v1828, %v1830
    %v1832 = vrot.slane %v1810, %v1831
    %v1834 = vunpack.c.l.s4 1966171168
    %v1835 = vunpack.c.0.s8 %v1834
    %v1836 = vlaneseq
    %v1837 = vshrl.u32 %v1836, 7
    %v1838 = vsub.s32 %v1835, %v1837
    %v1839 = vrot.slane %v1811, %v1838
    %v1840 = vcombine.low %v1818, %v1825
    %v1841 = vcombine.low %v1832, %v1839
    %v1843 = vunpack.c.l.s4 1966171168
    %v1844 = vunpack.c.0.s8 %v1843
    %v1845 = vlaneseq
    %v1846 = vshrl.u32 %v1845, 7
    %v1847 = vsub.s32 %v1844, %v1846
    %v1848 = vrot.slane %v1840, %v1847
    %v1850 = vunpack.c.l.s4 1966171168
    %v1851 = vunpack.c.0.s8 %v1850
    %v1852 = vlaneseq
    %v1853 = vshrl.u32 %v1852, 7
    %v1854 = vsub.s32 %v1851, %v1853
    %v1855 = vrot.slane %v1841, %v1854
    %v1856 = vcombine.low %v1848, %v1855
    %v1857 = vcombine.low %v1744, %v1758
    %v1859 = vunpack.c.l.s4 1966171168
    %v1860 = vunpack.c.0.s8 %v1859
    %v1861 = vlaneseq
    %v1862 = vshrl.u32 %v1861, 7
    %v1863 = vsub.s32 %v1860, %v1862
    %v1864 = vrot.slane %v1857, %v1863
    %v1866 = vunpack.c.l.s4 1966171168
    %v1867 = vunpack.c.0.s8 %v1866
    %v1868 = vlaneseq
    %v1869 = vshrl.u32 %v1868, 7
    %v1870 = vsub.s32 %v1867, %v1869
    %v1871 = vrot.slane %v1864, %v1870
    %v1872 = vsel %vm641, %v1807, 0
    %v1874 = vsel %vm641, %v1856, 0
    %v1876 = vsel %vm641, %v1871, 0
    %1878 = vmatprep.subr.mxu0 0.0
    %1879 = vmatpush1.msra.mxu0 0.0
    %1880 = vmatprep.subr.mxu0 0.0
    %1881 = vmatpush1.msra.mxu0 0.0
    %1882 = vmatprep.subr.mxu0 0.0
    %1883 = vmatpush1.msra.mxu0 0.0
    %1884 = vmatprep.subr.mxu0 0.0
    %1885 = vmatpush1.msra.mxu0 0.0
    %1886 = vmatprep.subr.mxu0 0.0
    %1887 = vmatpush1.msra.mxu0 0.0
    %1888 = vmatprep.subr.mxu0 0.0
    %1889 = vmatpush1.msra.mxu0 0.0
    %1890 = vmatprep.subr.mxu0 0.0
    %1891 = vmatpush1.msra.mxu0 0.0
    %1892 = vmatprep.subr.mxu0 0.0
    %1893 = vmatpush1.msra.mxu0 0.0
    %1894 = vmatprep.subr.mxu0 0.0
    %1895 = vmatpush1.msra.mxu0 0.0
    %1896 = vmatprep.subr.mxu0 0.0
    %1897 = vmatpush1.msra.mxu0 0.0
    %1898 = vmatprep.subr.mxu0 0.0
    %1899 = vmatpush1.msra.mxu0 0.0
    %1900 = vmatprep.subr.mxu0 0.0
    %1901 = vmatpush1.msra.mxu0 0.0
    %1902 = vmatprep.subr.mxu0 0.0
    %1903 = vmatpush1.msra.mxu0 0.0
    %1904 = vmatprep.subr.mxu0 0.0
    %1905 = vmatpush1.msra.mxu0 0.0
    %1906 = vmatprep.subr.mxu0 0.0
    %1907 = vmatpush1.msra.mxu0 0.0
    %1908 = vmatprep.subr.mxu0 0.0
    %1909 = vmatpush1.msra.mxu0 %v571
    %1910 = vmatprep.subr.mxu0 0.0
    %1911 = vmatpush2.msra.mxu0 0.0
    %1912 = vmatprep.subr.mxu0 0.0
    %1913 = vmatpush2.msra.mxu0 0.0
    %1914 = vmatprep.subr.mxu0 0.0
    %1915 = vmatpush2.msra.mxu0 0.0
    %1916 = vmatprep.subr.mxu0 0.0
    %1917 = vmatpush2.msra.mxu0 0.0
    %1918 = vmatprep.subr.mxu0 0.0
    %1919 = vmatpush2.msra.mxu0 0.0
    %1920 = vmatprep.subr.mxu0 0.0
    %1921 = vmatpush2.msra.mxu0 0.0
    %1922 = vmatprep.subr.mxu0 0.0
    %1923 = vmatpush2.msra.mxu0 0.0
    %1924 = vmatprep.subr.mxu0 0.0
    %1925 = vmatpush2.msra.mxu0 0.0
    %1926 = vmatprep.subr.mxu0 0.0
    %1927 = vmatpush2.msra.mxu0 0.0
    %1928 = vmatprep.subr.mxu0 0.0
    %1929 = vmatpush2.msra.mxu0 0.0
    %1930 = vmatprep.subr.mxu0 0.0
    %1931 = vmatpush2.msra.mxu0 0.0
    %1932 = vmatprep.subr.mxu0 0.0
    %1933 = vmatpush2.msra.mxu0 0.0
    %1934 = vmatprep.subr.mxu0 0.0
    %1935 = vmatpush2.msra.mxu0 0.0
    %1936 = vmatprep.subr.mxu0 0.0
    %1937 = vmatpush2.msra.mxu0 0.0
    %1938 = vmatprep.subr.mxu0 0.0
    %1939 = vmatpush2.msra.mxu0 0.0
    %1940 = vmatprep.subr.mxu0 0.0
    %1941 = vmatpush2.msra.mxu0 0.0
    %1942 = vmatprep.mubr.f32.mxu0 0.0
    %1943 = vmatmul.mubr.f32.gmra.mxu0 %v1872
    %v1944 = vpop.f32.mrf.mxu0
    %v1945 = vadd.f32 0.0, %v1944
    %v1946 = vpop.f32.mrf.mxu0
    %1947 = vmatprep.mubr.f32.mxu0 0.0
    %1948 = vmatmul.mubr.f32.gmra.mxu0 %v1874
    %v1949 = vpop.f32.mrf.mxu0
    %v1950 = vadd.f32 0.0, %v1949
    %v1951 = vpop.f32.mrf.mxu0
    %1952 = vmatprep.mubr.f32.mxu0 0.0
    %1953 = vmatmul.mubr.f32.gmra.mxu0 %v1876
    %v1954 = vpop.f32.mrf.mxu0
    %v1955 = vadd.f32 0.0, %v1954
    %v1956 = vpop.f32.mrf.mxu0
    %1957 = vdwg.mxu0
    %v1958 = vcombine.low %v1124, %v1138
    %v1959 = vcombine.low %v1146, %v1148
    %v1960 = vcombine.low %v1131, %v1145
    %v1961 = vcombine.low %v1147, %v1149
    %v1963 = vunpack.c.l.s4 1966171168
    %v1964 = vunpack.c.0.s8 %v1963
    %v1965 = vlaneseq
    %v1966 = vshrl.u32 %v1965, 7
    %v1967 = vsub.s32 %v1964, %v1966
    %v1968 = vrot.slane %v1958, %v1967
    %v1970 = vunpack.c.l.s4 1966171168
    %v1971 = vunpack.c.0.s8 %v1970
    %v1972 = vlaneseq
    %v1973 = vshrl.u32 %v1972, 7
    %v1974 = vsub.s32 %v1971, %v1973
    %v1975 = vrot.slane %v1959, %v1974
    %v1977 = vunpack.c.l.s4 1966171168
    %v1978 = vunpack.c.0.s8 %v1977
    %v1979 = vlaneseq
    %v1980 = vshrl.u32 %v1979, 7
    %v1981 = vsub.s32 %v1978, %v1980
    %v1982 = vrot.slane %v1960, %v1981
    %v1984 = vunpack.c.l.s4 1966171168
    %v1985 = vunpack.c.0.s8 %v1984
    %v1986 = vlaneseq
    %v1987 = vshrl.u32 %v1986, 7
    %v1988 = vsub.s32 %v1985, %v1987
    %v1989 = vrot.slane %v1961, %v1988
    %v1990 = vcombine.low %v1968, %v1975
    %v1991 = vcombine.low %v1982, %v1989
    %v1993 = vunpack.c.l.s4 1966171168
    %v1994 = vunpack.c.0.s8 %v1993
    %v1995 = vlaneseq
    %v1996 = vshrl.u32 %v1995, 7
    %v1997 = vsub.s32 %v1994, %v1996
    %v1998 = vrot.slane %v1990, %v1997
    %v2000 = vunpack.c.l.s4 1966171168
    %v2001 = vunpack.c.0.s8 %v2000
    %v2002 = vlaneseq
    %v2003 = vshrl.u32 %v2002, 7
    %v2004 = vsub.s32 %v2001, %v2003
    %v2005 = vrot.slane %v1991, %v2004
    %v2006 = vcombine.low %v1998, %v2005
    %v2007 = vcombine.low %v1163, %v1187
    %v2008 = vcombine.low %v1201, %v1209
    %v2009 = vcombine.low %v1211, %v1194
    %v2010 = vcombine.low %v1208, %v1210
    %v2012 = vunpack.c.l.s4 1966171168
    %v2013 = vunpack.c.0.s8 %v2012
    %v2014 = vlaneseq
    %v2015 = vshrl.u32 %v2014, 7
    %v2016 = vsub.s32 %v2013, %v2015
    %v2017 = vrot.slane %v2007, %v2016
    %v2019 = vunpack.c.l.s4 1966171168
    %v2020 = vunpack.c.0.s8 %v2019
    %v2021 = vlaneseq
    %v2022 = vshrl.u32 %v2021, 7
    %v2023 = vsub.s32 %v2020, %v2022
    %v2024 = vrot.slane %v2008, %v2023
    %v2026 = vunpack.c.l.s4 1966171168
    %v2027 = vunpack.c.0.s8 %v2026
    %v2028 = vlaneseq
    %v2029 = vshrl.u32 %v2028, 7
    %v2030 = vsub.s32 %v2027, %v2029
    %v2031 = vrot.slane %v2009, %v2030
    %v2033 = vunpack.c.l.s4 1966171168
    %v2034 = vunpack.c.0.s8 %v2033
    %v2035 = vlaneseq
    %v2036 = vshrl.u32 %v2035, 7
    %v2037 = vsub.s32 %v2034, %v2036
    %v2038 = vrot.slane %v2010, %v2037
    %v2039 = vcombine.low %v2017, %v2024
    %v2040 = vcombine.low %v2031, %v2038
    %v2042 = vunpack.c.l.s4 1966171168
    %v2043 = vunpack.c.0.s8 %v2042
    %v2044 = vlaneseq
    %v2045 = vshrl.u32 %v2044, 7
    %v2046 = vsub.s32 %v2043, %v2045
    %v2047 = vrot.slane %v2039, %v2046
    %v2049 = vunpack.c.l.s4 1966171168
    %v2050 = vunpack.c.0.s8 %v2049
    %v2051 = vlaneseq
    %v2052 = vshrl.u32 %v2051, 7
    %v2053 = vsub.s32 %v2050, %v2052
    %v2054 = vrot.slane %v2040, %v2053
    %v2055 = vcombine.low %v2047, %v2054
    %v2056 = vcombine.low %v1212, %v1226
    %v2058 = vunpack.c.l.s4 1966171168
    %v2059 = vunpack.c.0.s8 %v2058
    %v2060 = vlaneseq
    %v2061 = vshrl.u32 %v2060, 7
    %v2062 = vsub.s32 %v2059, %v2061
    %v2063 = vrot.slane %v2056, %v2062
    %v2065 = vunpack.c.l.s4 1966171168
    %v2066 = vunpack.c.0.s8 %v2065
    %v2067 = vlaneseq
    %v2068 = vshrl.u32 %v2067, 7
    %v2069 = vsub.s32 %v2066, %v2068
    %v2070 = vrot.slane %v2063, %v2069
    %v2071 = vsel %vm641, %v2006, 0
    %v2073 = vsel %vm641, %v2055, 0
    %v2075 = vsel %vm641, %v2070, 0
    %2077 = vmatprep.subr.mxu0 0.0
    %2078 = vmatpush1.msra.mxu0 0.0
    %2079 = vmatprep.subr.mxu0 0.0
    %2080 = vmatpush1.msra.mxu0 0.0
    %2081 = vmatprep.subr.mxu0 0.0
    %2082 = vmatpush1.msra.mxu0 0.0
    %2083 = vmatprep.subr.mxu0 0.0
    %2084 = vmatpush1.msra.mxu0 0.0
    %2085 = vmatprep.subr.mxu0 0.0
    %2086 = vmatpush1.msra.mxu0 0.0
    %2087 = vmatprep.subr.mxu0 0.0
    %2088 = vmatpush1.msra.mxu0 0.0
    %2089 = vmatprep.subr.mxu0 0.0
    %2090 = vmatpush1.msra.mxu0 0.0
    %2091 = vmatprep.subr.mxu0 0.0
    %2092 = vmatpush1.msra.mxu0 0.0
    %2093 = vmatprep.subr.mxu0 0.0
    %2094 = vmatpush1.msra.mxu0 0.0
    %2095 = vmatprep.subr.mxu0 0.0
    %2096 = vmatpush1.msra.mxu0 0.0
    %2097 = vmatprep.subr.mxu0 0.0
    %2098 = vmatpush1.msra.mxu0 0.0
    %2099 = vmatprep.subr.mxu0 0.0
    %2100 = vmatpush1.msra.mxu0 0.0
    %2101 = vmatprep.subr.mxu0 0.0
    %2102 = vmatpush1.msra.mxu0 0.0
    %2103 = vmatprep.subr.mxu0 0.0
    %2104 = vmatpush1.msra.mxu0 0.0
    %2105 = vmatprep.subr.mxu0 0.0
    %2106 = vmatpush1.msra.mxu0 0.0
    %2107 = vmatprep.subr.mxu0 0.0
    %2108 = vmatpush1.msra.mxu0 %v570
    %2109 = vmatprep.subr.mxu0 0.0
    %2110 = vmatpush2.msra.mxu0 0.0
    %2111 = vmatprep.subr.mxu0 0.0
    %2112 = vmatpush2.msra.mxu0 0.0
    %2113 = vmatprep.subr.mxu0 0.0
    %2114 = vmatpush2.msra.mxu0 0.0
    %2115 = vmatprep.subr.mxu0 0.0
    %2116 = vmatpush2.msra.mxu0 0.0
    %2117 = vmatprep.subr.mxu0 0.0
    %2118 = vmatpush2.msra.mxu0 0.0
    %2119 = vmatprep.subr.mxu0 0.0
    %2120 = vmatpush2.msra.mxu0 0.0
    %2121 = vmatprep.subr.mxu0 0.0
    %2122 = vmatpush2.msra.mxu0 0.0
    %2123 = vmatprep.subr.mxu0 0.0
    %2124 = vmatpush2.msra.mxu0 0.0
    %2125 = vmatprep.subr.mxu0 0.0
    %2126 = vmatpush2.msra.mxu0 0.0
    %2127 = vmatprep.subr.mxu0 0.0
    %2128 = vmatpush2.msra.mxu0 0.0
    %2129 = vmatprep.subr.mxu0 0.0
    %2130 = vmatpush2.msra.mxu0 0.0
    %2131 = vmatprep.subr.mxu0 0.0
    %2132 = vmatpush2.msra.mxu0 0.0
    %2133 = vmatprep.subr.mxu0 0.0
    %2134 = vmatpush2.msra.mxu0 0.0
    %2135 = vmatprep.subr.mxu0 0.0
    %2136 = vmatpush2.msra.mxu0 0.0
    %2137 = vmatprep.subr.mxu0 0.0
    %2138 = vmatpush2.msra.mxu0 0.0
    %2139 = vmatprep.subr.mxu0 0.0
    %2140 = vmatpush2.msra.mxu0 0.0
    %2141 = vmatprep.mubr.f32.mxu0 0.0
    %2142 = vmatmul.mubr.f32.gmra.mxu0 %v2071
    %v2143 = vpop.f32.mrf.mxu0
    %v2144 = vadd.f32 %v1945, %v2143
    %v2145 = vpop.f32.mrf.mxu0
    %2146 = vmatprep.mubr.f32.mxu0 0.0
    %2147 = vmatmul.mubr.f32.gmra.mxu0 %v2073
    %v2148 = vpop.f32.mrf.mxu0
    %v2149 = vadd.f32 %v1950, %v2148
    %v2150 = vpop.f32.mrf.mxu0
    %2151 = vmatprep.mubr.f32.mxu0 0.0
    %2152 = vmatmul.mubr.f32.gmra.mxu0 %v2075
    %v2153 = vpop.f32.mrf.mxu0
    %v2154 = vadd.f32 %v1955, %v2153
    %v2155 = vpop.f32.mrf.mxu0
    %2156 = vdwg.mxu0
    %2157 = vrot.lane.b32.xlu0 %v622, 112
    %v2158 = vpop.permute.xlu0 %2157
    %2159 = vrot.lane.b32.xlu0 %v636, 112
    %v2160 = vpop.permute.xlu0 %2159
    %2161 = vrot.lane.b32.xlu0 %v622, 80
    %v2162 = vpop.permute.xlu0 %2161
    %2163 = vrot.lane.b32.xlu0 %v636, 80
    %v2164 = vpop.permute.xlu0 %2163
    %v2165 = vsel %vm641, %v2158, 0
    %v2167 = vsel %vm641, %v2160, 0
    %v2169 = vsel %vm641, %v2162, 0
    %v2171 = vsel %vm641, %v2164, 0
    %2173 = vmatprep.subr.mxu0 0.0
    %2174 = vmatpush1.xpose.msra.mxu0 0.0
    %2175 = vmatprep.subr.mxu0 0.0
    %2176 = vmatpush1.xpose.msra.mxu0 0.0
    %2177 = vmatprep.subr.mxu0 0.0
    %2178 = vmatpush1.xpose.msra.mxu0 0.0
    %2179 = vmatprep.subr.mxu0 0.0
    %2180 = vmatpush1.xpose.msra.mxu0 0.0
    %2181 = vmatprep.subr.mxu0 0.0
    %2182 = vmatpush1.xpose.msra.mxu0 0.0
    %2183 = vmatprep.subr.mxu0 0.0
    %2184 = vmatpush1.xpose.msra.mxu0 0.0
    %2185 = vmatprep.subr.mxu0 0.0
    %2186 = vmatpush1.xpose.msra.mxu0 0.0
    %2187 = vmatprep.subr.mxu0 0.0
    %2188 = vmatpush1.xpose.msra.mxu0 0.0
    %2189 = vmatprep.subr.mxu0 0.0
    %2190 = vmatpush1.xpose.msra.mxu0 0.0
    %2191 = vmatprep.subr.mxu0 0.0
    %2192 = vmatpush1.xpose.msra.mxu0 0.0
    %2193 = vmatprep.subr.mxu0 0.0
    %2194 = vmatpush1.xpose.msra.mxu0 0.0
    %2195 = vmatprep.subr.mxu0 0.0
    %2196 = vmatpush1.xpose.msra.mxu0 0.0
    %2197 = vmatprep.subr.mxu0 0.0
    %2198 = vmatpush1.xpose.msra.mxu0 0.0
    %2199 = vmatprep.subr.mxu0 0.0
    %2200 = vmatpush1.xpose.msra.mxu0 0.0
    %2201 = vmatprep.subr.mxu0 0.0
    %2202 = vmatpush1.xpose.msra.mxu0 %v2171
    %2203 = vmatprep.subr.mxu0 0.0
    %2204 = vmatpush1.xpose.msra.mxu0 %v2169
    %2205 = vmatprep.subr.mxu0 0.0
    %2206 = vmatpush2.xpose.msra.mxu0 0.0
    %2207 = vmatprep.subr.mxu0 0.0
    %2208 = vmatpush2.xpose.msra.mxu0 0.0
    %2209 = vmatprep.subr.mxu0 0.0
    %2210 = vmatpush2.xpose.msra.mxu0 0.0
    %2211 = vmatprep.subr.mxu0 0.0
    %2212 = vmatpush2.xpose.msra.mxu0 0.0
    %2213 = vmatprep.subr.mxu0 0.0
    %2214 = vmatpush2.xpose.msra.mxu0 0.0
    %2215 = vmatprep.subr.mxu0 0.0
    %2216 = vmatpush2.xpose.msra.mxu0 0.0
    %2217 = vmatprep.subr.mxu0 0.0
    %2218 = vmatpush2.xpose.msra.mxu0 0.0
    %2219 = vmatprep.subr.mxu0 0.0
    %2220 = vmatpush2.xpose.msra.mxu0 0.0
    %2221 = vmatprep.subr.mxu0 0.0
    %2222 = vmatpush2.xpose.msra.mxu0 0.0
    %2223 = vmatprep.subr.mxu0 0.0
    %2224 = vmatpush2.xpose.msra.mxu0 0.0
    %2225 = vmatprep.subr.mxu0 0.0
    %2226 = vmatpush2.xpose.msra.mxu0 0.0
    %2227 = vmatprep.subr.mxu0 0.0
    %2228 = vmatpush2.xpose.msra.mxu0 0.0
    %2229 = vmatprep.subr.mxu0 0.0
    %2230 = vmatpush2.xpose.msra.mxu0 0.0
    %2231 = vmatprep.subr.mxu0 0.0
    %2232 = vmatpush2.xpose.msra.mxu0 0.0
    %2233 = vmatprep.subr.mxu0 0.0
    %2234 = vmatpush2.xpose.msra.mxu0 0.0
    %2235 = vmatprep.subr.mxu0 0.0
    %2236 = vmatpush2.xpose.msra.mxu0 0.0
    %2237 = vmatprep.mubr.f32.mxu0 0.0
    %2238 = vmatmul.mubr.f32.gmra.mxu0 %v2165
    %v2239 = vpop.f32.mrf.mxu0
    %v2240 = vadd.f32 0.0, %v2239
    %v2241 = vpop.f32.mrf.mxu0
    %2242 = vmatprep.mubr.f32.mxu0 0.0
    %2243 = vmatmul.mubr.f32.gmra.mxu0 %v2167
    %v2244 = vpop.f32.mrf.mxu0
    %v2245 = vadd.f32 0.0, %v2244
    %v2246 = vpop.f32.mrf.mxu0
    %2247 = vdwg.mxu0
    %2248 = vrot.lane.b32.xlu0 %v773, 112
    %v2249 = vpop.permute.xlu0 %2248
    %2250 = vrot.lane.b32.xlu0 %v787, 112
    %v2251 = vpop.permute.xlu0 %2250
    %2252 = vrot.lane.b32.xlu0 %v773, 80
    %v2253 = vpop.permute.xlu0 %2252
    %2254 = vrot.lane.b32.xlu0 %v787, 80
    %v2255 = vpop.permute.xlu0 %2254
    %v2256 = vsel %vm641, %v2249, 0
    %v2258 = vsel %vm641, %v2251, 0
    %v2260 = vsel %vm641, %v2253, 0
    %v2262 = vsel %vm641, %v2255, 0
    %2264 = vmatprep.subr.mxu0 0.0
    %2265 = vmatpush1.xpose.msra.mxu0 0.0
    %2266 = vmatprep.subr.mxu0 0.0
    %2267 = vmatpush1.xpose.msra.mxu0 0.0
    %2268 = vmatprep.subr.mxu0 0.0
    %2269 = vmatpush1.xpose.msra.mxu0 0.0
    %2270 = vmatprep.subr.mxu0 0.0
    %2271 = vmatpush1.xpose.msra.mxu0 0.0
    %2272 = vmatprep.subr.mxu0 0.0
    %2273 = vmatpush1.xpose.msra.mxu0 0.0
    %2274 = vmatprep.subr.mxu0 0.0
    %2275 = vmatpush1.xpose.msra.mxu0 0.0
    %2276 = vmatprep.subr.mxu0 0.0
    %2277 = vmatpush1.xpose.msra.mxu0 0.0
    %2278 = vmatprep.subr.mxu0 0.0
    %2279 = vmatpush1.xpose.msra.mxu0 0.0
    %2280 = vmatprep.subr.mxu0 0.0
    %2281 = vmatpush1.xpose.msra.mxu0 0.0
    %2282 = vmatprep.subr.mxu0 0.0
    %2283 = vmatpush1.xpose.msra.mxu0 0.0
    %2284 = vmatprep.subr.mxu0 0.0
    %2285 = vmatpush1.xpose.msra.mxu0 0.0
    %2286 = vmatprep.subr.mxu0 0.0
    %2287 = vmatpush1.xpose.msra.mxu0 0.0
    %2288 = vmatprep.subr.mxu0 0.0
    %2289 = vmatpush1.xpose.msra.mxu0 0.0
    %2290 = vmatprep.subr.mxu0 0.0
    %2291 = vmatpush1.xpose.msra.mxu0 0.0
    %2292 = vmatprep.subr.mxu0 0.0
    %2293 = vmatpush1.xpose.msra.mxu0 %v2262
    %2294 = vmatprep.subr.mxu0 0.0
    %2295 = vmatpush1.xpose.msra.mxu0 %v2260
    %2296 = vmatprep.subr.mxu0 0.0
    %2297 = vmatpush2.xpose.msra.mxu0 0.0
    %2298 = vmatprep.subr.mxu0 0.0
    %2299 = vmatpush2.xpose.msra.mxu0 0.0
    %2300 = vmatprep.subr.mxu0 0.0
    %2301 = vmatpush2.xpose.msra.mxu0 0.0
    %2302 = vmatprep.subr.mxu0 0.0
    %2303 = vmatpush2.xpose.msra.mxu0 0.0
    %2304 = vmatprep.subr.mxu0 0.0
    %2305 = vmatpush2.xpose.msra.mxu0 0.0
    %2306 = vmatprep.subr.mxu0 0.0
    %2307 = vmatpush2.xpose.msra.mxu0 0.0
    %2308 = vmatprep.subr.mxu0 0.0
    %2309 = vmatpush2.xpose.msra.mxu0 0.0
    %2310 = vmatprep.subr.mxu0 0.0
    %2311 = vmatpush2.xpose.msra.mxu0 0.0
    %2312 = vmatprep.subr.mxu0 0.0
    %2313 = vmatpush2.xpose.msra.mxu0 0.0
    %2314 = vmatprep.subr.mxu0 0.0
    %2315 = vmatpush2.xpose.msra.mxu0 0.0
    %2316 = vmatprep.subr.mxu0 0.0
    %2317 = vmatpush2.xpose.msra.mxu0 0.0
    %2318 = vmatprep.subr.mxu0 0.0
    %2319 = vmatpush2.xpose.msra.mxu0 0.0
    %2320 = vmatprep.subr.mxu0 0.0
    %2321 = vmatpush2.xpose.msra.mxu0 0.0
    %2322 = vmatprep.subr.mxu0 0.0
    %2323 = vmatpush2.xpose.msra.mxu0 0.0
    %2324 = vmatprep.subr.mxu0 0.0
    %2325 = vmatpush2.xpose.msra.mxu0 0.0
    %2326 = vmatprep.subr.mxu0 0.0
    %2327 = vmatpush2.xpose.msra.mxu0 0.0
    %2328 = vmatprep.mubr.f32.mxu0 0.0
    %2329 = vmatmul.mubr.f32.gmra.mxu0 %v2256
    %v2330 = vpop.f32.mrf.mxu0
    %v2331 = vadd.f32 0.0, %v2330
    %v2332 = vpop.f32.mrf.mxu0
    %2333 = vmatprep.mubr.f32.mxu0 0.0
    %2334 = vmatmul.mubr.f32.gmra.mxu0 %v2258
    %v2335 = vpop.f32.mrf.mxu0
    %v2336 = vadd.f32 0.0, %v2335
    %v2337 = vpop.f32.mrf.mxu0
    %2338 = vdwg.mxu0
    %v2339 = vsel %vm875, %v2240, -inf
    %2340 = vmax.xlane.f32.xlu0 %v2339
    %v2341 = vpop.xlane.xlu0 %2340
    %v2342 = vsel %vm879, %v2245, -inf
    %2343 = vmax.xlane.f32.xlu0 %v2342
    %v2344 = vpop.xlane.xlu0 %2343
    %v2345 = vsel %vm875, %v2331, -inf
    %2346 = vmax.xlane.f32.xlu0 %v2345
    %v2347 = vpop.xlane.xlu0 %2346
    %v2348 = vsel %vm879, %v2336, -inf
    %2349 = vmax.xlane.f32.xlu0 %v2348
    %v2350 = vpop.xlane.xlu0 %2349
    %v2351 = vsub.f32 %v2240, %v2341
    %v2352 = vsub.f32 %v2245, %v2344
    %v2353 = vsub.f32 %v2331, %v2347
    %v2354 = vsub.f32 %v2336, %v2350
    %v2355 = vmul.f32 %v2351, 1.442695
    %v2356 = vpow.pop %v2355
    %v2357 = vmul.f32 %v2352, 1.442695
    %v2358 = vpow.pop %v2357
    %v2359 = vmul.f32 %v2353, 1.442695
    %v2360 = vpow.pop %v2359
    %v2361 = vmul.f32 %v2354, 1.442695
    %v2362 = vpow.pop %v2361
    %v2363 = vsel %vm875, %v2356, 0.0
    %2364 = vadd.xlane.f32.xlu0 %v2363
    %v2365 = vpop.xlane.xlu0 %2364
    %v2366 = vsel %vm879, %v2358, 0.0
    %2367 = vadd.xlane.f32.xlu0 %v2366
    %v2368 = vpop.xlane.xlu0 %2367
    %v2369 = vsel %vm875, %v2360, 0.0
    %2370 = vadd.xlane.f32.xlu0 %v2369
    %v2371 = vpop.xlane.xlu0 %2370
    %v2372 = vsel %vm879, %v2362, 0.0
    %2373 = vadd.xlane.f32.xlu0 %v2372
    %v2374 = vpop.xlane.xlu0 %2373
    %v2375 = vrcp.pop %v2365
    %v2376 = vrcp.pop %v2368
    %v2377 = vrcp.pop %v2371
    %v2378 = vrcp.pop %v2374
    %v2379 = vmul.f32 %v2356, %v2375
    %v2380 = vmul.f32 %v2358, %v2376
    %v2381 = vmul.f32 %v2360, %v2377
    %v2382 = vmul.f32 %v2362, %v2378
    %2383 = vrot.lane.b32.xlu0 %v622, 48
    %v2384 = vpop.permute.xlu0 %2383
    %2385 = vrot.lane.b32.xlu0 %v636, 48
    %v2386 = vpop.permute.xlu0 %2385
    %v2389 = vsel %vm875, %v2379, 0
    %v2392 = vsel %vm875, %v2380, 0
    %v2394 = vsel %vm79, %v2386, 0
    %2396 = vmatprep.subr.mxu0 0.0
    %2397 = vmatpush1.msra.mxu0 0.0
    %2398 = vmatprep.subr.mxu0 0.0
    %2399 = vmatpush1.msra.mxu0 0.0
    %2400 = vmatprep.subr.mxu0 0.0
    %2401 = vmatpush1.msra.mxu0 0.0
    %2402 = vmatprep.subr.mxu0 0.0
    %2403 = vmatpush1.msra.mxu0 0.0
    %2404 = vmatprep.subr.mxu0 0.0
    %2405 = vmatpush1.msra.mxu0 0.0
    %2406 = vmatprep.subr.mxu0 0.0
    %2407 = vmatpush1.msra.mxu0 0.0
    %2408 = vmatprep.subr.mxu0 0.0
    %2409 = vmatpush1.msra.mxu0 0.0
    %2410 = vmatprep.subr.mxu0 0.0
    %2411 = vmatpush1.msra.mxu0 0.0
    %2412 = vmatprep.subr.mxu0 0.0
    %2413 = vmatpush1.msra.mxu0 0.0
    %2414 = vmatprep.subr.mxu0 0.0
    %2415 = vmatpush1.msra.mxu0 0.0
    %2416 = vmatprep.subr.mxu0 0.0
    %2417 = vmatpush1.msra.mxu0 0.0
    %2418 = vmatprep.subr.mxu0 0.0
    %2419 = vmatpush1.msra.mxu0 0.0
    %2420 = vmatprep.subr.mxu0 0.0
    %2421 = vmatpush1.msra.mxu0 0.0
    %2422 = vmatprep.subr.mxu0 0.0
    %2423 = vmatpush1.msra.mxu0 0.0
    %2424 = vmatprep.subr.mxu0 0.0
    %2425 = vmatpush1.msra.mxu0 %v2394
    %2426 = vmatprep.subr.mxu0 0.0
    %2427 = vmatpush1.msra.mxu0 %v2384
    %2428 = vmatprep.subr.mxu0 0.0
    %2429 = vmatpush2.msra.mxu0 0.0
    %2430 = vmatprep.subr.mxu0 0.0
    %2431 = vmatpush2.msra.mxu0 0.0
    %2432 = vmatprep.subr.mxu0 0.0
    %2433 = vmatpush2.msra.mxu0 0.0
    %2434 = vmatprep.subr.mxu0 0.0
    %2435 = vmatpush2.msra.mxu0 0.0
    %2436 = vmatprep.subr.mxu0 0.0
    %2437 = vmatpush2.msra.mxu0 0.0
    %2438 = vmatprep.subr.mxu0 0.0
    %2439 = vmatpush2.msra.mxu0 0.0
    %2440 = vmatprep.subr.mxu0 0.0
    %2441 = vmatpush2.msra.mxu0 0.0
    %2442 = vmatprep.subr.mxu0 0.0
    %2443 = vmatpush2.msra.mxu0 0.0
    %2444 = vmatprep.subr.mxu0 0.0
    %2445 = vmatpush2.msra.mxu0 0.0
    %2446 = vmatprep.subr.mxu0 0.0
    %2447 = vmatpush2.msra.mxu0 0.0
    %2448 = vmatprep.subr.mxu0 0.0
    %2449 = vmatpush2.msra.mxu0 0.0
    %2450 = vmatprep.subr.mxu0 0.0
    %2451 = vmatpush2.msra.mxu0 0.0
    %2452 = vmatprep.subr.mxu0 0.0
    %2453 = vmatpush2.msra.mxu0 0.0
    %2454 = vmatprep.subr.mxu0 0.0
    %2455 = vmatpush2.msra.mxu0 0.0
    %2456 = vmatprep.subr.mxu0 0.0
    %2457 = vmatpush2.msra.mxu0 0.0
    %2458 = vmatprep.subr.mxu0 0.0
    %2459 = vmatpush2.msra.mxu0 0.0
    %2460 = vmatprep.mubr.f32.mxu0 0.0
    %2461 = vmatmul.mubr.f32.gmra.mxu0 %v2389
    %v2462 = vpop.f32.mrf.mxu0
    %v2463 = vadd.f32 0.0, %v2462
    %v2464 = vpop.f32.mrf.mxu0
    %2465 = vmatprep.mubr.f32.mxu0 0.0
    %2466 = vmatmul.mubr.f32.gmra.mxu0 %v2392
    %v2467 = vpop.f32.mrf.mxu0
    %v2468 = vadd.f32 0.0, %v2467
    %v2469 = vpop.f32.mrf.mxu0
    %2470 = vdwg.mxu0
    %2471 = vrot.lane.b32.xlu0 %v773, 48
    %v2472 = vpop.permute.xlu0 %2471
    %2473 = vrot.lane.b32.xlu0 %v787, 48
    %v2474 = vpop.permute.xlu0 %2473
    %v2477 = vsel %vm875, %v2381, 0
    %v2480 = vsel %vm875, %v2382, 0
    %v2482 = vsel %vm79, %v2474, 0
    %2484 = vmatprep.subr.mxu0 0.0
    %2485 = vmatpush1.msra.mxu0 0.0
    %2486 = vmatprep.subr.mxu0 0.0
    %2487 = vmatpush1.msra.mxu0 0.0
    %2488 = vmatprep.subr.mxu0 0.0
    %2489 = vmatpush1.msra.mxu0 0.0
    %2490 = vmatprep.subr.mxu0 0.0
    %2491 = vmatpush1.msra.mxu0 0.0
    %2492 = vmatprep.subr.mxu0 0.0
    %2493 = vmatpush1.msra.mxu0 0.0
    %2494 = vmatprep.subr.mxu0 0.0
    %2495 = vmatpush1.msra.mxu0 0.0
    %2496 = vmatprep.subr.mxu0 0.0
    %2497 = vmatpush1.msra.mxu0 0.0
    %2498 = vmatprep.subr.mxu0 0.0
    %2499 = vmatpush1.msra.mxu0 0.0
    %2500 = vmatprep.subr.mxu0 0.0
    %2501 = vmatpush1.msra.mxu0 0.0
    %2502 = vmatprep.subr.mxu0 0.0
    %2503 = vmatpush1.msra.mxu0 0.0
    %2504 = vmatprep.subr.mxu0 0.0
    %2505 = vmatpush1.msra.mxu0 0.0
    %2506 = vmatprep.subr.mxu0 0.0
    %2507 = vmatpush1.msra.mxu0 0.0
    %2508 = vmatprep.subr.mxu0 0.0
    %2509 = vmatpush1.msra.mxu0 0.0
    %2510 = vmatprep.subr.mxu0 0.0
    %2511 = vmatpush1.msra.mxu0 0.0
    %2512 = vmatprep.subr.mxu0 0.0
    %2513 = vmatpush1.msra.mxu0 %v2482
    %2514 = vmatprep.subr.mxu0 0.0
    %2515 = vmatpush1.msra.mxu0 %v2472
    %2516 = vmatprep.subr.mxu0 0.0
    %2517 = vmatpush2.msra.mxu0 0.0
    %2518 = vmatprep.subr.mxu0 0.0
    %2519 = vmatpush2.msra.mxu0 0.0
    %2520 = vmatprep.subr.mxu0 0.0
    %2521 = vmatpush2.msra.mxu0 0.0
    %2522 = vmatprep.subr.mxu0 0.0
    %2523 = vmatpush2.msra.mxu0 0.0
    %2524 = vmatprep.subr.mxu0 0.0
    %2525 = vmatpush2.msra.mxu0 0.0
    %2526 = vmatprep.subr.mxu0 0.0
    %2527 = vmatpush2.msra.mxu0 0.0
    %2528 = vmatprep.subr.mxu0 0.0
    %2529 = vmatpush2.msra.mxu0 0.0
    %2530 = vmatprep.subr.mxu0 0.0
    %2531 = vmatpush2.msra.mxu0 0.0
    %2532 = vmatprep.subr.mxu0 0.0
    %2533 = vmatpush2.msra.mxu0 0.0
    %2534 = vmatprep.subr.mxu0 0.0
    %2535 = vmatpush2.msra.mxu0 0.0
    %2536 = vmatprep.subr.mxu0 0.0
    %2537 = vmatpush2.msra.mxu0 0.0
    %2538 = vmatprep.subr.mxu0 0.0
    %2539 = vmatpush2.msra.mxu0 0.0
    %2540 = vmatprep.subr.mxu0 0.0
    %2541 = vmatpush2.msra.mxu0 0.0
    %2542 = vmatprep.subr.mxu0 0.0
    %2543 = vmatpush2.msra.mxu0 0.0
    %2544 = vmatprep.subr.mxu0 0.0
    %2545 = vmatpush2.msra.mxu0 0.0
    %2546 = vmatprep.subr.mxu0 0.0
    %2547 = vmatpush2.msra.mxu0 0.0
    %2548 = vmatprep.mubr.f32.mxu0 0.0
    %2549 = vmatmul.mubr.f32.gmra.mxu0 %v2477
    %v2550 = vpop.f32.mrf.mxu0
    %v2551 = vadd.f32 0.0, %v2550
    %v2552 = vpop.f32.mrf.mxu0
    %2553 = vmatprep.mubr.f32.mxu0 0.0
    %2554 = vmatmul.mubr.f32.gmra.mxu0 %v2480
    %v2555 = vpop.f32.mrf.mxu0
    %v2556 = vadd.f32 0.0, %v2555
    %v2557 = vpop.f32.mrf.mxu0
    %2558 = vdwg.mxu0
    %v2563 = vcombine.high %v2463, %v2463
    %v2565 = vunpack.c.l.s4 1966171168
    %v2566 = vunpack.c.0.s8 %v2565
    %v2567 = vlaneseq
    %v2568 = vshrl.u32 %v2567, 7
    %v2569 = vsub.s32 %v2566, %v2568
    %v2570 = vrot.slane %v2463, %v2569
    %v2572 = vunpack.c.l.s4 1966171168
    %v2573 = vunpack.c.0.s8 %v2572
    %v2574 = vlaneseq
    %v2575 = vshrl.u32 %v2574, 7
    %v2576 = vsub.s32 %v2573, %v2575
    %v2577 = vrot.slane %v2563, %v2576
    %v2578 = vcombine.high %v2570, %v2570
    %v2579 = vcombine.high %v2577, %v2577
    %v2581 = vunpack.c.l.s4 1966171168
    %v2582 = vunpack.c.0.s8 %v2581
    %v2583 = vlaneseq
    %v2584 = vshrl.u32 %v2583, 7
    %v2585 = vsub.s32 %v2582, %v2584
    %v2586 = vrot.slane %v2570, %v2585
    %v2588 = vunpack.c.l.s4 1966171168
    %v2589 = vunpack.c.0.s8 %v2588
    %v2590 = vlaneseq
    %v2591 = vshrl.u32 %v2590, 7
    %v2592 = vsub.s32 %v2589, %v2591
    %v2593 = vrot.slane %v2577, %v2592
    %v2595 = vunpack.c.l.s4 1966171168
    %v2596 = vunpack.c.0.s8 %v2595
    %v2597 = vlaneseq
    %v2598 = vshrl.u32 %v2597, 7
    %v2599 = vsub.s32 %v2596, %v2598
    %v2600 = vrot.slane %v2578, %v2599
    %v2602 = vunpack.c.l.s4 1966171168
    %v2603 = vunpack.c.0.s8 %v2602
    %v2604 = vlaneseq
    %v2605 = vshrl.u32 %v2604, 7
    %v2606 = vsub.s32 %v2603, %v2605
    %v2607 = vrot.slane %v2579, %v2606
    %v2608 = vcombine.high %v2586, %v2586
    %v2609 = vcombine.high %v2593, %v2593
    %v2610 = vcombine.high %v2600, %v2600
    %v2611 = vcombine.high %v2607, %v2607
    %v2613 = vunpack.c.l.s4 1966171168
    %v2614 = vunpack.c.0.s8 %v2613
    %v2615 = vlaneseq
    %v2616 = vshrl.u32 %v2615, 7
    %v2617 = vsub.s32 %v2614, %v2616
    %v2618 = vrot.slane %v2468, %v2617
    %v2620 = vunpack.c.l.s4 1966171168
    %v2621 = vunpack.c.0.s8 %v2620
    %v2622 = vlaneseq
    %v2623 = vshrl.u32 %v2622, 7
    %v2624 = vsub.s32 %v2621, %v2623
    %v2625 = vrot.slane %v2618, %v2624
    %v2626 = vcombine.high %v2551, %v2551
    %v2628 = vunpack.c.l.s4 1966171168
    %v2629 = vunpack.c.0.s8 %v2628
    %v2630 = vlaneseq
    %v2631 = vshrl.u32 %v2630, 7
    %v2632 = vsub.s32 %v2629, %v2631
    %v2633 = vrot.slane %v2551, %v2632
    %v2635 = vunpack.c.l.s4 1966171168
    %v2636 = vunpack.c.0.s8 %v2635
    %v2637 = vlaneseq
    %v2638 = vshrl.u32 %v2637, 7
    %v2639 = vsub.s32 %v2636, %v2638
    %v2640 = vrot.slane %v2626, %v2639
    %v2641 = vcombine.high %v2633, %v2633
    %v2642 = vcombine.high %v2640, %v2640
    %v2644 = vunpack.c.l.s4 1966171168
    %v2645 = vunpack.c.0.s8 %v2644
    %v2646 = vlaneseq
    %v2647 = vshrl.u32 %v2646, 7
    %v2648 = vsub.s32 %v2645, %v2647
    %v2649 = vrot.slane %v2633, %v2648
    %v2651 = vunpack.c.l.s4 1966171168
    %v2652 = vunpack.c.0.s8 %v2651
    %v2653 = vlaneseq
    %v2654 = vshrl.u32 %v2653, 7
    %v2655 = vsub.s32 %v2652, %v2654
    %v2656 = vrot.slane %v2640, %v2655
    %v2658 = vunpack.c.l.s4 1966171168
    %v2659 = vunpack.c.0.s8 %v2658
    %v2660 = vlaneseq
    %v2661 = vshrl.u32 %v2660, 7
    %v2662 = vsub.s32 %v2659, %v2661
    %v2663 = vrot.slane %v2641, %v2662
    %v2665 = vunpack.c.l.s4 1966171168
    %v2666 = vunpack.c.0.s8 %v2665
    %v2667 = vlaneseq
    %v2668 = vshrl.u32 %v2667, 7
    %v2669 = vsub.s32 %v2666, %v2668
    %v2670 = vrot.slane %v2642, %v2669
    %v2671 = vcombine.high %v2649, %v2649
    %v2672 = vcombine.high %v2656, %v2656
    %v2673 = vcombine.high %v2663, %v2663
    %v2674 = vcombine.high %v2670, %v2670
    %v2676 = vunpack.c.l.s4 1966171168
    %v2677 = vunpack.c.0.s8 %v2676
    %v2678 = vlaneseq
    %v2679 = vshrl.u32 %v2678, 7
    %v2680 = vsub.s32 %v2677, %v2679
    %v2681 = vrot.slane %v2556, %v2680
    %v2683 = vunpack.c.l.s4 1966171168
    %v2684 = vunpack.c.0.s8 %v2683
    %v2685 = vlaneseq
    %v2686 = vshrl.u32 %v2685, 7
    %v2687 = vsub.s32 %v2684, %v2686
    %v2688 = vrot.slane %v2681, %v2687
    %v2689 = vcombine.low %v2586, %v2600
    %v2690 = vcombine.low %v2608, %v2610
    %v2691 = vcombine.low %v2593, %v2607
    %v2692 = vcombine.low %v2609, %v2611
    %v2694 = vunpack.c.l.s4 1966171168
    %v2695 = vunpack.c.0.s8 %v2694
    %v2696 = vlaneseq
    %v2697 = vshrl.u32 %v2696, 7
    %v2698 = vsub.s32 %v2695, %v2697
    %v2699 = vrot.slane %v2689, %v2698
    %v2701 = vunpack.c.l.s4 1966171168
    %v2702 = vunpack.c.0.s8 %v2701
    %v2703 = vlaneseq
    %v2704 = vshrl.u32 %v2703, 7
    %v2705 = vsub.s32 %v2702, %v2704
    %v2706 = vrot.slane %v2690, %v2705
    %v2708 = vunpack.c.l.s4 1966171168
    %v2709 = vunpack.c.0.s8 %v2708
    %v2710 = vlaneseq
    %v2711 = vshrl.u32 %v2710, 7
    %v2712 = vsub.s32 %v2709, %v2711
    %v2713 = vrot.slane %v2691, %v2712
    %v2715 = vunpack.c.l.s4 1966171168
    %v2716 = vunpack.c.0.s8 %v2715
    %v2717 = vlaneseq
    %v2718 = vshrl.u32 %v2717, 7
    %v2719 = vsub.s32 %v2716, %v2718
    %v2720 = vrot.slane %v2692, %v2719
    %v2721 = vcombine.low %v2699, %v2706
    %v2722 = vcombine.low %v2713, %v2720
    %v2724 = vunpack.c.l.s4 1966171168
    %v2725 = vunpack.c.0.s8 %v2724
    %v2726 = vlaneseq
    %v2727 = vshrl.u32 %v2726, 7
    %v2728 = vsub.s32 %v2725, %v2727
    %v2729 = vrot.slane %v2721, %v2728
    %v2731 = vunpack.c.l.s4 1966171168
    %v2732 = vunpack.c.0.s8 %v2731
    %v2733 = vlaneseq
    %v2734 = vshrl.u32 %v2733, 7
    %v2735 = vsub.s32 %v2732, %v2734
    %v2736 = vrot.slane %v2722, %v2735
    %v2737 = vcombine.low %v2729, %v2736
    %v2738 = vcombine.low %v2625, %v2649
    %v2739 = vcombine.low %v2663, %v2671
    %v2740 = vcombine.low %v2673, %v2656
    %v2741 = vcombine.low %v2670, %v2672
    %v2743 = vunpack.c.l.s4 1966171168
    %v2744 = vunpack.c.0.s8 %v2743
    %v2745 = vlaneseq
    %v2746 = vshrl.u32 %v2745, 7
    %v2747 = vsub.s32 %v2744, %v2746
    %v2748 = vrot.slane %v2738, %v2747
    %v2750 = vunpack.c.l.s4 1966171168
    %v2751 = vunpack.c.0.s8 %v2750
    %v2752 = vlaneseq
    %v2753 = vshrl.u32 %v2752, 7
    %v2754 = vsub.s32 %v2751, %v2753
    %v2755 = vrot.slane %v2739, %v2754
    %v2757 = vunpack.c.l.s4 1966171168
    %v2758 = vunpack.c.0.s8 %v2757
    %v2759 = vlaneseq
    %v2760 = vshrl.u32 %v2759, 7
    %v2761 = vsub.s32 %v2758, %v2760
    %v2762 = vrot.slane %v2740, %v2761
    %v2764 = vunpack.c.l.s4 1966171168
    %v2765 = vunpack.c.0.s8 %v2764
    %v2766 = vlaneseq
    %v2767 = vshrl.u32 %v2766, 7
    %v2768 = vsub.s32 %v2765, %v2767
    %v2769 = vrot.slane %v2741, %v2768
    %v2770 = vcombine.low %v2748, %v2755
    %v2771 = vcombine.low %v2762, %v2769
    %v2773 = vunpack.c.l.s4 1966171168
    %v2774 = vunpack.c.0.s8 %v2773
    %v2775 = vlaneseq
    %v2776 = vshrl.u32 %v2775, 7
    %v2777 = vsub.s32 %v2774, %v2776
    %v2778 = vrot.slane %v2770, %v2777
    %v2780 = vunpack.c.l.s4 1966171168
    %v2781 = vunpack.c.0.s8 %v2780
    %v2782 = vlaneseq
    %v2783 = vshrl.u32 %v2782, 7
    %v2784 = vsub.s32 %v2781, %v2783
    %v2785 = vrot.slane %v2771, %v2784
    %v2786 = vcombine.low %v2778, %v2785
    %v2787 = vcombine.low %v2674, %v2688
    %v2789 = vunpack.c.l.s4 1966171168
    %v2790 = vunpack.c.0.s8 %v2789
    %v2791 = vlaneseq
    %v2792 = vshrl.u32 %v2791, 7
    %v2793 = vsub.s32 %v2790, %v2792
    %v2794 = vrot.slane %v2787, %v2793
    %v2796 = vunpack.c.l.s4 1966171168
    %v2797 = vunpack.c.0.s8 %v2796
    %v2798 = vlaneseq
    %v2799 = vshrl.u32 %v2798, 7
    %v2800 = vsub.s32 %v2797, %v2799
    %v2801 = vrot.slane %v2794, %v2800
    %v2802 = vsel %vm641, %v2737, 0
    %v2804 = vsel %vm641, %v2786, 0
    %v2806 = vsel %vm641, %v2801, 0
    %2808 = vmatprep.subr.mxu0 0.0
    %2809 = vmatpush1.msra.mxu0 0.0
    %2810 = vmatprep.subr.mxu0 0.0
    %2811 = vmatpush1.msra.mxu0 0.0
    %2812 = vmatprep.subr.mxu0 0.0
    %2813 = vmatpush1.msra.mxu0 0.0
    %2814 = vmatprep.subr.mxu0 0.0
    %2815 = vmatpush1.msra.mxu0 0.0
    %2816 = vmatprep.subr.mxu0 0.0
    %2817 = vmatpush1.msra.mxu0 0.0
    %2818 = vmatprep.subr.mxu0 0.0
    %2819 = vmatpush1.msra.mxu0 0.0
    %2820 = vmatprep.subr.mxu0 0.0
    %2821 = vmatpush1.msra.mxu0 0.0
    %2822 = vmatprep.subr.mxu0 0.0
    %2823 = vmatpush1.msra.mxu0 0.0
    %2824 = vmatprep.subr.mxu0 0.0
    %2825 = vmatpush1.msra.mxu0 0.0
    %2826 = vmatprep.subr.mxu0 0.0
    %2827 = vmatpush1.msra.mxu0 0.0
    %2828 = vmatprep.subr.mxu0 0.0
    %2829 = vmatpush1.msra.mxu0 0.0
    %2830 = vmatprep.subr.mxu0 0.0
    %2831 = vmatpush1.msra.mxu0 0.0
    %2832 = vmatprep.subr.mxu0 0.0
    %2833 = vmatpush1.msra.mxu0 0.0
    %2834 = vmatprep.subr.mxu0 0.0
    %2835 = vmatpush1.msra.mxu0 0.0
    %2836 = vmatprep.subr.mxu0 0.0
    %2837 = vmatpush1.msra.mxu0 0.0
    %2838 = vmatprep.subr.mxu0 0.0
    %2839 = vmatpush1.msra.mxu0 %v572
    %2840 = vmatprep.subr.mxu0 0.0
    %2841 = vmatpush2.msra.mxu0 0.0
    %2842 = vmatprep.subr.mxu0 0.0
    %2843 = vmatpush2.msra.mxu0 0.0
    %2844 = vmatprep.subr.mxu0 0.0
    %2845 = vmatpush2.msra.mxu0 0.0
    %2846 = vmatprep.subr.mxu0 0.0
    %2847 = vmatpush2.msra.mxu0 0.0
    %2848 = vmatprep.subr.mxu0 0.0
    %2849 = vmatpush2.msra.mxu0 0.0
    %2850 = vmatprep.subr.mxu0 0.0
    %2851 = vmatpush2.msra.mxu0 0.0
    %2852 = vmatprep.subr.mxu0 0.0
    %2853 = vmatpush2.msra.mxu0 0.0
    %2854 = vmatprep.subr.mxu0 0.0
    %2855 = vmatpush2.msra.mxu0 0.0
    %2856 = vmatprep.subr.mxu0 0.0
    %2857 = vmatpush2.msra.mxu0 0.0
    %2858 = vmatprep.subr.mxu0 0.0
    %2859 = vmatpush2.msra.mxu0 0.0
    %2860 = vmatprep.subr.mxu0 0.0
    %2861 = vmatpush2.msra.mxu0 0.0
    %2862 = vmatprep.subr.mxu0 0.0
    %2863 = vmatpush2.msra.mxu0 0.0
    %2864 = vmatprep.subr.mxu0 0.0
    %2865 = vmatpush2.msra.mxu0 0.0
    %2866 = vmatprep.subr.mxu0 0.0
    %2867 = vmatpush2.msra.mxu0 0.0
    %2868 = vmatprep.subr.mxu0 0.0
    %2869 = vmatpush2.msra.mxu0 0.0
    %2870 = vmatprep.subr.mxu0 0.0
    %2871 = vmatpush2.msra.mxu0 0.0
    %2872 = vmatprep.mubr.f32.mxu0 0.0
    %2873 = vmatmul.mubr.f32.gmra.mxu0 %v2802
    %v2874 = vpop.f32.mrf.mxu0
    %v2875 = vadd.f32 0.0, %v2874
    %v2876 = vpop.f32.mrf.mxu0
    %2877 = vmatprep.mubr.f32.mxu0 0.0
    %2878 = vmatmul.mubr.f32.gmra.mxu0 %v2804
    %v2879 = vpop.f32.mrf.mxu0
    %v2880 = vadd.f32 0.0, %v2879
    %v2881 = vpop.f32.mrf.mxu0
    %2882 = vmatprep.mubr.f32.mxu0 0.0
    %2883 = vmatmul.mubr.f32.gmra.mxu0 %v2806
    %v2884 = vpop.f32.mrf.mxu0
    %v2885 = vadd.f32 0.0, %v2884
    %v2886 = vpop.f32.mrf.mxu0
    %2887 = vdwg.mxu0
    %v2888 = vadd.f32 %v2144, %v2875
    %v2889 = vadd.f32 %v2149, %v2880
    %v2890 = vadd.f32 %v2154, %v2885
    %2891 = vrot.lane.b32.xlu0 %v622, 104
    %v2892 = vpop.permute.xlu0 %2891
    %2893 = vrot.lane.b32.xlu0 %v636, 104
    %v2894 = vpop.permute.xlu0 %2893
    %2895 = vrot.lane.b32.xlu0 %v622, 72
    %v2896 = vpop.permute.xlu0 %2895
    %2897 = vrot.lane.b32.xlu0 %v636, 72
    %v2898 = vpop.permute.xlu0 %2897
    %v2899 = vsel %vm641, %v2892, 0
    %v2901 = vsel %vm641, %v2894, 0
    %v2903 = vsel %vm641, %v2896, 0
    %v2905 = vsel %vm641, %v2898, 0
    %2907 = vmatprep.subr.mxu0 0.0
    %2908 = vmatpush1.xpose.msra.mxu0 0.0
    %2909 = vmatprep.subr.mxu0 0.0
    %2910 = vmatpush1.xpose.msra.mxu0 0.0
    %2911 = vmatprep.subr.mxu0 0.0
    %2912 = vmatpush1.xpose.msra.mxu0 0.0
    %2913 = vmatprep.subr.mxu0 0.0
    %2914 = vmatpush1.xpose.msra.mxu0 0.0
    %2915 = vmatprep.subr.mxu0 0.0
    %2916 = vmatpush1.xpose.msra.mxu0 0.0
    %2917 = vmatprep.subr.mxu0 0.0
    %2918 = vmatpush1.xpose.msra.mxu0 0.0
    %2919 = vmatprep.subr.mxu0 0.0
    %2920 = vmatpush1.xpose.msra.mxu0 0.0
    %2921 = vmatprep.subr.mxu0 0.0
    %2922 = vmatpush1.xpose.msra.mxu0 0.0
    %2923 = vmatprep.subr.mxu0 0.0
    %2924 = vmatpush1.xpose.msra.mxu0 0.0
    %2925 = vmatprep.subr.mxu0 0.0
    %2926 = vmatpush1.xpose.msra.mxu0 0.0
    %2927 = vmatprep.subr.mxu0 0.0
    %2928 = vmatpush1.xpose.msra.mxu0 0.0
    %2929 = vmatprep.subr.mxu0 0.0
    %2930 = vmatpush1.xpose.msra.mxu0 0.0
    %2931 = vmatprep.subr.mxu0 0.0
    %2932 = vmatpush1.xpose.msra.mxu0 0.0
    %2933 = vmatprep.subr.mxu0 0.0
    %2934 = vmatpush1.xpose.msra.mxu0 0.0
    %2935 = vmatprep.subr.mxu0 0.0
    %2936 = vmatpush1.xpose.msra.mxu0 %v2905
    %2937 = vmatprep.subr.mxu0 0.0
    %2938 = vmatpush1.xpose.msra.mxu0 %v2903
    %2939 = vmatprep.subr.mxu0 0.0
    %2940 = vmatpush2.xpose.msra.mxu0 0.0
    %2941 = vmatprep.subr.mxu0 0.0
    %2942 = vmatpush2.xpose.msra.mxu0 0.0
    %2943 = vmatprep.subr.mxu0 0.0
    %2944 = vmatpush2.xpose.msra.mxu0 0.0
    %2945 = vmatprep.subr.mxu0 0.0
    %2946 = vmatpush2.xpose.msra.mxu0 0.0
    %2947 = vmatprep.subr.mxu0 0.0
    %2948 = vmatpush2.xpose.msra.mxu0 0.0
    %2949 = vmatprep.subr.mxu0 0.0
    %2950 = vmatpush2.xpose.msra.mxu0 0.0
    %2951 = vmatprep.subr.mxu0 0.0
    %2952 = vmatpush2.xpose.msra.mxu0 0.0
    %2953 = vmatprep.subr.mxu0 0.0
    %2954 = vmatpush2.xpose.msra.mxu0 0.0
    %2955 = vmatprep.subr.mxu0 0.0
    %2956 = vmatpush2.xpose.msra.mxu0 0.0
    %2957 = vmatprep.subr.mxu0 0.0
    %2958 = vmatpush2.xpose.msra.mxu0 0.0
    %2959 = vmatprep.subr.mxu0 0.0
    %2960 = vmatpush2.xpose.msra.mxu0 0.0
    %2961 = vmatprep.subr.mxu0 0.0
    %2962 = vmatpush2.xpose.msra.mxu0 0.0
    %2963 = vmatprep.subr.mxu0 0.0
    %2964 = vmatpush2.xpose.msra.mxu0 0.0
    %2965 = vmatprep.subr.mxu0 0.0
    %2966 = vmatpush2.xpose.msra.mxu0 0.0
    %2967 = vmatprep.subr.mxu0 0.0
    %2968 = vmatpush2.xpose.msra.mxu0 0.0
    %2969 = vmatprep.subr.mxu0 0.0
    %2970 = vmatpush2.xpose.msra.mxu0 0.0
    %2971 = vmatprep.mubr.f32.mxu0 0.0
    %2972 = vmatmul.mubr.f32.gmra.mxu0 %v2899
    %v2973 = vpop.f32.mrf.mxu0
    %v2974 = vadd.f32 0.0, %v2973
    %v2975 = vpop.f32.mrf.mxu0
    %2976 = vmatprep.mubr.f32.mxu0 0.0
    %2977 = vmatmul.mubr.f32.gmra.mxu0 %v2901
    %v2978 = vpop.f32.mrf.mxu0
    %v2979 = vadd.f32 0.0, %v2978
    %v2980 = vpop.f32.mrf.mxu0
    %2981 = vdwg.mxu0
    %2982 = vrot.lane.b32.xlu0 %v773, 104
    %v2983 = vpop.permute.xlu0 %2982
    %2984 = vrot.lane.b32.xlu0 %v787, 104
    %v2985 = vpop.permute.xlu0 %2984
    %2986 = vrot.lane.b32.xlu0 %v773, 72
    %v2987 = vpop.permute.xlu0 %2986
    %2988 = vrot.lane.b32.xlu0 %v787, 72
    %v2989 = vpop.permute.xlu0 %2988
    %v2990 = vsel %vm641, %v2983, 0
    %v2992 = vsel %vm641, %v2985, 0
    %v2994 = vsel %vm641, %v2987, 0
    %v2996 = vsel %vm641, %v2989, 0
    %2998 = vmatprep.subr.mxu0 0.0
    %2999 = vmatpush1.xpose.msra.mxu0 0.0
    %3000 = vmatprep.subr.mxu0 0.0
    %3001 = vmatpush1.xpose.msra.mxu0 0.0
    %3002 = vmatprep.subr.mxu0 0.0
    %3003 = vmatpush1.xpose.msra.mxu0 0.0
    %3004 = vmatprep.subr.mxu0 0.0
    %3005 = vmatpush1.xpose.msra.mxu0 0.0
    %3006 = vmatprep.subr.mxu0 0.0
    %3007 = vmatpush1.xpose.msra.mxu0 0.0
    %3008 = vmatprep.subr.mxu0 0.0
    %3009 = vmatpush1.xpose.msra.mxu0 0.0
    %3010 = vmatprep.subr.mxu0 0.0
    %3011 = vmatpush1.xpose.msra.mxu0 0.0
    %3012 = vmatprep.subr.mxu0 0.0
    %3013 = vmatpush1.xpose.msra.mxu0 0.0
    %3014 = vmatprep.subr.mxu0 0.0
    %3015 = vmatpush1.xpose.msra.mxu0 0.0
    %3016 = vmatprep.subr.mxu0 0.0
    %3017 = vmatpush1.xpose.msra.mxu0 0.0
    %3018 = vmatprep.subr.mxu0 0.0
    %3019 = vmatpush1.xpose.msra.mxu0 0.0
    %3020 = vmatprep.subr.mxu0 0.0
    %3021 = vmatpush1.xpose.msra.mxu0 0.0
    %3022 = vmatprep.subr.mxu0 0.0
    %3023 = vmatpush1.xpose.msra.mxu0 0.0
    %3024 = vmatprep.subr.mxu0 0.0
    %3025 = vmatpush1.xpose.msra.mxu0 0.0
    %3026 = vmatprep.subr.mxu0 0.0
    %3027 = vmatpush1.xpose.msra.mxu0 %v2996
    %3028 = vmatprep.subr.mxu0 0.0
    %3029 = vmatpush1.xpose.msra.mxu0 %v2994
    %3030 = vmatprep.subr.mxu0 0.0
    %3031 = vmatpush2.xpose.msra.mxu0 0.0
    %3032 = vmatprep.subr.mxu0 0.0
    %3033 = vmatpush2.xpose.msra.mxu0 0.0
    %3034 = vmatprep.subr.mxu0 0.0
    %3035 = vmatpush2.xpose.msra.mxu0 0.0
    %3036 = vmatprep.subr.mxu0 0.0
    %3037 = vmatpush2.xpose.msra.mxu0 0.0
    %3038 = vmatprep.subr.mxu0 0.0
    %3039 = vmatpush2.xpose.msra.mxu0 0.0
    %3040 = vmatprep.subr.mxu0 0.0
    %3041 = vmatpush2.xpose.msra.mxu0 0.0
    %3042 = vmatprep.subr.mxu0 0.0
    %3043 = vmatpush2.xpose.msra.mxu0 0.0
    %3044 = vmatprep.subr.mxu0 0.0
    %3045 = vmatpush2.xpose.msra.mxu0 0.0
    %3046 = vmatprep.subr.mxu0 0.0
    %3047 = vmatpush2.xpose.msra.mxu0 0.0
    %3048 = vmatprep.subr.mxu0 0.0
    %3049 = vmatpush2.xpose.msra.mxu0 0.0
    %3050 = vmatprep.subr.mxu0 0.0
    %3051 = vmatpush2.xpose.msra.mxu0 0.0
    %3052 = vmatprep.subr.mxu0 0.0
    %3053 = vmatpush2.xpose.msra.mxu0 0.0
    %3054 = vmatprep.subr.mxu0 0.0
    %3055 = vmatpush2.xpose.msra.mxu0 0.0
    %3056 = vmatprep.subr.mxu0 0.0
    %3057 = vmatpush2.xpose.msra.mxu0 0.0
    %3058 = vmatprep.subr.mxu0 0.0
    %3059 = vmatpush2.xpose.msra.mxu0 0.0
    %3060 = vmatprep.subr.mxu0 0.0
    %3061 = vmatpush2.xpose.msra.mxu0 0.0
    %3062 = vmatprep.mubr.f32.mxu0 0.0
    %3063 = vmatmul.mubr.f32.gmra.mxu0 %v2990
    %v3064 = vpop.f32.mrf.mxu0
    %v3065 = vadd.f32 0.0, %v3064
    %v3066 = vpop.f32.mrf.mxu0
    %3067 = vmatprep.mubr.f32.mxu0 0.0
    %3068 = vmatmul.mubr.f32.gmra.mxu0 %v2992
    %v3069 = vpop.f32.mrf.mxu0
    %v3070 = vadd.f32 0.0, %v3069
    %v3071 = vpop.f32.mrf.mxu0
    %3072 = vdwg.mxu0
    %v3073 = vsel %vm875, %v2974, -inf
    %3074 = vmax.xlane.f32.xlu0 %v3073
    %v3075 = vpop.xlane.xlu0 %3074
    %v3076 = vsel %vm879, %v2979, -inf
    %3077 = vmax.xlane.f32.xlu0 %v3076
    %v3078 = vpop.xlane.xlu0 %3077
    %v3079 = vsel %vm875, %v3065, -inf
    %3080 = vmax.xlane.f32.xlu0 %v3079
    %v3081 = vpop.xlane.xlu0 %3080
    %v3082 = vsel %vm879, %v3070, -inf
    %3083 = vmax.xlane.f32.xlu0 %v3082
    %v3084 = vpop.xlane.xlu0 %3083
    %v3085 = vsub.f32 %v2974, %v3075
    %v3086 = vsub.f32 %v2979, %v3078
    %v3087 = vsub.f32 %v3065, %v3081
    %v3088 = vsub.f32 %v3070, %v3084
    %v3089 = vmul.f32 %v3085, 1.442695
    %v3090 = vpow.pop %v3089
    %v3091 = vmul.f32 %v3086, 1.442695
    %v3092 = vpow.pop %v3091
    %v3093 = vmul.f32 %v3087, 1.442695
    %v3094 = vpow.pop %v3093
    %v3095 = vmul.f32 %v3088, 1.442695
    %v3096 = vpow.pop %v3095
    %v3097 = vsel %vm875, %v3090, 0.0
    %3098 = vadd.xlane.f32.xlu0 %v3097
    %v3099 = vpop.xlane.xlu0 %3098
    %v3100 = vsel %vm879, %v3092, 0.0
    %3101 = vadd.xlane.f32.xlu0 %v3100
    %v3102 = vpop.xlane.xlu0 %3101
    %v3103 = vsel %vm875, %v3094, 0.0
    %3104 = vadd.xlane.f32.xlu0 %v3103
    %v3105 = vpop.xlane.xlu0 %3104
    %v3106 = vsel %vm879, %v3096, 0.0
    %3107 = vadd.xlane.f32.xlu0 %v3106
    %v3108 = vpop.xlane.xlu0 %3107
    %v3109 = vrcp.pop %v3099
    %v3110 = vrcp.pop %v3102
    %v3111 = vrcp.pop %v3105
    %v3112 = vrcp.pop %v3108
    %v3113 = vmul.f32 %v3090, %v3109
    %v3114 = vmul.f32 %v3092, %v3110
    %v3115 = vmul.f32 %v3094, %v3111
    %v3116 = vmul.f32 %v3096, %v3112
    %3117 = vrot.lane.b32.xlu0 %v622, 40
    %v3118 = vpop.permute.xlu0 %3117
    %3119 = vrot.lane.b32.xlu0 %v636, 40
    %v3120 = vpop.permute.xlu0 %3119
    %v3123 = vsel %vm875, %v3113, 0
    %v3126 = vsel %vm875, %v3114, 0
    %v3128 = vsel %vm79, %v3120, 0
    %3130 = vmatprep.subr.mxu0 0.0
    %3131 = vmatpush1.msra.mxu0 0.0
    %3132 = vmatprep.subr.mxu0 0.0
    %3133 = vmatpush1.msra.mxu0 0.0
    %3134 = vmatprep.subr.mxu0 0.0
    %3135 = vmatpush1.msra.mxu0 0.0
    %3136 = vmatprep.subr.mxu0 0.0
    %3137 = vmatpush1.msra.mxu0 0.0
    %3138 = vmatprep.subr.mxu0 0.0
    %3139 = vmatpush1.msra.mxu0 0.0
    %3140 = vmatprep.subr.mxu0 0.0
    %3141 = vmatpush1.msra.mxu0 0.0
    %3142 = vmatprep.subr.mxu0 0.0
    %3143 = vmatpush1.msra.mxu0 0.0
    %3144 = vmatprep.subr.mxu0 0.0
    %3145 = vmatpush1.msra.mxu0 0.0
    %3146 = vmatprep.subr.mxu0 0.0
    %3147 = vmatpush1.msra.mxu0 0.0
    %3148 = vmatprep.subr.mxu0 0.0
    %3149 = vmatpush1.msra.mxu0 0.0
    %3150 = vmatprep.subr.mxu0 0.0
    %3151 = vmatpush1.msra.mxu0 0.0
    %3152 = vmatprep.subr.mxu0 0.0
    %3153 = vmatpush1.msra.mxu0 0.0
    %3154 = vmatprep.subr.mxu0 0.0
    %3155 = vmatpush1.msra.mxu0 0.0
    %3156 = vmatprep.subr.mxu0 0.0
    %3157 = vmatpush1.msra.mxu0 0.0
    %3158 = vmatprep.subr.mxu0 0.0
    %3159 = vmatpush1.msra.mxu0 %v3128
    %3160 = vmatprep.subr.mxu0 0.0
    %3161 = vmatpush1.msra.mxu0 %v3118
    %3162 = vmatprep.subr.mxu0 0.0
    %3163 = vmatpush2.msra.mxu0 0.0
    %3164 = vmatprep.subr.mxu0 0.0
    %3165 = vmatpush2.msra.mxu0 0.0
    %3166 = vmatprep.subr.mxu0 0.0
    %3167 = vmatpush2.msra.mxu0 0.0
    %3168 = vmatprep.subr.mxu0 0.0
    %3169 = vmatpush2.msra.mxu0 0.0
    %3170 = vmatprep.subr.mxu0 0.0
    %3171 = vmatpush2.msra.mxu0 0.0
    %3172 = vmatprep.subr.mxu0 0.0
    %3173 = vmatpush2.msra.mxu0 0.0
    %3174 = vmatprep.subr.mxu0 0.0
    %3175 = vmatpush2.msra.mxu0 0.0
    %3176 = vmatprep.subr.mxu0 0.0
    %3177 = vmatpush2.msra.mxu0 0.0
    %3178 = vmatprep.subr.mxu0 0.0
    %3179 = vmatpush2.msra.mxu0 0.0
    %3180 = vmatprep.subr.mxu0 0.0
    %3181 = vmatpush2.msra.mxu0 0.0
    %3182 = vmatprep.subr.mxu0 0.0
    %3183 = vmatpush2.msra.mxu0 0.0
    %3184 = vmatprep.subr.mxu0 0.0
    %3185 = vmatpush2.msra.mxu0 0.0
    %3186 = vmatprep.subr.mxu0 0.0
    %3187 = vmatpush2.msra.mxu0 0.0
    %3188 = vmatprep.subr.mxu0 0.0
    %3189 = vmatpush2.msra.mxu0 0.0
    %3190 = vmatprep.subr.mxu0 0.0
    %3191 = vmatpush2.msra.mxu0 0.0
    %3192 = vmatprep.subr.mxu0 0.0
    %3193 = vmatpush2.msra.mxu0 0.0
    %3194 = vmatprep.mubr.f32.mxu0 0.0
    %3195 = vmatmul.mubr.f32.gmra.mxu0 %v3123
    %v3196 = vpop.f32.mrf.mxu0
    %v3197 = vadd.f32 0.0, %v3196
    %v3198 = vpop.f32.mrf.mxu0
    %3199 = vmatprep.mubr.f32.mxu0 0.0
    %3200 = vmatmul.mubr.f32.gmra.mxu0 %v3126
    %v3201 = vpop.f32.mrf.mxu0
    %v3202 = vadd.f32 0.0, %v3201
    %v3203 = vpop.f32.mrf.mxu0
    %3204 = vdwg.mxu0
    %3205 = vrot.lane.b32.xlu0 %v773, 40
    %v3206 = vpop.permute.xlu0 %3205
    %3207 = vrot.lane.b32.xlu0 %v787, 40
    %v3208 = vpop.permute.xlu0 %3207
    %v3211 = vsel %vm875, %v3115, 0
    %v3214 = vsel %vm875, %v3116, 0
    %v3216 = vsel %vm79, %v3208, 0
    %3218 = vmatprep.subr.mxu0 0.0
    %3219 = vmatpush1.msra.mxu0 0.0
    %3220 = vmatprep.subr.mxu0 0.0
    %3221 = vmatpush1.msra.mxu0 0.0
    %3222 = vmatprep.subr.mxu0 0.0
    %3223 = vmatpush1.msra.mxu0 0.0
    %3224 = vmatprep.subr.mxu0 0.0
    %3225 = vmatpush1.msra.mxu0 0.0
    %3226 = vmatprep.subr.mxu0 0.0
    %3227 = vmatpush1.msra.mxu0 0.0
    %3228 = vmatprep.subr.mxu0 0.0
    %3229 = vmatpush1.msra.mxu0 0.0
    %3230 = vmatprep.subr.mxu0 0.0
    %3231 = vmatpush1.msra.mxu0 0.0
    %3232 = vmatprep.subr.mxu0 0.0
    %3233 = vmatpush1.msra.mxu0 0.0
    %3234 = vmatprep.subr.mxu0 0.0
    %3235 = vmatpush1.msra.mxu0 0.0
    %3236 = vmatprep.subr.mxu0 0.0
    %3237 = vmatpush1.msra.mxu0 0.0
    %3238 = vmatprep.subr.mxu0 0.0
    %3239 = vmatpush1.msra.mxu0 0.0
    %3240 = vmatprep.subr.mxu0 0.0
    %3241 = vmatpush1.msra.mxu0 0.0
    %3242 = vmatprep.subr.mxu0 0.0
    %3243 = vmatpush1.msra.mxu0 0.0
    %3244 = vmatprep.subr.mxu0 0.0
    %3245 = vmatpush1.msra.mxu0 0.0
    %3246 = vmatprep.subr.mxu0 0.0
    %3247 = vmatpush1.msra.mxu0 %v3216
    %3248 = vmatprep.subr.mxu0 0.0
    %3249 = vmatpush1.msra.mxu0 %v3206
    %3250 = vmatprep.subr.mxu0 0.0
    %3251 = vmatpush2.msra.mxu0 0.0
    %3252 = vmatprep.subr.mxu0 0.0
    %3253 = vmatpush2.msra.mxu0 0.0
    %3254 = vmatprep.subr.mxu0 0.0
    %3255 = vmatpush2.msra.mxu0 0.0
    %3256 = vmatprep.subr.mxu0 0.0
    %3257 = vmatpush2.msra.mxu0 0.0
    %3258 = vmatprep.subr.mxu0 0.0
    %3259 = vmatpush2.msra.mxu0 0.0
    %3260 = vmatprep.subr.mxu0 0.0
    %3261 = vmatpush2.msra.mxu0 0.0
    %3262 = vmatprep.subr.mxu0 0.0
    %3263 = vmatpush2.msra.mxu0 0.0
    %3264 = vmatprep.subr.mxu0 0.0
    %3265 = vmatpush2.msra.mxu0 0.0
    %3266 = vmatprep.subr.mxu0 0.0
    %3267 = vmatpush2.msra.mxu0 0.0
    %3268 = vmatprep.subr.mxu0 0.0
    %3269 = vmatpush2.msra.mxu0 0.0
    %3270 = vmatprep.subr.mxu0 0.0
    %3271 = vmatpush2.msra.mxu0 0.0
    %3272 = vmatprep.subr.mxu0 0.0
    %3273 = vmatpush2.msra.mxu0 0.0
    %3274 = vmatprep.subr.mxu0 0.0
    %3275 = vmatpush2.msra.mxu0 0.0
    %3276 = vmatprep.subr.mxu0 0.0
    %3277 = vmatpush2.msra.mxu0 0.0
    %3278 = vmatprep.subr.mxu0 0.0
    %3279 = vmatpush2.msra.mxu0 0.0
    %3280 = vmatprep.subr.mxu0 0.0
    %3281 = vmatpush2.msra.mxu0 0.0
    %3282 = vmatprep.mubr.f32.mxu0 0.0
    %3283 = vmatmul.mubr.f32.gmra.mxu0 %v3211
    %v3284 = vpop.f32.mrf.mxu0
    %v3285 = vadd.f32 0.0, %v3284
    %v3286 = vpop.f32.mrf.mxu0
    %3287 = vmatprep.mubr.f32.mxu0 0.0
    %3288 = vmatmul.mubr.f32.gmra.mxu0 %v3214
    %v3289 = vpop.f32.mrf.mxu0
    %v3290 = vadd.f32 0.0, %v3289
    %v3291 = vpop.f32.mrf.mxu0
    %3292 = vdwg.mxu0
    %v3297 = vcombine.high %v3197, %v3197
    %v3299 = vunpack.c.l.s4 1966171168
    %v3300 = vunpack.c.0.s8 %v3299
    %v3301 = vlaneseq
    %v3302 = vshrl.u32 %v3301, 7
    %v3303 = vsub.s32 %v3300, %v3302
    %v3304 = vrot.slane %v3197, %v3303
    %v3306 = vunpack.c.l.s4 1966171168
    %v3307 = vunpack.c.0.s8 %v3306
    %v3308 = vlaneseq
    %v3309 = vshrl.u32 %v3308, 7
    %v3310 = vsub.s32 %v3307, %v3309
    %v3311 = vrot.slane %v3297, %v3310
    %v3312 = vcombine.high %v3304, %v3304
    %v3313 = vcombine.high %v3311, %v3311
    %v3315 = vunpack.c.l.s4 1966171168
    %v3316 = vunpack.c.0.s8 %v3315
    %v3317 = vlaneseq
    %v3318 = vshrl.u32 %v3317, 7
    %v3319 = vsub.s32 %v3316, %v3318
    %v3320 = vrot.slane %v3304, %v3319
    %v3322 = vunpack.c.l.s4 1966171168
    %v3323 = vunpack.c.0.s8 %v3322
    %v3324 = vlaneseq
    %v3325 = vshrl.u32 %v3324, 7
    %v3326 = vsub.s32 %v3323, %v3325
    %v3327 = vrot.slane %v3311, %v3326
    %v3329 = vunpack.c.l.s4 1966171168
    %v3330 = vunpack.c.0.s8 %v3329
    %v3331 = vlaneseq
    %v3332 = vshrl.u32 %v3331, 7
    %v3333 = vsub.s32 %v3330, %v3332
    %v3334 = vrot.slane %v3312, %v3333
    %v3336 = vunpack.c.l.s4 1966171168
    %v3337 = vunpack.c.0.s8 %v3336
    %v3338 = vlaneseq
    %v3339 = vshrl.u32 %v3338, 7
    %v3340 = vsub.s32 %v3337, %v3339
    %v3341 = vrot.slane %v3313, %v3340
    %v3342 = vcombine.high %v3320, %v3320
    %v3343 = vcombine.high %v3327, %v3327
    %v3344 = vcombine.high %v3334, %v3334
    %v3345 = vcombine.high %v3341, %v3341
    %v3347 = vunpack.c.l.s4 1966171168
    %v3348 = vunpack.c.0.s8 %v3347
    %v3349 = vlaneseq
    %v3350 = vshrl.u32 %v3349, 7
    %v3351 = vsub.s32 %v3348, %v3350
    %v3352 = vrot.slane %v3202, %v3351
    %v3354 = vunpack.c.l.s4 1966171168
    %v3355 = vunpack.c.0.s8 %v3354
    %v3356 = vlaneseq
    %v3357 = vshrl.u32 %v3356, 7
    %v3358 = vsub.s32 %v3355, %v3357
    %v3359 = vrot.slane %v3352, %v3358
    %v3360 = vcombine.high %v3285, %v3285
    %v3362 = vunpack.c.l.s4 1966171168
    %v3363 = vunpack.c.0.s8 %v3362
    %v3364 = vlaneseq
    %v3365 = vshrl.u32 %v3364, 7
    %v3366 = vsub.s32 %v3363, %v3365
    %v3367 = vrot.slane %v3285, %v3366
    %v3369 = vunpack.c.l.s4 1966171168
    %v3370 = vunpack.c.0.s8 %v3369
    %v3371 = vlaneseq
    %v3372 = vshrl.u32 %v3371, 7
    %v3373 = vsub.s32 %v3370, %v3372
    %v3374 = vrot.slane %v3360, %v3373
    %v3375 = vcombine.high %v3367, %v3367
    %v3376 = vcombine.high %v3374, %v3374
    %v3378 = vunpack.c.l.s4 1966171168
    %v3379 = vunpack.c.0.s8 %v3378
    %v3380 = vlaneseq
    %v3381 = vshrl.u32 %v3380, 7
    %v3382 = vsub.s32 %v3379, %v3381
    %v3383 = vrot.slane %v3367, %v3382
    %v3385 = vunpack.c.l.s4 1966171168
    %v3386 = vunpack.c.0.s8 %v3385
    %v3387 = vlaneseq
    %v3388 = vshrl.u32 %v3387, 7
    %v3389 = vsub.s32 %v3386, %v3388
    %v3390 = vrot.slane %v3374, %v3389
    %v3392 = vunpack.c.l.s4 1966171168
    %v3393 = vunpack.c.0.s8 %v3392
    %v3394 = vlaneseq
    %v3395 = vshrl.u32 %v3394, 7
    %v3396 = vsub.s32 %v3393, %v3395
    %v3397 = vrot.slane %v3375, %v3396
    %v3399 = vunpack.c.l.s4 1966171168
    %v3400 = vunpack.c.0.s8 %v3399
    %v3401 = vlaneseq
    %v3402 = vshrl.u32 %v3401, 7
    %v3403 = vsub.s32 %v3400, %v3402
    %v3404 = vrot.slane %v3376, %v3403
    %v3405 = vcombine.high %v3383, %v3383
    %v3406 = vcombine.high %v3390, %v3390
    %v3407 = vcombine.high %v3397, %v3397
    %v3408 = vcombine.high %v3404, %v3404
    %v3410 = vunpack.c.l.s4 1966171168
    %v3411 = vunpack.c.0.s8 %v3410
    %v3412 = vlaneseq
    %v3413 = vshrl.u32 %v3412, 7
    %v3414 = vsub.s32 %v3411, %v3413
    %v3415 = vrot.slane %v3290, %v3414
    %v3417 = vunpack.c.l.s4 1966171168
    %v3418 = vunpack.c.0.s8 %v3417
    %v3419 = vlaneseq
    %v3420 = vshrl.u32 %v3419, 7
    %v3421 = vsub.s32 %v3418, %v3420
    %v3422 = vrot.slane %v3415, %v3421
    %v3423 = vcombine.low %v3320, %v3334
    %v3424 = vcombine.low %v3342, %v3344
    %v3425 = vcombine.low %v3327, %v3341
    %v3426 = vcombine.low %v3343, %v3345
    %v3428 = vunpack.c.l.s4 1966171168
    %v3429 = vunpack.c.0.s8 %v3428
    %v3430 = vlaneseq
    %v3431 = vshrl.u32 %v3430, 7
    %v3432 = vsub.s32 %v3429, %v3431
    %v3433 = vrot.slane %v3423, %v3432
    %v3435 = vunpack.c.l.s4 1966171168
    %v3436 = vunpack.c.0.s8 %v3435
    %v3437 = vlaneseq
    %v3438 = vshrl.u32 %v3437, 7
    %v3439 = vsub.s32 %v3436, %v3438
    %v3440 = vrot.slane %v3424, %v3439
    %v3442 = vunpack.c.l.s4 1966171168
    %v3443 = vunpack.c.0.s8 %v3442
    %v3444 = vlaneseq
    %v3445 = vshrl.u32 %v3444, 7
    %v3446 = vsub.s32 %v3443, %v3445
    %v3447 = vrot.slane %v3425, %v3446
    %v3449 = vunpack.c.l.s4 1966171168
    %v3450 = vunpack.c.0.s8 %v3449
    %v3451 = vlaneseq
    %v3452 = vshrl.u32 %v3451, 7
    %v3453 = vsub.s32 %v3450, %v3452
    %v3454 = vrot.slane %v3426, %v3453
    %v3455 = vcombine.low %v3433, %v3440
    %v3456 = vcombine.low %v3447, %v3454
    %v3458 = vunpack.c.l.s4 1966171168
    %v3459 = vunpack.c.0.s8 %v3458
    %v3460 = vlaneseq
    %v3461 = vshrl.u32 %v3460, 7
    %v3462 = vsub.s32 %v3459, %v3461
    %v3463 = vrot.slane %v3455, %v3462
    %v3465 = vunpack.c.l.s4 1966171168
    %v3466 = vunpack.c.0.s8 %v3465
    %v3467 = vlaneseq
    %v3468 = vshrl.u32 %v3467, 7
    %v3469 = vsub.s32 %v3466, %v3468
    %v3470 = vrot.slane %v3456, %v3469
    %v3471 = vcombine.low %v3463, %v3470
    %v3472 = vcombine.low %v3359, %v3383
    %v3473 = vcombine.low %v3397, %v3405
    %v3474 = vcombine.low %v3407, %v3390
    %v3475 = vcombine.low %v3404, %v3406
    %v3477 = vunpack.c.l.s4 1966171168
    %v3478 = vunpack.c.0.s8 %v3477
    %v3479 = vlaneseq
    %v3480 = vshrl.u32 %v3479, 7
    %v3481 = vsub.s32 %v3478, %v3480
    %v3482 = vrot.slane %v3472, %v3481
    %v3484 = vunpack.c.l.s4 1966171168
    %v3485 = vunpack.c.0.s8 %v3484
    %v3486 = vlaneseq
    %v3487 = vshrl.u32 %v3486, 7
    %v3488 = vsub.s32 %v3485, %v3487
    %v3489 = vrot.slane %v3473, %v3488
    %v3491 = vunpack.c.l.s4 1966171168
    %v3492 = vunpack.c.0.s8 %v3491
    %v3493 = vlaneseq
    %v3494 = vshrl.u32 %v3493, 7
    %v3495 = vsub.s32 %v3492, %v3494
    %v3496 = vrot.slane %v3474, %v3495
    %v3498 = vunpack.c.l.s4 1966171168
    %v3499 = vunpack.c.0.s8 %v3498
    %v3500 = vlaneseq
    %v3501 = vshrl.u32 %v3500, 7
    %v3502 = vsub.s32 %v3499, %v3501
    %v3503 = vrot.slane %v3475, %v3502
    %v3504 = vcombine.low %v3482, %v3489
    %v3505 = vcombine.low %v3496, %v3503
    %v3507 = vunpack.c.l.s4 1966171168
    %v3508 = vunpack.c.0.s8 %v3507
    %v3509 = vlaneseq
    %v3510 = vshrl.u32 %v3509, 7
    %v3511 = vsub.s32 %v3508, %v3510
    %v3512 = vrot.slane %v3504, %v3511
    %v3514 = vunpack.c.l.s4 1966171168
    %v3515 = vunpack.c.0.s8 %v3514
    %v3516 = vlaneseq
    %v3517 = vshrl.u32 %v3516, 7
    %v3518 = vsub.s32 %v3515, %v3517
    %v3519 = vrot.slane %v3505, %v3518
    %v3520 = vcombine.low %v3512, %v3519
    %v3521 = vcombine.low %v3408, %v3422
    %v3523 = vunpack.c.l.s4 1966171168
    %v3524 = vunpack.c.0.s8 %v3523
    %v3525 = vlaneseq
    %v3526 = vshrl.u32 %v3525, 7
    %v3527 = vsub.s32 %v3524, %v3526
    %v3528 = vrot.slane %v3521, %v3527
    %v3530 = vunpack.c.l.s4 1966171168
    %v3531 = vunpack.c.0.s8 %v3530
    %v3532 = vlaneseq
    %v3533 = vshrl.u32 %v3532, 7
    %v3534 = vsub.s32 %v3531, %v3533
    %v3535 = vrot.slane %v3528, %v3534
    %v3536 = vsel %vm641, %v3471, 0
    %v3538 = vsel %vm641, %v3520, 0
    %v3540 = vsel %vm641, %v3535, 0
    %3542 = vmatprep.subr.mxu0 0.0
    %3543 = vmatpush1.msra.mxu0 0.0
    %3544 = vmatprep.subr.mxu0 0.0
    %3545 = vmatpush1.msra.mxu0 0.0
    %3546 = vmatprep.subr.mxu0 0.0
    %3547 = vmatpush1.msra.mxu0 0.0
    %3548 = vmatprep.subr.mxu0 0.0
    %3549 = vmatpush1.msra.mxu0 0.0
    %3550 = vmatprep.subr.mxu0 0.0
    %3551 = vmatpush1.msra.mxu0 0.0
    %3552 = vmatprep.subr.mxu0 0.0
    %3553 = vmatpush1.msra.mxu0 0.0
    %3554 = vmatprep.subr.mxu0 0.0
    %3555 = vmatpush1.msra.mxu0 0.0
    %3556 = vmatprep.subr.mxu0 0.0
    %3557 = vmatpush1.msra.mxu0 0.0
    %3558 = vmatprep.subr.mxu0 0.0
    %3559 = vmatpush1.msra.mxu0 0.0
    %3560 = vmatprep.subr.mxu0 0.0
    %3561 = vmatpush1.msra.mxu0 0.0
    %3562 = vmatprep.subr.mxu0 0.0
    %3563 = vmatpush1.msra.mxu0 0.0
    %3564 = vmatprep.subr.mxu0 0.0
    %3565 = vmatpush1.msra.mxu0 0.0
    %3566 = vmatprep.subr.mxu0 0.0
    %3567 = vmatpush1.msra.mxu0 0.0
    %3568 = vmatprep.subr.mxu0 0.0
    %3569 = vmatpush1.msra.mxu0 0.0
    %3570 = vmatprep.subr.mxu0 0.0
    %3571 = vmatpush1.msra.mxu0 0.0
    %3572 = vmatprep.subr.mxu0 0.0
    %3573 = vmatpush1.msra.mxu0 %v573
    %3574 = vmatprep.subr.mxu0 0.0
    %3575 = vmatpush2.msra.mxu0 0.0
    %3576 = vmatprep.subr.mxu0 0.0
    %3577 = vmatpush2.msra.mxu0 0.0
    %3578 = vmatprep.subr.mxu0 0.0
    %3579 = vmatpush2.msra.mxu0 0.0
    %3580 = vmatprep.subr.mxu0 0.0
    %3581 = vmatpush2.msra.mxu0 0.0
    %3582 = vmatprep.subr.mxu0 0.0
    %3583 = vmatpush2.msra.mxu0 0.0
    %3584 = vmatprep.subr.mxu0 0.0
    %3585 = vmatpush2.msra.mxu0 0.0
    %3586 = vmatprep.subr.mxu0 0.0
    %3587 = vmatpush2.msra.mxu0 0.0
    %3588 = vmatprep.subr.mxu0 0.0
    %3589 = vmatpush2.msra.mxu0 0.0
    %3590 = vmatprep.subr.mxu0 0.0
    %3591 = vmatpush2.msra.mxu0 0.0
    %3592 = vmatprep.subr.mxu0 0.0
    %3593 = vmatpush2.msra.mxu0 0.0
    %3594 = vmatprep.subr.mxu0 0.0
    %3595 = vmatpush2.msra.mxu0 0.0
    %3596 = vmatprep.subr.mxu0 0.0
    %3597 = vmatpush2.msra.mxu0 0.0
    %3598 = vmatprep.subr.mxu0 0.0
    %3599 = vmatpush2.msra.mxu0 0.0
    %3600 = vmatprep.subr.mxu0 0.0
    %3601 = vmatpush2.msra.mxu0 0.0
    %3602 = vmatprep.subr.mxu0 0.0
    %3603 = vmatpush2.msra.mxu0 0.0
    %3604 = vmatprep.subr.mxu0 0.0
    %3605 = vmatpush2.msra.mxu0 0.0
    %3606 = vmatprep.mubr.f32.mxu0 0.0
    %3607 = vmatmul.mubr.f32.gmra.mxu0 %v3536
    %v3608 = vpop.f32.mrf.mxu0
    %v3609 = vadd.f32 0.0, %v3608
    %v3610 = vpop.f32.mrf.mxu0
    %3611 = vmatprep.mubr.f32.mxu0 0.0
    %3612 = vmatmul.mubr.f32.gmra.mxu0 %v3538
    %v3613 = vpop.f32.mrf.mxu0
    %v3614 = vadd.f32 0.0, %v3613
    %v3615 = vpop.f32.mrf.mxu0
    %3616 = vmatprep.mubr.f32.mxu0 0.0
    %3617 = vmatmul.mubr.f32.gmra.mxu0 %v3540
    %v3618 = vpop.f32.mrf.mxu0
    %v3619 = vadd.f32 0.0, %v3618
    %v3620 = vpop.f32.mrf.mxu0
    %3621 = vdwg.mxu0
    %v3622 = vadd.f32 %v2888, %v3609
    %v3623 = vadd.f32 %v2889, %v3614
    %v3624 = vadd.f32 %v2890, %v3619
    %v3625 = vld [vmem:[%s6] sm:$0x1]
    %v3627 = vlaneseq
    %v3628 = vshrl.u32 %v3627, 7
    %v3629 = vsub.s32 0, %v3628
    %v3630 = vrot.slane %v3625, %v3629
    %v3632 = vadd.f32 %v3622, %v3630
    %v3633 = vadd.f32 %v3623, %v3630
    %v3634 = vadd.f32 %v3624, %v3630
    %v3638 = vcombine.high %v3632, %v3632
    %v3640 = vunpack.c.l.s4 1966171168
    %v3641 = vunpack.c.0.s8 %v3640
    %v3642 = vlaneseq
    %v3643 = vshrl.u32 %v3642, 7
    %v3644 = vsub.s32 %v3641, %v3643
    %v3645 = vrot.slane %v3632, %v3644
    %v3647 = vunpack.c.l.s4 1966171168
    %v3648 = vunpack.c.0.s8 %v3647
    %v3649 = vlaneseq
    %v3650 = vshrl.u32 %v3649, 7
    %v3651 = vsub.s32 %v3648, %v3650
    %v3652 = vrot.slane %v3638, %v3651
    %v3653 = vcombine.high %v3645, %v3645
    %v3654 = vcombine.high %v3652, %v3652
    %v3656 = vunpack.c.l.s4 1966171168
    %v3657 = vunpack.c.0.s8 %v3656
    %v3658 = vlaneseq
    %v3659 = vshrl.u32 %v3658, 7
    %v3660 = vsub.s32 %v3657, %v3659
    %v3661 = vrot.slane %v3645, %v3660
    %v3663 = vunpack.c.l.s4 1966171168
    %v3664 = vunpack.c.0.s8 %v3663
    %v3665 = vlaneseq
    %v3666 = vshrl.u32 %v3665, 7
    %v3667 = vsub.s32 %v3664, %v3666
    %v3668 = vrot.slane %v3652, %v3667
    %v3670 = vunpack.c.l.s4 1966171168
    %v3671 = vunpack.c.0.s8 %v3670
    %v3672 = vlaneseq
    %v3673 = vshrl.u32 %v3672, 7
    %v3674 = vsub.s32 %v3671, %v3673
    %v3675 = vrot.slane %v3653, %v3674
    %v3677 = vunpack.c.l.s4 1966171168
    %v3678 = vunpack.c.0.s8 %v3677
    %v3679 = vlaneseq
    %v3680 = vshrl.u32 %v3679, 7
    %v3681 = vsub.s32 %v3678, %v3680
    %v3682 = vrot.slane %v3654, %v3681
    %v3683 = vcombine.high %v3661, %v3661
    %v3684 = vcombine.high %v3668, %v3668
    %v3685 = vcombine.high %v3675, %v3675
    %v3686 = vcombine.high %v3682, %v3682
    %v3687 = vcombine.high %v3633, %v3633
    %v3689 = vunpack.c.l.s4 1966171168
    %v3690 = vunpack.c.0.s8 %v3689
    %v3691 = vlaneseq
    %v3692 = vshrl.u32 %v3691, 7
    %v3693 = vsub.s32 %v3690, %v3692
    %v3694 = vrot.slane %v3633, %v3693
    %v3696 = vunpack.c.l.s4 1966171168
    %v3697 = vunpack.c.0.s8 %v3696
    %v3698 = vlaneseq
    %v3699 = vshrl.u32 %v3698, 7
    %v3700 = vsub.s32 %v3697, %v3699
    %v3701 = vrot.slane %v3687, %v3700
    %v3702 = vcombine.high %v3694, %v3694
    %v3703 = vcombine.high %v3701, %v3701
    %v3705 = vunpack.c.l.s4 1966171168
    %v3706 = vunpack.c.0.s8 %v3705
    %v3707 = vlaneseq
    %v3708 = vshrl.u32 %v3707, 7
    %v3709 = vsub.s32 %v3706, %v3708
    %v3710 = vrot.slane %v3694, %v3709
    %v3712 = vunpack.c.l.s4 1966171168
    %v3713 = vunpack.c.0.s8 %v3712
    %v3714 = vlaneseq
    %v3715 = vshrl.u32 %v3714, 7
    %v3716 = vsub.s32 %v3713, %v3715
    %v3717 = vrot.slane %v3701, %v3716
    %v3719 = vunpack.c.l.s4 1966171168
    %v3720 = vunpack.c.0.s8 %v3719
    %v3721 = vlaneseq
    %v3722 = vshrl.u32 %v3721, 7
    %v3723 = vsub.s32 %v3720, %v3722
    %v3724 = vrot.slane %v3702, %v3723
    %v3726 = vunpack.c.l.s4 1966171168
    %v3727 = vunpack.c.0.s8 %v3726
    %v3728 = vlaneseq
    %v3729 = vshrl.u32 %v3728, 7
    %v3730 = vsub.s32 %v3727, %v3729
    %v3731 = vrot.slane %v3703, %v3730
    %v3732 = vcombine.high %v3710, %v3710
    %v3733 = vcombine.high %v3717, %v3717
    %v3734 = vcombine.high %v3724, %v3724
    %v3735 = vcombine.high %v3731, %v3731
    %v3737 = vunpack.c.l.s4 1966171168
    %v3738 = vunpack.c.0.s8 %v3737
    %v3739 = vlaneseq
    %v3740 = vshrl.u32 %v3739, 7
    %v3741 = vsub.s32 %v3738, %v3740
    %v3742 = vrot.slane %v3634, %v3741
    %v3743 = vcombine.high %v3742, %v3742
    %v3745 = vunpack.c.l.s4 1966171168
    %v3746 = vunpack.c.0.s8 %v3745
    %v3747 = vlaneseq
    %v3748 = vshrl.u32 %v3747, 7
    %v3749 = vsub.s32 %v3746, %v3748
    %v3750 = vrot.slane %v3742, %v3749
    %v3752 = vunpack.c.l.s4 1966171168
    %v3753 = vunpack.c.0.s8 %v3752
    %v3754 = vlaneseq
    %v3755 = vshrl.u32 %v3754, 7
    %v3756 = vsub.s32 %v3753, %v3755
    %v3757 = vrot.slane %v3743, %v3756
    %v3776 = vadd.f32 %v115, %v3661
    %v3777 = vadd.f32 %v129, %v3675
    %v3778 = vadd.f32 %v137, %v3683
    %v3779 = vadd.f32 %v139, %v3685
    %v3780 = vadd.f32 %v122, %v3668
    %v3781 = vadd.f32 %v136, %v3682
    %v3782 = vadd.f32 %v138, %v3684
    %v3783 = vadd.f32 %v140, %v3686
    %v3784 = vadd.f32 %v154, %v3710
    %v3785 = vadd.f32 %v178, %v3724
    %v3786 = vadd.f32 %v192, %v3732
    %v3787 = vadd.f32 %v200, %v3734
    %v3788 = vadd.f32 %v202, %v3717
    %v3789 = vadd.f32 %v185, %v3731
    %v3790 = vadd.f32 %v199, %v3733
    %v3791 = vadd.f32 %v201, %v3735
    %v3792 = vadd.f32 %v203, %v3750
    %v3793 = vadd.f32 %v217, %v3757
    %v3794 = vld [vmem:[%s7] sm:$0x1]
    %v3795 = vld [vmem:[%s8] sm:$0x1]
    %v3814 = vcombine.low %v3776, %v3777
    %v3815 = vcombine.low %v3778, %v3779
    %v3816 = vcombine.low %v3780, %v3781
    %v3817 = vcombine.low %v3782, %v3783
    %v3819 = vunpack.c.l.s4 1966171168
    %v3820 = vunpack.c.0.s8 %v3819
    %v3821 = vlaneseq
    %v3822 = vshrl.u32 %v3821, 7
    %v3823 = vsub.s32 %v3820, %v3822
    %v3824 = vrot.slane %v3814, %v3823
    %v3826 = vunpack.c.l.s4 1966171168
    %v3827 = vunpack.c.0.s8 %v3826
    %v3828 = vlaneseq
    %v3829 = vshrl.u32 %v3828, 7
    %v3830 = vsub.s32 %v3827, %v3829
    %v3831 = vrot.slane %v3815, %v3830
    %v3833 = vunpack.c.l.s4 1966171168
    %v3834 = vunpack.c.0.s8 %v3833
    %v3835 = vlaneseq
    %v3836 = vshrl.u32 %v3835, 7
    %v3837 = vsub.s32 %v3834, %v3836
    %v3838 = vrot.slane %v3816, %v3837
    %v3840 = vunpack.c.l.s4 1966171168
    %v3841 = vunpack.c.0.s8 %v3840
    %v3842 = vlaneseq
    %v3843 = vshrl.u32 %v3842, 7
    %v3844 = vsub.s32 %v3841, %v3843
    %v3845 = vrot.slane %v3817, %v3844
    %v3846 = vcombine.low %v3824, %v3831
    %v3847 = vcombine.low %v3838, %v3845
    %v3849 = vunpack.c.l.s4 1966171168
    %v3850 = vunpack.c.0.s8 %v3849
    %v3851 = vlaneseq
    %v3852 = vshrl.u32 %v3851, 7
    %v3853 = vsub.s32 %v3850, %v3852
    %v3854 = vrot.slane %v3846, %v3853
    %v3856 = vunpack.c.l.s4 1966171168
    %v3857 = vunpack.c.0.s8 %v3856
    %v3858 = vlaneseq
    %v3859 = vshrl.u32 %v3858, 7
    %v3860 = vsub.s32 %v3857, %v3859
    %v3861 = vrot.slane %v3847, %v3860
    %v3862 = vcombine.low %v3854, %v3861
    %v3863 = vcombine.low %v3784, %v3785
    %v3864 = vcombine.low %v3786, %v3787
    %v3865 = vcombine.low %v3788, %v3789
    %v3866 = vcombine.low %v3790, %v3791
    %v3868 = vunpack.c.l.s4 1966171168
    %v3869 = vunpack.c.0.s8 %v3868
    %v3870 = vlaneseq
    %v3871 = vshrl.u32 %v3870, 7
    %v3872 = vsub.s32 %v3869, %v3871
    %v3873 = vrot.slane %v3863, %v3872
    %v3875 = vunpack.c.l.s4 1966171168
    %v3876 = vunpack.c.0.s8 %v3875
    %v3877 = vlaneseq
    %v3878 = vshrl.u32 %v3877, 7
    %v3879 = vsub.s32 %v3876, %v3878
    %v3880 = vrot.slane %v3864, %v3879
    %v3882 = vunpack.c.l.s4 1966171168
    %v3883 = vunpack.c.0.s8 %v3882
    %v3884 = vlaneseq
    %v3885 = vshrl.u32 %v3884, 7
    %v3886 = vsub.s32 %v3883, %v3885
    %v3887 = vrot.slane %v3865, %v3886
    %v3889 = vunpack.c.l.s4 1966171168
    %v3890 = vunpack.c.0.s8 %v3889
    %v3891 = vlaneseq
    %v3892 = vshrl.u32 %v3891, 7
    %v3893 = vsub.s32 %v3890, %v3892
    %v3894 = vrot.slane %v3866, %v3893
    %v3895 = vcombine.low %v3873, %v3880
    %v3896 = vcombine.low %v3887, %v3894
    %v3898 = vunpack.c.l.s4 1966171168
    %v3899 = vunpack.c.0.s8 %v3898
    %v3900 = vlaneseq
    %v3901 = vshrl.u32 %v3900, 7
    %v3902 = vsub.s32 %v3899, %v3901
    %v3903 = vrot.slane %v3895, %v3902
    %v3905 = vunpack.c.l.s4 1966171168
    %v3906 = vunpack.c.0.s8 %v3905
    %v3907 = vlaneseq
    %v3908 = vshrl.u32 %v3907, 7
    %v3909 = vsub.s32 %v3906, %v3908
    %v3910 = vrot.slane %v3896, %v3909
    %v3911 = vcombine.low %v3903, %v3910
    %v3912 = vcombine.low %v3792, %v3793
    %v3914 = vunpack.c.l.s4 1966171168
    %v3915 = vunpack.c.0.s8 %v3914
    %v3916 = vlaneseq
    %v3917 = vshrl.u32 %v3916, 7
    %v3918 = vsub.s32 %v3915, %v3917
    %v3919 = vrot.slane %v3912, %v3918
    %v3921 = vunpack.c.l.s4 1966171168
    %v3922 = vunpack.c.0.s8 %v3921
    %v3923 = vlaneseq
    %v3924 = vshrl.u32 %v3923, 7
    %v3925 = vsub.s32 %v3922, %v3924
    %v3926 = vrot.slane %v3919, %v3925
    %v3930 = vsel %vm360, %v3862, 0.0
    %3931 = vadd.xlane.f32.xlu0 %v3930
    %v3932 = vpop.xlane.xlu0 %3931
    %v3933 = vsel %vm360, %v3911, 0.0
    %3934 = vadd.xlane.f32.xlu0 %v3933
    %v3935 = vpop.xlane.xlu0 %3934
    %vm3936 = vcmask 254976
    %v3937 = vsel %vm3936, %v3926, 0.0
    %3938 = vadd.xlane.f32.xlu0 %v3937
    %v3939 = vpop.xlane.xlu0 %3938
    %v3940 = vrcp.pop 32.0
    %v3941 = vmul.f32 %v3932, %v3940
    %v3942 = vmul.f32 %v3935, %v3940
    %v3943 = vmul.f32 %v3939, %v3940
    %v3947 = vlaneseq
    %v3948 = vshrl.u32 %v3947, 7
    %v3949 = vsub.s32 0, %v3948
    %v3950 = vrot.slane %v3941, %v3949
    %v3951 = vlaneseq
    %v3952 = vshrl.u32 %v3951, 7
    %v3953 = vsub.s32 1, %v3952
    %v3954 = vrot.slane %v3941, %v3953
    %v3955 = vlaneseq
    %v3956 = vshrl.u32 %v3955, 7
    %v3957 = vsub.s32 2, %v3956
    %v3958 = vrot.slane %v3941, %v3957
    %v3959 = vlaneseq
    %v3960 = vshrl.u32 %v3959, 7
    %v3961 = vsub.s32 3, %v3960
    %v3962 = vrot.slane %v3941, %v3961
    %v3963 = vlaneseq
    %v3964 = vshrl.u32 %v3963, 7
    %v3965 = vsub.s32 4, %v3964
    %v3966 = vrot.slane %v3941, %v3965
    %v3967 = vlaneseq
    %v3968 = vshrl.u32 %v3967, 7
    %v3969 = vsub.s32 5, %v3968
    %v3970 = vrot.slane %v3941, %v3969
    %v3971 = vlaneseq
    %v3972 = vshrl.u32 %v3971, 7
    %v3973 = vsub.s32 6, %v3972
    %v3974 = vrot.slane %v3941, %v3973
    %v3975 = vlaneseq
    %v3976 = vshrl.u32 %v3975, 7
    %v3977 = vsub.s32 7, %v3976
    %v3978 = vrot.slane %v3941, %v3977
    %v3979 = vlaneseq
    %v3980 = vshrl.u32 %v3979, 7
    %v3981 = vsub.s32 0, %v3980
    %v3982 = vrot.slane %v3942, %v3981
    %v3983 = vlaneseq
    %v3984 = vshrl.u32 %v3983, 7
    %v3985 = vsub.s32 1, %v3984
    %v3986 = vrot.slane %v3942, %v3985
    %v3987 = vlaneseq
    %v3988 = vshrl.u32 %v3987, 7
    %v3989 = vsub.s32 2, %v3988
    %v3990 = vrot.slane %v3942, %v3989
    %v3991 = vlaneseq
    %v3992 = vshrl.u32 %v3991, 7
    %v3993 = vsub.s32 3, %v3992
    %v3994 = vrot.slane %v3942, %v3993
    %v3995 = vlaneseq
    %v3996 = vshrl.u32 %v3995, 7
    %v3997 = vsub.s32 4, %v3996
    %v3998 = vrot.slane %v3942, %v3997
    %v3999 = vlaneseq
    %v4000 = vshrl.u32 %v3999, 7
    %v4001 = vsub.s32 5, %v4000
    %v4002 = vrot.slane %v3942, %v4001
    %v4003 = vlaneseq
    %v4004 = vshrl.u32 %v4003, 7
    %v4005 = vsub.s32 6, %v4004
    %v4006 = vrot.slane %v3942, %v4005
    %v4007 = vlaneseq
    %v4008 = vshrl.u32 %v4007, 7
    %v4009 = vsub.s32 7, %v4008
    %v4010 = vrot.slane %v3942, %v4009
    %v4011 = vlaneseq
    %v4012 = vshrl.u32 %v4011, 7
    %v4013 = vsub.s32 0, %v4012
    %v4014 = vrot.slane %v3943, %v4013
    %v4015 = vlaneseq
    %v4016 = vshrl.u32 %v4015, 7
    %v4017 = vsub.s32 1, %v4016
    %v4018 = vrot.slane %v3943, %v4017
    %v4037 = vsub.f32 %v3776, %v3950
    %v4038 = vsub.f32 %v3777, %v3954
    %v4039 = vsub.f32 %v3778, %v3958
    %v4040 = vsub.f32 %v3779, %v3962
    %v4041 = vsub.f32 %v3780, %v3966
    %v4042 = vsub.f32 %v3781, %v3970
    %v4043 = vsub.f32 %v3782, %v3974
    %v4044 = vsub.f32 %v3783, %v3978
    %v4045 = vsub.f32 %v3784, %v3982
    %v4046 = vsub.f32 %v3785, %v3986
    %v4047 = vsub.f32 %v3786, %v3990
    %v4048 = vsub.f32 %v3787, %v3994
    %v4049 = vsub.f32 %v3788, %v3998
    %v4050 = vsub.f32 %v3789, %v4002
    %v4051 = vsub.f32 %v3790, %v4006
    %v4052 = vsub.f32 %v3791, %v4010
    %v4053 = vsub.f32 %v3792, %v4014
    %v4054 = vsub.f32 %v3793, %v4018
    %v4055 = vmul.f32 %v4037, %v4037
    %v4056 = vmul.f32 %v4038, %v4038
    %v4057 = vmul.f32 %v4039, %v4039
    %v4058 = vmul.f32 %v4040, %v4040
    %v4059 = vmul.f32 %v4041, %v4041
    %v4060 = vmul.f32 %v4042, %v4042
    %v4061 = vmul.f32 %v4043, %v4043
    %v4062 = vmul.f32 %v4044, %v4044
    %v4063 = vmul.f32 %v4045, %v4045
    %v4064 = vmul.f32 %v4046, %v4046
    %v4065 = vmul.f32 %v4047, %v4047
    %v4066 = vmul.f32 %v4048, %v4048
    %v4067 = vmul.f32 %v4049, %v4049
    %v4068 = vmul.f32 %v4050, %v4050
    %v4069 = vmul.f32 %v4051, %v4051
    %v4070 = vmul.f32 %v4052, %v4052
    %v4071 = vmul.f32 %v4053, %v4053
    %v4072 = vmul.f32 %v4054, %v4054
    %v4091 = vcombine.low %v4055, %v4056
    %v4092 = vcombine.low %v4057, %v4058
    %v4093 = vcombine.low %v4059, %v4060
    %v4094 = vcombine.low %v4061, %v4062
    %v4096 = vunpack.c.l.s4 1966171168
    %v4097 = vunpack.c.0.s8 %v4096
    %v4098 = vlaneseq
    %v4099 = vshrl.u32 %v4098, 7
    %v4100 = vsub.s32 %v4097, %v4099
    %v4101 = vrot.slane %v4091, %v4100
    %v4103 = vunpack.c.l.s4 1966171168
    %v4104 = vunpack.c.0.s8 %v4103
    %v4105 = vlaneseq
    %v4106 = vshrl.u32 %v4105, 7
    %v4107 = vsub.s32 %v4104, %v4106
    %v4108 = vrot.slane %v4092, %v4107
    %v4110 = vunpack.c.l.s4 1966171168
    %v4111 = vunpack.c.0.s8 %v4110
    %v4112 = vlaneseq
    %v4113 = vshrl.u32 %v4112, 7
    %v4114 = vsub.s32 %v4111, %v4113
    %v4115 = vrot.slane %v4093, %v4114
    %v4117 = vunpack.c.l.s4 1966171168
    %v4118 = vunpack.c.0.s8 %v4117
    %v4119 = vlaneseq
    %v4120 = vshrl.u32 %v4119, 7
    %v4121 = vsub.s32 %v4118, %v4120
    %v4122 = vrot.slane %v4094, %v4121
    %v4123 = vcombine.low %v4101, %v4108
    %v4124 = vcombine.low %v4115, %v4122
    %v4126 = vunpack.c.l.s4 1966171168
    %v4127 = vunpack.c.0.s8 %v4126
    %v4128 = vlaneseq
    %v4129 = vshrl.u32 %v4128, 7
    %v4130 = vsub.s32 %v4127, %v4129
    %v4131 = vrot.slane %v4123, %v4130
    %v4133 = vunpack.c.l.s4 1966171168
    %v4134 = vunpack.c.0.s8 %v4133
    %v4135 = vlaneseq
    %v4136 = vshrl.u32 %v4135, 7
    %v4137 = vsub.s32 %v4134, %v4136
    %v4138 = vrot.slane %v4124, %v4137
    %v4139 = vcombine.low %v4131, %v4138
    %v4140 = vcombine.low %v4063, %v4064
    %v4141 = vcombine.low %v4065, %v4066
    %v4142 = vcombine.low %v4067, %v4068
    %v4143 = vcombine.low %v4069, %v4070
    %v4145 = vunpack.c.l.s4 1966171168
    %v4146 = vunpack.c.0.s8 %v4145
    %v4147 = vlaneseq
    %v4148 = vshrl.u32 %v4147, 7
    %v4149 = vsub.s32 %v4146, %v4148
    %v4150 = vrot.slane %v4140, %v4149
    %v4152 = vunpack.c.l.s4 1966171168
    %v4153 = vunpack.c.0.s8 %v4152
    %v4154 = vlaneseq
    %v4155 = vshrl.u32 %v4154, 7
    %v4156 = vsub.s32 %v4153, %v4155
    %v4157 = vrot.slane %v4141, %v4156
    %v4159 = vunpack.c.l.s4 1966171168
    %v4160 = vunpack.c.0.s8 %v4159
    %v4161 = vlaneseq
    %v4162 = vshrl.u32 %v4161, 7
    %v4163 = vsub.s32 %v4160, %v4162
    %v4164 = vrot.slane %v4142, %v4163
    %v4166 = vunpack.c.l.s4 1966171168
    %v4167 = vunpack.c.0.s8 %v4166
    %v4168 = vlaneseq
    %v4169 = vshrl.u32 %v4168, 7
    %v4170 = vsub.s32 %v4167, %v4169
    %v4171 = vrot.slane %v4143, %v4170
    %v4172 = vcombine.low %v4150, %v4157
    %v4173 = vcombine.low %v4164, %v4171
    %v4175 = vunpack.c.l.s4 1966171168
    %v4176 = vunpack.c.0.s8 %v4175
    %v4177 = vlaneseq
    %v4178 = vshrl.u32 %v4177, 7
    %v4179 = vsub.s32 %v4176, %v4178
    %v4180 = vrot.slane %v4172, %v4179
    %v4182 = vunpack.c.l.s4 1966171168
    %v4183 = vunpack.c.0.s8 %v4182
    %v4184 = vlaneseq
    %v4185 = vshrl.u32 %v4184, 7
    %v4186 = vsub.s32 %v4183, %v4185
    %v4187 = vrot.slane %v4173, %v4186
    %v4188 = vcombine.low %v4180, %v4187
    %v4189 = vcombine.low %v4071, %v4072
    %v4191 = vunpack.c.l.s4 1966171168
    %v4192 = vunpack.c.0.s8 %v4191
    %v4193 = vlaneseq
    %v4194 = vshrl.u32 %v4193, 7
    %v4195 = vsub.s32 %v4192, %v4194
    %v4196 = vrot.slane %v4189, %v4195
    %v4198 = vunpack.c.l.s4 1966171168
    %v4199 = vunpack.c.0.s8 %v4198
    %v4200 = vlaneseq
    %v4201 = vshrl.u32 %v4200, 7
    %v4202 = vsub.s32 %v4199, %v4201
    %v4203 = vrot.slane %v4196, %v4202
    %v4207 = vsel %vm360, %v4139, 0.0
    %4208 = vadd.xlane.f32.xlu0 %v4207
    %v4209 = vpop.xlane.xlu0 %4208
    %v4210 = vsel %vm360, %v4188, 0.0
    %4211 = vadd.xlane.f32.xlu0 %v4210
    %v4212 = vpop.xlane.xlu0 %4211
    %v4213 = vsel %vm3936, %v4203, 0.0
    %4214 = vadd.xlane.f32.xlu0 %v4213
    %v4215 = vpop.xlane.xlu0 %4214
    %v4216 = vmul.f32 %v4209, %v3940
    %v4217 = vmul.f32 %v4212, %v3940
    %v4218 = vmul.f32 %v4215, %v3940
    %v4219 = vadd.f32 %v4216, 1e-05
    %v4220 = vadd.f32 %v4217, 1e-05
    %v4221 = vadd.f32 %v4218, 1e-05
    %v4222 = vrsqrt.pop %v4219
    %v4223 = vrsqrt.pop %v4220
    %v4224 = vrsqrt.pop %v4221
    %v4228 = vlaneseq
    %v4229 = vshrl.u32 %v4228, 7
    %v4230 = vsub.s32 0, %v4229
    %v4231 = vrot.slane %v4222, %v4230
    %v4232 = vlaneseq
    %v4233 = vshrl.u32 %v4232, 7
    %v4234 = vsub.s32 1, %v4233
    %v4235 = vrot.slane %v4222, %v4234
    %v4236 = vlaneseq
    %v4237 = vshrl.u32 %v4236, 7
    %v4238 = vsub.s32 2, %v4237
    %v4239 = vrot.slane %v4222, %v4238
    %v4240 = vlaneseq
    %v4241 = vshrl.u32 %v4240, 7
    %v4242 = vsub.s32 3, %v4241
    %v4243 = vrot.slane %v4222, %v4242
    %v4244 = vlaneseq
    %v4245 = vshrl.u32 %v4244, 7
    %v4246 = vsub.s32 4, %v4245
    %v4247 = vrot.slane %v4222, %v4246
    %v4248 = vlaneseq
    %v4249 = vshrl.u32 %v4248, 7
    %v4250 = vsub.s32 5, %v4249
    %v4251 = vrot.slane %v4222, %v4250
    %v4252 = vlaneseq
    %v4253 = vshrl.u32 %v4252, 7
    %v4254 = vsub.s32 6, %v4253
    %v4255 = vrot.slane %v4222, %v4254
    %v4256 = vlaneseq
    %v4257 = vshrl.u32 %v4256, 7
    %v4258 = vsub.s32 7, %v4257
    %v4259 = vrot.slane %v4222, %v4258
    %v4260 = vlaneseq
    %v4261 = vshrl.u32 %v4260, 7
    %v4262 = vsub.s32 0, %v4261
    %v4263 = vrot.slane %v4223, %v4262
    %v4264 = vlaneseq
    %v4265 = vshrl.u32 %v4264, 7
    %v4266 = vsub.s32 1, %v4265
    %v4267 = vrot.slane %v4223, %v4266
    %v4268 = vlaneseq
    %v4269 = vshrl.u32 %v4268, 7
    %v4270 = vsub.s32 2, %v4269
    %v4271 = vrot.slane %v4223, %v4270
    %v4272 = vlaneseq
    %v4273 = vshrl.u32 %v4272, 7
    %v4274 = vsub.s32 3, %v4273
    %v4275 = vrot.slane %v4223, %v4274
    %v4276 = vlaneseq
    %v4277 = vshrl.u32 %v4276, 7
    %v4278 = vsub.s32 4, %v4277
    %v4279 = vrot.slane %v4223, %v4278
    %v4280 = vlaneseq
    %v4281 = vshrl.u32 %v4280, 7
    %v4282 = vsub.s32 5, %v4281
    %v4283 = vrot.slane %v4223, %v4282
    %v4284 = vlaneseq
    %v4285 = vshrl.u32 %v4284, 7
    %v4286 = vsub.s32 6, %v4285
    %v4287 = vrot.slane %v4223, %v4286
    %v4288 = vlaneseq
    %v4289 = vshrl.u32 %v4288, 7
    %v4290 = vsub.s32 7, %v4289
    %v4291 = vrot.slane %v4223, %v4290
    %v4292 = vlaneseq
    %v4293 = vshrl.u32 %v4292, 7
    %v4294 = vsub.s32 0, %v4293
    %v4295 = vrot.slane %v4224, %v4294
    %v4296 = vlaneseq
    %v4297 = vshrl.u32 %v4296, 7
    %v4298 = vsub.s32 1, %v4297
    %v4299 = vrot.slane %v4224, %v4298
    %v4318 = vmul.f32 %v4037, %v4231
    %v4319 = vmul.f32 %v4038, %v4235
    %v4320 = vmul.f32 %v4039, %v4239
    %v4321 = vmul.f32 %v4040, %v4243
    %v4322 = vmul.f32 %v4041, %v4247
    %v4323 = vmul.f32 %v4042, %v4251
    %v4324 = vmul.f32 %v4043, %v4255
    %v4325 = vmul.f32 %v4044, %v4259
    %v4326 = vmul.f32 %v4045, %v4263
    %v4327 = vmul.f32 %v4046, %v4267
    %v4328 = vmul.f32 %v4047, %v4271
    %v4329 = vmul.f32 %v4048, %v4275
    %v4330 = vmul.f32 %v4049, %v4279
    %v4331 = vmul.f32 %v4050, %v4283
    %v4332 = vmul.f32 %v4051, %v4287
    %v4333 = vmul.f32 %v4052, %v4291
    %v4334 = vmul.f32 %v4053, %v4295
    %v4335 = vmul.f32 %v4054, %v4299
    %v4337 = vlaneseq
    %v4338 = vshrl.u32 %v4337, 7
    %v4339 = vsub.s32 0, %v4338
    %v4340 = vrot.slane %v3794, %v4339
    %v4341 = vcombine.high %v4340, %v4340
    %v4343 = vunpack.c.l.s4 1966171168
    %v4344 = vunpack.c.0.s8 %v4343
    %v4345 = vlaneseq
    %v4346 = vshrl.u32 %v4345, 7
    %v4347 = vsub.s32 %v4344, %v4346
    %v4348 = vrot.slane %v4340, %v4347
    %v4350 = vunpack.c.l.s4 1966171168
    %v4351 = vunpack.c.0.s8 %v4350
    %v4352 = vlaneseq
    %v4353 = vshrl.u32 %v4352, 7
    %v4354 = vsub.s32 %v4351, %v4353
    %v4355 = vrot.slane %v4341, %v4354
    %v4356 = vcombine.high %v4348, %v4348
    %v4357 = vcombine.high %v4355, %v4355
    %v4359 = vunpack.c.l.s4 1966171168
    %v4360 = vunpack.c.0.s8 %v4359
    %v4361 = vlaneseq
    %v4362 = vshrl.u32 %v4361, 7
    %v4363 = vsub.s32 %v4360, %v4362
    %v4364 = vrot.slane %v4348, %v4363
    %v4366 = vunpack.c.l.s4 1966171168
    %v4367 = vunpack.c.0.s8 %v4366
    %v4368 = vlaneseq
    %v4369 = vshrl.u32 %v4368, 7
    %v4370 = vsub.s32 %v4367, %v4369
    %v4371 = vrot.slane %v4355, %v4370
    %v4373 = vunpack.c.l.s4 1966171168
    %v4374 = vunpack.c.0.s8 %v4373
    %v4375 = vlaneseq
    %v4376 = vshrl.u32 %v4375, 7
    %v4377 = vsub.s32 %v4374, %v4376
    %v4378 = vrot.slane %v4356, %v4377
    %v4380 = vunpack.c.l.s4 1966171168
    %v4381 = vunpack.c.0.s8 %v4380
    %v4382 = vlaneseq
    %v4383 = vshrl.u32 %v4382, 7
    %v4384 = vsub.s32 %v4381, %v4383
    %v4385 = vrot.slane %v4357, %v4384
    %v4386 = vcombine.high %v4364, %v4364
    %v4387 = vcombine.high %v4371, %v4371
    %v4388 = vcombine.high %v4378, %v4378
    %v4389 = vcombine.high %v4385, %v4385
    %v4398 = vmul.f32 %v4318, %v4364
    %v4399 = vmul.f32 %v4319, %v4378
    %v4400 = vmul.f32 %v4320, %v4386
    %v4401 = vmul.f32 %v4321, %v4388
    %v4402 = vmul.f32 %v4322, %v4371
    %v4403 = vmul.f32 %v4323, %v4385
    %v4404 = vmul.f32 %v4324, %v4387
    %v4405 = vmul.f32 %v4325, %v4389
    %v4406 = vmul.f32 %v4326, %v4364
    %v4407 = vmul.f32 %v4327, %v4378
    %v4408 = vmul.f32 %v4328, %v4386
    %v4409 = vmul.f32 %v4329, %v4388
    %v4410 = vmul.f32 %v4330, %v4371
    %v4411 = vmul.f32 %v4331, %v4385
    %v4412 = vmul.f32 %v4332, %v4387
    %v4413 = vmul.f32 %v4333, %v4389
    %v4414 = vmul.f32 %v4334, %v4364
    %v4415 = vmul.f32 %v4335, %v4378
    %v4417 = vlaneseq
    %v4418 = vshrl.u32 %v4417, 7
    %v4419 = vsub.s32 0, %v4418
    %v4420 = vrot.slane %v3795, %v4419
    %v4421 = vcombine.high %v4420, %v4420
    %v4423 = vunpack.c.l.s4 1966171168
    %v4424 = vunpack.c.0.s8 %v4423
    %v4425 = vlaneseq
    %v4426 = vshrl.u32 %v4425, 7
    %v4427 = vsub.s32 %v4424, %v4426
    %v4428 = vrot.slane %v4420, %v4427
    %v4430 = vunpack.c.l.s4 1966171168
    %v4431 = vunpack.c.0.s8 %v4430
    %v4432 = vlaneseq
    %v4433 = vshrl.u32 %v4432, 7
    %v4434 = vsub.s32 %v4431, %v4433
    %v4435 = vrot.slane %v4421, %v4434
    %v4436 = vcombine.high %v4428, %v4428
    %v4437 = vcombine.high %v4435, %v4435
    %v4439 = vunpack.c.l.s4 1966171168
    %v4440 = vunpack.c.0.s8 %v4439
    %v4441 = vlaneseq
    %v4442 = vshrl.u32 %v4441, 7
    %v4443 = vsub.s32 %v4440, %v4442
    %v4444 = vrot.slane %v4428, %v4443
    %v4446 = vunpack.c.l.s4 1966171168
    %v4447 = vunpack.c.0.s8 %v4446
    %v4448 = vlaneseq
    %v4449 = vshrl.u32 %v4448, 7
    %v4450 = vsub.s32 %v4447, %v4449
    %v4451 = vrot.slane %v4435, %v4450
    %v4453 = vunpack.c.l.s4 1966171168
    %v4454 = vunpack.c.0.s8 %v4453
    %v4455 = vlaneseq
    %v4456 = vshrl.u32 %v4455, 7
    %v4457 = vsub.s32 %v4454, %v4456
    %v4458 = vrot.slane %v4436, %v4457
    %v4460 = vunpack.c.l.s4 1966171168
    %v4461 = vunpack.c.0.s8 %v4460
    %v4462 = vlaneseq
    %v4463 = vshrl.u32 %v4462, 7
    %v4464 = vsub.s32 %v4461, %v4463
    %v4465 = vrot.slane %v4437, %v4464
    %v4466 = vcombine.high %v4444, %v4444
    %v4467 = vcombine.high %v4451, %v4451
    %v4468 = vcombine.high %v4458, %v4458
    %v4469 = vcombine.high %v4465, %v4465
    %v4478 = vadd.f32 %v4398, %v4444
    %v4479 = vadd.f32 %v4399, %v4458
    %v4480 = vadd.f32 %v4400, %v4466
    %v4481 = vadd.f32 %v4401, %v4468
    %v4482 = vadd.f32 %v4402, %v4451
    %v4483 = vadd.f32 %v4403, %v4465
    %v4484 = vadd.f32 %v4404, %v4467
    %v4485 = vadd.f32 %v4405, %v4469
    %v4486 = vadd.f32 %v4406, %v4444
    %v4487 = vadd.f32 %v4407, %v4458
    %v4488 = vadd.f32 %v4408, %v4466
    %v4489 = vadd.f32 %v4409, %v4468
    %v4490 = vadd.f32 %v4410, %v4451
    %v4491 = vadd.f32 %v4411, %v4465
    %v4492 = vadd.f32 %v4412, %v4467
    %v4493 = vadd.f32 %v4413, %v4469
    %v4494 = vadd.f32 %v4414, %v4444
    %v4495 = vadd.f32 %v4415, %v4458
    %v4496 = vld [vmem:[%s9] sm:$0xff]
    %v4497 = vld [vmem:[%s9 + $0x8] sm:$0xff]
    %v4498 = vld [vmem:[%s9 + $0x10] sm:$0xff]
    %v4499 = vld [vmem:[%s9 + $0x18] sm:$0xff]
    %v4500 = vld [vmem:[%s10] sm:$0x1]
    %v4502 = vlaneseq
    %v4503 = vshrl.u32 %v4502, 7
    %v4504 = vsub.s32 0, %v4503
    %v4505 = vrot.slane %v4500, %v4504
    %v4525 = vcombine.low %v4478, %v4479
    %v4526 = vcombine.low %v4480, %v4481
    %v4527 = vcombine.low %v4482, %v4483
    %v4528 = vcombine.low %v4484, %v4485
    %v4530 = vunpack.c.l.s4 1966171168
    %v4531 = vunpack.c.0.s8 %v4530
    %v4532 = vlaneseq
    %v4533 = vshrl.u32 %v4532, 7
    %v4534 = vsub.s32 %v4531, %v4533
    %v4535 = vrot.slane %v4525, %v4534
    %v4537 = vunpack.c.l.s4 1966171168
    %v4538 = vunpack.c.0.s8 %v4537
    %v4539 = vlaneseq
    %v4540 = vshrl.u32 %v4539, 7
    %v4541 = vsub.s32 %v4538, %v4540
    %v4542 = vrot.slane %v4526, %v4541
    %v4544 = vunpack.c.l.s4 1966171168
    %v4545 = vunpack.c.0.s8 %v4544
    %v4546 = vlaneseq
    %v4547 = vshrl.u32 %v4546, 7
    %v4548 = vsub.s32 %v4545, %v4547
    %v4549 = vrot.slane %v4527, %v4548
    %v4551 = vunpack.c.l.s4 1966171168
    %v4552 = vunpack.c.0.s8 %v4551
    %v4553 = vlaneseq
    %v4554 = vshrl.u32 %v4553, 7
    %v4555 = vsub.s32 %v4552, %v4554
    %v4556 = vrot.slane %v4528, %v4555
    %v4557 = vcombine.low %v4535, %v4542
    %v4558 = vcombine.low %v4549, %v4556
    %v4560 = vunpack.c.l.s4 1966171168
    %v4561 = vunpack.c.0.s8 %v4560
    %v4562 = vlaneseq
    %v4563 = vshrl.u32 %v4562, 7
    %v4564 = vsub.s32 %v4561, %v4563
    %v4565 = vrot.slane %v4557, %v4564
    %v4567 = vunpack.c.l.s4 1966171168
    %v4568 = vunpack.c.0.s8 %v4567
    %v4569 = vlaneseq
    %v4570 = vshrl.u32 %v4569, 7
    %v4571 = vsub.s32 %v4568, %v4570
    %v4572 = vrot.slane %v4558, %v4571
    %v4573 = vcombine.low %v4565, %v4572
    %v4574 = vcombine.low %v4486, %v4487
    %v4575 = vcombine.low %v4488, %v4489
    %v4576 = vcombine.low %v4490, %v4491
    %v4577 = vcombine.low %v4492, %v4493
    %v4579 = vunpack.c.l.s4 1966171168
    %v4580 = vunpack.c.0.s8 %v4579
    %v4581 = vlaneseq
    %v4582 = vshrl.u32 %v4581, 7
    %v4583 = vsub.s32 %v4580, %v4582
    %v4584 = vrot.slane %v4574, %v4583
    %v4586 = vunpack.c.l.s4 1966171168
    %v4587 = vunpack.c.0.s8 %v4586
    %v4588 = vlaneseq
    %v4589 = vshrl.u32 %v4588, 7
    %v4590 = vsub.s32 %v4587, %v4589
    %v4591 = vrot.slane %v4575, %v4590
    %v4593 = vunpack.c.l.s4 1966171168
    %v4594 = vunpack.c.0.s8 %v4593
    %v4595 = vlaneseq
    %v4596 = vshrl.u32 %v4595, 7
    %v4597 = vsub.s32 %v4594, %v4596
    %v4598 = vrot.slane %v4576, %v4597
    %v4600 = vunpack.c.l.s4 1966171168
    %v4601 = vunpack.c.0.s8 %v4600
    %v4602 = vlaneseq
    %v4603 = vshrl.u32 %v4602, 7
    %v4604 = vsub.s32 %v4601, %v4603
    %v4605 = vrot.slane %v4577, %v4604
    %v4606 = vcombine.low %v4584, %v4591
    %v4607 = vcombine.low %v4598, %v4605
    %v4609 = vunpack.c.l.s4 1966171168
    %v4610 = vunpack.c.0.s8 %v4609
    %v4611 = vlaneseq
    %v4612 = vshrl.u32 %v4611, 7
    %v4613 = vsub.s32 %v4610, %v4612
    %v4614 = vrot.slane %v4606, %v4613
    %v4616 = vunpack.c.l.s4 1966171168
    %v4617 = vunpack.c.0.s8 %v4616
    %v4618 = vlaneseq
    %v4619 = vshrl.u32 %v4618, 7
    %v4620 = vsub.s32 %v4617, %v4619
    %v4621 = vrot.slane %v4607, %v4620
    %v4622 = vcombine.low %v4614, %v4621
    %v4623 = vcombine.low %v4494, %v4495
    %v4625 = vunpack.c.l.s4 1966171168
    %v4626 = vunpack.c.0.s8 %v4625
    %v4627 = vlaneseq
    %v4628 = vshrl.u32 %v4627, 7
    %v4629 = vsub.s32 %v4626, %v4628
    %v4630 = vrot.slane %v4623, %v4629
    %v4632 = vunpack.c.l.s4 1966171168
    %v4633 = vunpack.c.0.s8 %v4632
    %v4634 = vlaneseq
    %v4635 = vshrl.u32 %v4634, 7
    %v4636 = vsub.s32 %v4633, %v4635
    %v4637 = vrot.slane %v4630, %v4636
    %v4638 = vsel %vm360, %v4573, 0
    %v4640 = vsel %vm360, %v4622, 0
    %v4642 = vsel %vm360, %v4637, 0
    %4644 = vmatprep.subr.mxu0 0.0
    %4645 = vmatpush1.msra.mxu0 0.0
    %4646 = vmatprep.subr.mxu0 0.0
    %4647 = vmatpush1.msra.mxu0 0.0
    %4648 = vmatprep.subr.mxu0 0.0
    %4649 = vmatpush1.msra.mxu0 0.0
    %4650 = vmatprep.subr.mxu0 0.0
    %4651 = vmatpush1.msra.mxu0 0.0
    %4652 = vmatprep.subr.mxu0 0.0
    %4653 = vmatpush1.msra.mxu0 0.0
    %4654 = vmatprep.subr.mxu0 0.0
    %4655 = vmatpush1.msra.mxu0 0.0
    %4656 = vmatprep.subr.mxu0 0.0
    %4657 = vmatpush1.msra.mxu0 0.0
    %4658 = vmatprep.subr.mxu0 0.0
    %4659 = vmatpush1.msra.mxu0 0.0
    %4660 = vmatprep.subr.mxu0 0.0
    %4661 = vmatpush1.msra.mxu0 0.0
    %4662 = vmatprep.subr.mxu0 0.0
    %4663 = vmatpush1.msra.mxu0 0.0
    %4664 = vmatprep.subr.mxu0 0.0
    %4665 = vmatpush1.msra.mxu0 0.0
    %4666 = vmatprep.subr.mxu0 0.0
    %4667 = vmatpush1.msra.mxu0 0.0
    %4668 = vmatprep.subr.mxu0 0.0
    %4669 = vmatpush1.msra.mxu0 %v4499
    %4670 = vmatprep.subr.mxu0 0.0
    %4671 = vmatpush1.msra.mxu0 %v4498
    %4672 = vmatprep.subr.mxu0 0.0
    %4673 = vmatpush1.msra.mxu0 %v4497
    %4674 = vmatprep.subr.mxu0 0.0
    %4675 = vmatpush1.msra.mxu0 %v4496
    %4676 = vmatprep.subr.mxu0 0.0
    %4677 = vmatpush2.msra.mxu0 0.0
    %4678 = vmatprep.subr.mxu0 0.0
    %4679 = vmatpush2.msra.mxu0 0.0
    %4680 = vmatprep.subr.mxu0 0.0
    %4681 = vmatpush2.msra.mxu0 0.0
    %4682 = vmatprep.subr.mxu0 0.0
    %4683 = vmatpush2.msra.mxu0 0.0
    %4684 = vmatprep.subr.mxu0 0.0
    %4685 = vmatpush2.msra.mxu0 0.0
    %4686 = vmatprep.subr.mxu0 0.0
    %4687 = vmatpush2.msra.mxu0 0.0
    %4688 = vmatprep.subr.mxu0 0.0
    %4689 = vmatpush2.msra.mxu0 0.0
    %4690 = vmatprep.subr.mxu0 0.0
    %4691 = vmatpush2.msra.mxu0 0.0
    %4692 = vmatprep.subr.mxu0 0.0
    %4693 = vmatpush2.msra.mxu0 0.0
    %4694 = vmatprep.subr.mxu0 0.0
    %4695 = vmatpush2.msra.mxu0 0.0
    %4696 = vmatprep.subr.mxu0 0.0
    %4697 = vmatpush2.msra.mxu0 0.0
    %4698 = vmatprep.subr.mxu0 0.0
    %4699 = vmatpush2.msra.mxu0 0.0
    %4700 = vmatprep.subr.mxu0 0.0
    %4701 = vmatpush2.msra.mxu0 0.0
    %4702 = vmatprep.subr.mxu0 0.0
    %4703 = vmatpush2.msra.mxu0 0.0
    %4704 = vmatprep.subr.mxu0 0.0
    %4705 = vmatpush2.msra.mxu0 0.0
    %4706 = vmatprep.subr.mxu0 0.0
    %4707 = vmatpush2.msra.mxu0 0.0
    %4708 = vmatprep.mubr.f32.mxu0 0.0
    %4709 = vmatmul.mubr.f32.gmra.mxu0 %v4638
    %v4710 = vpop.f32.mrf.mxu0
    %v4711 = vadd.f32 %v4505, %v4710
    %v4712 = vpop.f32.mrf.mxu0
    %4713 = vmatprep.mubr.f32.mxu0 0.0
    %4714 = vmatmul.mubr.f32.gmra.mxu0 %v4640
    %v4715 = vpop.f32.mrf.mxu0
    %v4716 = vadd.f32 %v4505, %v4715
    %v4717 = vpop.f32.mrf.mxu0
    %4718 = vmatprep.mubr.f32.mxu0 0.0
    %4719 = vmatmul.mubr.f32.gmra.mxu0 %v4642
    %v4720 = vpop.f32.mrf.mxu0
    %v4721 = vadd.f32 %v4505, %v4720
    %v4722 = vpop.f32.mrf.mxu0
    %4723 = vdwg.mxu0
    %v4724 = vmul.f32 %v4711, 0.5
    %v4725 = vmul.f32 %v4716, 0.5
    %v4726 = vmul.f32 %v4721, 0.5
    %v4727 = vmul.f32 %v4711, 0.70710677
    %v4728 = vmul.f32 %v4716, 0.70710677
    %v4729 = vmul.f32 %v4721, 0.70710677
    %v4730 = verf.f32.pop %v4727
    %v4731 = verf.f32.pop %v4728
    %v4732 = verf.f32.pop %v4729
    %v4733 = vadd.f32 %v4730, 1.0
    %v4734 = vadd.f32 %v4731, 1.0
    %v4735 = vadd.f32 %v4732, 1.0
    %v4736 = vmul.f32 %v4724, %v4733
    %v4737 = vmul.f32 %v4725, %v4734
    %v4738 = vmul.f32 %v4726, %v4735
    %v4739 = vld [vmem:[%s11] sm:$0xff]
    %v4740 = vld [vmem:[%s11 + $0x8] sm:$0xff]
    %v4741 = vld [vmem:[%s11 + $0x10] sm:$0xff]
    %v4742 = vld [vmem:[%s11 + $0x18] sm:$0xff]
    %v4743 = vld [vmem:[%s11 + $0x20] sm:$0xff]
    %v4744 = vld [vmem:[%s11 + $0x28] sm:$0xff]
    %v4745 = vld [vmem:[%s11 + $0x30] sm:$0xff]
    %v4746 = vld [vmem:[%s11 + $0x38] sm:$0xff]
    %v4747 = vld [vmem:[%s12] sm:$0x1]
    %v4749 = vlaneseq
    %v4750 = vshrl.u32 %v4749, 7
    %v4751 = vsub.s32 0, %v4750
    %v4752 = vrot.slane %v4747, %v4751
    %vm4754 = vcmask 523264
    %v4756 = vsel %vm4754, %v4736, 0
    %v4759 = vsel %vm4754, %v4737, 0
    %v4762 = vsel %vm4754, %v4738, 0
    %4764 = vmatprep.subr.mxu0 0.0
    %4765 = vmatpush1.msra.mxu0 0.0
    %4766 = vmatprep.subr.mxu0 0.0
    %4767 = vmatpush1.msra.mxu0 0.0
    %4768 = vmatprep.subr.mxu0 0.0
    %4769 = vmatpush1.msra.mxu0 0.0
    %4770 = vmatprep.subr.mxu0 0.0
    %4771 = vmatpush1.msra.mxu0 0.0
    %4772 = vmatprep.subr.mxu0 0.0
    %4773 = vmatpush1.msra.mxu0 0.0
    %4774 = vmatprep.subr.mxu0 0.0
    %4775 = vmatpush1.msra.mxu0 0.0
    %4776 = vmatprep.subr.mxu0 0.0
    %4777 = vmatpush1.msra.mxu0 0.0
    %4778 = vmatprep.subr.mxu0 0.0
    %4779 = vmatpush1.msra.mxu0 0.0
    %4780 = vmatprep.subr.mxu0 0.0
    %4781 = vmatpush1.msra.mxu0 %v4746
    %4782 = vmatprep.subr.mxu0 0.0
    %4783 = vmatpush1.msra.mxu0 %v4745
    %4784 = vmatprep.subr.mxu0 0.0
    %4785 = vmatpush1.msra.mxu0 %v4744
    %4786 = vmatprep.subr.mxu0 0.0
    %4787 = vmatpush1.msra.mxu0 %v4743
    %4788 = vmatprep.subr.mxu0 0.0
    %4789 = vmatpush1.msra.mxu0 %v4742
    %4790 = vmatprep.subr.mxu0 0.0
    %4791 = vmatpush1.msra.mxu0 %v4741
    %4792 = vmatprep.subr.mxu0 0.0
    %4793 = vmatpush1.msra.mxu0 %v4740
    %4794 = vmatprep.subr.mxu0 0.0
    %4795 = vmatpush1.msra.mxu0 %v4739
    %4796 = vmatprep.subr.mxu0 0.0
    %4797 = vmatpush2.msra.mxu0 0.0
    %4798 = vmatprep.subr.mxu0 0.0
    %4799 = vmatpush2.msra.mxu0 0.0
    %4800 = vmatprep.subr.mxu0 0.0
    %4801 = vmatpush2.msra.mxu0 0.0
    %4802 = vmatprep.subr.mxu0 0.0
    %4803 = vmatpush2.msra.mxu0 0.0
    %4804 = vmatprep.subr.mxu0 0.0
    %4805 = vmatpush2.msra.mxu0 0.0
    %4806 = vmatprep.subr.mxu0 0.0
    %4807 = vmatpush2.msra.mxu0 0.0
    %4808 = vmatprep.subr.mxu0 0.0
    %4809 = vmatpush2.msra.mxu0 0.0
    %4810 = vmatprep.subr.mxu0 0.0
    %4811 = vmatpush2.msra.mxu0 0.0
    %4812 = vmatprep.subr.mxu0 0.0
    %4813 = vmatpush2.msra.mxu0 0.0
    %4814 = vmatprep.subr.mxu0 0.0
    %4815 = vmatpush2.msra.mxu0 0.0
    %4816 = vmatprep.subr.mxu0 0.0
    %4817 = vmatpush2.msra.mxu0 0.0
    %4818 = vmatprep.subr.mxu0 0.0
    %4819 = vmatpush2.msra.mxu0 0.0
    %4820 = vmatprep.subr.mxu0 0.0
    %4821 = vmatpush2.msra.mxu0 0.0
    %4822 = vmatprep.subr.mxu0 0.0
    %4823 = vmatpush2.msra.mxu0 0.0
    %4824 = vmatprep.subr.mxu0 0.0
    %4825 = vmatpush2.msra.mxu0 0.0
    %4826 = vmatprep.subr.mxu0 0.0
    %4827 = vmatpush2.msra.mxu0 0.0
    %4828 = vmatprep.mubr.f32.mxu0 0.0
    %4829 = vmatmul.mubr.f32.gmra.mxu0 %v4756
    %v4830 = vpop.f32.mrf.mxu0
    %v4831 = vadd.f32 %v4752, %v4830
    %v4832 = vpop.f32.mrf.mxu0
    %4833 = vmatprep.mubr.f32.mxu0 0.0
    %4834 = vmatmul.mubr.f32.gmra.mxu0 %v4759
    %v4835 = vpop.f32.mrf.mxu0
    %v4836 = vadd.f32 %v4752, %v4835
    %v4837 = vpop.f32.mrf.mxu0
    %4838 = vmatprep.mubr.f32.mxu0 0.0
    %4839 = vmatmul.mubr.f32.gmra.mxu0 %v4762
    %v4840 = vpop.f32.mrf.mxu0
    %v4841 = vadd.f32 %v4752, %v4840
    %v4842 = vpop.f32.mrf.mxu0
    %4843 = vdwg.mxu0
    %v4847 = vcombine.high %v4831, %v4831
    %v4849 = vunpack.c.l.s4 1966171168
    %v4850 = vunpack.c.0.s8 %v4849
    %v4851 = vlaneseq
    %v4852 = vshrl.u32 %v4851, 7
    %v4853 = vsub.s32 %v4850, %v4852
    %v4854 = vrot.slane %v4831, %v4853
    %v4856 = vunpack.c.l.s4 1966171168
    %v4857 = vunpack.c.0.s8 %v4856
    %v4858 = vlaneseq
    %v4859 = vshrl.u32 %v4858, 7
    %v4860 = vsub.s32 %v4857, %v4859
    %v4861 = vrot.slane %v4847, %v4860
    %v4862 = vcombine.high %v4854, %v4854
    %v4863 = vcombine.high %v4861, %v4861
    %v4865 = vunpack.c.l.s4 1966171168
    %v4866 = vunpack.c.0.s8 %v4865
    %v4867 = vlaneseq
    %v4868 = vshrl.u32 %v4867, 7
    %v4869 = vsub.s32 %v4866, %v4868
    %v4870 = vrot.slane %v4854, %v4869
    %v4872 = vunpack.c.l.s4 1966171168
    %v4873 = vunpack.c.0.s8 %v4872
    %v4874 = vlaneseq
    %v4875 = vshrl.u32 %v4874, 7
    %v4876 = vsub.s32 %v4873, %v4875
    %v4877 = vrot.slane %v4861, %v4876
    %v4879 = vunpack.c.l.s4 1966171168
    %v4880 = vunpack.c.0.s8 %v4879
    %v4881 = vlaneseq
    %v4882 = vshrl.u32 %v4881, 7
    %v4883 = vsub.s32 %v4880, %v4882
    %v4884 = vrot.slane %v4862, %v4883
    %v4886 = vunpack.c.l.s4 1966171168
    %v4887 = vunpack.c.0.s8 %v4886
    %v4888 = vlaneseq
    %v4889 = vshrl.u32 %v4888, 7
    %v4890 = vsub.s32 %v4887, %v4889
    %v4891 = vrot.slane %v4863, %v4890
    %v4892 = vcombine.high %v4870, %v4870
    %v4893 = vcombine.high %v4877, %v4877
    %v4894 = vcombine.high %v4884, %v4884
    %v4895 = vcombine.high %v4891, %v4891
    %v4896 = vcombine.high %v4836, %v4836
    %v4898 = vunpack.c.l.s4 1966171168
    %v4899 = vunpack.c.0.s8 %v4898
    %v4900 = vlaneseq
    %v4901 = vshrl.u32 %v4900, 7
    %v4902 = vsub.s32 %v4899, %v4901
    %v4903 = vrot.slane %v4836, %v4902
    %v4905 = vunpack.c.l.s4 1966171168
    %v4906 = vunpack.c.0.s8 %v4905
    %v4907 = vlaneseq
    %v4908 = vshrl.u32 %v4907, 7
    %v4909 = vsub.s32 %v4906, %v4908
    %v4910 = vrot.slane %v4896, %v4909
    %v4911 = vcombine.high %v4903, %v4903
    %v4912 = vcombine.high %v4910, %v4910
    %v4914 = vunpack.c.l.s4 1966171168
    %v4915 = vunpack.c.0.s8 %v4914
    %v4916 = vlaneseq
    %v4917 = vshrl.u32 %v4916, 7
    %v4918 = vsub.s32 %v4915, %v4917
    %v4919 = vrot.slane %v4903, %v4918
    %v4921 = vunpack.c.l.s4 1966171168
    %v4922 = vunpack.c.0.s8 %v4921
    %v4923 = vlaneseq
    %v4924 = vshrl.u32 %v4923, 7
    %v4925 = vsub.s32 %v4922, %v4924
    %v4926 = vrot.slane %v4910, %v4925
    %v4928 = vunpack.c.l.s4 1966171168
    %v4929 = vunpack.c.0.s8 %v4928
    %v4930 = vlaneseq
    %v4931 = vshrl.u32 %v4930, 7
    %v4932 = vsub.s32 %v4929, %v4931
    %v4933 = vrot.slane %v4911, %v4932
    %v4935 = vunpack.c.l.s4 1966171168
    %v4936 = vunpack.c.0.s8 %v4935
    %v4937 = vlaneseq
    %v4938 = vshrl.u32 %v4937, 7
    %v4939 = vsub.s32 %v4936, %v4938
    %v4940 = vrot.slane %v4912, %v4939
    %v4941 = vcombine.high %v4919, %v4919
    %v4942 = vcombine.high %v4926, %v4926
    %v4943 = vcombine.high %v4933, %v4933
    %v4944 = vcombine.high %v4940, %v4940
    %v4946 = vunpack.c.l.s4 1966171168
    %v4947 = vunpack.c.0.s8 %v4946
    %v4948 = vlaneseq
    %v4949 = vshrl.u32 %v4948, 7
    %v4950 = vsub.s32 %v4947, %v4949
    %v4951 = vrot.slane %v4841, %v4950
    %v4952 = vcombine.high %v4951, %v4951
    %v4954 = vunpack.c.l.s4 1966171168
    %v4955 = vunpack.c.0.s8 %v4954
    %v4956 = vlaneseq
    %v4957 = vshrl.u32 %v4956, 7
    %v4958 = vsub.s32 %v4955, %v4957
    %v4959 = vrot.slane %v4951, %v4958
    %v4961 = vunpack.c.l.s4 1966171168
    %v4962 = vunpack.c.0.s8 %v4961
    %v4963 = vlaneseq
    %v4964 = vshrl.u32 %v4963, 7
    %v4965 = vsub.s32 %v4962, %v4964
    %v4966 = vrot.slane %v4952, %v4965
    %v4985 = vadd.f32 %v4478, %v4870
    %v4986 = vadd.f32 %v4479, %v4884
    %v4987 = vadd.f32 %v4480, %v4892
    %v4988 = vadd.f32 %v4481, %v4894
    %v4989 = vadd.f32 %v4482, %v4877
    %v4990 = vadd.f32 %v4483, %v4891
    %v4991 = vadd.f32 %v4484, %v4893
    %v4992 = vadd.f32 %v4485, %v4895
    %v4993 = vadd.f32 %v4486, %v4919
    %v4994 = vadd.f32 %v4487, %v4933
    %v4995 = vadd.f32 %v4488, %v4941
    %v4996 = vadd.f32 %v4489, %v4943
    %v4997 = vadd.f32 %v4490, %v4926
    %v4998 = vadd.f32 %v4491, %v4940
    %v4999 = vadd.f32 %v4492, %v4942
    %v5000 = vadd.f32 %v4493, %v4944
    %v5001 = vadd.f32 %v4494, %v4959
    %v5002 = vadd.f32 %v4495, %v4966
    %v5003 = vld [vmem:[%s13] sm:$0x1]
    %v5004 = vld [vmem:[%s14] sm:$0x1]
    %v5023 = vcombine.low %v4985, %v4986
    %v5024 = vcombine.low %v4987, %v4988
    %v5025 = vcombine.low %v4989, %v4990
    %v5026 = vcombine.low %v4991, %v4992
    %v5028 = vunpack.c.l.s4 1966171168
    %v5029 = vunpack.c.0.s8 %v5028
    %v5030 = vlaneseq
    %v5031 = vshrl.u32 %v5030, 7
    %v5032 = vsub.s32 %v5029, %v5031
    %v5033 = vrot.slane %v5023, %v5032
    %v5035 = vunpack.c.l.s4 1966171168
    %v5036 = vunpack.c.0.s8 %v5035
    %v5037 = vlaneseq
    %v5038 = vshrl.u32 %v5037, 7
    %v5039 = vsub.s32 %v5036, %v5038
    %v5040 = vrot.slane %v5024, %v5039
    %v5042 = vunpack.c.l.s4 1966171168
    %v5043 = vunpack.c.0.s8 %v5042
    %v5044 = vlaneseq
    %v5045 = vshrl.u32 %v5044, 7
    %v5046 = vsub.s32 %v5043, %v5045
    %v5047 = vrot.slane %v5025, %v5046
    %v5049 = vunpack.c.l.s4 1966171168
    %v5050 = vunpack.c.0.s8 %v5049
    %v5051 = vlaneseq
    %v5052 = vshrl.u32 %v5051, 7
    %v5053 = vsub.s32 %v5050, %v5052
    %v5054 = vrot.slane %v5026, %v5053
    %v5055 = vcombine.low %v5033, %v5040
    %v5056 = vcombine.low %v5047, %v5054
    %v5058 = vunpack.c.l.s4 1966171168
    %v5059 = vunpack.c.0.s8 %v5058
    %v5060 = vlaneseq
    %v5061 = vshrl.u32 %v5060, 7
    %v5062 = vsub.s32 %v5059, %v5061
    %v5063 = vrot.slane %v5055, %v5062
    %v5065 = vunpack.c.l.s4 1966171168
    %v5066 = vunpack.c.0.s8 %v5065
    %v5067 = vlaneseq
    %v5068 = vshrl.u32 %v5067, 7
    %v5069 = vsub.s32 %v5066, %v5068
    %v5070 = vrot.slane %v5056, %v5069
    %v5071 = vcombine.low %v5063, %v5070
    %v5072 = vcombine.low %v4993, %v4994
    %v5073 = vcombine.low %v4995, %v4996
    %v5074 = vcombine.low %v4997, %v4998
    %v5075 = vcombine.low %v4999, %v5000
    %v5077 = vunpack.c.l.s4 1966171168
    %v5078 = vunpack.c.0.s8 %v5077
    %v5079 = vlaneseq
    %v5080 = vshrl.u32 %v5079, 7
    %v5081 = vsub.s32 %v5078, %v5080
    %v5082 = vrot.slane %v5072, %v5081
    %v5084 = vunpack.c.l.s4 1966171168
    %v5085 = vunpack.c.0.s8 %v5084
    %v5086 = vlaneseq
    %v5087 = vshrl.u32 %v5086, 7
    %v5088 = vsub.s32 %v5085, %v5087
    %v5089 = vrot.slane %v5073, %v5088
    %v5091 = vunpack.c.l.s4 1966171168
    %v5092 = vunpack.c.0.s8 %v5091
    %v5093 = vlaneseq
    %v5094 = vshrl.u32 %v5093, 7
    %v5095 = vsub.s32 %v5092, %v5094
    %v5096 = vrot.slane %v5074, %v5095
    %v5098 = vunpack.c.l.s4 1966171168
    %v5099 = vunpack.c.0.s8 %v5098
    %v5100 = vlaneseq
    %v5101 = vshrl.u32 %v5100, 7
    %v5102 = vsub.s32 %v5099, %v5101
    %v5103 = vrot.slane %v5075, %v5102
    %v5104 = vcombine.low %v5082, %v5089
    %v5105 = vcombine.low %v5096, %v5103
    %v5107 = vunpack.c.l.s4 1966171168
    %v5108 = vunpack.c.0.s8 %v5107
    %v5109 = vlaneseq
    %v5110 = vshrl.u32 %v5109, 7
    %v5111 = vsub.s32 %v5108, %v5110
    %v5112 = vrot.slane %v5104, %v5111
    %v5114 = vunpack.c.l.s4 1966171168
    %v5115 = vunpack.c.0.s8 %v5114
    %v5116 = vlaneseq
    %v5117 = vshrl.u32 %v5116, 7
    %v5118 = vsub.s32 %v5115, %v5117
    %v5119 = vrot.slane %v5105, %v5118
    %v5120 = vcombine.low %v5112, %v5119
    %v5121 = vcombine.low %v5001, %v5002
    %v5123 = vunpack.c.l.s4 1966171168
    %v5124 = vunpack.c.0.s8 %v5123
    %v5125 = vlaneseq
    %v5126 = vshrl.u32 %v5125, 7
    %v5127 = vsub.s32 %v5124, %v5126
    %v5128 = vrot.slane %v5121, %v5127
    %v5130 = vunpack.c.l.s4 1966171168
    %v5131 = vunpack.c.0.s8 %v5130
    %v5132 = vlaneseq
    %v5133 = vshrl.u32 %v5132, 7
    %v5134 = vsub.s32 %v5131, %v5133
    %v5135 = vrot.slane %v5128, %v5134
    %v5139 = vsel %vm360, %v5071, 0.0
    %5140 = vadd.xlane.f32.xlu0 %v5139
    %v5141 = vpop.xlane.xlu0 %5140
    %v5142 = vsel %vm360, %v5120, 0.0
    %5143 = vadd.xlane.f32.xlu0 %v5142
    %v5144 = vpop.xlane.xlu0 %5143
    %v5145 = vsel %vm3936, %v5135, 0.0
    %5146 = vadd.xlane.f32.xlu0 %v5145
    %v5147 = vpop.xlane.xlu0 %5146
    %v5148 = vmul.f32 %v5141, %v3940
    %v5149 = vmul.f32 %v5144, %v3940
    %v5150 = vmul.f32 %v5147, %v3940
    %v5154 = vlaneseq
    %v5155 = vshrl.u32 %v5154, 7
    %v5156 = vsub.s32 0, %v5155
    %v5157 = vrot.slane %v5148, %v5156
    %v5158 = vlaneseq
    %v5159 = vshrl.u32 %v5158, 7
    %v5160 = vsub.s32 1, %v5159
    %v5161 = vrot.slane %v5148, %v5160
    %v5162 = vlaneseq
    %v5163 = vshrl.u32 %v5162, 7
    %v5164 = vsub.s32 2, %v5163
    %v5165 = vrot.slane %v5148, %v5164
    %v5166 = vlaneseq
    %v5167 = vshrl.u32 %v5166, 7
    %v5168 = vsub.s32 3, %v5167
    %v5169 = vrot.slane %v5148, %v5168
    %v5170 = vlaneseq
    %v5171 = vshrl.u32 %v5170, 7
    %v5172 = vsub.s32 4, %v5171
    %v5173 = vrot.slane %v5148, %v5172
    %v5174 = vlaneseq
    %v5175 = vshrl.u32 %v5174, 7
    %v5176 = vsub.s32 5, %v5175
    %v5177 = vrot.slane %v5148, %v5176
    %v5178 = vlaneseq
    %v5179 = vshrl.u32 %v5178, 7
    %v5180 = vsub.s32 6, %v5179
    %v5181 = vrot.slane %v5148, %v5180
    %v5182 = vlaneseq
    %v5183 = vshrl.u32 %v5182, 7
    %v5184 = vsub.s32 7, %v5183
    %v5185 = vrot.slane %v5148, %v5184
    %v5186 = vlaneseq
    %v5187 = vshrl.u32 %v5186, 7
    %v5188 = vsub.s32 0, %v5187
    %v5189 = vrot.slane %v5149, %v5188
    %v5190 = vlaneseq
    %v5191 = vshrl.u32 %v5190, 7
    %v5192 = vsub.s32 1, %v5191
    %v5193 = vrot.slane %v5149, %v5192
    %v5194 = vlaneseq
    %v5195 = vshrl.u32 %v5194, 7
    %v5196 = vsub.s32 2, %v5195
    %v5197 = vrot.slane %v5149, %v5196
    %v5198 = vlaneseq
    %v5199 = vshrl.u32 %v5198, 7
    %v5200 = vsub.s32 3, %v5199
    %v5201 = vrot.slane %v5149, %v5200
    %v5202 = vlaneseq
    %v5203 = vshrl.u32 %v5202, 7
    %v5204 = vsub.s32 4, %v5203
    %v5205 = vrot.slane %v5149, %v5204
    %v5206 = vlaneseq
    %v5207 = vshrl.u32 %v5206, 7
    %v5208 = vsub.s32 5, %v5207
    %v5209 = vrot.slane %v5149, %v5208
    %v5210 = vlaneseq
    %v5211 = vshrl.u32 %v5210, 7
    %v5212 = vsub.s32 6, %v5211
    %v5213 = vrot.slane %v5149, %v5212
    %v5214 = vlaneseq
    %v5215 = vshrl.u32 %v5214, 7
    %v5216 = vsub.s32 7, %v5215
    %v5217 = vrot.slane %v5149, %v5216
    %v5218 = vlaneseq
    %v5219 = vshrl.u32 %v5218, 7
    %v5220 = vsub.s32 0, %v5219
    %v5221 = vrot.slane %v5150, %v5220
    %v5222 = vlaneseq
    %v5223 = vshrl.u32 %v5222, 7
    %v5224 = vsub.s32 1, %v5223
    %v5225 = vrot.slane %v5150, %v5224
    %v5244 = vsub.f32 %v4985, %v5157
    %v5245 = vsub.f32 %v4986, %v5161
    %v5246 = vsub.f32 %v4987, %v5165
    %v5247 = vsub.f32 %v4988, %v5169
    %v5248 = vsub.f32 %v4989, %v5173
    %v5249 = vsub.f32 %v4990, %v5177
    %v5250 = vsub.f32 %v4991, %v5181
    %v5251 = vsub.f32 %v4992, %v5185
    %v5252 = vsub.f32 %v4993, %v5189
    %v5253 = vsub.f32 %v4994, %v5193
    %v5254 = vsub.f32 %v4995, %v5197
    %v5255 = vsub.f32 %v4996, %v5201
    %v5256 = vsub.f32 %v4997, %v5205
    %v5257 = vsub.f32 %v4998, %v5209
    %v5258 = vsub.f32 %v4999, %v5213
    %v5259 = vsub.f32 %v5000, %v5217
    %v5260 = vsub.f32 %v5001, %v5221
    %v5261 = vsub.f32 %v5002, %v5225
    %v5262 = vmul.f32 %v5244, %v5244
    %v5263 = vmul.f32 %v5245, %v5245
    %v5264 = vmul.f32 %v5246, %v5246
    %v5265 = vmul.f32 %v5247, %v5247
    %v5266 = vmul.f32 %v5248, %v5248
    %v5267 = vmul.f32 %v5249, %v5249
    %v5268 = vmul.f32 %v5250, %v5250
    %v5269 = vmul.f32 %v5251, %v5251
    %v5270 = vmul.f32 %v5252, %v5252
    %v5271 = vmul.f32 %v5253, %v5253
    %v5272 = vmul.f32 %v5254, %v5254
    %v5273 = vmul.f32 %v5255, %v5255
    %v5274 = vmul.f32 %v5256, %v5256
    %v5275 = vmul.f32 %v5257, %v5257
    %v5276 = vmul.f32 %v5258, %v5258
    %v5277 = vmul.f32 %v5259, %v5259
    %v5278 = vmul.f32 %v5260, %v5260
    %v5279 = vmul.f32 %v5261, %v5261
    %v5298 = vcombine.low %v5262, %v5263
    %v5299 = vcombine.low %v5264, %v5265
    %v5300 = vcombine.low %v5266, %v5267
    %v5301 = vcombine.low %v5268, %v5269
    %v5303 = vunpack.c.l.s4 1966171168
    %v5304 = vunpack.c.0.s8 %v5303
    %v5305 = vlaneseq
    %v5306 = vshrl.u32 %v5305, 7
    %v5307 = vsub.s32 %v5304, %v5306
    %v5308 = vrot.slane %v5298, %v5307
    %v5310 = vunpack.c.l.s4 1966171168
    %v5311 = vunpack.c.0.s8 %v5310
    %v5312 = vlaneseq
    %v5313 = vshrl.u32 %v5312, 7
    %v5314 = vsub.s32 %v5311, %v5313
    %v5315 = vrot.slane %v5299, %v5314
    %v5317 = vunpack.c.l.s4 1966171168
    %v5318 = vunpack.c.0.s8 %v5317
    %v5319 = vlaneseq
    %v5320 = vshrl.u32 %v5319, 7
    %v5321 = vsub.s32 %v5318, %v5320
    %v5322 = vrot.slane %v5300, %v5321
    %v5324 = vunpack.c.l.s4 1966171168
    %v5325 = vunpack.c.0.s8 %v5324
    %v5326 = vlaneseq
    %v5327 = vshrl.u32 %v5326, 7
    %v5328 = vsub.s32 %v5325, %v5327
    %v5329 = vrot.slane %v5301, %v5328
    %v5330 = vcombine.low %v5308, %v5315
    %v5331 = vcombine.low %v5322, %v5329
    %v5333 = vunpack.c.l.s4 1966171168
    %v5334 = vunpack.c.0.s8 %v5333
    %v5335 = vlaneseq
    %v5336 = vshrl.u32 %v5335, 7
    %v5337 = vsub.s32 %v5334, %v5336
    %v5338 = vrot.slane %v5330, %v5337
    %v5340 = vunpack.c.l.s4 1966171168
    %v5341 = vunpack.c.0.s8 %v5340
    %v5342 = vlaneseq
    %v5343 = vshrl.u32 %v5342, 7
    %v5344 = vsub.s32 %v5341, %v5343
    %v5345 = vrot.slane %v5331, %v5344
    %v5346 = vcombine.low %v5338, %v5345
    %v5347 = vcombine.low %v5270, %v5271
    %v5348 = vcombine.low %v5272, %v5273
    %v5349 = vcombine.low %v5274, %v5275
    %v5350 = vcombine.low %v5276, %v5277
    %v5352 = vunpack.c.l.s4 1966171168
    %v5353 = vunpack.c.0.s8 %v5352
    %v5354 = vlaneseq
    %v5355 = vshrl.u32 %v5354, 7
    %v5356 = vsub.s32 %v5353, %v5355
    %v5357 = vrot.slane %v5347, %v5356
    %v5359 = vunpack.c.l.s4 1966171168
    %v5360 = vunpack.c.0.s8 %v5359
    %v5361 = vlaneseq
    %v5362 = vshrl.u32 %v5361, 7
    %v5363 = vsub.s32 %v5360, %v5362
    %v5364 = vrot.slane %v5348, %v5363
    %v5366 = vunpack.c.l.s4 1966171168
    %v5367 = vunpack.c.0.s8 %v5366
    %v5368 = vlaneseq
    %v5369 = vshrl.u32 %v5368, 7
    %v5370 = vsub.s32 %v5367, %v5369
    %v5371 = vrot.slane %v5349, %v5370
    %v5373 = vunpack.c.l.s4 1966171168
    %v5374 = vunpack.c.0.s8 %v5373
    %v5375 = vlaneseq
    %v5376 = vshrl.u32 %v5375, 7
    %v5377 = vsub.s32 %v5374, %v5376
    %v5378 = vrot.slane %v5350, %v5377
    %v5379 = vcombine.low %v5357, %v5364
    %v5380 = vcombine.low %v5371, %v5378
    %v5382 = vunpack.c.l.s4 1966171168
    %v5383 = vunpack.c.0.s8 %v5382
    %v5384 = vlaneseq
    %v5385 = vshrl.u32 %v5384, 7
    %v5386 = vsub.s32 %v5383, %v5385
    %v5387 = vrot.slane %v5379, %v5386
    %v5389 = vunpack.c.l.s4 1966171168
    %v5390 = vunpack.c.0.s8 %v5389
    %v5391 = vlaneseq
    %v5392 = vshrl.u32 %v5391, 7
    %v5393 = vsub.s32 %v5390, %v5392
    %v5394 = vrot.slane %v5380, %v5393
    %v5395 = vcombine.low %v5387, %v5394
    %v5396 = vcombine.low %v5278, %v5279
    %v5398 = vunpack.c.l.s4 1966171168
    %v5399 = vunpack.c.0.s8 %v5398
    %v5400 = vlaneseq
    %v5401 = vshrl.u32 %v5400, 7
    %v5402 = vsub.s32 %v5399, %v5401
    %v5403 = vrot.slane %v5396, %v5402
    %v5405 = vunpack.c.l.s4 1966171168
    %v5406 = vunpack.c.0.s8 %v5405
    %v5407 = vlaneseq
    %v5408 = vshrl.u32 %v5407, 7
    %v5409 = vsub.s32 %v5406, %v5408
    %v5410 = vrot.slane %v5403, %v5409
    %v5414 = vsel %vm360, %v5346, 0.0
    %5415 = vadd.xlane.f32.xlu0 %v5414
    %v5416 = vpop.xlane.xlu0 %5415
    %v5417 = vsel %vm360, %v5395, 0.0
    %5418 = vadd.xlane.f32.xlu0 %v5417
    %v5419 = vpop.xlane.xlu0 %5418
    %v5420 = vsel %vm3936, %v5410, 0.0
    %5421 = vadd.xlane.f32.xlu0 %v5420
    %v5422 = vpop.xlane.xlu0 %5421
    %v5423 = vmul.f32 %v5416, %v3940
    %v5424 = vmul.f32 %v5419, %v3940
    %v5425 = vmul.f32 %v5422, %v3940
    %v5426 = vadd.f32 %v5423, 1e-05
    %v5427 = vadd.f32 %v5424, 1e-05
    %v5428 = vadd.f32 %v5425, 1e-05
    %v5429 = vrsqrt.pop %v5426
    %v5430 = vrsqrt.pop %v5427
    %v5431 = vrsqrt.pop %v5428
    %v5435 = vlaneseq
    %v5436 = vshrl.u32 %v5435, 7
    %v5437 = vsub.s32 0, %v5436
    %v5438 = vrot.slane %v5429, %v5437
    %v5439 = vlaneseq
    %v5440 = vshrl.u32 %v5439, 7
    %v5441 = vsub.s32 1, %v5440
    %v5442 = vrot.slane %v5429, %v5441
    %v5443 = vlaneseq
    %v5444 = vshrl.u32 %v5443, 7
    %v5445 = vsub.s32 2, %v5444
    %v5446 = vrot.slane %v5429, %v5445
    %v5447 = vlaneseq
    %v5448 = vshrl.u32 %v5447, 7
    %v5449 = vsub.s32 3, %v5448
    %v5450 = vrot.slane %v5429, %v5449
    %v5451 = vlaneseq
    %v5452 = vshrl.u32 %v5451, 7
    %v5453 = vsub.s32 4, %v5452
    %v5454 = vrot.slane %v5429, %v5453
    %v5455 = vlaneseq
    %v5456 = vshrl.u32 %v5455, 7
    %v5457 = vsub.s32 5, %v5456
    %v5458 = vrot.slane %v5429, %v5457
    %v5459 = vlaneseq
    %v5460 = vshrl.u32 %v5459, 7
    %v5461 = vsub.s32 6, %v5460
    %v5462 = vrot.slane %v5429, %v5461
    %v5463 = vlaneseq
    %v5464 = vshrl.u32 %v5463, 7
    %v5465 = vsub.s32 7, %v5464
    %v5466 = vrot.slane %v5429, %v5465
    %v5467 = vlaneseq
    %v5468 = vshrl.u32 %v5467, 7
    %v5469 = vsub.s32 0, %v5468
    %v5470 = vrot.slane %v5430, %v5469
    %v5471 = vlaneseq
    %v5472 = vshrl.u32 %v5471, 7
    %v5473 = vsub.s32 1, %v5472
    %v5474 = vrot.slane %v5430, %v5473
    %v5475 = vlaneseq
    %v5476 = vshrl.u32 %v5475, 7
    %v5477 = vsub.s32 2, %v5476
    %v5478 = vrot.slane %v5430, %v5477
    %v5479 = vlaneseq
    %v5480 = vshrl.u32 %v5479, 7
    %v5481 = vsub.s32 3, %v5480
    %v5482 = vrot.slane %v5430, %v5481
    %v5483 = vlaneseq
    %v5484 = vshrl.u32 %v5483, 7
    %v5485 = vsub.s32 4, %v5484
    %v5486 = vrot.slane %v5430, %v5485
    %v5487 = vlaneseq
    %v5488 = vshrl.u32 %v5487, 7
    %v5489 = vsub.s32 5, %v5488
    %v5490 = vrot.slane %v5430, %v5489
    %v5491 = vlaneseq
    %v5492 = vshrl.u32 %v5491, 7
    %v5493 = vsub.s32 6, %v5492
    %v5494 = vrot.slane %v5430, %v5493
    %v5495 = vlaneseq
    %v5496 = vshrl.u32 %v5495, 7
    %v5497 = vsub.s32 7, %v5496
    %v5498 = vrot.slane %v5430, %v5497
    %v5499 = vlaneseq
    %v5500 = vshrl.u32 %v5499, 7
    %v5501 = vsub.s32 0, %v5500
    %v5502 = vrot.slane %v5431, %v5501
    %v5503 = vlaneseq
    %v5504 = vshrl.u32 %v5503, 7
    %v5505 = vsub.s32 1, %v5504
    %v5506 = vrot.slane %v5431, %v5505
    %v5525 = vmul.f32 %v5244, %v5438
    %v5526 = vmul.f32 %v5245, %v5442
    %v5527 = vmul.f32 %v5246, %v5446
    %v5528 = vmul.f32 %v5247, %v5450
    %v5529 = vmul.f32 %v5248, %v5454
    %v5530 = vmul.f32 %v5249, %v5458
    %v5531 = vmul.f32 %v5250, %v5462
    %v5532 = vmul.f32 %v5251, %v5466
    %v5533 = vmul.f32 %v5252, %v5470
    %v5534 = vmul.f32 %v5253, %v5474
    %v5535 = vmul.f32 %v5254, %v5478
    %v5536 = vmul.f32 %v5255, %v5482
    %v5537 = vmul.f32 %v5256, %v5486
    %v5538 = vmul.f32 %v5257, %v5490
    %v5539 = vmul.f32 %v5258, %v5494
    %v5540 = vmul.f32 %v5259, %v5498
    %v5541 = vmul.f32 %v5260, %v5502
    %v5542 = vmul.f32 %v5261, %v5506
    %v5544 = vlaneseq
    %v5545 = vshrl.u32 %v5544, 7
    %v5546 = vsub.s32 0, %v5545
    %v5547 = vrot.slane %v5003, %v5546
    %v5548 = vcombine.high %v5547, %v5547
    %v5550 = vunpack.c.l.s4 1966171168
    %v5551 = vunpack.c.0.s8 %v5550
    %v5552 = vlaneseq
    %v5553 = vshrl.u32 %v5552, 7
    %v5554 = vsub.s32 %v5551, %v5553
    %v5555 = vrot.slane %v5547, %v5554
    %v5557 = vunpack.c.l.s4 1966171168
    %v5558 = vunpack.c.0.s8 %v5557
    %v5559 = vlaneseq
    %v5560 = vshrl.u32 %v5559, 7
    %v5561 = vsub.s32 %v5558, %v5560
    %v5562 = vrot.slane %v5548, %v5561
    %v5563 = vcombine.high %v5555, %v5555
    %v5564 = vcombine.high %v5562, %v5562
    %v5566 = vunpack.c.l.s4 1966171168
    %v5567 = vunpack.c.0.s8 %v5566
    %v5568 = vlaneseq
    %v5569 = vshrl.u32 %v5568, 7
    %v5570 = vsub.s32 %v5567, %v5569
    %v5571 = vrot.slane %v5555, %v5570
    %v5573 = vunpack.c.l.s4 1966171168
    %v5574 = vunpack.c.0.s8 %v5573
    %v5575 = vlaneseq
    %v5576 = vshrl.u32 %v5575, 7
    %v5577 = vsub.s32 %v5574, %v5576
    %v5578 = vrot.slane %v5562, %v5577
    %v5580 = vunpack.c.l.s4 1966171168
    %v5581 = vunpack.c.0.s8 %v5580
    %v5582 = vlaneseq
    %v5583 = vshrl.u32 %v5582, 7
    %v5584 = vsub.s32 %v5581, %v5583
    %v5585 = vrot.slane %v5563, %v5584
    %v5587 = vunpack.c.l.s4 1966171168
    %v5588 = vunpack.c.0.s8 %v5587
    %v5589 = vlaneseq
    %v5590 = vshrl.u32 %v5589, 7
    %v5591 = vsub.s32 %v5588, %v5590
    %v5592 = vrot.slane %v5564, %v5591
    %v5593 = vcombine.high %v5571, %v5571
    %v5594 = vcombine.high %v5578, %v5578
    %v5595 = vcombine.high %v5585, %v5585
    %v5596 = vcombine.high %v5592, %v5592
    %v5605 = vmul.f32 %v5525, %v5571
    %v5606 = vmul.f32 %v5526, %v5585
    %v5607 = vmul.f32 %v5527, %v5593
    %v5608 = vmul.f32 %v5528, %v5595
    %v5609 = vmul.f32 %v5529, %v5578
    %v5610 = vmul.f32 %v5530, %v5592
    %v5611 = vmul.f32 %v5531, %v5594
    %v5612 = vmul.f32 %v5532, %v5596
    %v5613 = vmul.f32 %v5533, %v5571
    %v5614 = vmul.f32 %v5534, %v5585
    %v5615 = vmul.f32 %v5535, %v5593
    %v5616 = vmul.f32 %v5536, %v5595
    %v5617 = vmul.f32 %v5537, %v5578
    %v5618 = vmul.f32 %v5538, %v5592
    %v5619 = vmul.f32 %v5539, %v5594
    %v5620 = vmul.f32 %v5540, %v5596
    %v5621 = vmul.f32 %v5541, %v5571
    %v5622 = vmul.f32 %v5542, %v5585
    %v5624 = vlaneseq
    %v5625 = vshrl.u32 %v5624, 7
    %v5626 = vsub.s32 0, %v5625
    %v5627 = vrot.slane %v5004, %v5626
    %v5628 = vcombine.high %v5627, %v5627
    %v5630 = vunpack.c.l.s4 1966171168
    %v5631 = vunpack.c.0.s8 %v5630
    %v5632 = vlaneseq
    %v5633 = vshrl.u32 %v5632, 7
    %v5634 = vsub.s32 %v5631, %v5633
    %v5635 = vrot.slane %v5627, %v5634
    %v5637 = vunpack.c.l.s4 1966171168
    %v5638 = vunpack.c.0.s8 %v5637
    %v5639 = vlaneseq
    %v5640 = vshrl.u32 %v5639, 7
    %v5641 = vsub.s32 %v5638, %v5640
    %v5642 = vrot.slane %v5628, %v5641
    %v5643 = vcombine.high %v5635, %v5635
    %v5644 = vcombine.high %v5642, %v5642
    %v5646 = vunpack.c.l.s4 1966171168
    %v5647 = vunpack.c.0.s8 %v5646
    %v5648 = vlaneseq
    %v5649 = vshrl.u32 %v5648, 7
    %v5650 = vsub.s32 %v5647, %v5649
    %v5651 = vrot.slane %v5635, %v5650
    %v5653 = vunpack.c.l.s4 1966171168
    %v5654 = vunpack.c.0.s8 %v5653
    %v5655 = vlaneseq
    %v5656 = vshrl.u32 %v5655, 7
    %v5657 = vsub.s32 %v5654, %v5656
    %v5658 = vrot.slane %v5642, %v5657
    %v5660 = vunpack.c.l.s4 1966171168
    %v5661 = vunpack.c.0.s8 %v5660
    %v5662 = vlaneseq
    %v5663 = vshrl.u32 %v5662, 7
    %v5664 = vsub.s32 %v5661, %v5663
    %v5665 = vrot.slane %v5643, %v5664
    %v5667 = vunpack.c.l.s4 1966171168
    %v5668 = vunpack.c.0.s8 %v5667
    %v5669 = vlaneseq
    %v5670 = vshrl.u32 %v5669, 7
    %v5671 = vsub.s32 %v5668, %v5670
    %v5672 = vrot.slane %v5644, %v5671
    %v5673 = vcombine.high %v5651, %v5651
    %v5674 = vcombine.high %v5658, %v5658
    %v5675 = vcombine.high %v5665, %v5665
    %v5676 = vcombine.high %v5672, %v5672
    %v5685 = vadd.f32 %v5605, %v5651
    %v5686 = vadd.f32 %v5606, %v5665
    %v5687 = vadd.f32 %v5607, %v5673
    %v5688 = vadd.f32 %v5608, %v5675
    %v5689 = vadd.f32 %v5609, %v5658
    %v5690 = vadd.f32 %v5610, %v5672
    %v5691 = vadd.f32 %v5611, %v5674
    %v5692 = vadd.f32 %v5612, %v5676
    %v5693 = vadd.f32 %v5613, %v5651
    %v5694 = vadd.f32 %v5614, %v5665
    %v5695 = vadd.f32 %v5615, %v5673
    %v5696 = vadd.f32 %v5616, %v5675
    %v5697 = vadd.f32 %v5617, %v5658
    %v5698 = vadd.f32 %v5618, %v5672
    %v5699 = vadd.f32 %v5619, %v5674
    %v5700 = vadd.f32 %v5620, %v5676
    %v5701 = vadd.f32 %v5621, %v5651
    %v5702 = vadd.f32 %v5622, %v5665
    %s5703 = scalar_lea.vmem %s3, 32
    %v5704 = vld [vmem:[%s5703] sm:$0xff]
    %v5705 = vld [vmem:[%s5703 + $0x8] sm:$0xff]
    %v5706 = vld [vmem:[%s5703 + $0x10] sm:$0xff]
    %v5707 = vld [vmem:[%s5703 + $0x18] sm:$0xff]
    %s5708 = scalar_lea.vmem %s4, 1
    %v5709 = vld [vmem:[%s5708] sm:$0x1]
    %v5711 = vlaneseq
    %v5712 = vshrl.u32 %v5711, 7
    %v5713 = vsub.s32 0, %v5712
    %v5714 = vrot.slane %v5709, %v5713
    %v5734 = vcombine.low %v5685, %v5686
    %v5735 = vcombine.low %v5687, %v5688
    %v5736 = vcombine.low %v5689, %v5690
    %v5737 = vcombine.low %v5691, %v5692
    %v5739 = vunpack.c.l.s4 1966171168
    %v5740 = vunpack.c.0.s8 %v5739
    %v5741 = vlaneseq
    %v5742 = vshrl.u32 %v5741, 7
    %v5743 = vsub.s32 %v5740, %v5742
    %v5744 = vrot.slane %v5734, %v5743
    %v5746 = vunpack.c.l.s4 1966171168
    %v5747 = vunpack.c.0.s8 %v5746
    %v5748 = vlaneseq
    %v5749 = vshrl.u32 %v5748, 7
    %v5750 = vsub.s32 %v5747, %v5749
    %v5751 = vrot.slane %v5735, %v5750
    %v5753 = vunpack.c.l.s4 1966171168
    %v5754 = vunpack.c.0.s8 %v5753
    %v5755 = vlaneseq
    %v5756 = vshrl.u32 %v5755, 7
    %v5757 = vsub.s32 %v5754, %v5756
    %v5758 = vrot.slane %v5736, %v5757
    %v5760 = vunpack.c.l.s4 1966171168
    %v5761 = vunpack.c.0.s8 %v5760
    %v5762 = vlaneseq
    %v5763 = vshrl.u32 %v5762, 7
    %v5764 = vsub.s32 %v5761, %v5763
    %v5765 = vrot.slane %v5737, %v5764
    %v5766 = vcombine.low %v5744, %v5751
    %v5767 = vcombine.low %v5758, %v5765
    %v5769 = vunpack.c.l.s4 1966171168
    %v5770 = vunpack.c.0.s8 %v5769
    %v5771 = vlaneseq
    %v5772 = vshrl.u32 %v5771, 7
    %v5773 = vsub.s32 %v5770, %v5772
    %v5774 = vrot.slane %v5766, %v5773
    %v5776 = vunpack.c.l.s4 1966171168
    %v5777 = vunpack.c.0.s8 %v5776
    %v5778 = vlaneseq
    %v5779 = vshrl.u32 %v5778, 7
    %v5780 = vsub.s32 %v5777, %v5779
    %v5781 = vrot.slane %v5767, %v5780
    %v5782 = vcombine.low %v5774, %v5781
    %v5783 = vcombine.low %v5693, %v5694
    %v5784 = vcombine.low %v5695, %v5696
    %v5785 = vcombine.low %v5697, %v5698
    %v5786 = vcombine.low %v5699, %v5700
    %v5788 = vunpack.c.l.s4 1966171168
    %v5789 = vunpack.c.0.s8 %v5788
    %v5790 = vlaneseq
    %v5791 = vshrl.u32 %v5790, 7
    %v5792 = vsub.s32 %v5789, %v5791
    %v5793 = vrot.slane %v5783, %v5792
    %v5795 = vunpack.c.l.s4 1966171168
    %v5796 = vunpack.c.0.s8 %v5795
    %v5797 = vlaneseq
    %v5798 = vshrl.u32 %v5797, 7
    %v5799 = vsub.s32 %v5796, %v5798
    %v5800 = vrot.slane %v5784, %v5799
    %v5802 = vunpack.c.l.s4 1966171168
    %v5803 = vunpack.c.0.s8 %v5802
    %v5804 = vlaneseq
    %v5805 = vshrl.u32 %v5804, 7
    %v5806 = vsub.s32 %v5803, %v5805
    %v5807 = vrot.slane %v5785, %v5806
    %v5809 = vunpack.c.l.s4 1966171168
    %v5810 = vunpack.c.0.s8 %v5809
    %v5811 = vlaneseq
    %v5812 = vshrl.u32 %v5811, 7
    %v5813 = vsub.s32 %v5810, %v5812
    %v5814 = vrot.slane %v5786, %v5813
    %v5815 = vcombine.low %v5793, %v5800
    %v5816 = vcombine.low %v5807, %v5814
    %v5818 = vunpack.c.l.s4 1966171168
    %v5819 = vunpack.c.0.s8 %v5818
    %v5820 = vlaneseq
    %v5821 = vshrl.u32 %v5820, 7
    %v5822 = vsub.s32 %v5819, %v5821
    %v5823 = vrot.slane %v5815, %v5822
    %v5825 = vunpack.c.l.s4 1966171168
    %v5826 = vunpack.c.0.s8 %v5825
    %v5827 = vlaneseq
    %v5828 = vshrl.u32 %v5827, 7
    %v5829 = vsub.s32 %v5826, %v5828
    %v5830 = vrot.slane %v5816, %v5829
    %v5831 = vcombine.low %v5823, %v5830
    %v5832 = vcombine.low %v5701, %v5702
    %v5834 = vunpack.c.l.s4 1966171168
    %v5835 = vunpack.c.0.s8 %v5834
    %v5836 = vlaneseq
    %v5837 = vshrl.u32 %v5836, 7
    %v5838 = vsub.s32 %v5835, %v5837
    %v5839 = vrot.slane %v5832, %v5838
    %v5841 = vunpack.c.l.s4 1966171168
    %v5842 = vunpack.c.0.s8 %v5841
    %v5843 = vlaneseq
    %v5844 = vshrl.u32 %v5843, 7
    %v5845 = vsub.s32 %v5842, %v5844
    %v5846 = vrot.slane %v5839, %v5845
    %v5847 = vsel %vm360, %v5782, 0
    %v5849 = vsel %vm360, %v5831, 0
    %v5851 = vsel %vm360, %v5846, 0
    %5853 = vmatprep.subr.mxu0 0.0
    %5854 = vmatpush1.msra.mxu0 0.0
    %5855 = vmatprep.subr.mxu0 0.0
    %5856 = vmatpush1.msra.mxu0 0.0
    %5857 = vmatprep.subr.mxu0 0.0
    %5858 = vmatpush1.msra.mxu0 0.0
    %5859 = vmatprep.subr.mxu0 0.0
    %5860 = vmatpush1.msra.mxu0 0.0
    %5861 = vmatprep.subr.mxu0 0.0
    %5862 = vmatpush1.msra.mxu0 0.0
    %5863 = vmatprep.subr.mxu0 0.0
    %5864 = vmatpush1.msra.mxu0 0.0
    %5865 = vmatprep.subr.mxu0 0.0
    %5866 = vmatpush1.msra.mxu0 0.0
    %5867 = vmatprep.subr.mxu0 0.0
    %5868 = vmatpush1.msra.mxu0 0.0
    %5869 = vmatprep.subr.mxu0 0.0
    %5870 = vmatpush1.msra.mxu0 0.0
    %5871 = vmatprep.subr.mxu0 0.0
    %5872 = vmatpush1.msra.mxu0 0.0
    %5873 = vmatprep.subr.mxu0 0.0
    %5874 = vmatpush1.msra.mxu0 0.0
    %5875 = vmatprep.subr.mxu0 0.0
    %5876 = vmatpush1.msra.mxu0 0.0
    %5877 = vmatprep.subr.mxu0 0.0
    %5878 = vmatpush1.msra.mxu0 %v5707
    %5879 = vmatprep.subr.mxu0 0.0
    %5880 = vmatpush1.msra.mxu0 %v5706
    %5881 = vmatprep.subr.mxu0 0.0
    %5882 = vmatpush1.msra.mxu0 %v5705
    %5883 = vmatprep.subr.mxu0 0.0
    %5884 = vmatpush1.msra.mxu0 %v5704
    %5885 = vmatprep.subr.mxu0 0.0
    %5886 = vmatpush2.msra.mxu0 0.0
    %5887 = vmatprep.subr.mxu0 0.0
    %5888 = vmatpush2.msra.mxu0 0.0
    %5889 = vmatprep.subr.mxu0 0.0
    %5890 = vmatpush2.msra.mxu0 0.0
    %5891 = vmatprep.subr.mxu0 0.0
    %5892 = vmatpush2.msra.mxu0 0.0
    %5893 = vmatprep.subr.mxu0 0.0
    %5894 = vmatpush2.msra.mxu0 0.0
    %5895 = vmatprep.subr.mxu0 0.0
    %5896 = vmatpush2.msra.mxu0 0.0
    %5897 = vmatprep.subr.mxu0 0.0
    %5898 = vmatpush2.msra.mxu0 0.0
    %5899 = vmatprep.subr.mxu0 0.0
    %5900 = vmatpush2.msra.mxu0 0.0
    %5901 = vmatprep.subr.mxu0 0.0
    %5902 = vmatpush2.msra.mxu0 0.0
    %5903 = vmatprep.subr.mxu0 0.0
    %5904 = vmatpush2.msra.mxu0 0.0
    %5905 = vmatprep.subr.mxu0 0.0
    %5906 = vmatpush2.msra.mxu0 0.0
    %5907 = vmatprep.subr.mxu0 0.0
    %5908 = vmatpush2.msra.mxu0 0.0
    %5909 = vmatprep.subr.mxu0 0.0
    %5910 = vmatpush2.msra.mxu0 0.0
    %5911 = vmatprep.subr.mxu0 0.0
    %5912 = vmatpush2.msra.mxu0 0.0
    %5913 = vmatprep.subr.mxu0 0.0
    %5914 = vmatpush2.msra.mxu0 0.0
    %5915 = vmatprep.subr.mxu0 0.0
    %5916 = vmatpush2.msra.mxu0 0.0
    %5917 = vmatprep.mubr.f32.mxu0 0.0
    %5918 = vmatmul.mubr.f32.gmra.mxu0 %v5847
    %v5919 = vpop.f32.mrf.mxu0
    %v5920 = vadd.f32 %v5714, %v5919
    %v5921 = vpop.f32.mrf.mxu0
    %5922 = vmatprep.mubr.f32.mxu0 0.0
    %5923 = vmatmul.mubr.f32.gmra.mxu0 %v5849
    %v5924 = vpop.f32.mrf.mxu0
    %v5925 = vadd.f32 %v5714, %v5924
    %v5926 = vpop.f32.mrf.mxu0
    %5927 = vmatprep.mubr.f32.mxu0 0.0
    %5928 = vmatmul.mubr.f32.gmra.mxu0 %v5851
    %v5929 = vpop.f32.mrf.mxu0
    %v5930 = vadd.f32 %v5714, %v5929
    %v5931 = vpop.f32.mrf.mxu0
    %5932 = vdwg.mxu0
    %v5936 = vcombine.high %v5920, %v5920
    %v5938 = vunpack.c.l.s4 1966171168
    %v5939 = vunpack.c.0.s8 %v5938
    %v5940 = vlaneseq
    %v5941 = vshrl.u32 %v5940, 7
    %v5942 = vsub.s32 %v5939, %v5941
    %v5943 = vrot.slane %v5920, %v5942
    %v5945 = vunpack.c.l.s4 1966171168
    %v5946 = vunpack.c.0.s8 %v5945
    %v5947 = vlaneseq
    %v5948 = vshrl.u32 %v5947, 7
    %v5949 = vsub.s32 %v5946, %v5948
    %v5950 = vrot.slane %v5936, %v5949
    %v5951 = vcombine.high %v5943, %v5943
    %v5952 = vcombine.high %v5950, %v5950
    %v5954 = vunpack.c.l.s4 1966171168
    %v5955 = vunpack.c.0.s8 %v5954
    %v5956 = vlaneseq
    %v5957 = vshrl.u32 %v5956, 7
    %v5958 = vsub.s32 %v5955, %v5957
    %v5959 = vrot.slane %v5943, %v5958
    %v5961 = vunpack.c.l.s4 1966171168
    %v5962 = vunpack.c.0.s8 %v5961
    %v5963 = vlaneseq
    %v5964 = vshrl.u32 %v5963, 7
    %v5965 = vsub.s32 %v5962, %v5964
    %v5966 = vrot.slane %v5950, %v5965
    %v5968 = vunpack.c.l.s4 1966171168
    %v5969 = vunpack.c.0.s8 %v5968
    %v5970 = vlaneseq
    %v5971 = vshrl.u32 %v5970, 7
    %v5972 = vsub.s32 %v5969, %v5971
    %v5973 = vrot.slane %v5951, %v5972
    %v5975 = vunpack.c.l.s4 1966171168
    %v5976 = vunpack.c.0.s8 %v5975
    %v5977 = vlaneseq
    %v5978 = vshrl.u32 %v5977, 7
    %v5979 = vsub.s32 %v5976, %v5978
    %v5980 = vrot.slane %v5952, %v5979
    %v5981 = vcombine.high %v5959, %v5959
    %v5982 = vcombine.high %v5966, %v5966
    %v5983 = vcombine.high %v5973, %v5973
    %v5984 = vcombine.high %v5980, %v5980
    %v5985 = vcombine.high %v5925, %v5925
    %v5987 = vunpack.c.l.s4 1966171168
    %v5988 = vunpack.c.0.s8 %v5987
    %v5989 = vlaneseq
    %v5990 = vshrl.u32 %v5989, 7
    %v5991 = vsub.s32 %v5988, %v5990
    %v5992 = vrot.slane %v5925, %v5991
    %v5994 = vunpack.c.l.s4 1966171168
    %v5995 = vunpack.c.0.s8 %v5994
    %v5996 = vlaneseq
    %v5997 = vshrl.u32 %v5996, 7
    %v5998 = vsub.s32 %v5995, %v5997
    %v5999 = vrot.slane %v5985, %v5998
    %v6000 = vcombine.high %v5992, %v5992
    %v6001 = vcombine.high %v5999, %v5999
    %v6003 = vunpack.c.l.s4 1966171168
    %v6004 = vunpack.c.0.s8 %v6003
    %v6005 = vlaneseq
    %v6006 = vshrl.u32 %v6005, 7
    %v6007 = vsub.s32 %v6004, %v6006
    %v6008 = vrot.slane %v5992, %v6007
    %v6010 = vunpack.c.l.s4 1966171168
    %v6011 = vunpack.c.0.s8 %v6010
    %v6012 = vlaneseq
    %v6013 = vshrl.u32 %v6012, 7
    %v6014 = vsub.s32 %v6011, %v6013
    %v6015 = vrot.slane %v5999, %v6014
    %v6017 = vunpack.c.l.s4 1966171168
    %v6018 = vunpack.c.0.s8 %v6017
    %v6019 = vlaneseq
    %v6020 = vshrl.u32 %v6019, 7
    %v6021 = vsub.s32 %v6018, %v6020
    %v6022 = vrot.slane %v6000, %v6021
    %v6024 = vunpack.c.l.s4 1966171168
    %v6025 = vunpack.c.0.s8 %v6024
    %v6026 = vlaneseq
    %v6027 = vshrl.u32 %v6026, 7
    %v6028 = vsub.s32 %v6025, %v6027
    %v6029 = vrot.slane %v6001, %v6028
    %v6030 = vcombine.high %v6008, %v6008
    %v6031 = vcombine.high %v6015, %v6015
    %v6032 = vcombine.high %v6022, %v6022
    %v6033 = vcombine.high %v6029, %v6029
    %v6035 = vunpack.c.l.s4 1966171168
    %v6036 = vunpack.c.0.s8 %v6035
    %v6037 = vlaneseq
    %v6038 = vshrl.u32 %v6037, 7
    %v6039 = vsub.s32 %v6036, %v6038
    %v6040 = vrot.slane %v5930, %v6039
    %v6041 = vcombine.high %v6040, %v6040
    %v6043 = vunpack.c.l.s4 1966171168
    %v6044 = vunpack.c.0.s8 %v6043
    %v6045 = vlaneseq
    %v6046 = vshrl.u32 %v6045, 7
    %v6047 = vsub.s32 %v6044, %v6046
    %v6048 = vrot.slane %v6040, %v6047
    %v6050 = vunpack.c.l.s4 1966171168
    %v6051 = vunpack.c.0.s8 %v6050
    %v6052 = vlaneseq
    %v6053 = vshrl.u32 %v6052, 7
    %v6054 = vsub.s32 %v6051, %v6053
    %v6055 = vrot.slane %v6041, %v6054
    %s6056 = scalar_lea.vmem %s5, 32
    %v6057 = vld [vmem:[%s6056] sm:$0xff]
    %v6058 = vld [vmem:[%s6056 + $0x8] sm:$0xff]
    %v6059 = vld [vmem:[%s6056 + $0x10] sm:$0xff]
    %v6060 = vld [vmem:[%s6056 + $0x18] sm:$0xff]
    %v6061 = vcombine.low %v5959, %v5973
    %v6062 = vcombine.low %v5981, %v5983
    %v6063 = vcombine.low %v5966, %v5980
    %v6064 = vcombine.low %v5982, %v5984
    %v6066 = vunpack.c.l.s4 1966171168
    %v6067 = vunpack.c.0.s8 %v6066
    %v6068 = vlaneseq
    %v6069 = vshrl.u32 %v6068, 7
    %v6070 = vsub.s32 %v6067, %v6069
    %v6071 = vrot.slane %v6061, %v6070
    %v6073 = vunpack.c.l.s4 1966171168
    %v6074 = vunpack.c.0.s8 %v6073
    %v6075 = vlaneseq
    %v6076 = vshrl.u32 %v6075, 7
    %v6077 = vsub.s32 %v6074, %v6076
    %v6078 = vrot.slane %v6062, %v6077
    %v6080 = vunpack.c.l.s4 1966171168
    %v6081 = vunpack.c.0.s8 %v6080
    %v6082 = vlaneseq
    %v6083 = vshrl.u32 %v6082, 7
    %v6084 = vsub.s32 %v6081, %v6083
    %v6085 = vrot.slane %v6063, %v6084
    %v6087 = vunpack.c.l.s4 1966171168
    %v6088 = vunpack.c.0.s8 %v6087
    %v6089 = vlaneseq
    %v6090 = vshrl.u32 %v6089, 7
    %v6091 = vsub.s32 %v6088, %v6090
    %v6092 = vrot.slane %v6064, %v6091
    %v6093 = vcombine.low %v6071, %v6078
    %v6094 = vcombine.low %v6085, %v6092
    %v6096 = vunpack.c.l.s4 1966171168
    %v6097 = vunpack.c.0.s8 %v6096
    %v6098 = vlaneseq
    %v6099 = vshrl.u32 %v6098, 7
    %v6100 = vsub.s32 %v6097, %v6099
    %v6101 = vrot.slane %v6093, %v6100
    %v6103 = vunpack.c.l.s4 1966171168
    %v6104 = vunpack.c.0.s8 %v6103
    %v6105 = vlaneseq
    %v6106 = vshrl.u32 %v6105, 7
    %v6107 = vsub.s32 %v6104, %v6106
    %v6108 = vrot.slane %v6094, %v6107
    %v6109 = vcombine.low %v6101, %v6108
    %v6111 = vunpack.c.l.s4 1966171168
    %v6112 = vunpack.c.0.s8 %v6111
    %v6113 = vlaneseq
    %v6114 = vshrl.u32 %v6113, 7
    %v6115 = vsub.s32 %v6112, %v6114
    %v6116 = vrot.slane %v6008, %v6115
    %v6118 = vunpack.c.l.s4 1966171168
    %v6119 = vunpack.c.0.s8 %v6118
    %v6120 = vlaneseq
    %v6121 = vshrl.u32 %v6120, 7
    %v6122 = vsub.s32 %v6119, %v6121
    %v6123 = vrot.slane %v6116, %v6122
    %6124 = vrot.lane.b32.xlu0 %v6109, 96
    %v6125 = vpop.permute.xlu0 %6124
    %6126 = vrot.lane.b32.xlu0 %v6123, 96
    %v6127 = vpop.permute.xlu0 %6126
    %v6128 = vsel %vm641, %v6109, 0
    %v6130 = vsel %vm641, %v6123, 0
    %v6132 = vsel %vm641, %v6125, 0
    %v6134 = vsel %vm641, %v6127, 0
    %6136 = vmatprep.subr.mxu0 0.0
    %6137 = vmatpush1.xpose.msra.mxu0 0.0
    %6138 = vmatprep.subr.mxu0 0.0
    %6139 = vmatpush1.xpose.msra.mxu0 0.0
    %6140 = vmatprep.subr.mxu0 0.0
    %6141 = vmatpush1.xpose.msra.mxu0 0.0
    %6142 = vmatprep.subr.mxu0 0.0
    %6143 = vmatpush1.xpose.msra.mxu0 0.0
    %6144 = vmatprep.subr.mxu0 0.0
    %6145 = vmatpush1.xpose.msra.mxu0 0.0
    %6146 = vmatprep.subr.mxu0 0.0
    %6147 = vmatpush1.xpose.msra.mxu0 0.0
    %6148 = vmatprep.subr.mxu0 0.0
    %6149 = vmatpush1.xpose.msra.mxu0 0.0
    %6150 = vmatprep.subr.mxu0 0.0
    %6151 = vmatpush1.xpose.msra.mxu0 0.0
    %6152 = vmatprep.subr.mxu0 0.0
    %6153 = vmatpush1.xpose.msra.mxu0 0.0
    %6154 = vmatprep.subr.mxu0 0.0
    %6155 = vmatpush1.xpose.msra.mxu0 0.0
    %6156 = vmatprep.subr.mxu0 0.0
    %6157 = vmatpush1.xpose.msra.mxu0 0.0
    %6158 = vmatprep.subr.mxu0 0.0
    %6159 = vmatpush1.xpose.msra.mxu0 0.0
    %6160 = vmatprep.subr.mxu0 0.0
    %6161 = vmatpush1.xpose.msra.mxu0 0.0
    %6162 = vmatprep.subr.mxu0 0.0
    %6163 = vmatpush1.xpose.msra.mxu0 0.0
    %6164 = vmatprep.subr.mxu0 0.0
    %6165 = vmatpush1.xpose.msra.mxu0 %v6134
    %6166 = vmatprep.subr.mxu0 0.0
    %6167 = vmatpush1.xpose.msra.mxu0 %v6132
    %6168 = vmatprep.subr.mxu0 0.0
    %6169 = vmatpush2.xpose.msra.mxu0 0.0
    %6170 = vmatprep.subr.mxu0 0.0
    %6171 = vmatpush2.xpose.msra.mxu0 0.0
    %6172 = vmatprep.subr.mxu0 0.0
    %6173 = vmatpush2.xpose.msra.mxu0 0.0
    %6174 = vmatprep.subr.mxu0 0.0
    %6175 = vmatpush2.xpose.msra.mxu0 0.0
    %6176 = vmatprep.subr.mxu0 0.0
    %6177 = vmatpush2.xpose.msra.mxu0 0.0
    %6178 = vmatprep.subr.mxu0 0.0
    %6179 = vmatpush2.xpose.msra.mxu0 0.0
    %6180 = vmatprep.subr.mxu0 0.0
    %6181 = vmatpush2.xpose.msra.mxu0 0.0
    %6182 = vmatprep.subr.mxu0 0.0
    %6183 = vmatpush2.xpose.msra.mxu0 0.0
    %6184 = vmatprep.subr.mxu0 0.0
    %6185 = vmatpush2.xpose.msra.mxu0 0.0
    %6186 = vmatprep.subr.mxu0 0.0
    %6187 = vmatpush2.xpose.msra.mxu0 0.0
    %6188 = vmatprep.subr.mxu0 0.0
    %6189 = vmatpush2.xpose.msra.mxu0 0.0
    %6190 = vmatprep.subr.mxu0 0.0
    %6191 = vmatpush2.xpose.msra.mxu0 0.0
    %6192 = vmatprep.subr.mxu0 0.0
    %6193 = vmatpush2.xpose.msra.mxu0 0.0
    %6194 = vmatprep.subr.mxu0 0.0
    %6195 = vmatpush2.xpose.msra.mxu0 0.0
    %6196 = vmatprep.subr.mxu0 0.0
    %6197 = vmatpush2.xpose.msra.mxu0 0.0
    %6198 = vmatprep.subr.mxu0 0.0
    %6199 = vmatpush2.xpose.msra.mxu0 0.0
    %6200 = vmatprep.mubr.f32.mxu0 0.0
    %6201 = vmatmul.mubr.f32.gmra.mxu0 %v6128
    %v6202 = vpop.f32.mrf.mxu0
    %v6203 = vadd.f32 0.0, %v6202
    %v6204 = vpop.f32.mrf.mxu0
    %6205 = vmatprep.mubr.f32.mxu0 0.0
    %6206 = vmatmul.mubr.f32.gmra.mxu0 %v6130
    %v6207 = vpop.f32.mrf.mxu0
    %v6208 = vadd.f32 0.0, %v6207
    %v6209 = vpop.f32.mrf.mxu0
    %6210 = vdwg.mxu0
    %v6211 = vcombine.low %v6022, %v6030
    %v6212 = vcombine.low %v6032, %v6015
    %v6213 = vcombine.low %v6029, %v6031
    %v6214 = vcombine.low %v6033, %v6048
    %v6216 = vunpack.c.l.s4 1966171168
    %v6217 = vunpack.c.0.s8 %v6216
    %v6218 = vlaneseq
    %v6219 = vshrl.u32 %v6218, 7
    %v6220 = vsub.s32 %v6217, %v6219
    %v6221 = vrot.slane %v6211, %v6220
    %v6223 = vunpack.c.l.s4 1966171168
    %v6224 = vunpack.c.0.s8 %v6223
    %v6225 = vlaneseq
    %v6226 = vshrl.u32 %v6225, 7
    %v6227 = vsub.s32 %v6224, %v6226
    %v6228 = vrot.slane %v6212, %v6227
    %v6230 = vunpack.c.l.s4 1966171168
    %v6231 = vunpack.c.0.s8 %v6230
    %v6232 = vlaneseq
    %v6233 = vshrl.u32 %v6232, 7
    %v6234 = vsub.s32 %v6231, %v6233
    %v6235 = vrot.slane %v6213, %v6234
    %v6237 = vunpack.c.l.s4 1966171168
    %v6238 = vunpack.c.0.s8 %v6237
    %v6239 = vlaneseq
    %v6240 = vshrl.u32 %v6239, 7
    %v6241 = vsub.s32 %v6238, %v6240
    %v6242 = vrot.slane %v6214, %v6241
    %v6243 = vcombine.low %v6221, %v6228
    %v6244 = vcombine.low %v6235, %v6242
    %v6246 = vunpack.c.l.s4 1966171168
    %v6247 = vunpack.c.0.s8 %v6246
    %v6248 = vlaneseq
    %v6249 = vshrl.u32 %v6248, 7
    %v6250 = vsub.s32 %v6247, %v6249
    %v6251 = vrot.slane %v6243, %v6250
    %v6253 = vunpack.c.l.s4 1966171168
    %v6254 = vunpack.c.0.s8 %v6253
    %v6255 = vlaneseq
    %v6256 = vshrl.u32 %v6255, 7
    %v6257 = vsub.s32 %v6254, %v6256
    %v6258 = vrot.slane %v6244, %v6257
    %v6259 = vcombine.low %v6251, %v6258
    %v6261 = vunpack.c.l.s4 1966171168
    %v6262 = vunpack.c.0.s8 %v6261
    %v6263 = vlaneseq
    %v6264 = vshrl.u32 %v6263, 7
    %v6265 = vsub.s32 %v6262, %v6264
    %v6266 = vrot.slane %v6055, %v6265
    %v6268 = vunpack.c.l.s4 1966171168
    %v6269 = vunpack.c.0.s8 %v6268
    %v6270 = vlaneseq
    %v6271 = vshrl.u32 %v6270, 7
    %v6272 = vsub.s32 %v6269, %v6271
    %v6273 = vrot.slane %v6266, %v6272
    %6274 = vrot.lane.b32.xlu0 %v6259, 96
    %v6275 = vpop.permute.xlu0 %6274
    %6276 = vrot.lane.b32.xlu0 %v6273, 96
    %v6277 = vpop.permute.xlu0 %6276
    %v6278 = vsel %vm641, %v6259, 0
    %v6280 = vsel %vm641, %v6273, 0
    %v6282 = vsel %vm641, %v6275, 0
    %v6284 = vsel %vm641, %v6277, 0
    %6286 = vmatprep.subr.mxu0 0.0
    %6287 = vmatpush1.xpose.msra.mxu0 0.0
    %6288 = vmatprep.subr.mxu0 0.0
    %6289 = vmatpush1.xpose.msra.mxu0 0.0
    %6290 = vmatprep.subr.mxu0 0.0
    %6291 = vmatpush1.xpose.msra.mxu0 0.0
    %6292 = vmatprep.subr.mxu0 0.0
    %6293 = vmatpush1.xpose.msra.mxu0 0.0
    %6294 = vmatprep.subr.mxu0 0.0
    %6295 = vmatpush1.xpose.msra.mxu0 0.0
    %6296 = vmatprep.subr.mxu0 0.0
    %6297 = vmatpush1.xpose.msra.mxu0 0.0
    %6298 = vmatprep.subr.mxu0 0.0
    %6299 = vmatpush1.xpose.msra.mxu0 0.0
    %6300 = vmatprep.subr.mxu0 0.0
    %6301 = vmatpush1.xpose.msra.mxu0 0.0
    %6302 = vmatprep.subr.mxu0 0.0
    %6303 = vmatpush1.xpose.msra.mxu0 0.0
    %6304 = vmatprep.subr.mxu0 0.0
    %6305 = vmatpush1.xpose.msra.mxu0 0.0
    %6306 = vmatprep.subr.mxu0 0.0
    %6307 = vmatpush1.xpose.msra.mxu0 0.0
    %6308 = vmatprep.subr.mxu0 0.0
    %6309 = vmatpush1.xpose.msra.mxu0 0.0
    %6310 = vmatprep.subr.mxu0 0.0
    %6311 = vmatpush1.xpose.msra.mxu0 0.0
    %6312 = vmatprep.subr.mxu0 0.0
    %6313 = vmatpush1.xpose.msra.mxu0 0.0
    %6314 = vmatprep.subr.mxu0 0.0
    %6315 = vmatpush1.xpose.msra.mxu0 %v6284
    %6316 = vmatprep.subr.mxu0 0.0
    %6317 = vmatpush1.xpose.msra.mxu0 %v6282
    %6318 = vmatprep.subr.mxu0 0.0
    %6319 = vmatpush2.xpose.msra.mxu0 0.0
    %6320 = vmatprep.subr.mxu0 0.0
    %6321 = vmatpush2.xpose.msra.mxu0 0.0
    %6322 = vmatprep.subr.mxu0 0.0
    %6323 = vmatpush2.xpose.msra.mxu0 0.0
    %6324 = vmatprep.subr.mxu0 0.0
    %6325 = vmatpush2.xpose.msra.mxu0 0.0
    %6326 = vmatprep.subr.mxu0 0.0
    %6327 = vmatpush2.xpose.msra.mxu0 0.0
    %6328 = vmatprep.subr.mxu0 0.0
    %6329 = vmatpush2.xpose.msra.mxu0 0.0
    %6330 = vmatprep.subr.mxu0 0.0
    %6331 = vmatpush2.xpose.msra.mxu0 0.0
    %6332 = vmatprep.subr.mxu0 0.0
    %6333 = vmatpush2.xpose.msra.mxu0 0.0
    %6334 = vmatprep.subr.mxu0 0.0
    %6335 = vmatpush2.xpose.msra.mxu0 0.0
    %6336 = vmatprep.subr.mxu0 0.0
    %6337 = vmatpush2.xpose.msra.mxu0 0.0
    %6338 = vmatprep.subr.mxu0 0.0
    %6339 = vmatpush2.xpose.msra.mxu0 0.0
    %6340 = vmatprep.subr.mxu0 0.0
    %6341 = vmatpush2.xpose.msra.mxu0 0.0
    %6342 = vmatprep.subr.mxu0 0.0
    %6343 = vmatpush2.xpose.msra.mxu0 0.0
    %6344 = vmatprep.subr.mxu0 0.0
    %6345 = vmatpush2.xpose.msra.mxu0 0.0
    %6346 = vmatprep.subr.mxu0 0.0
    %6347 = vmatpush2.xpose.msra.mxu0 0.0
    %6348 = vmatprep.subr.mxu0 0.0
    %6349 = vmatpush2.xpose.msra.mxu0 0.0
    %6350 = vmatprep.mubr.f32.mxu0 0.0
    %6351 = vmatmul.mubr.f32.gmra.mxu0 %v6278
    %v6352 = vpop.f32.mrf.mxu0
    %v6353 = vadd.f32 0.0, %v6352
    %v6354 = vpop.f32.mrf.mxu0
    %6355 = vmatprep.mubr.f32.mxu0 0.0
    %6356 = vmatmul.mubr.f32.gmra.mxu0 %v6280
    %v6357 = vpop.f32.mrf.mxu0
    %v6358 = vadd.f32 0.0, %v6357
    %v6359 = vpop.f32.mrf.mxu0
    %6360 = vdwg.mxu0
    %v6361 = vsel %vm875, %v6203, -inf
    %6362 = vmax.xlane.f32.xlu0 %v6361
    %v6363 = vpop.xlane.xlu0 %6362
    %v6364 = vsel %vm879, %v6208, -inf
    %6365 = vmax.xlane.f32.xlu0 %v6364
    %v6366 = vpop.xlane.xlu0 %6365
    %v6367 = vsel %vm875, %v6353, -inf
    %6368 = vmax.xlane.f32.xlu0 %v6367
    %v6369 = vpop.xlane.xlu0 %6368
    %v6370 = vsel %vm879, %v6358, -inf
    %6371 = vmax.xlane.f32.xlu0 %v6370
    %v6372 = vpop.xlane.xlu0 %6371
    %v6373 = vsub.f32 %v6203, %v6363
    %v6374 = vsub.f32 %v6208, %v6366
    %v6375 = vsub.f32 %v6353, %v6369
    %v6376 = vsub.f32 %v6358, %v6372
    %v6377 = vmul.f32 %v6373, 1.442695
    %v6378 = vpow.pop %v6377
    %v6379 = vmul.f32 %v6374, 1.442695
    %v6380 = vpow.pop %v6379
    %v6381 = vmul.f32 %v6375, 1.442695
    %v6382 = vpow.pop %v6381
    %v6383 = vmul.f32 %v6376, 1.442695
    %v6384 = vpow.pop %v6383
    %v6385 = vsel %vm875, %v6378, 0.0
    %6386 = vadd.xlane.f32.xlu0 %v6385
    %v6387 = vpop.xlane.xlu0 %6386
    %v6388 = vsel %vm879, %v6380, 0.0
    %6389 = vadd.xlane.f32.xlu0 %v6388
    %v6390 = vpop.xlane.xlu0 %6389
    %v6391 = vsel %vm875, %v6382, 0.0
    %6392 = vadd.xlane.f32.xlu0 %v6391
    %v6393 = vpop.xlane.xlu0 %6392
    %v6394 = vsel %vm879, %v6384, 0.0
    %6395 = vadd.xlane.f32.xlu0 %v6394
    %v6396 = vpop.xlane.xlu0 %6395
    %v6397 = vrcp.pop %v6387
    %v6398 = vrcp.pop %v6390
    %v6399 = vrcp.pop %v6393
    %v6400 = vrcp.pop %v6396
    %v6401 = vmul.f32 %v6378, %v6397
    %v6402 = vmul.f32 %v6380, %v6398
    %v6403 = vmul.f32 %v6382, %v6399
    %v6404 = vmul.f32 %v6384, %v6400
    %6405 = vrot.lane.b32.xlu0 %v6109, 64
    %v6406 = vpop.permute.xlu0 %6405
    %6407 = vrot.lane.b32.xlu0 %v6123, 64
    %v6408 = vpop.permute.xlu0 %6407
    %v6411 = vsel %vm875, %v6401, 0
    %v6414 = vsel %vm875, %v6402, 0
    %v6416 = vsel %vm79, %v6408, 0
    %6418 = vmatprep.subr.mxu0 0.0
    %6419 = vmatpush1.msra.mxu0 0.0
    %6420 = vmatprep.subr.mxu0 0.0
    %6421 = vmatpush1.msra.mxu0 0.0
    %6422 = vmatprep.subr.mxu0 0.0
    %6423 = vmatpush1.msra.mxu0 0.0
    %6424 = vmatprep.subr.mxu0 0.0
    %6425 = vmatpush1.msra.mxu0 0.0
    %6426 = vmatprep.subr.mxu0 0.0
    %6427 = vmatpush1.msra.mxu0 0.0
    %6428 = vmatprep.subr.mxu0 0.0
    %6429 = vmatpush1.msra.mxu0 0.0
    %6430 = vmatprep.subr.mxu0 0.0
    %6431 = vmatpush1.msra.mxu0 0.0
    %6432 = vmatprep.subr.mxu0 0.0
    %6433 = vmatpush1.msra.mxu0 0.0
    %6434 = vmatprep.subr.mxu0 0.0
    %6435 = vmatpush1.msra.mxu0 0.0
    %6436 = vmatprep.subr.mxu0 0.0
    %6437 = vmatpush1.msra.mxu0 0.0
    %6438 = vmatprep.subr.mxu0 0.0
    %6439 = vmatpush1.msra.mxu0 0.0
    %6440 = vmatprep.subr.mxu0 0.0
    %6441 = vmatpush1.msra.mxu0 0.0
    %6442 = vmatprep.subr.mxu0 0.0
    %6443 = vmatpush1.msra.mxu0 0.0
    %6444 = vmatprep.subr.mxu0 0.0
    %6445 = vmatpush1.msra.mxu0 0.0
    %6446 = vmatprep.subr.mxu0 0.0
    %6447 = vmatpush1.msra.mxu0 %v6416
    %6448 = vmatprep.subr.mxu0 0.0
    %6449 = vmatpush1.msra.mxu0 %v6406
    %6450 = vmatprep.subr.mxu0 0.0
    %6451 = vmatpush2.msra.mxu0 0.0
    %6452 = vmatprep.subr.mxu0 0.0
    %6453 = vmatpush2.msra.mxu0 0.0
    %6454 = vmatprep.subr.mxu0 0.0
    %6455 = vmatpush2.msra.mxu0 0.0
    %6456 = vmatprep.subr.mxu0 0.0
    %6457 = vmatpush2.msra.mxu0 0.0
    %6458 = vmatprep.subr.mxu0 0.0
    %6459 = vmatpush2.msra.mxu0 0.0
    %6460 = vmatprep.subr.mxu0 0.0
    %6461 = vmatpush2.msra.mxu0 0.0
    %6462 = vmatprep.subr.mxu0 0.0
    %6463 = vmatpush2.msra.mxu0 0.0
    %6464 = vmatprep.subr.mxu0 0.0
    %6465 = vmatpush2.msra.mxu0 0.0
    %6466 = vmatprep.subr.mxu0 0.0
    %6467 = vmatpush2.msra.mxu0 0.0
    %6468 = vmatprep.subr.mxu0 0.0
    %6469 = vmatpush2.msra.mxu0 0.0
    %6470 = vmatprep.subr.mxu0 0.0
    %6471 = vmatpush2.msra.mxu0 0.0
    %6472 = vmatprep.subr.mxu0 0.0
    %6473 = vmatpush2.msra.mxu0 0.0
    %6474 = vmatprep.subr.mxu0 0.0
    %6475 = vmatpush2.msra.mxu0 0.0
    %6476 = vmatprep.subr.mxu0 0.0
    %6477 = vmatpush2.msra.mxu0 0.0
    %6478 = vmatprep.subr.mxu0 0.0
    %6479 = vmatpush2.msra.mxu0 0.0
    %6480 = vmatprep.subr.mxu0 0.0
    %6481 = vmatpush2.msra.mxu0 0.0
    %6482 = vmatprep.mubr.f32.mxu0 0.0
    %6483 = vmatmul.mubr.f32.gmra.mxu0 %v6411
    %v6484 = vpop.f32.mrf.mxu0
    %v6485 = vadd.f32 0.0, %v6484
    %v6486 = vpop.f32.mrf.mxu0
    %6487 = vmatprep.mubr.f32.mxu0 0.0
    %6488 = vmatmul.mubr.f32.gmra.mxu0 %v6414
    %v6489 = vpop.f32.mrf.mxu0
    %v6490 = vadd.f32 0.0, %v6489
    %v6491 = vpop.f32.mrf.mxu0
    %6492 = vdwg.mxu0
    %6493 = vrot.lane.b32.xlu0 %v6259, 64
    %v6494 = vpop.permute.xlu0 %6493
    %6495 = vrot.lane.b32.xlu0 %v6273, 64
    %v6496 = vpop.permute.xlu0 %6495
    %v6499 = vsel %vm875, %v6403, 0
    %v6502 = vsel %vm875, %v6404, 0
    %v6504 = vsel %vm79, %v6496, 0
    %6506 = vmatprep.subr.mxu0 0.0
    %6507 = vmatpush1.msra.mxu0 0.0
    %6508 = vmatprep.subr.mxu0 0.0
    %6509 = vmatpush1.msra.mxu0 0.0
    %6510 = vmatprep.subr.mxu0 0.0
    %6511 = vmatpush1.msra.mxu0 0.0
    %6512 = vmatprep.subr.mxu0 0.0
    %6513 = vmatpush1.msra.mxu0 0.0
    %6514 = vmatprep.subr.mxu0 0.0
    %6515 = vmatpush1.msra.mxu0 0.0
    %6516 = vmatprep.subr.mxu0 0.0
    %6517 = vmatpush1.msra.mxu0 0.0
    %6518 = vmatprep.subr.mxu0 0.0
    %6519 = vmatpush1.msra.mxu0 0.0
    %6520 = vmatprep.subr.mxu0 0.0
    %6521 = vmatpush1.msra.mxu0 0.0
    %6522 = vmatprep.subr.mxu0 0.0
    %6523 = vmatpush1.msra.mxu0 0.0
    %6524 = vmatprep.subr.mxu0 0.0
    %6525 = vmatpush1.msra.mxu0 0.0
    %6526 = vmatprep.subr.mxu0 0.0
    %6527 = vmatpush1.msra.mxu0 0.0
    %6528 = vmatprep.subr.mxu0 0.0
    %6529 = vmatpush1.msra.mxu0 0.0
    %6530 = vmatprep.subr.mxu0 0.0
    %6531 = vmatpush1.msra.mxu0 0.0
    %6532 = vmatprep.subr.mxu0 0.0
    %6533 = vmatpush1.msra.mxu0 0.0
    %6534 = vmatprep.subr.mxu0 0.0
    %6535 = vmatpush1.msra.mxu0 %v6504
    %6536 = vmatprep.subr.mxu0 0.0
    %6537 = vmatpush1.msra.mxu0 %v6494
    %6538 = vmatprep.subr.mxu0 0.0
    %6539 = vmatpush2.msra.mxu0 0.0
    %6540 = vmatprep.subr.mxu0 0.0
    %6541 = vmatpush2.msra.mxu0 0.0
    %6542 = vmatprep.subr.mxu0 0.0
    %6543 = vmatpush2.msra.mxu0 0.0
    %6544 = vmatprep.subr.mxu0 0.0
    %6545 = vmatpush2.msra.mxu0 0.0
    %6546 = vmatprep.subr.mxu0 0.0
    %6547 = vmatpush2.msra.mxu0 0.0
    %6548 = vmatprep.subr.mxu0 0.0
    %6549 = vmatpush2.msra.mxu0 0.0
    %6550 = vmatprep.subr.mxu0 0.0
    %6551 = vmatpush2.msra.mxu0 0.0
    %6552 = vmatprep.subr.mxu0 0.0
    %6553 = vmatpush2.msra.mxu0 0.0
    %6554 = vmatprep.subr.mxu0 0.0
    %6555 = vmatpush2.msra.mxu0 0.0
    %6556 = vmatprep.subr.mxu0 0.0
    %6557 = vmatpush2.msra.mxu0 0.0
    %6558 = vmatprep.subr.mxu0 0.0
    %6559 = vmatpush2.msra.mxu0 0.0
    %6560 = vmatprep.subr.mxu0 0.0
    %6561 = vmatpush2.msra.mxu0 0.0
    %6562 = vmatprep.subr.mxu0 0.0
    %6563 = vmatpush2.msra.mxu0 0.0
    %6564 = vmatprep.subr.mxu0 0.0
    %6565 = vmatpush2.msra.mxu0 0.0
    %6566 = vmatprep.subr.mxu0 0.0
    %6567 = vmatpush2.msra.mxu0 0.0
    %6568 = vmatprep.subr.mxu0 0.0
    %6569 = vmatpush2.msra.mxu0 0.0
    %6570 = vmatprep.mubr.f32.mxu0 0.0
    %6571 = vmatmul.mubr.f32.gmra.mxu0 %v6499
    %v6572 = vpop.f32.mrf.mxu0
    %v6573 = vadd.f32 0.0, %v6572
    %v6574 = vpop.f32.mrf.mxu0
    %6575 = vmatprep.mubr.f32.mxu0 0.0
    %6576 = vmatmul.mubr.f32.gmra.mxu0 %v6502
    %v6577 = vpop.f32.mrf.mxu0
    %v6578 = vadd.f32 0.0, %v6577
    %v6579 = vpop.f32.mrf.mxu0
    %6580 = vdwg.mxu0
    %v6585 = vcombine.high %v6485, %v6485
    %v6587 = vunpack.c.l.s4 1966171168
    %v6588 = vunpack.c.0.s8 %v6587
    %v6589 = vlaneseq
    %v6590 = vshrl.u32 %v6589, 7
    %v6591 = vsub.s32 %v6588, %v6590
    %v6592 = vrot.slane %v6485, %v6591
    %v6594 = vunpack.c.l.s4 1966171168
    %v6595 = vunpack.c.0.s8 %v6594
    %v6596 = vlaneseq
    %v6597 = vshrl.u32 %v6596, 7
    %v6598 = vsub.s32 %v6595, %v6597
    %v6599 = vrot.slane %v6585, %v6598
    %v6600 = vcombine.high %v6592, %v6592
    %v6601 = vcombine.high %v6599, %v6599
    %v6603 = vunpack.c.l.s4 1966171168
    %v6604 = vunpack.c.0.s8 %v6603
    %v6605 = vlaneseq
    %v6606 = vshrl.u32 %v6605, 7
    %v6607 = vsub.s32 %v6604, %v6606
    %v6608 = vrot.slane %v6592, %v6607
    %v6610 = vunpack.c.l.s4 1966171168
    %v6611 = vunpack.c.0.s8 %v6610
    %v6612 = vlaneseq
    %v6613 = vshrl.u32 %v6612, 7
    %v6614 = vsub.s32 %v6611, %v6613
    %v6615 = vrot.slane %v6599, %v6614
    %v6617 = vunpack.c.l.s4 1966171168
    %v6618 = vunpack.c.0.s8 %v6617
    %v6619 = vlaneseq
    %v6620 = vshrl.u32 %v6619, 7
    %v6621 = vsub.s32 %v6618, %v6620
    %v6622 = vrot.slane %v6600, %v6621
    %v6624 = vunpack.c.l.s4 1966171168
    %v6625 = vunpack.c.0.s8 %v6624
    %v6626 = vlaneseq
    %v6627 = vshrl.u32 %v6626, 7
    %v6628 = vsub.s32 %v6625, %v6627
    %v6629 = vrot.slane %v6601, %v6628
    %v6630 = vcombine.high %v6608, %v6608
    %v6631 = vcombine.high %v6615, %v6615
    %v6632 = vcombine.high %v6622, %v6622
    %v6633 = vcombine.high %v6629, %v6629
    %v6635 = vunpack.c.l.s4 1966171168
    %v6636 = vunpack.c.0.s8 %v6635
    %v6637 = vlaneseq
    %v6638 = vshrl.u32 %v6637, 7
    %v6639 = vsub.s32 %v6636, %v6638
    %v6640 = vrot.slane %v6490, %v6639
    %v6642 = vunpack.c.l.s4 1966171168
    %v6643 = vunpack.c.0.s8 %v6642
    %v6644 = vlaneseq
    %v6645 = vshrl.u32 %v6644, 7
    %v6646 = vsub.s32 %v6643, %v6645
    %v6647 = vrot.slane %v6640, %v6646
    %v6648 = vcombine.high %v6573, %v6573
    %v6650 = vunpack.c.l.s4 1966171168
    %v6651 = vunpack.c.0.s8 %v6650
    %v6652 = vlaneseq
    %v6653 = vshrl.u32 %v6652, 7
    %v6654 = vsub.s32 %v6651, %v6653
    %v6655 = vrot.slane %v6573, %v6654
    %v6657 = vunpack.c.l.s4 1966171168
    %v6658 = vunpack.c.0.s8 %v6657
    %v6659 = vlaneseq
    %v6660 = vshrl.u32 %v6659, 7
    %v6661 = vsub.s32 %v6658, %v6660
    %v6662 = vrot.slane %v6648, %v6661
    %v6663 = vcombine.high %v6655, %v6655
    %v6664 = vcombine.high %v6662, %v6662
    %v6666 = vunpack.c.l.s4 1966171168
    %v6667 = vunpack.c.0.s8 %v6666
    %v6668 = vlaneseq
    %v6669 = vshrl.u32 %v6668, 7
    %v6670 = vsub.s32 %v6667, %v6669
    %v6671 = vrot.slane %v6655, %v6670
    %v6673 = vunpack.c.l.s4 1966171168
    %v6674 = vunpack.c.0.s8 %v6673
    %v6675 = vlaneseq
    %v6676 = vshrl.u32 %v6675, 7
    %v6677 = vsub.s32 %v6674, %v6676
    %v6678 = vrot.slane %v6662, %v6677
    %v6680 = vunpack.c.l.s4 1966171168
    %v6681 = vunpack.c.0.s8 %v6680
    %v6682 = vlaneseq
    %v6683 = vshrl.u32 %v6682, 7
    %v6684 = vsub.s32 %v6681, %v6683
    %v6685 = vrot.slane %v6663, %v6684
    %v6687 = vunpack.c.l.s4 1966171168
    %v6688 = vunpack.c.0.s8 %v6687
    %v6689 = vlaneseq
    %v6690 = vshrl.u32 %v6689, 7
    %v6691 = vsub.s32 %v6688, %v6690
    %v6692 = vrot.slane %v6664, %v6691
    %v6693 = vcombine.high %v6671, %v6671
    %v6694 = vcombine.high %v6678, %v6678
    %v6695 = vcombine.high %v6685, %v6685
    %v6696 = vcombine.high %v6692, %v6692
    %v6698 = vunpack.c.l.s4 1966171168
    %v6699 = vunpack.c.0.s8 %v6698
    %v6700 = vlaneseq
    %v6701 = vshrl.u32 %v6700, 7
    %v6702 = vsub.s32 %v6699, %v6701
    %v6703 = vrot.slane %v6578, %v6702
    %v6705 = vunpack.c.l.s4 1966171168
    %v6706 = vunpack.c.0.s8 %v6705
    %v6707 = vlaneseq
    %v6708 = vshrl.u32 %v6707, 7
    %v6709 = vsub.s32 %v6706, %v6708
    %v6710 = vrot.slane %v6703, %v6709
    %6711 = vrot.lane.b32.xlu0 %v6109, 120
    %v6712 = vpop.permute.xlu0 %6711
    %6713 = vrot.lane.b32.xlu0 %v6123, 120
    %v6714 = vpop.permute.xlu0 %6713
    %6715 = vrot.lane.b32.xlu0 %v6109, 88
    %v6716 = vpop.permute.xlu0 %6715
    %6717 = vrot.lane.b32.xlu0 %v6123, 88
    %v6718 = vpop.permute.xlu0 %6717
    %v6719 = vsel %vm641, %v6712, 0
    %v6721 = vsel %vm641, %v6714, 0
    %v6723 = vsel %vm641, %v6716, 0
    %v6725 = vsel %vm641, %v6718, 0
    %6727 = vmatprep.subr.mxu0 0.0
    %6728 = vmatpush1.xpose.msra.mxu0 0.0
    %6729 = vmatprep.subr.mxu0 0.0
    %6730 = vmatpush1.xpose.msra.mxu0 0.0
    %6731 = vmatprep.subr.mxu0 0.0
    %6732 = vmatpush1.xpose.msra.mxu0 0.0
    %6733 = vmatprep.subr.mxu0 0.0
    %6734 = vmatpush1.xpose.msra.mxu0 0.0
    %6735 = vmatprep.subr.mxu0 0.0
    %6736 = vmatpush1.xpose.msra.mxu0 0.0
    %6737 = vmatprep.subr.mxu0 0.0
    %6738 = vmatpush1.xpose.msra.mxu0 0.0
    %6739 = vmatprep.subr.mxu0 0.0
    %6740 = vmatpush1.xpose.msra.mxu0 0.0
    %6741 = vmatprep.subr.mxu0 0.0
    %6742 = vmatpush1.xpose.msra.mxu0 0.0
    %6743 = vmatprep.subr.mxu0 0.0
    %6744 = vmatpush1.xpose.msra.mxu0 0.0
    %6745 = vmatprep.subr.mxu0 0.0
    %6746 = vmatpush1.xpose.msra.mxu0 0.0
    %6747 = vmatprep.subr.mxu0 0.0
    %6748 = vmatpush1.xpose.msra.mxu0 0.0
    %6749 = vmatprep.subr.mxu0 0.0
    %6750 = vmatpush1.xpose.msra.mxu0 0.0
    %6751 = vmatprep.subr.mxu0 0.0
    %6752 = vmatpush1.xpose.msra.mxu0 0.0
    %6753 = vmatprep.subr.mxu0 0.0
    %6754 = vmatpush1.xpose.msra.mxu0 0.0
    %6755 = vmatprep.subr.mxu0 0.0
    %6756 = vmatpush1.xpose.msra.mxu0 %v6725
    %6757 = vmatprep.subr.mxu0 0.0
    %6758 = vmatpush1.xpose.msra.mxu0 %v6723
    %6759 = vmatprep.subr.mxu0 0.0
    %6760 = vmatpush2.xpose.msra.mxu0 0.0
    %6761 = vmatprep.subr.mxu0 0.0
    %6762 = vmatpush2.xpose.msra.mxu0 0.0
    %6763 = vmatprep.subr.mxu0 0.0
    %6764 = vmatpush2.xpose.msra.mxu0 0.0
    %6765 = vmatprep.subr.mxu0 0.0
    %6766 = vmatpush2.xpose.msra.mxu0 0.0
    %6767 = vmatprep.subr.mxu0 0.0
    %6768 = vmatpush2.xpose.msra.mxu0 0.0
    %6769 = vmatprep.subr.mxu0 0.0
    %6770 = vmatpush2.xpose.msra.mxu0 0.0
    %6771 = vmatprep.subr.mxu0 0.0
    %6772 = vmatpush2.xpose.msra.mxu0 0.0
    %6773 = vmatprep.subr.mxu0 0.0
    %6774 = vmatpush2.xpose.msra.mxu0 0.0
    %6775 = vmatprep.subr.mxu0 0.0
    %6776 = vmatpush2.xpose.msra.mxu0 0.0
    %6777 = vmatprep.subr.mxu0 0.0
    %6778 = vmatpush2.xpose.msra.mxu0 0.0
    %6779 = vmatprep.subr.mxu0 0.0
    %6780 = vmatpush2.xpose.msra.mxu0 0.0
    %6781 = vmatprep.subr.mxu0 0.0
    %6782 = vmatpush2.xpose.msra.mxu0 0.0
    %6783 = vmatprep.subr.mxu0 0.0
    %6784 = vmatpush2.xpose.msra.mxu0 0.0
    %6785 = vmatprep.subr.mxu0 0.0
    %6786 = vmatpush2.xpose.msra.mxu0 0.0
    %6787 = vmatprep.subr.mxu0 0.0
    %6788 = vmatpush2.xpose.msra.mxu0 0.0
    %6789 = vmatprep.subr.mxu0 0.0
    %6790 = vmatpush2.xpose.msra.mxu0 0.0
    %6791 = vmatprep.mubr.f32.mxu0 0.0
    %6792 = vmatmul.mubr.f32.gmra.mxu0 %v6719
    %v6793 = vpop.f32.mrf.mxu0
    %v6794 = vadd.f32 0.0, %v6793
    %v6795 = vpop.f32.mrf.mxu0
    %6796 = vmatprep.mubr.f32.mxu0 0.0
    %6797 = vmatmul.mubr.f32.gmra.mxu0 %v6721
    %v6798 = vpop.f32.mrf.mxu0
    %v6799 = vadd.f32 0.0, %v6798
    %v6800 = vpop.f32.mrf.mxu0
    %6801 = vdwg.mxu0
    %6802 = vrot.lane.b32.xlu0 %v6259, 120
    %v6803 = vpop.permute.xlu0 %6802
    %6804 = vrot.lane.b32.xlu0 %v6273, 120
    %v6805 = vpop.permute.xlu0 %6804
    %6806 = vrot.lane.b32.xlu0 %v6259, 88
    %v6807 = vpop.permute.xlu0 %6806
    %6808 = vrot.lane.b32.xlu0 %v6273, 88
    %v6809 = vpop.permute.xlu0 %6808
    %v6810 = vsel %vm641, %v6803, 0
    %v6812 = vsel %vm641, %v6805, 0
    %v6814 = vsel %vm641, %v6807, 0
    %v6816 = vsel %vm641, %v6809, 0
    %6818 = vmatprep.subr.mxu0 0.0
    %6819 = vmatpush1.xpose.msra.mxu0 0.0
    %6820 = vmatprep.subr.mxu0 0.0
    %6821 = vmatpush1.xpose.msra.mxu0 0.0
    %6822 = vmatprep.subr.mxu0 0.0
    %6823 = vmatpush1.xpose.msra.mxu0 0.0
    %6824 = vmatprep.subr.mxu0 0.0
    %6825 = vmatpush1.xpose.msra.mxu0 0.0
    %6826 = vmatprep.subr.mxu0 0.0
    %6827 = vmatpush1.xpose.msra.mxu0 0.0
    %6828 = vmatprep.subr.mxu0 0.0
    %6829 = vmatpush1.xpose.msra.mxu0 0.0
    %6830 = vmatprep.subr.mxu0 0.0
    %6831 = vmatpush1.xpose.msra.mxu0 0.0
    %6832 = vmatprep.subr.mxu0 0.0
    %6833 = vmatpush1.xpose.msra.mxu0 0.0
    %6834 = vmatprep.subr.mxu0 0.0
    %6835 = vmatpush1.xpose.msra.mxu0 0.0
    %6836 = vmatprep.subr.mxu0 0.0
    %6837 = vmatpush1.xpose.msra.mxu0 0.0
    %6838 = vmatprep.subr.mxu0 0.0
    %6839 = vmatpush1.xpose.msra.mxu0 0.0
    %6840 = vmatprep.subr.mxu0 0.0
    %6841 = vmatpush1.xpose.msra.mxu0 0.0
    %6842 = vmatprep.subr.mxu0 0.0
    %6843 = vmatpush1.xpose.msra.mxu0 0.0
    %6844 = vmatprep.subr.mxu0 0.0
    %6845 = vmatpush1.xpose.msra.mxu0 0.0
    %6846 = vmatprep.subr.mxu0 0.0
    %6847 = vmatpush1.xpose.msra.mxu0 %v6816
    %6848 = vmatprep.subr.mxu0 0.0
    %6849 = vmatpush1.xpose.msra.mxu0 %v6814
    %6850 = vmatprep.subr.mxu0 0.0
    %6851 = vmatpush2.xpose.msra.mxu0 0.0
    %6852 = vmatprep.subr.mxu0 0.0
    %6853 = vmatpush2.xpose.msra.mxu0 0.0
    %6854 = vmatprep.subr.mxu0 0.0
    %6855 = vmatpush2.xpose.msra.mxu0 0.0
    %6856 = vmatprep.subr.mxu0 0.0
    %6857 = vmatpush2.xpose.msra.mxu0 0.0
    %6858 = vmatprep.subr.mxu0 0.0
    %6859 = vmatpush2.xpose.msra.mxu0 0.0
    %6860 = vmatprep.subr.mxu0 0.0
    %6861 = vmatpush2.xpose.msra.mxu0 0.0
    %6862 = vmatprep.subr.mxu0 0.0
    %6863 = vmatpush2.xpose.msra.mxu0 0.0
    %6864 = vmatprep.subr.mxu0 0.0
    %6865 = vmatpush2.xpose.msra.mxu0 0.0
    %6866 = vmatprep.subr.mxu0 0.0
    %6867 = vmatpush2.xpose.msra.mxu0 0.0
    %6868 = vmatprep.subr.mxu0 0.0
    %6869 = vmatpush2.xpose.msra.mxu0 0.0
    %6870 = vmatprep.subr.mxu0 0.0
    %6871 = vmatpush2.xpose.msra.mxu0 0.0
    %6872 = vmatprep.subr.mxu0 0.0
    %6873 = vmatpush2.xpose.msra.mxu0 0.0
    %6874 = vmatprep.subr.mxu0 0.0
    %6875 = vmatpush2.xpose.msra.mxu0 0.0
    %6876 = vmatprep.subr.mxu0 0.0
    %6877 = vmatpush2.xpose.msra.mxu0 0.0
    %6878 = vmatprep.subr.mxu0 0.0
    %6879 = vmatpush2.xpose.msra.mxu0 0.0
    %6880 = vmatprep.subr.mxu0 0.0
    %6881 = vmatpush2.xpose.msra.mxu0 0.0
    %6882 = vmatprep.mubr.f32.mxu0 0.0
    %6883 = vmatmul.mubr.f32.gmra.mxu0 %v6810
    %v6884 = vpop.f32.mrf.mxu0
    %v6885 = vadd.f32 0.0, %v6884
    %v6886 = vpop.f32.mrf.mxu0
    %6887 = vmatprep.mubr.f32.mxu0 0.0
    %6888 = vmatmul.mubr.f32.gmra.mxu0 %v6812
    %v6889 = vpop.f32.mrf.mxu0
    %v6890 = vadd.f32 0.0, %v6889
    %v6891 = vpop.f32.mrf.mxu0
    %6892 = vdwg.mxu0
    %v6893 = vsel %vm875, %v6794, -inf
    %6894 = vmax.xlane.f32.xlu0 %v6893
    %v6895 = vpop.xlane.xlu0 %6894
    %v6896 = vsel %vm879, %v6799, -inf
    %6897 = vmax.xlane.f32.xlu0 %v6896
    %v6898 = vpop.xlane.xlu0 %6897
    %v6899 = vsel %vm875, %v6885, -inf
    %6900 = vmax.xlane.f32.xlu0 %v6899
    %v6901 = vpop.xlane.xlu0 %6900
    %v6902 = vsel %vm879, %v6890, -inf
    %6903 = vmax.xlane.f32.xlu0 %v6902
    %v6904 = vpop.xlane.xlu0 %6903
    %v6905 = vsub.f32 %v6794, %v6895
    %v6906 = vsub.f32 %v6799, %v6898
    %v6907 = vsub.f32 %v6885, %v6901
    %v6908 = vsub.f32 %v6890, %v6904
    %v6909 = vmul.f32 %v6905, 1.442695
    %v6910 = vpow.pop %v6909
    %v6911 = vmul.f32 %v6906, 1.442695
    %v6912 = vpow.pop %v6911
    %v6913 = vmul.f32 %v6907, 1.442695
    %v6914 = vpow.pop %v6913
    %v6915 = vmul.f32 %v6908, 1.442695
    %v6916 = vpow.pop %v6915
    %v6917 = vsel %vm875, %v6910, 0.0
    %6918 = vadd.xlane.f32.xlu0 %v6917
    %v6919 = vpop.xlane.xlu0 %6918
    %v6920 = vsel %vm879, %v6912, 0.0
    %6921 = vadd.xlane.f32.xlu0 %v6920
    %v6922 = vpop.xlane.xlu0 %6921
    %v6923 = vsel %vm875, %v6914, 0.0
    %6924 = vadd.xlane.f32.xlu0 %v6923
    %v6925 = vpop.xlane.xlu0 %6924
    %v6926 = vsel %vm879, %v6916, 0.0
    %6927 = vadd.xlane.f32.xlu0 %v6926
    %v6928 = vpop.xlane.xlu0 %6927
    %v6929 = vrcp.pop %v6919
    %v6930 = vrcp.pop %v6922
    %v6931 = vrcp.pop %v6925
    %v6932 = vrcp.pop %v6928
    %v6933 = vmul.f32 %v6910, %v6929
    %v6934 = vmul.f32 %v6912, %v6930
    %v6935 = vmul.f32 %v6914, %v6931
    %v6936 = vmul.f32 %v6916, %v6932
    %6937 = vrot.lane.b32.xlu0 %v6109, 56
    %v6938 = vpop.permute.xlu0 %6937
    %6939 = vrot.lane.b32.xlu0 %v6123, 56
    %v6940 = vpop.permute.xlu0 %6939
    %v6943 = vsel %vm875, %v6933, 0
    %v6946 = vsel %vm875, %v6934, 0
    %v6948 = vsel %vm79, %v6940, 0
    %6950 = vmatprep.subr.mxu0 0.0
    %6951 = vmatpush1.msra.mxu0 0.0
    %6952 = vmatprep.subr.mxu0 0.0
    %6953 = vmatpush1.msra.mxu0 0.0
    %6954 = vmatprep.subr.mxu0 0.0
    %6955 = vmatpush1.msra.mxu0 0.0
    %6956 = vmatprep.subr.mxu0 0.0
    %6957 = vmatpush1.msra.mxu0 0.0
    %6958 = vmatprep.subr.mxu0 0.0
    %6959 = vmatpush1.msra.mxu0 0.0
    %6960 = vmatprep.subr.mxu0 0.0
    %6961 = vmatpush1.msra.mxu0 0.0
    %6962 = vmatprep.subr.mxu0 0.0
    %6963 = vmatpush1.msra.mxu0 0.0
    %6964 = vmatprep.subr.mxu0 0.0
    %6965 = vmatpush1.msra.mxu0 0.0
    %6966 = vmatprep.subr.mxu0 0.0
    %6967 = vmatpush1.msra.mxu0 0.0
    %6968 = vmatprep.subr.mxu0 0.0
    %6969 = vmatpush1.msra.mxu0 0.0
    %6970 = vmatprep.subr.mxu0 0.0
    %6971 = vmatpush1.msra.mxu0 0.0
    %6972 = vmatprep.subr.mxu0 0.0
    %6973 = vmatpush1.msra.mxu0 0.0
    %6974 = vmatprep.subr.mxu0 0.0
    %6975 = vmatpush1.msra.mxu0 0.0
    %6976 = vmatprep.subr.mxu0 0.0
    %6977 = vmatpush1.msra.mxu0 0.0
    %6978 = vmatprep.subr.mxu0 0.0
    %6979 = vmatpush1.msra.mxu0 %v6948
    %6980 = vmatprep.subr.mxu0 0.0
    %6981 = vmatpush1.msra.mxu0 %v6938
    %6982 = vmatprep.subr.mxu0 0.0
    %6983 = vmatpush2.msra.mxu0 0.0
    %6984 = vmatprep.subr.mxu0 0.0
    %6985 = vmatpush2.msra.mxu0 0.0
    %6986 = vmatprep.subr.mxu0 0.0
    %6987 = vmatpush2.msra.mxu0 0.0
    %6988 = vmatprep.subr.mxu0 0.0
    %6989 = vmatpush2.msra.mxu0 0.0
    %6990 = vmatprep.subr.mxu0 0.0
    %6991 = vmatpush2.msra.mxu0 0.0
    %6992 = vmatprep.subr.mxu0 0.0
    %6993 = vmatpush2.msra.mxu0 0.0
    %6994 = vmatprep.subr.mxu0 0.0
    %6995 = vmatpush2.msra.mxu0 0.0
    %6996 = vmatprep.subr.mxu0 0.0
    %6997 = vmatpush2.msra.mxu0 0.0
    %6998 = vmatprep.subr.mxu0 0.0
    %6999 = vmatpush2.msra.mxu0 0.0
    %7000 = vmatprep.subr.mxu0 0.0
    %7001 = vmatpush2.msra.mxu0 0.0
    %7002 = vmatprep.subr.mxu0 0.0
    %7003 = vmatpush2.msra.mxu0 0.0
    %7004 = vmatprep.subr.mxu0 0.0
    %7005 = vmatpush2.msra.mxu0 0.0
    %7006 = vmatprep.subr.mxu0 0.0
    %7007 = vmatpush2.msra.mxu0 0.0
    %7008 = vmatprep.subr.mxu0 0.0
    %7009 = vmatpush2.msra.mxu0 0.0
    %7010 = vmatprep.subr.mxu0 0.0
    %7011 = vmatpush2.msra.mxu0 0.0
    %7012 = vmatprep.subr.mxu0 0.0
    %7013 = vmatpush2.msra.mxu0 0.0
    %7014 = vmatprep.mubr.f32.mxu0 0.0
    %7015 = vmatmul.mubr.f32.gmra.mxu0 %v6943
    %v7016 = vpop.f32.mrf.mxu0
    %v7017 = vadd.f32 0.0, %v7016
    %v7018 = vpop.f32.mrf.mxu0
    %7019 = vmatprep.mubr.f32.mxu0 0.0
    %7020 = vmatmul.mubr.f32.gmra.mxu0 %v6946
    %v7021 = vpop.f32.mrf.mxu0
    %v7022 = vadd.f32 0.0, %v7021
    %v7023 = vpop.f32.mrf.mxu0
    %7024 = vdwg.mxu0
    %7025 = vrot.lane.b32.xlu0 %v6259, 56
    %v7026 = vpop.permute.xlu0 %7025
    %7027 = vrot.lane.b32.xlu0 %v6273, 56
    %v7028 = vpop.permute.xlu0 %7027
    %v7031 = vsel %vm875, %v6935, 0
    %v7034 = vsel %vm875, %v6936, 0
    %v7036 = vsel %vm79, %v7028, 0
    %7038 = vmatprep.subr.mxu0 0.0
    %7039 = vmatpush1.msra.mxu0 0.0
    %7040 = vmatprep.subr.mxu0 0.0
    %7041 = vmatpush1.msra.mxu0 0.0
    %7042 = vmatprep.subr.mxu0 0.0
    %7043 = vmatpush1.msra.mxu0 0.0
    %7044 = vmatprep.subr.mxu0 0.0
    %7045 = vmatpush1.msra.mxu0 0.0
    %7046 = vmatprep.subr.mxu0 0.0
    %7047 = vmatpush1.msra.mxu0 0.0
    %7048 = vmatprep.subr.mxu0 0.0
    %7049 = vmatpush1.msra.mxu0 0.0
    %7050 = vmatprep.subr.mxu0 0.0
    %7051 = vmatpush1.msra.mxu0 0.0
    %7052 = vmatprep.subr.mxu0 0.0
    %7053 = vmatpush1.msra.mxu0 0.0
    %7054 = vmatprep.subr.mxu0 0.0
    %7055 = vmatpush1.msra.mxu0 0.0
    %7056 = vmatprep.subr.mxu0 0.0
    %7057 = vmatpush1.msra.mxu0 0.0
    %7058 = vmatprep.subr.mxu0 0.0
    %7059 = vmatpush1.msra.mxu0 0.0
    %7060 = vmatprep.subr.mxu0 0.0
    %7061 = vmatpush1.msra.mxu0 0.0
    %7062 = vmatprep.subr.mxu0 0.0
    %7063 = vmatpush1.msra.mxu0 0.0
    %7064 = vmatprep.subr.mxu0 0.0
    %7065 = vmatpush1.msra.mxu0 0.0
    %7066 = vmatprep.subr.mxu0 0.0
    %7067 = vmatpush1.msra.mxu0 %v7036
    %7068 = vmatprep.subr.mxu0 0.0
    %7069 = vmatpush1.msra.mxu0 %v7026
    %7070 = vmatprep.subr.mxu0 0.0
    %7071 = vmatpush2.msra.mxu0 0.0
    %7072 = vmatprep.subr.mxu0 0.0
    %7073 = vmatpush2.msra.mxu0 0.0
    %7074 = vmatprep.subr.mxu0 0.0
    %7075 = vmatpush2.msra.mxu0 0.0
    %7076 = vmatprep.subr.mxu0 0.0
    %7077 = vmatpush2.msra.mxu0 0.0
    %7078 = vmatprep.subr.mxu0 0.0
    %7079 = vmatpush2.msra.mxu0 0.0
    %7080 = vmatprep.subr.mxu0 0.0
    %7081 = vmatpush2.msra.mxu0 0.0
    %7082 = vmatprep.subr.mxu0 0.0
    %7083 = vmatpush2.msra.mxu0 0.0
    %7084 = vmatprep.subr.mxu0 0.0
    %7085 = vmatpush2.msra.mxu0 0.0
    %7086 = vmatprep.subr.mxu0 0.0
    %7087 = vmatpush2.msra.mxu0 0.0
    %7088 = vmatprep.subr.mxu0 0.0
    %7089 = vmatpush2.msra.mxu0 0.0
    %7090 = vmatprep.subr.mxu0 0.0
    %7091 = vmatpush2.msra.mxu0 0.0
    %7092 = vmatprep.subr.mxu0 0.0
    %7093 = vmatpush2.msra.mxu0 0.0
    %7094 = vmatprep.subr.mxu0 0.0
    %7095 = vmatpush2.msra.mxu0 0.0
    %7096 = vmatprep.subr.mxu0 0.0
    %7097 = vmatpush2.msra.mxu0 0.0
    %7098 = vmatprep.subr.mxu0 0.0
    %7099 = vmatpush2.msra.mxu0 0.0
    %7100 = vmatprep.subr.mxu0 0.0
    %7101 = vmatpush2.msra.mxu0 0.0
    %7102 = vmatprep.mubr.f32.mxu0 0.0
    %7103 = vmatmul.mubr.f32.gmra.mxu0 %v7031
    %v7104 = vpop.f32.mrf.mxu0
    %v7105 = vadd.f32 0.0, %v7104
    %v7106 = vpop.f32.mrf.mxu0
    %7107 = vmatprep.mubr.f32.mxu0 0.0
    %7108 = vmatmul.mubr.f32.gmra.mxu0 %v7034
    %v7109 = vpop.f32.mrf.mxu0
    %v7110 = vadd.f32 0.0, %v7109
    %v7111 = vpop.f32.mrf.mxu0
    %7112 = vdwg.mxu0
    %v7117 = vcombine.high %v7017, %v7017
    %v7119 = vunpack.c.l.s4 1966171168
    %v7120 = vunpack.c.0.s8 %v7119
    %v7121 = vlaneseq
    %v7122 = vshrl.u32 %v7121, 7
    %v7123 = vsub.s32 %v7120, %v7122
    %v7124 = vrot.slane %v7017, %v7123
    %v7126 = vunpack.c.l.s4 1966171168
    %v7127 = vunpack.c.0.s8 %v7126
    %v7128 = vlaneseq
    %v7129 = vshrl.u32 %v7128, 7
    %v7130 = vsub.s32 %v7127, %v7129
    %v7131 = vrot.slane %v7117, %v7130
    %v7132 = vcombine.high %v7124, %v7124
    %v7133 = vcombine.high %v7131, %v7131
    %v7135 = vunpack.c.l.s4 1966171168
    %v7136 = vunpack.c.0.s8 %v7135
    %v7137 = vlaneseq
    %v7138 = vshrl.u32 %v7137, 7
    %v7139 = vsub.s32 %v7136, %v7138
    %v7140 = vrot.slane %v7124, %v7139
    %v7142 = vunpack.c.l.s4 1966171168
    %v7143 = vunpack.c.0.s8 %v7142
    %v7144 = vlaneseq
    %v7145 = vshrl.u32 %v7144, 7
    %v7146 = vsub.s32 %v7143, %v7145
    %v7147 = vrot.slane %v7131, %v7146
    %v7149 = vunpack.c.l.s4 1966171168
    %v7150 = vunpack.c.0.s8 %v7149
    %v7151 = vlaneseq
    %v7152 = vshrl.u32 %v7151, 7
    %v7153 = vsub.s32 %v7150, %v7152
    %v7154 = vrot.slane %v7132, %v7153
    %v7156 = vunpack.c.l.s4 1966171168
    %v7157 = vunpack.c.0.s8 %v7156
    %v7158 = vlaneseq
    %v7159 = vshrl.u32 %v7158, 7
    %v7160 = vsub.s32 %v7157, %v7159
    %v7161 = vrot.slane %v7133, %v7160
    %v7162 = vcombine.high %v7140, %v7140
    %v7163 = vcombine.high %v7147, %v7147
    %v7164 = vcombine.high %v7154, %v7154
    %v7165 = vcombine.high %v7161, %v7161
    %v7167 = vunpack.c.l.s4 1966171168
    %v7168 = vunpack.c.0.s8 %v7167
    %v7169 = vlaneseq
    %v7170 = vshrl.u32 %v7169, 7
    %v7171 = vsub.s32 %v7168, %v7170
    %v7172 = vrot.slane %v7022, %v7171
    %v7174 = vunpack.c.l.s4 1966171168
    %v7175 = vunpack.c.0.s8 %v7174
    %v7176 = vlaneseq
    %v7177 = vshrl.u32 %v7176, 7
    %v7178 = vsub.s32 %v7175, %v7177
    %v7179 = vrot.slane %v7172, %v7178
    %v7180 = vcombine.high %v7105, %v7105
    %v7182 = vunpack.c.l.s4 1966171168
    %v7183 = vunpack.c.0.s8 %v7182
    %v7184 = vlaneseq
    %v7185 = vshrl.u32 %v7184, 7
    %v7186 = vsub.s32 %v7183, %v7185
    %v7187 = vrot.slane %v7105, %v7186
    %v7189 = vunpack.c.l.s4 1966171168
    %v7190 = vunpack.c.0.s8 %v7189
    %v7191 = vlaneseq
    %v7192 = vshrl.u32 %v7191, 7
    %v7193 = vsub.s32 %v7190, %v7192
    %v7194 = vrot.slane %v7180, %v7193
    %v7195 = vcombine.high %v7187, %v7187
    %v7196 = vcombine.high %v7194, %v7194
    %v7198 = vunpack.c.l.s4 1966171168
    %v7199 = vunpack.c.0.s8 %v7198
    %v7200 = vlaneseq
    %v7201 = vshrl.u32 %v7200, 7
    %v7202 = vsub.s32 %v7199, %v7201
    %v7203 = vrot.slane %v7187, %v7202
    %v7205 = vunpack.c.l.s4 1966171168
    %v7206 = vunpack.c.0.s8 %v7205
    %v7207 = vlaneseq
    %v7208 = vshrl.u32 %v7207, 7
    %v7209 = vsub.s32 %v7206, %v7208
    %v7210 = vrot.slane %v7194, %v7209
    %v7212 = vunpack.c.l.s4 1966171168
    %v7213 = vunpack.c.0.s8 %v7212
    %v7214 = vlaneseq
    %v7215 = vshrl.u32 %v7214, 7
    %v7216 = vsub.s32 %v7213, %v7215
    %v7217 = vrot.slane %v7195, %v7216
    %v7219 = vunpack.c.l.s4 1966171168
    %v7220 = vunpack.c.0.s8 %v7219
    %v7221 = vlaneseq
    %v7222 = vshrl.u32 %v7221, 7
    %v7223 = vsub.s32 %v7220, %v7222
    %v7224 = vrot.slane %v7196, %v7223
    %v7225 = vcombine.high %v7203, %v7203
    %v7226 = vcombine.high %v7210, %v7210
    %v7227 = vcombine.high %v7217, %v7217
    %v7228 = vcombine.high %v7224, %v7224
    %v7230 = vunpack.c.l.s4 1966171168
    %v7231 = vunpack.c.0.s8 %v7230
    %v7232 = vlaneseq
    %v7233 = vshrl.u32 %v7232, 7
    %v7234 = vsub.s32 %v7231, %v7233
    %v7235 = vrot.slane %v7110, %v7234
    %v7237 = vunpack.c.l.s4 1966171168
    %v7238 = vunpack.c.0.s8 %v7237
    %v7239 = vlaneseq
    %v7240 = vshrl.u32 %v7239, 7
    %v7241 = vsub.s32 %v7238, %v7240
    %v7242 = vrot.slane %v7235, %v7241
    %v7243 = vcombine.low %v7140, %v7154
    %v7244 = vcombine.low %v7162, %v7164
    %v7245 = vcombine.low %v7147, %v7161
    %v7246 = vcombine.low %v7163, %v7165
    %v7248 = vunpack.c.l.s4 1966171168
    %v7249 = vunpack.c.0.s8 %v7248
    %v7250 = vlaneseq
    %v7251 = vshrl.u32 %v7250, 7
    %v7252 = vsub.s32 %v7249, %v7251
    %v7253 = vrot.slane %v7243, %v7252
    %v7255 = vunpack.c.l.s4 1966171168
    %v7256 = vunpack.c.0.s8 %v7255
    %v7257 = vlaneseq
    %v7258 = vshrl.u32 %v7257, 7
    %v7259 = vsub.s32 %v7256, %v7258
    %v7260 = vrot.slane %v7244, %v7259
    %v7262 = vunpack.c.l.s4 1966171168
    %v7263 = vunpack.c.0.s8 %v7262
    %v7264 = vlaneseq
    %v7265 = vshrl.u32 %v7264, 7
    %v7266 = vsub.s32 %v7263, %v7265
    %v7267 = vrot.slane %v7245, %v7266
    %v7269 = vunpack.c.l.s4 1966171168
    %v7270 = vunpack.c.0.s8 %v7269
    %v7271 = vlaneseq
    %v7272 = vshrl.u32 %v7271, 7
    %v7273 = vsub.s32 %v7270, %v7272
    %v7274 = vrot.slane %v7246, %v7273
    %v7275 = vcombine.low %v7253, %v7260
    %v7276 = vcombine.low %v7267, %v7274
    %v7278 = vunpack.c.l.s4 1966171168
    %v7279 = vunpack.c.0.s8 %v7278
    %v7280 = vlaneseq
    %v7281 = vshrl.u32 %v7280, 7
    %v7282 = vsub.s32 %v7279, %v7281
    %v7283 = vrot.slane %v7275, %v7282
    %v7285 = vunpack.c.l.s4 1966171168
    %v7286 = vunpack.c.0.s8 %v7285
    %v7287 = vlaneseq
    %v7288 = vshrl.u32 %v7287, 7
    %v7289 = vsub.s32 %v7286, %v7288
    %v7290 = vrot.slane %v7276, %v7289
    %v7291 = vcombine.low %v7283, %v7290
    %v7292 = vcombine.low %v7179, %v7203
    %v7293 = vcombine.low %v7217, %v7225
    %v7294 = vcombine.low %v7227, %v7210
    %v7295 = vcombine.low %v7224, %v7226
    %v7297 = vunpack.c.l.s4 1966171168
    %v7298 = vunpack.c.0.s8 %v7297
    %v7299 = vlaneseq
    %v7300 = vshrl.u32 %v7299, 7
    %v7301 = vsub.s32 %v7298, %v7300
    %v7302 = vrot.slane %v7292, %v7301
    %v7304 = vunpack.c.l.s4 1966171168
    %v7305 = vunpack.c.0.s8 %v7304
    %v7306 = vlaneseq
    %v7307 = vshrl.u32 %v7306, 7
    %v7308 = vsub.s32 %v7305, %v7307
    %v7309 = vrot.slane %v7293, %v7308
    %v7311 = vunpack.c.l.s4 1966171168
    %v7312 = vunpack.c.0.s8 %v7311
    %v7313 = vlaneseq
    %v7314 = vshrl.u32 %v7313, 7
    %v7315 = vsub.s32 %v7312, %v7314
    %v7316 = vrot.slane %v7294, %v7315
    %v7318 = vunpack.c.l.s4 1966171168
    %v7319 = vunpack.c.0.s8 %v7318
    %v7320 = vlaneseq
    %v7321 = vshrl.u32 %v7320, 7
    %v7322 = vsub.s32 %v7319, %v7321
    %v7323 = vrot.slane %v7295, %v7322
    %v7324 = vcombine.low %v7302, %v7309
    %v7325 = vcombine.low %v7316, %v7323
    %v7327 = vunpack.c.l.s4 1966171168
    %v7328 = vunpack.c.0.s8 %v7327
    %v7329 = vlaneseq
    %v7330 = vshrl.u32 %v7329, 7
    %v7331 = vsub.s32 %v7328, %v7330
    %v7332 = vrot.slane %v7324, %v7331
    %v7334 = vunpack.c.l.s4 1966171168
    %v7335 = vunpack.c.0.s8 %v7334
    %v7336 = vlaneseq
    %v7337 = vshrl.u32 %v7336, 7
    %v7338 = vsub.s32 %v7335, %v7337
    %v7339 = vrot.slane %v7325, %v7338
    %v7340 = vcombine.low %v7332, %v7339
    %v7341 = vcombine.low %v7228, %v7242
    %v7343 = vunpack.c.l.s4 1966171168
    %v7344 = vunpack.c.0.s8 %v7343
    %v7345 = vlaneseq
    %v7346 = vshrl.u32 %v7345, 7
    %v7347 = vsub.s32 %v7344, %v7346
    %v7348 = vrot.slane %v7341, %v7347
    %v7350 = vunpack.c.l.s4 1966171168
    %v7351 = vunpack.c.0.s8 %v7350
    %v7352 = vlaneseq
    %v7353 = vshrl.u32 %v7352, 7
    %v7354 = vsub.s32 %v7351, %v7353
    %v7355 = vrot.slane %v7348, %v7354
    %v7356 = vsel %vm641, %v7291, 0
    %v7358 = vsel %vm641, %v7340, 0
    %v7360 = vsel %vm641, %v7355, 0
    %7362 = vmatprep.subr.mxu0 0.0
    %7363 = vmatpush1.msra.mxu0 0.0
    %7364 = vmatprep.subr.mxu0 0.0
    %7365 = vmatpush1.msra.mxu0 0.0
    %7366 = vmatprep.subr.mxu0 0.0
    %7367 = vmatpush1.msra.mxu0 0.0
    %7368 = vmatprep.subr.mxu0 0.0
    %7369 = vmatpush1.msra.mxu0 0.0
    %7370 = vmatprep.subr.mxu0 0.0
    %7371 = vmatpush1.msra.mxu0 0.0
    %7372 = vmatprep.subr.mxu0 0.0
    %7373 = vmatpush1.msra.mxu0 0.0
    %7374 = vmatprep.subr.mxu0 0.0
    %7375 = vmatpush1.msra.mxu0 0.0
    %7376 = vmatprep.subr.mxu0 0.0
    %7377 = vmatpush1.msra.mxu0 0.0
    %7378 = vmatprep.subr.mxu0 0.0
    %7379 = vmatpush1.msra.mxu0 0.0
    %7380 = vmatprep.subr.mxu0 0.0
    %7381 = vmatpush1.msra.mxu0 0.0
    %7382 = vmatprep.subr.mxu0 0.0
    %7383 = vmatpush1.msra.mxu0 0.0
    %7384 = vmatprep.subr.mxu0 0.0
    %7385 = vmatpush1.msra.mxu0 0.0
    %7386 = vmatprep.subr.mxu0 0.0
    %7387 = vmatpush1.msra.mxu0 0.0
    %7388 = vmatprep.subr.mxu0 0.0
    %7389 = vmatpush1.msra.mxu0 0.0
    %7390 = vmatprep.subr.mxu0 0.0
    %7391 = vmatpush1.msra.mxu0 0.0
    %7392 = vmatprep.subr.mxu0 0.0
    %7393 = vmatpush1.msra.mxu0 %v6058
    %7394 = vmatprep.subr.mxu0 0.0
    %7395 = vmatpush2.msra.mxu0 0.0
    %7396 = vmatprep.subr.mxu0 0.0
    %7397 = vmatpush2.msra.mxu0 0.0
    %7398 = vmatprep.subr.mxu0 0.0
    %7399 = vmatpush2.msra.mxu0 0.0
    %7400 = vmatprep.subr.mxu0 0.0
    %7401 = vmatpush2.msra.mxu0 0.0
    %7402 = vmatprep.subr.mxu0 0.0
    %7403 = vmatpush2.msra.mxu0 0.0
    %7404 = vmatprep.subr.mxu0 0.0
    %7405 = vmatpush2.msra.mxu0 0.0
    %7406 = vmatprep.subr.mxu0 0.0
    %7407 = vmatpush2.msra.mxu0 0.0
    %7408 = vmatprep.subr.mxu0 0.0
    %7409 = vmatpush2.msra.mxu0 0.0
    %7410 = vmatprep.subr.mxu0 0.0
    %7411 = vmatpush2.msra.mxu0 0.0
    %7412 = vmatprep.subr.mxu0 0.0
    %7413 = vmatpush2.msra.mxu0 0.0
    %7414 = vmatprep.subr.mxu0 0.0
    %7415 = vmatpush2.msra.mxu0 0.0
    %7416 = vmatprep.subr.mxu0 0.0
    %7417 = vmatpush2.msra.mxu0 0.0
    %7418 = vmatprep.subr.mxu0 0.0
    %7419 = vmatpush2.msra.mxu0 0.0
    %7420 = vmatprep.subr.mxu0 0.0
    %7421 = vmatpush2.msra.mxu0 0.0
    %7422 = vmatprep.subr.mxu0 0.0
    %7423 = vmatpush2.msra.mxu0 0.0
    %7424 = vmatprep.subr.mxu0 0.0
    %7425 = vmatpush2.msra.mxu0 0.0
    %7426 = vmatprep.mubr.f32.mxu0 0.0
    %7427 = vmatmul.mubr.f32.gmra.mxu0 %v7356
    %v7428 = vpop.f32.mrf.mxu0
    %v7429 = vadd.f32 0.0, %v7428
    %v7430 = vpop.f32.mrf.mxu0
    %7431 = vmatprep.mubr.f32.mxu0 0.0
    %7432 = vmatmul.mubr.f32.gmra.mxu0 %v7358
    %v7433 = vpop.f32.mrf.mxu0
    %v7434 = vadd.f32 0.0, %v7433
    %v7435 = vpop.f32.mrf.mxu0
    %7436 = vmatprep.mubr.f32.mxu0 0.0
    %7437 = vmatmul.mubr.f32.gmra.mxu0 %v7360
    %v7438 = vpop.f32.mrf.mxu0
    %v7439 = vadd.f32 0.0, %v7438
    %v7440 = vpop.f32.mrf.mxu0
    %7441 = vdwg.mxu0
    %v7442 = vcombine.low %v6608, %v6622
    %v7443 = vcombine.low %v6630, %v6632
    %v7444 = vcombine.low %v6615, %v6629
    %v7445 = vcombine.low %v6631, %v6633
    %v7447 = vunpack.c.l.s4 1966171168
    %v7448 = vunpack.c.0.s8 %v7447
    %v7449 = vlaneseq
    %v7450 = vshrl.u32 %v7449, 7
    %v7451 = vsub.s32 %v7448, %v7450
    %v7452 = vrot.slane %v7442, %v7451
    %v7454 = vunpack.c.l.s4 1966171168
    %v7455 = vunpack.c.0.s8 %v7454
    %v7456 = vlaneseq
    %v7457 = vshrl.u32 %v7456, 7
    %v7458 = vsub.s32 %v7455, %v7457
    %v7459 = vrot.slane %v7443, %v7458
    %v7461 = vunpack.c.l.s4 1966171168
    %v7462 = vunpack.c.0.s8 %v7461
    %v7463 = vlaneseq
    %v7464 = vshrl.u32 %v7463, 7
    %v7465 = vsub.s32 %v7462, %v7464
    %v7466 = vrot.slane %v7444, %v7465
    %v7468 = vunpack.c.l.s4 1966171168
    %v7469 = vunpack.c.0.s8 %v7468
    %v7470 = vlaneseq
    %v7471 = vshrl.u32 %v7470, 7
    %v7472 = vsub.s32 %v7469, %v7471
    %v7473 = vrot.slane %v7445, %v7472
    %v7474 = vcombine.low %v7452, %v7459
    %v7475 = vcombine.low %v7466, %v7473
    %v7477 = vunpack.c.l.s4 1966171168
    %v7478 = vunpack.c.0.s8 %v7477
    %v7479 = vlaneseq
    %v7480 = vshrl.u32 %v7479, 7
    %v7481 = vsub.s32 %v7478, %v7480
    %v7482 = vrot.slane %v7474, %v7481
    %v7484 = vunpack.c.l.s4 1966171168
    %v7485 = vunpack.c.0.s8 %v7484
    %v7486 = vlaneseq
    %v7487 = vshrl.u32 %v7486, 7
    %v7488 = vsub.s32 %v7485, %v7487
    %v7489 = vrot.slane %v7475, %v7488
    %v7490 = vcombine.low %v7482, %v7489
    %v7491 = vcombine.low %v6647, %v6671
    %v7492 = vcombine.low %v6685, %v6693
    %v7493 = vcombine.low %v6695, %v6678
    %v7494 = vcombine.low %v6692, %v6694
    %v7496 = vunpack.c.l.s4 1966171168
    %v7497 = vunpack.c.0.s8 %v7496
    %v7498 = vlaneseq
    %v7499 = vshrl.u32 %v7498, 7
    %v7500 = vsub.s32 %v7497, %v7499
    %v7501 = vrot.slane %v7491, %v7500
    %v7503 = vunpack.c.l.s4 1966171168
    %v7504 = vunpack.c.0.s8 %v7503
    %v7505 = vlaneseq
    %v7506 = vshrl.u32 %v7505, 7
    %v7507 = vsub.s32 %v7504, %v7506
    %v7508 = vrot.slane %v7492, %v7507
    %v7510 = vunpack.c.l.s4 1966171168
    %v7511 = vunpack.c.0.s8 %v7510
    %v7512 = vlaneseq
    %v7513 = vshrl.u32 %v7512, 7
    %v7514 = vsub.s32 %v7511, %v7513
    %v7515 = vrot.slane %v7493, %v7514
    %v7517 = vunpack.c.l.s4 1966171168
    %v7518 = vunpack.c.0.s8 %v7517
    %v7519 = vlaneseq
    %v7520 = vshrl.u32 %v7519, 7
    %v7521 = vsub.s32 %v7518, %v7520
    %v7522 = vrot.slane %v7494, %v7521
    %v7523 = vcombine.low %v7501, %v7508
    %v7524 = vcombine.low %v7515, %v7522
    %v7526 = vunpack.c.l.s4 1966171168
    %v7527 = vunpack.c.0.s8 %v7526
    %v7528 = vlaneseq
    %v7529 = vshrl.u32 %v7528, 7
    %v7530 = vsub.s32 %v7527, %v7529
    %v7531 = vrot.slane %v7523, %v7530
    %v7533 = vunpack.c.l.s4 1966171168
    %v7534 = vunpack.c.0.s8 %v7533
    %v7535 = vlaneseq
    %v7536 = vshrl.u32 %v7535, 7
    %v7537 = vsub.s32 %v7534, %v7536
    %v7538 = vrot.slane %v7524, %v7537
    %v7539 = vcombine.low %v7531, %v7538
    %v7540 = vcombine.low %v6696, %v6710
    %v7542 = vunpack.c.l.s4 1966171168
    %v7543 = vunpack.c.0.s8 %v7542
    %v7544 = vlaneseq
    %v7545 = vshrl.u32 %v7544, 7
    %v7546 = vsub.s32 %v7543, %v7545
    %v7547 = vrot.slane %v7540, %v7546
    %v7549 = vunpack.c.l.s4 1966171168
    %v7550 = vunpack.c.0.s8 %v7549
    %v7551 = vlaneseq
    %v7552 = vshrl.u32 %v7551, 7
    %v7553 = vsub.s32 %v7550, %v7552
    %v7554 = vrot.slane %v7547, %v7553
    %v7555 = vsel %vm641, %v7490, 0
    %v7557 = vsel %vm641, %v7539, 0
    %v7559 = vsel %vm641, %v7554, 0
    %7561 = vmatprep.subr.mxu0 0.0
    %7562 = vmatpush1.msra.mxu0 0.0
    %7563 = vmatprep.subr.mxu0 0.0
    %7564 = vmatpush1.msra.mxu0 0.0
    %7565 = vmatprep.subr.mxu0 0.0
    %7566 = vmatpush1.msra.mxu0 0.0
    %7567 = vmatprep.subr.mxu0 0.0
    %7568 = vmatpush1.msra.mxu0 0.0
    %7569 = vmatprep.subr.mxu0 0.0
    %7570 = vmatpush1.msra.mxu0 0.0
    %7571 = vmatprep.subr.mxu0 0.0
    %7572 = vmatpush1.msra.mxu0 0.0
    %7573 = vmatprep.subr.mxu0 0.0
    %7574 = vmatpush1.msra.mxu0 0.0
    %7575 = vmatprep.subr.mxu0 0.0
    %7576 = vmatpush1.msra.mxu0 0.0
    %7577 = vmatprep.subr.mxu0 0.0
    %7578 = vmatpush1.msra.mxu0 0.0
    %7579 = vmatprep.subr.mxu0 0.0
    %7580 = vmatpush1.msra.mxu0 0.0
    %7581 = vmatprep.subr.mxu0 0.0
    %7582 = vmatpush1.msra.mxu0 0.0
    %7583 = vmatprep.subr.mxu0 0.0
    %7584 = vmatpush1.msra.mxu0 0.0
    %7585 = vmatprep.subr.mxu0 0.0
    %7586 = vmatpush1.msra.mxu0 0.0
    %7587 = vmatprep.subr.mxu0 0.0
    %7588 = vmatpush1.msra.mxu0 0.0
    %7589 = vmatprep.subr.mxu0 0.0
    %7590 = vmatpush1.msra.mxu0 0.0
    %7591 = vmatprep.subr.mxu0 0.0
    %7592 = vmatpush1.msra.mxu0 %v6057
    %7593 = vmatprep.subr.mxu0 0.0
    %7594 = vmatpush2.msra.mxu0 0.0
    %7595 = vmatprep.subr.mxu0 0.0
    %7596 = vmatpush2.msra.mxu0 0.0
    %7597 = vmatprep.subr.mxu0 0.0
    %7598 = vmatpush2.msra.mxu0 0.0
    %7599 = vmatprep.subr.mxu0 0.0
    %7600 = vmatpush2.msra.mxu0 0.0
    %7601 = vmatprep.subr.mxu0 0.0
    %7602 = vmatpush2.msra.mxu0 0.0
    %7603 = vmatprep.subr.mxu0 0.0
    %7604 = vmatpush2.msra.mxu0 0.0
    %7605 = vmatprep.subr.mxu0 0.0
    %7606 = vmatpush2.msra.mxu0 0.0
    %7607 = vmatprep.subr.mxu0 0.0
    %7608 = vmatpush2.msra.mxu0 0.0
    %7609 = vmatprep.subr.mxu0 0.0
    %7610 = vmatpush2.msra.mxu0 0.0
    %7611 = vmatprep.subr.mxu0 0.0
    %7612 = vmatpush2.msra.mxu0 0.0
    %7613 = vmatprep.subr.mxu0 0.0
    %7614 = vmatpush2.msra.mxu0 0.0
    %7615 = vmatprep.subr.mxu0 0.0
    %7616 = vmatpush2.msra.mxu0 0.0
    %7617 = vmatprep.subr.mxu0 0.0
    %7618 = vmatpush2.msra.mxu0 0.0
    %7619 = vmatprep.subr.mxu0 0.0
    %7620 = vmatpush2.msra.mxu0 0.0
    %7621 = vmatprep.subr.mxu0 0.0
    %7622 = vmatpush2.msra.mxu0 0.0
    %7623 = vmatprep.subr.mxu0 0.0
    %7624 = vmatpush2.msra.mxu0 0.0
    %7625 = vmatprep.mubr.f32.mxu0 0.0
    %7626 = vmatmul.mubr.f32.gmra.mxu0 %v7555
    %v7627 = vpop.f32.mrf.mxu0
    %v7628 = vadd.f32 %v7429, %v7627
    %v7629 = vpop.f32.mrf.mxu0
    %7630 = vmatprep.mubr.f32.mxu0 0.0
    %7631 = vmatmul.mubr.f32.gmra.mxu0 %v7557
    %v7632 = vpop.f32.mrf.mxu0
    %v7633 = vadd.f32 %v7434, %v7632
    %v7634 = vpop.f32.mrf.mxu0
    %7635 = vmatprep.mubr.f32.mxu0 0.0
    %7636 = vmatmul.mubr.f32.gmra.mxu0 %v7559
    %v7637 = vpop.f32.mrf.mxu0
    %v7638 = vadd.f32 %v7439, %v7637
    %v7639 = vpop.f32.mrf.mxu0
    %7640 = vdwg.mxu0
    %7641 = vrot.lane.b32.xlu0 %v6109, 112
    %v7642 = vpop.permute.xlu0 %7641
    %7643 = vrot.lane.b32.xlu0 %v6123, 112
    %v7644 = vpop.permute.xlu0 %7643
    %7645 = vrot.lane.b32.xlu0 %v6109, 80
    %v7646 = vpop.permute.xlu0 %7645
    %7647 = vrot.lane.b32.xlu0 %v6123, 80
    %v7648 = vpop.permute.xlu0 %7647
    %v7649 = vsel %vm641, %v7642, 0
    %v7651 = vsel %vm641, %v7644, 0
    %v7653 = vsel %vm641, %v7646, 0
    %v7655 = vsel %vm641, %v7648, 0
    %7657 = vmatprep.subr.mxu0 0.0
    %7658 = vmatpush1.xpose.msra.mxu0 0.0
    %7659 = vmatprep.subr.mxu0 0.0
    %7660 = vmatpush1.xpose.msra.mxu0 0.0
    %7661 = vmatprep.subr.mxu0 0.0
    %7662 = vmatpush1.xpose.msra.mxu0 0.0
    %7663 = vmatprep.subr.mxu0 0.0
    %7664 = vmatpush1.xpose.msra.mxu0 0.0
    %7665 = vmatprep.subr.mxu0 0.0
    %7666 = vmatpush1.xpose.msra.mxu0 0.0
    %7667 = vmatprep.subr.mxu0 0.0
    %7668 = vmatpush1.xpose.msra.mxu0 0.0
    %7669 = vmatprep.subr.mxu0 0.0
    %7670 = vmatpush1.xpose.msra.mxu0 0.0
    %7671 = vmatprep.subr.mxu0 0.0
    %7672 = vmatpush1.xpose.msra.mxu0 0.0
    %7673 = vmatprep.subr.mxu0 0.0
    %7674 = vmatpush1.xpose.msra.mxu0 0.0
    %7675 = vmatprep.subr.mxu0 0.0
    %7676 = vmatpush1.xpose.msra.mxu0 0.0
    %7677 = vmatprep.subr.mxu0 0.0
    %7678 = vmatpush1.xpose.msra.mxu0 0.0
    %7679 = vmatprep.subr.mxu0 0.0
    %7680 = vmatpush1.xpose.msra.mxu0 0.0
    %7681 = vmatprep.subr.mxu0 0.0
    %7682 = vmatpush1.xpose.msra.mxu0 0.0
    %7683 = vmatprep.subr.mxu0 0.0
    %7684 = vmatpush1.xpose.msra.mxu0 0.0
    %7685 = vmatprep.subr.mxu0 0.0
    %7686 = vmatpush1.xpose.msra.mxu0 %v7655
    %7687 = vmatprep.subr.mxu0 0.0
    %7688 = vmatpush1.xpose.msra.mxu0 %v7653
    %7689 = vmatprep.subr.mxu0 0.0
    %7690 = vmatpush2.xpose.msra.mxu0 0.0
    %7691 = vmatprep.subr.mxu0 0.0
    %7692 = vmatpush2.xpose.msra.mxu0 0.0
    %7693 = vmatprep.subr.mxu0 0.0
    %7694 = vmatpush2.xpose.msra.mxu0 0.0
    %7695 = vmatprep.subr.mxu0 0.0
    %7696 = vmatpush2.xpose.msra.mxu0 0.0
    %7697 = vmatprep.subr.mxu0 0.0
    %7698 = vmatpush2.xpose.msra.mxu0 0.0
    %7699 = vmatprep.subr.mxu0 0.0
    %7700 = vmatpush2.xpose.msra.mxu0 0.0
    %7701 = vmatprep.subr.mxu0 0.0
    %7702 = vmatpush2.xpose.msra.mxu0 0.0
    %7703 = vmatprep.subr.mxu0 0.0
    %7704 = vmatpush2.xpose.msra.mxu0 0.0
    %7705 = vmatprep.subr.mxu0 0.0
    %7706 = vmatpush2.xpose.msra.mxu0 0.0
    %7707 = vmatprep.subr.mxu0 0.0
    %7708 = vmatpush2.xpose.msra.mxu0 0.0
    %7709 = vmatprep.subr.mxu0 0.0
    %7710 = vmatpush2.xpose.msra.mxu0 0.0
    %7711 = vmatprep.subr.mxu0 0.0
    %7712 = vmatpush2.xpose.msra.mxu0 0.0
    %7713 = vmatprep.subr.mxu0 0.0
    %7714 = vmatpush2.xpose.msra.mxu0 0.0
    %7715 = vmatprep.subr.mxu0 0.0
    %7716 = vmatpush2.xpose.msra.mxu0 0.0
    %7717 = vmatprep.subr.mxu0 0.0
    %7718 = vmatpush2.xpose.msra.mxu0 0.0
    %7719 = vmatprep.subr.mxu0 0.0
    %7720 = vmatpush2.xpose.msra.mxu0 0.0
    %7721 = vmatprep.mubr.f32.mxu0 0.0
    %7722 = vmatmul.mubr.f32.gmra.mxu0 %v7649
    %v7723 = vpop.f32.mrf.mxu0
    %v7724 = vadd.f32 0.0, %v7723
    %v7725 = vpop.f32.mrf.mxu0
    %7726 = vmatprep.mubr.f32.mxu0 0.0
    %7727 = vmatmul.mubr.f32.gmra.mxu0 %v7651
    %v7728 = vpop.f32.mrf.mxu0
    %v7729 = vadd.f32 0.0, %v7728
    %v7730 = vpop.f32.mrf.mxu0
    %7731 = vdwg.mxu0
    %7732 = vrot.lane.b32.xlu0 %v6259, 112
    %v7733 = vpop.permute.xlu0 %7732
    %7734 = vrot.lane.b32.xlu0 %v6273, 112
    %v7735 = vpop.permute.xlu0 %7734
    %7736 = vrot.lane.b32.xlu0 %v6259, 80
    %v7737 = vpop.permute.xlu0 %7736
    %7738 = vrot.lane.b32.xlu0 %v6273, 80
    %v7739 = vpop.permute.xlu0 %7738
    %v7740 = vsel %vm641, %v7733, 0
    %v7742 = vsel %vm641, %v7735, 0
    %v7744 = vsel %vm641, %v7737, 0
    %v7746 = vsel %vm641, %v7739, 0
    %7748 = vmatprep.subr.mxu0 0.0
    %7749 = vmatpush1.xpose.msra.mxu0 0.0
    %7750 = vmatprep.subr.mxu0 0.0
    %7751 = vmatpush1.xpose.msra.mxu0 0.0
    %7752 = vmatprep.subr.mxu0 0.0
    %7753 = vmatpush1.xpose.msra.mxu0 0.0
    %7754 = vmatprep.subr.mxu0 0.0
    %7755 = vmatpush1.xpose.msra.mxu0 0.0
    %7756 = vmatprep.subr.mxu0 0.0
    %7757 = vmatpush1.xpose.msra.mxu0 0.0
    %7758 = vmatprep.subr.mxu0 0.0
    %7759 = vmatpush1.xpose.msra.mxu0 0.0
    %7760 = vmatprep.subr.mxu0 0.0
    %7761 = vmatpush1.xpose.msra.mxu0 0.0
    %7762 = vmatprep.subr.mxu0 0.0
    %7763 = vmatpush1.xpose.msra.mxu0 0.0
    %7764 = vmatprep.subr.mxu0 0.0
    %7765 = vmatpush1.xpose.msra.mxu0 0.0
    %7766 = vmatprep.subr.mxu0 0.0
    %7767 = vmatpush1.xpose.msra.mxu0 0.0
    %7768 = vmatprep.subr.mxu0 0.0
    %7769 = vmatpush1.xpose.msra.mxu0 0.0
    %7770 = vmatprep.subr.mxu0 0.0
    %7771 = vmatpush1.xpose.msra.mxu0 0.0
    %7772 = vmatprep.subr.mxu0 0.0
    %7773 = vmatpush1.xpose.msra.mxu0 0.0
    %7774 = vmatprep.subr.mxu0 0.0
    %7775 = vmatpush1.xpose.msra.mxu0 0.0
    %7776 = vmatprep.subr.mxu0 0.0
    %7777 = vmatpush1.xpose.msra.mxu0 %v7746
    %7778 = vmatprep.subr.mxu0 0.0
    %7779 = vmatpush1.xpose.msra.mxu0 %v7744
    %7780 = vmatprep.subr.mxu0 0.0
    %7781 = vmatpush2.xpose.msra.mxu0 0.0
    %7782 = vmatprep.subr.mxu0 0.0
    %7783 = vmatpush2.xpose.msra.mxu0 0.0
    %7784 = vmatprep.subr.mxu0 0.0
    %7785 = vmatpush2.xpose.msra.mxu0 0.0
    %7786 = vmatprep.subr.mxu0 0.0
    %7787 = vmatpush2.xpose.msra.mxu0 0.0
    %7788 = vmatprep.subr.mxu0 0.0
    %7789 = vmatpush2.xpose.msra.mxu0 0.0
    %7790 = vmatprep.subr.mxu0 0.0
    %7791 = vmatpush2.xpose.msra.mxu0 0.0
    %7792 = vmatprep.subr.mxu0 0.0
    %7793 = vmatpush2.xpose.msra.mxu0 0.0
    %7794 = vmatprep.subr.mxu0 0.0
    %7795 = vmatpush2.xpose.msra.mxu0 0.0
    %7796 = vmatprep.subr.mxu0 0.0
    %7797 = vmatpush2.xpose.msra.mxu0 0.0
    %7798 = vmatprep.subr.mxu0 0.0
    %7799 = vmatpush2.xpose.msra.mxu0 0.0
    %7800 = vmatprep.subr.mxu0 0.0
    %7801 = vmatpush2.xpose.msra.mxu0 0.0
    %7802 = vmatprep.subr.mxu0 0.0
    %7803 = vmatpush2.xpose.msra.mxu0 0.0
    %7804 = vmatprep.subr.mxu0 0.0
    %7805 = vmatpush2.xpose.msra.mxu0 0.0
    %7806 = vmatprep.subr.mxu0 0.0
    %7807 = vmatpush2.xpose.msra.mxu0 0.0
    %7808 = vmatprep.subr.mxu0 0.0
    %7809 = vmatpush2.xpose.msra.mxu0 0.0
    %7810 = vmatprep.subr.mxu0 0.0
    %7811 = vmatpush2.xpose.msra.mxu0 0.0
    %7812 = vmatprep.mubr.f32.mxu0 0.0
    %7813 = vmatmul.mubr.f32.gmra.mxu0 %v7740
    %v7814 = vpop.f32.mrf.mxu0
    %v7815 = vadd.f32 0.0, %v7814
    %v7816 = vpop.f32.mrf.mxu0
    %7817 = vmatprep.mubr.f32.mxu0 0.0
    %7818 = vmatmul.mubr.f32.gmra.mxu0 %v7742
    %v7819 = vpop.f32.mrf.mxu0
    %v7820 = vadd.f32 0.0, %v7819
    %v7821 = vpop.f32.mrf.mxu0
    %7822 = vdwg.mxu0
    %v7823 = vsel %vm875, %v7724, -inf
    %7824 = vmax.xlane.f32.xlu0 %v7823
    %v7825 = vpop.xlane.xlu0 %7824
    %v7826 = vsel %vm879, %v7729, -inf
    %7827 = vmax.xlane.f32.xlu0 %v7826
    %v7828 = vpop.xlane.xlu0 %7827
    %v7829 = vsel %vm875, %v7815, -inf
    %7830 = vmax.xlane.f32.xlu0 %v7829
    %v7831 = vpop.xlane.xlu0 %7830
    %v7832 = vsel %vm879, %v7820, -inf
    %7833 = vmax.xlane.f32.xlu0 %v7832
    %v7834 = vpop.xlane.xlu0 %7833
    %v7835 = vsub.f32 %v7724, %v7825
    %v7836 = vsub.f32 %v7729, %v7828
    %v7837 = vsub.f32 %v7815, %v7831
    %v7838 = vsub.f32 %v7820, %v7834
    %v7839 = vmul.f32 %v7835, 1.442695
    %v7840 = vpow.pop %v7839
    %v7841 = vmul.f32 %v7836, 1.442695
    %v7842 = vpow.pop %v7841
    %v7843 = vmul.f32 %v7837, 1.442695
    %v7844 = vpow.pop %v7843
    %v7845 = vmul.f32 %v7838, 1.442695
    %v7846 = vpow.pop %v7845
    %v7847 = vsel %vm875, %v7840, 0.0
    %7848 = vadd.xlane.f32.xlu0 %v7847
    %v7849 = vpop.xlane.xlu0 %7848
    %v7850 = vsel %vm879, %v7842, 0.0
    %7851 = vadd.xlane.f32.xlu0 %v7850
    %v7852 = vpop.xlane.xlu0 %7851
    %v7853 = vsel %vm875, %v7844, 0.0
    %7854 = vadd.xlane.f32.xlu0 %v7853
    %v7855 = vpop.xlane.xlu0 %7854
    %v7856 = vsel %vm879, %v7846, 0.0
    %7857 = vadd.xlane.f32.xlu0 %v7856
    %v7858 = vpop.xlane.xlu0 %7857
    %v7859 = vrcp.pop %v7849
    %v7860 = vrcp.pop %v7852
    %v7861 = vrcp.pop %v7855
    %v7862 = vrcp.pop %v7858
    %v7863 = vmul.f32 %v7840, %v7859
    %v7864 = vmul.f32 %v7842, %v7860
    %v7865 = vmul.f32 %v7844, %v7861
    %v7866 = vmul.f32 %v7846, %v7862
    %7867 = vrot.lane.b32.xlu0 %v6109, 48
    %v7868 = vpop.permute.xlu0 %7867
    %7869 = vrot.lane.b32.xlu0 %v6123, 48
    %v7870 = vpop.permute.xlu0 %7869
    %v7873 = vsel %vm875, %v7863, 0
    %v7876 = vsel %vm875, %v7864, 0
    %v7878 = vsel %vm79, %v7870, 0
    %7880 = vmatprep.subr.mxu0 0.0
    %7881 = vmatpush1.msra.mxu0 0.0
    %7882 = vmatprep.subr.mxu0 0.0
    %7883 = vmatpush1.msra.mxu0 0.0
    %7884 = vmatprep.subr.mxu0 0.0
    %7885 = vmatpush1.msra.mxu0 0.0
    %7886 = vmatprep.subr.mxu0 0.0
    %7887 = vmatpush1.msra.mxu0 0.0
    %7888 = vmatprep.subr.mxu0 0.0
    %7889 = vmatpush1.msra.mxu0 0.0
    %7890 = vmatprep.subr.mxu0 0.0
    %7891 = vmatpush1.msra.mxu0 0.0
    %7892 = vmatprep.subr.mxu0 0.0
    %7893 = vmatpush1.msra.mxu0 0.0
    %7894 = vmatprep.subr.mxu0 0.0
    %7895 = vmatpush1.msra.mxu0 0.0
    %7896 = vmatprep.subr.mxu0 0.0
    %7897 = vmatpush1.msra.mxu0 0.0
    %7898 = vmatprep.subr.mxu0 0.0
    %7899 = vmatpush1.msra.mxu0 0.0
    %7900 = vmatprep.subr.mxu0 0.0
    %7901 = vmatpush1.msra.mxu0 0.0
    %7902 = vmatprep.subr.mxu0 0.0
    %7903 = vmatpush1.msra.mxu0 0.0
    %7904 = vmatprep.subr.mxu0 0.0
    %7905 = vmatpush1.msra.mxu0 0.0
    %7906 = vmatprep.subr.mxu0 0.0
    %7907 = vmatpush1.msra.mxu0 0.0
    %7908 = vmatprep.subr.mxu0 0.0
    %7909 = vmatpush1.msra.mxu0 %v7878
    %7910 = vmatprep.subr.mxu0 0.0
    %7911 = vmatpush1.msra.mxu0 %v7868
    %7912 = vmatprep.subr.mxu0 0.0
    %7913 = vmatpush2.msra.mxu0 0.0
    %7914 = vmatprep.subr.mxu0 0.0
    %7915 = vmatpush2.msra.mxu0 0.0
    %7916 = vmatprep.subr.mxu0 0.0
    %7917 = vmatpush2.msra.mxu0 0.0
    %7918 = vmatprep.subr.mxu0 0.0
    %7919 = vmatpush2.msra.mxu0 0.0
    %7920 = vmatprep.subr.mxu0 0.0
    %7921 = vmatpush2.msra.mxu0 0.0
    %7922 = vmatprep.subr.mxu0 0.0
    %7923 = vmatpush2.msra.mxu0 0.0
    %7924 = vmatprep.subr.mxu0 0.0
    %7925 = vmatpush2.msra.mxu0 0.0
    %7926 = vmatprep.subr.mxu0 0.0
    %7927 = vmatpush2.msra.mxu0 0.0
    %7928 = vmatprep.subr.mxu0 0.0
    %7929 = vmatpush2.msra.mxu0 0.0
    %7930 = vmatprep.subr.mxu0 0.0
    %7931 = vmatpush2.msra.mxu0 0.0
    %7932 = vmatprep.subr.mxu0 0.0
    %7933 = vmatpush2.msra.mxu0 0.0
    %7934 = vmatprep.subr.mxu0 0.0
    %7935 = vmatpush2.msra.mxu0 0.0
    %7936 = vmatprep.subr.mxu0 0.0
    %7937 = vmatpush2.msra.mxu0 0.0
    %7938 = vmatprep.subr.mxu0 0.0
    %7939 = vmatpush2.msra.mxu0 0.0
    %7940 = vmatprep.subr.mxu0 0.0
    %7941 = vmatpush2.msra.mxu0 0.0
    %7942 = vmatprep.subr.mxu0 0.0
    %7943 = vmatpush2.msra.mxu0 0.0
    %7944 = vmatprep.mubr.f32.mxu0 0.0
    %7945 = vmatmul.mubr.f32.gmra.mxu0 %v7873
    %v7946 = vpop.f32.mrf.mxu0
    %v7947 = vadd.f32 0.0, %v7946
    %v7948 = vpop.f32.mrf.mxu0
    %7949 = vmatprep.mubr.f32.mxu0 0.0
    %7950 = vmatmul.mubr.f32.gmra.mxu0 %v7876
    %v7951 = vpop.f32.mrf.mxu0
    %v7952 = vadd.f32 0.0, %v7951
    %v7953 = vpop.f32.mrf.mxu0
    %7954 = vdwg.mxu0
    %7955 = vrot.lane.b32.xlu0 %v6259, 48
    %v7956 = vpop.permute.xlu0 %7955
    %7957 = vrot.lane.b32.xlu0 %v6273, 48
    %v7958 = vpop.permute.xlu0 %7957
    %v7961 = vsel %vm875, %v7865, 0
    %v7964 = vsel %vm875, %v7866, 0
    %v7966 = vsel %vm79, %v7958, 0
    %7968 = vmatprep.subr.mxu0 0.0
    %7969 = vmatpush1.msra.mxu0 0.0
    %7970 = vmatprep.subr.mxu0 0.0
    %7971 = vmatpush1.msra.mxu0 0.0
    %7972 = vmatprep.subr.mxu0 0.0
    %7973 = vmatpush1.msra.mxu0 0.0
    %7974 = vmatprep.subr.mxu0 0.0
    %7975 = vmatpush1.msra.mxu0 0.0
    %7976 = vmatprep.subr.mxu0 0.0
    %7977 = vmatpush1.msra.mxu0 0.0
    %7978 = vmatprep.subr.mxu0 0.0
    %7979 = vmatpush1.msra.mxu0 0.0
    %7980 = vmatprep.subr.mxu0 0.0
    %7981 = vmatpush1.msra.mxu0 0.0
    %7982 = vmatprep.subr.mxu0 0.0
    %7983 = vmatpush1.msra.mxu0 0.0
    %7984 = vmatprep.subr.mxu0 0.0
    %7985 = vmatpush1.msra.mxu0 0.0
    %7986 = vmatprep.subr.mxu0 0.0
    %7987 = vmatpush1.msra.mxu0 0.0
    %7988 = vmatprep.subr.mxu0 0.0
    %7989 = vmatpush1.msra.mxu0 0.0
    %7990 = vmatprep.subr.mxu0 0.0
    %7991 = vmatpush1.msra.mxu0 0.0
    %7992 = vmatprep.subr.mxu0 0.0
    %7993 = vmatpush1.msra.mxu0 0.0
    %7994 = vmatprep.subr.mxu0 0.0
    %7995 = vmatpush1.msra.mxu0 0.0
    %7996 = vmatprep.subr.mxu0 0.0
    %7997 = vmatpush1.msra.mxu0 %v7966
    %7998 = vmatprep.subr.mxu0 0.0
    %7999 = vmatpush1.msra.mxu0 %v7956
    %8000 = vmatprep.subr.mxu0 0.0
    %8001 = vmatpush2.msra.mxu0 0.0
    %8002 = vmatprep.subr.mxu0 0.0
    %8003 = vmatpush2.msra.mxu0 0.0
    %8004 = vmatprep.subr.mxu0 0.0
    %8005 = vmatpush2.msra.mxu0 0.0
    %8006 = vmatprep.subr.mxu0 0.0
    %8007 = vmatpush2.msra.mxu0 0.0
    %8008 = vmatprep.subr.mxu0 0.0
    %8009 = vmatpush2.msra.mxu0 0.0
    %8010 = vmatprep.subr.mxu0 0.0
    %8011 = vmatpush2.msra.mxu0 0.0
    %8012 = vmatprep.subr.mxu0 0.0
    %8013 = vmatpush2.msra.mxu0 0.0
    %8014 = vmatprep.subr.mxu0 0.0
    %8015 = vmatpush2.msra.mxu0 0.0
    %8016 = vmatprep.subr.mxu0 0.0
    %8017 = vmatpush2.msra.mxu0 0.0
    %8018 = vmatprep.subr.mxu0 0.0
    %8019 = vmatpush2.msra.mxu0 0.0
    %8020 = vmatprep.subr.mxu0 0.0
    %8021 = vmatpush2.msra.mxu0 0.0
    %8022 = vmatprep.subr.mxu0 0.0
    %8023 = vmatpush2.msra.mxu0 0.0
    %8024 = vmatprep.subr.mxu0 0.0
    %8025 = vmatpush2.msra.mxu0 0.0
    %8026 = vmatprep.subr.mxu0 0.0
    %8027 = vmatpush2.msra.mxu0 0.0
    %8028 = vmatprep.subr.mxu0 0.0
    %8029 = vmatpush2.msra.mxu0 0.0
    %8030 = vmatprep.subr.mxu0 0.0
    %8031 = vmatpush2.msra.mxu0 0.0
    %8032 = vmatprep.mubr.f32.mxu0 0.0
    %8033 = vmatmul.mubr.f32.gmra.mxu0 %v7961
    %v8034 = vpop.f32.mrf.mxu0
    %v8035 = vadd.f32 0.0, %v8034
    %v8036 = vpop.f32.mrf.mxu0
    %8037 = vmatprep.mubr.f32.mxu0 0.0
    %8038 = vmatmul.mubr.f32.gmra.mxu0 %v7964
    %v8039 = vpop.f32.mrf.mxu0
    %v8040 = vadd.f32 0.0, %v8039
    %v8041 = vpop.f32.mrf.mxu0
    %8042 = vdwg.mxu0
    %v8047 = vcombine.high %v7947, %v7947
    %v8049 = vunpack.c.l.s4 1966171168
    %v8050 = vunpack.c.0.s8 %v8049
    %v8051 = vlaneseq
    %v8052 = vshrl.u32 %v8051, 7
    %v8053 = vsub.s32 %v8050, %v8052
    %v8054 = vrot.slane %v7947, %v8053
    %v8056 = vunpack.c.l.s4 1966171168
    %v8057 = vunpack.c.0.s8 %v8056
    %v8058 = vlaneseq
    %v8059 = vshrl.u32 %v8058, 7
    %v8060 = vsub.s32 %v8057, %v8059
    %v8061 = vrot.slane %v8047, %v8060
    %v8062 = vcombine.high %v8054, %v8054
    %v8063 = vcombine.high %v8061, %v8061
    %v8065 = vunpack.c.l.s4 1966171168
    %v8066 = vunpack.c.0.s8 %v8065
    %v8067 = vlaneseq
    %v8068 = vshrl.u32 %v8067, 7
    %v8069 = vsub.s32 %v8066, %v8068
    %v8070 = vrot.slane %v8054, %v8069
    %v8072 = vunpack.c.l.s4 1966171168
    %v8073 = vunpack.c.0.s8 %v8072
    %v8074 = vlaneseq
    %v8075 = vshrl.u32 %v8074, 7
    %v8076 = vsub.s32 %v8073, %v8075
    %v8077 = vrot.slane %v8061, %v8076
    %v8079 = vunpack.c.l.s4 1966171168
    %v8080 = vunpack.c.0.s8 %v8079
    %v8081 = vlaneseq
    %v8082 = vshrl.u32 %v8081, 7
    %v8083 = vsub.s32 %v8080, %v8082
    %v8084 = vrot.slane %v8062, %v8083
    %v8086 = vunpack.c.l.s4 1966171168
    %v8087 = vunpack.c.0.s8 %v8086
    %v8088 = vlaneseq
    %v8089 = vshrl.u32 %v8088, 7
    %v8090 = vsub.s32 %v8087, %v8089
    %v8091 = vrot.slane %v8063, %v8090
    %v8092 = vcombine.high %v8070, %v8070
    %v8093 = vcombine.high %v8077, %v8077
    %v8094 = vcombine.high %v8084, %v8084
    %v8095 = vcombine.high %v8091, %v8091
    %v8097 = vunpack.c.l.s4 1966171168
    %v8098 = vunpack.c.0.s8 %v8097
    %v8099 = vlaneseq
    %v8100 = vshrl.u32 %v8099, 7
    %v8101 = vsub.s32 %v8098, %v8100
    %v8102 = vrot.slane %v7952, %v8101
    %v8104 = vunpack.c.l.s4 1966171168
    %v8105 = vunpack.c.0.s8 %v8104
    %v8106 = vlaneseq
    %v8107 = vshrl.u32 %v8106, 7
    %v8108 = vsub.s32 %v8105, %v8107
    %v8109 = vrot.slane %v8102, %v8108
    %v8110 = vcombine.high %v8035, %v8035
    %v8112 = vunpack.c.l.s4 1966171168
    %v8113 = vunpack.c.0.s8 %v8112
    %v8114 = vlaneseq
    %v8115 = vshrl.u32 %v8114, 7
    %v8116 = vsub.s32 %v8113, %v8115
    %v8117 = vrot.slane %v8035, %v8116
    %v8119 = vunpack.c.l.s4 1966171168
    %v8120 = vunpack.c.0.s8 %v8119
    %v8121 = vlaneseq
    %v8122 = vshrl.u32 %v8121, 7
    %v8123 = vsub.s32 %v8120, %v8122
    %v8124 = vrot.slane %v8110, %v8123
    %v8125 = vcombine.high %v8117, %v8117
    %v8126 = vcombine.high %v8124, %v8124
    %v8128 = vunpack.c.l.s4 1966171168
    %v8129 = vunpack.c.0.s8 %v8128
    %v8130 = vlaneseq
    %v8131 = vshrl.u32 %v8130, 7
    %v8132 = vsub.s32 %v8129, %v8131
    %v8133 = vrot.slane %v8117, %v8132
    %v8135 = vunpack.c.l.s4 1966171168
    %v8136 = vunpack.c.0.s8 %v8135
    %v8137 = vlaneseq
    %v8138 = vshrl.u32 %v8137, 7
    %v8139 = vsub.s32 %v8136, %v8138
    %v8140 = vrot.slane %v8124, %v8139
    %v8142 = vunpack.c.l.s4 1966171168
    %v8143 = vunpack.c.0.s8 %v8142
    %v8144 = vlaneseq
    %v8145 = vshrl.u32 %v8144, 7
    %v8146 = vsub.s32 %v8143, %v8145
    %v8147 = vrot.slane %v8125, %v8146
    %v8149 = vunpack.c.l.s4 1966171168
    %v8150 = vunpack.c.0.s8 %v8149
    %v8151 = vlaneseq
    %v8152 = vshrl.u32 %v8151, 7
    %v8153 = vsub.s32 %v8150, %v8152
    %v8154 = vrot.slane %v8126, %v8153
    %v8155 = vcombine.high %v8133, %v8133
    %v8156 = vcombine.high %v8140, %v8140
    %v8157 = vcombine.high %v8147, %v8147
    %v8158 = vcombine.high %v8154, %v8154
    %v8160 = vunpack.c.l.s4 1966171168
    %v8161 = vunpack.c.0.s8 %v8160
    %v8162 = vlaneseq
    %v8163 = vshrl.u32 %v8162, 7
    %v8164 = vsub.s32 %v8161, %v8163
    %v8165 = vrot.slane %v8040, %v8164
    %v8167 = vunpack.c.l.s4 1966171168
    %v8168 = vunpack.c.0.s8 %v8167
    %v8169 = vlaneseq
    %v8170 = vshrl.u32 %v8169, 7
    %v8171 = vsub.s32 %v8168, %v8170
    %v8172 = vrot.slane %v8165, %v8171
    %v8173 = vcombine.low %v8070, %v8084
    %v8174 = vcombine.low %v8092, %v8094
    %v8175 = vcombine.low %v8077, %v8091
    %v8176 = vcombine.low %v8093, %v8095
    %v8178 = vunpack.c.l.s4 1966171168
    %v8179 = vunpack.c.0.s8 %v8178
    %v8180 = vlaneseq
    %v8181 = vshrl.u32 %v8180, 7
    %v8182 = vsub.s32 %v8179, %v8181
    %v8183 = vrot.slane %v8173, %v8182
    %v8185 = vunpack.c.l.s4 1966171168
    %v8186 = vunpack.c.0.s8 %v8185
    %v8187 = vlaneseq
    %v8188 = vshrl.u32 %v8187, 7
    %v8189 = vsub.s32 %v8186, %v8188
    %v8190 = vrot.slane %v8174, %v8189
    %v8192 = vunpack.c.l.s4 1966171168
    %v8193 = vunpack.c.0.s8 %v8192
    %v8194 = vlaneseq
    %v8195 = vshrl.u32 %v8194, 7
    %v8196 = vsub.s32 %v8193, %v8195
    %v8197 = vrot.slane %v8175, %v8196
    %v8199 = vunpack.c.l.s4 1966171168
    %v8200 = vunpack.c.0.s8 %v8199
    %v8201 = vlaneseq
    %v8202 = vshrl.u32 %v8201, 7
    %v8203 = vsub.s32 %v8200, %v8202
    %v8204 = vrot.slane %v8176, %v8203
    %v8205 = vcombine.low %v8183, %v8190
    %v8206 = vcombine.low %v8197, %v8204
    %v8208 = vunpack.c.l.s4 1966171168
    %v8209 = vunpack.c.0.s8 %v8208
    %v8210 = vlaneseq
    %v8211 = vshrl.u32 %v8210, 7
    %v8212 = vsub.s32 %v8209, %v8211
    %v8213 = vrot.slane %v8205, %v8212
    %v8215 = vunpack.c.l.s4 1966171168
    %v8216 = vunpack.c.0.s8 %v8215
    %v8217 = vlaneseq
    %v8218 = vshrl.u32 %v8217, 7
    %v8219 = vsub.s32 %v8216, %v8218
    %v8220 = vrot.slane %v8206, %v8219
    %v8221 = vcombine.low %v8213, %v8220
    %v8222 = vcombine.low %v8109, %v8133
    %v8223 = vcombine.low %v8147, %v8155
    %v8224 = vcombine.low %v8157, %v8140
    %v8225 = vcombine.low %v8154, %v8156
    %v8227 = vunpack.c.l.s4 1966171168
    %v8228 = vunpack.c.0.s8 %v8227
    %v8229 = vlaneseq
    %v8230 = vshrl.u32 %v8229, 7
    %v8231 = vsub.s32 %v8228, %v8230
    %v8232 = vrot.slane %v8222, %v8231
    %v8234 = vunpack.c.l.s4 1966171168
    %v8235 = vunpack.c.0.s8 %v8234
    %v8236 = vlaneseq
    %v8237 = vshrl.u32 %v8236, 7
    %v8238 = vsub.s32 %v8235, %v8237
    %v8239 = vrot.slane %v8223, %v8238
    %v8241 = vunpack.c.l.s4 1966171168
    %v8242 = vunpack.c.0.s8 %v8241
    %v8243 = vlaneseq
    %v8244 = vshrl.u32 %v8243, 7
    %v8245 = vsub.s32 %v8242, %v8244
    %v8246 = vrot.slane %v8224, %v8245
    %v8248 = vunpack.c.l.s4 1966171168
    %v8249 = vunpack.c.0.s8 %v8248
    %v8250 = vlaneseq
    %v8251 = vshrl.u32 %v8250, 7
    %v8252 = vsub.s32 %v8249, %v8251
    %v8253 = vrot.slane %v8225, %v8252
    %v8254 = vcombine.low %v8232, %v8239
    %v8255 = vcombine.low %v8246, %v8253
    %v8257 = vunpack.c.l.s4 1966171168
    %v8258 = vunpack.c.0.s8 %v8257
    %v8259 = vlaneseq
    %v8260 = vshrl.u32 %v8259, 7
    %v8261 = vsub.s32 %v8258, %v8260
    %v8262 = vrot.slane %v8254, %v8261
    %v8264 = vunpack.c.l.s4 1966171168
    %v8265 = vunpack.c.0.s8 %v8264
    %v8266 = vlaneseq
    %v8267 = vshrl.u32 %v8266, 7
    %v8268 = vsub.s32 %v8265, %v8267
    %v8269 = vrot.slane %v8255, %v8268
    %v8270 = vcombine.low %v8262, %v8269
    %v8271 = vcombine.low %v8158, %v8172
    %v8273 = vunpack.c.l.s4 1966171168
    %v8274 = vunpack.c.0.s8 %v8273
    %v8275 = vlaneseq
    %v8276 = vshrl.u32 %v8275, 7
    %v8277 = vsub.s32 %v8274, %v8276
    %v8278 = vrot.slane %v8271, %v8277
    %v8280 = vunpack.c.l.s4 1966171168
    %v8281 = vunpack.c.0.s8 %v8280
    %v8282 = vlaneseq
    %v8283 = vshrl.u32 %v8282, 7
    %v8284 = vsub.s32 %v8281, %v8283
    %v8285 = vrot.slane %v8278, %v8284
    %v8286 = vsel %vm641, %v8221, 0
    %v8288 = vsel %vm641, %v8270, 0
    %v8290 = vsel %vm641, %v8285, 0
    %8292 = vmatprep.subr.mxu0 0.0
    %8293 = vmatpush1.msra.mxu0 0.0
    %8294 = vmatprep.subr.mxu0 0.0
    %8295 = vmatpush1.msra.mxu0 0.0
    %8296 = vmatprep.subr.mxu0 0.0
    %8297 = vmatpush1.msra.mxu0 0.0
    %8298 = vmatprep.subr.mxu0 0.0
    %8299 = vmatpush1.msra.mxu0 0.0
    %8300 = vmatprep.subr.mxu0 0.0
    %8301 = vmatpush1.msra.mxu0 0.0
    %8302 = vmatprep.subr.mxu0 0.0
    %8303 = vmatpush1.msra.mxu0 0.0
    %8304 = vmatprep.subr.mxu0 0.0
    %8305 = vmatpush1.msra.mxu0 0.0
    %8306 = vmatprep.subr.mxu0 0.0
    %8307 = vmatpush1.msra.mxu0 0.0
    %8308 = vmatprep.subr.mxu0 0.0
    %8309 = vmatpush1.msra.mxu0 0.0
    %8310 = vmatprep.subr.mxu0 0.0
    %8311 = vmatpush1.msra.mxu0 0.0
    %8312 = vmatprep.subr.mxu0 0.0
    %8313 = vmatpush1.msra.mxu0 0.0
    %8314 = vmatprep.subr.mxu0 0.0
    %8315 = vmatpush1.msra.mxu0 0.0
    %8316 = vmatprep.subr.mxu0 0.0
    %8317 = vmatpush1.msra.mxu0 0.0
    %8318 = vmatprep.subr.mxu0 0.0
    %8319 = vmatpush1.msra.mxu0 0.0
    %8320 = vmatprep.subr.mxu0 0.0
    %8321 = vmatpush1.msra.mxu0 0.0
    %8322 = vmatprep.subr.mxu0 0.0
    %8323 = vmatpush1.msra.mxu0 %v6059
    %8324 = vmatprep.subr.mxu0 0.0
    %8325 = vmatpush2.msra.mxu0 0.0
    %8326 = vmatprep.subr.mxu0 0.0
    %8327 = vmatpush2.msra.mxu0 0.0
    %8328 = vmatprep.subr.mxu0 0.0
    %8329 = vmatpush2.msra.mxu0 0.0
    %8330 = vmatprep.subr.mxu0 0.0
    %8331 = vmatpush2.msra.mxu0 0.0
    %8332 = vmatprep.subr.mxu0 0.0
    %8333 = vmatpush2.msra.mxu0 0.0
    %8334 = vmatprep.subr.mxu0 0.0
    %8335 = vmatpush2.msra.mxu0 0.0
    %8336 = vmatprep.subr.mxu0 0.0
    %8337 = vmatpush2.msra.mxu0 0.0
    %8338 = vmatprep.subr.mxu0 0.0
    %8339 = vmatpush2.msra.mxu0 0.0
    %8340 = vmatprep.subr.mxu0 0.0
    %8341 = vmatpush2.msra.mxu0 0.0
    %8342 = vmatprep.subr.mxu0 0.0
    %8343 = vmatpush2.msra.mxu0 0.0
    %8344 = vmatprep.subr.mxu0 0.0
    %8345 = vmatpush2.msra.mxu0 0.0
    %8346 = vmatprep.subr.mxu0 0.0
    %8347 = vmatpush2.msra.mxu0 0.0
    %8348 = vmatprep.subr.mxu0 0.0
    %8349 = vmatpush2.msra.mxu0 0.0
    %8350 = vmatprep.subr.mxu0 0.0
    %8351 = vmatpush2.msra.mxu0 0.0
    %8352 = vmatprep.subr.mxu0 0.0
    %8353 = vmatpush2.msra.mxu0 0.0
    %8354 = vmatprep.subr.mxu0 0.0
    %8355 = vmatpush2.msra.mxu0 0.0
    %8356 = vmatprep.mubr.f32.mxu0 0.0
    %8357 = vmatmul.mubr.f32.gmra.mxu0 %v8286
    %v8358 = vpop.f32.mrf.mxu0
    %v8359 = vadd.f32 0.0, %v8358
    %v8360 = vpop.f32.mrf.mxu0
    %8361 = vmatprep.mubr.f32.mxu0 0.0
    %8362 = vmatmul.mubr.f32.gmra.mxu0 %v8288
    %v8363 = vpop.f32.mrf.mxu0
    %v8364 = vadd.f32 0.0, %v8363
    %v8365 = vpop.f32.mrf.mxu0
    %8366 = vmatprep.mubr.f32.mxu0 0.0
    %8367 = vmatmul.mubr.f32.gmra.mxu0 %v8290
    %v8368 = vpop.f32.mrf.mxu0
    %v8369 = vadd.f32 0.0, %v8368
    %v8370 = vpop.f32.mrf.mxu0
    %8371 = vdwg.mxu0
    %v8372 = vadd.f32 %v7628, %v8359
    %v8373 = vadd.f32 %v7633, %v8364
    %v8374 = vadd.f32 %v7638, %v8369
    %8375 = vrot.lane.b32.xlu0 %v6109, 104
    %v8376 = vpop.permute.xlu0 %8375
    %8377 = vrot.lane.b32.xlu0 %v6123, 104
    %v8378 = vpop.permute.xlu0 %8377
    %8379 = vrot.lane.b32.xlu0 %v6109, 72
    %v8380 = vpop.permute.xlu0 %8379
    %8381 = vrot.lane.b32.xlu0 %v6123, 72
    %v8382 = vpop.permute.xlu0 %8381
    %v8383 = vsel %vm641, %v8376, 0
    %v8385 = vsel %vm641, %v8378, 0
    %v8387 = vsel %vm641, %v8380, 0
    %v8389 = vsel %vm641, %v8382, 0
    %8391 = vmatprep.subr.mxu0 0.0
    %8392 = vmatpush1.xpose.msra.mxu0 0.0
    %8393 = vmatprep.subr.mxu0 0.0
    %8394 = vmatpush1.xpose.msra.mxu0 0.0
    %8395 = vmatprep.subr.mxu0 0.0
    %8396 = vmatpush1.xpose.msra.mxu0 0.0
    %8397 = vmatprep.subr.mxu0 0.0
    %8398 = vmatpush1.xpose.msra.mxu0 0.0
    %8399 = vmatprep.subr.mxu0 0.0
    %8400 = vmatpush1.xpose.msra.mxu0 0.0
    %8401 = vmatprep.subr.mxu0 0.0
    %8402 = vmatpush1.xpose.msra.mxu0 0.0
    %8403 = vmatprep.subr.mxu0 0.0
    %8404 = vmatpush1.xpose.msra.mxu0 0.0
    %8405 = vmatprep.subr.mxu0 0.0
    %8406 = vmatpush1.xpose.msra.mxu0 0.0
    %8407 = vmatprep.subr.mxu0 0.0
    %8408 = vmatpush1.xpose.msra.mxu0 0.0
    %8409 = vmatprep.subr.mxu0 0.0
    %8410 = vmatpush1.xpose.msra.mxu0 0.0
    %8411 = vmatprep.subr.mxu0 0.0
    %8412 = vmatpush1.xpose.msra.mxu0 0.0
    %8413 = vmatprep.subr.mxu0 0.0
    %8414 = vmatpush1.xpose.msra.mxu0 0.0
    %8415 = vmatprep.subr.mxu0 0.0
    %8416 = vmatpush1.xpose.msra.mxu0 0.0
    %8417 = vmatprep.subr.mxu0 0.0
    %8418 = vmatpush1.xpose.msra.mxu0 0.0
    %8419 = vmatprep.subr.mxu0 0.0
    %8420 = vmatpush1.xpose.msra.mxu0 %v8389
    %8421 = vmatprep.subr.mxu0 0.0
    %8422 = vmatpush1.xpose.msra.mxu0 %v8387
    %8423 = vmatprep.subr.mxu0 0.0
    %8424 = vmatpush2.xpose.msra.mxu0 0.0
    %8425 = vmatprep.subr.mxu0 0.0
    %8426 = vmatpush2.xpose.msra.mxu0 0.0
    %8427 = vmatprep.subr.mxu0 0.0
    %8428 = vmatpush2.xpose.msra.mxu0 0.0
    %8429 = vmatprep.subr.mxu0 0.0
    %8430 = vmatpush2.xpose.msra.mxu0 0.0
    %8431 = vmatprep.subr.mxu0 0.0
    %8432 = vmatpush2.xpose.msra.mxu0 0.0
    %8433 = vmatprep.subr.mxu0 0.0
    %8434 = vmatpush2.xpose.msra.mxu0 0.0
    %8435 = vmatprep.subr.mxu0 0.0
    %8436 = vmatpush2.xpose.msra.mxu0 0.0
    %8437 = vmatprep.subr.mxu0 0.0
    %8438 = vmatpush2.xpose.msra.mxu0 0.0
    %8439 = vmatprep.subr.mxu0 0.0
    %8440 = vmatpush2.xpose.msra.mxu0 0.0
    %8441 = vmatprep.subr.mxu0 0.0
    %8442 = vmatpush2.xpose.msra.mxu0 0.0
    %8443 = vmatprep.subr.mxu0 0.0
    %8444 = vmatpush2.xpose.msra.mxu0 0.0
    %8445 = vmatprep.subr.mxu0 0.0
    %8446 = vmatpush2.xpose.msra.mxu0 0.0
    %8447 = vmatprep.subr.mxu0 0.0
    %8448 = vmatpush2.xpose.msra.mxu0 0.0
    %8449 = vmatprep.subr.mxu0 0.0
    %8450 = vmatpush2.xpose.msra.mxu0 0.0
    %8451 = vmatprep.subr.mxu0 0.0
    %8452 = vmatpush2.xpose.msra.mxu0 0.0
    %8453 = vmatprep.subr.mxu0 0.0
    %8454 = vmatpush2.xpose.msra.mxu0 0.0
    %8455 = vmatprep.mubr.f32.mxu0 0.0
    %8456 = vmatmul.mubr.f32.gmra.mxu0 %v8383
    %v8457 = vpop.f32.mrf.mxu0
    %v8458 = vadd.f32 0.0, %v8457
    %v8459 = vpop.f32.mrf.mxu0
    %8460 = vmatprep.mubr.f32.mxu0 0.0
    %8461 = vmatmul.mubr.f32.gmra.mxu0 %v8385
    %v8462 = vpop.f32.mrf.mxu0
    %v8463 = vadd.f32 0.0, %v8462
    %v8464 = vpop.f32.mrf.mxu0
    %8465 = vdwg.mxu0
    %8466 = vrot.lane.b32.xlu0 %v6259, 104
    %v8467 = vpop.permute.xlu0 %8466
    %8468 = vrot.lane.b32.xlu0 %v6273, 104
    %v8469 = vpop.permute.xlu0 %8468
    %8470 = vrot.lane.b32.xlu0 %v6259, 72
    %v8471 = vpop.permute.xlu0 %8470
    %8472 = vrot.lane.b32.xlu0 %v6273, 72
    %v8473 = vpop.permute.xlu0 %8472
    %v8474 = vsel %vm641, %v8467, 0
    %v8476 = vsel %vm641, %v8469, 0
    %v8478 = vsel %vm641, %v8471, 0
    %v8480 = vsel %vm641, %v8473, 0
    %8482 = vmatprep.subr.mxu0 0.0
    %8483 = vmatpush1.xpose.msra.mxu0 0.0
    %8484 = vmatprep.subr.mxu0 0.0
    %8485 = vmatpush1.xpose.msra.mxu0 0.0
    %8486 = vmatprep.subr.mxu0 0.0
    %8487 = vmatpush1.xpose.msra.mxu0 0.0
    %8488 = vmatprep.subr.mxu0 0.0
    %8489 = vmatpush1.xpose.msra.mxu0 0.0
    %8490 = vmatprep.subr.mxu0 0.0
    %8491 = vmatpush1.xpose.msra.mxu0 0.0
    %8492 = vmatprep.subr.mxu0 0.0
    %8493 = vmatpush1.xpose.msra.mxu0 0.0
    %8494 = vmatprep.subr.mxu0 0.0
    %8495 = vmatpush1.xpose.msra.mxu0 0.0
    %8496 = vmatprep.subr.mxu0 0.0
    %8497 = vmatpush1.xpose.msra.mxu0 0.0
    %8498 = vmatprep.subr.mxu0 0.0
    %8499 = vmatpush1.xpose.msra.mxu0 0.0
    %8500 = vmatprep.subr.mxu0 0.0
    %8501 = vmatpush1.xpose.msra.mxu0 0.0
    %8502 = vmatprep.subr.mxu0 0.0
    %8503 = vmatpush1.xpose.msra.mxu0 0.0
    %8504 = vmatprep.subr.mxu0 0.0
    %8505 = vmatpush1.xpose.msra.mxu0 0.0
    %8506 = vmatprep.subr.mxu0 0.0
    %8507 = vmatpush1.xpose.msra.mxu0 0.0
    %8508 = vmatprep.subr.mxu0 0.0
    %8509 = vmatpush1.xpose.msra.mxu0 0.0
    %8510 = vmatprep.subr.mxu0 0.0
    %8511 = vmatpush1.xpose.msra.mxu0 %v8480
    %8512 = vmatprep.subr.mxu0 0.0
    %8513 = vmatpush1.xpose.msra.mxu0 %v8478
    %8514 = vmatprep.subr.mxu0 0.0
    %8515 = vmatpush2.xpose.msra.mxu0 0.0
    %8516 = vmatprep.subr.mxu0 0.0
    %8517 = vmatpush2.xpose.msra.mxu0 0.0
    %8518 = vmatprep.subr.mxu0 0.0
    %8519 = vmatpush2.xpose.msra.mxu0 0.0
    %8520 = vmatprep.subr.mxu0 0.0
    %8521 = vmatpush2.xpose.msra.mxu0 0.0
    %8522 = vmatprep.subr.mxu0 0.0
    %8523 = vmatpush2.xpose.msra.mxu0 0.0
    %8524 = vmatprep.subr.mxu0 0.0
    %8525 = vmatpush2.xpose.msra.mxu0 0.0
    %8526 = vmatprep.subr.mxu0 0.0
    %8527 = vmatpush2.xpose.msra.mxu0 0.0
    %8528 = vmatprep.subr.mxu0 0.0
    %8529 = vmatpush2.xpose.msra.mxu0 0.0
    %8530 = vmatprep.subr.mxu0 0.0
    %8531 = vmatpush2.xpose.msra.mxu0 0.0
    %8532 = vmatprep.subr.mxu0 0.0
    %8533 = vmatpush2.xpose.msra.mxu0 0.0
    %8534 = vmatprep.subr.mxu0 0.0
    %8535 = vmatpush2.xpose.msra.mxu0 0.0
    %8536 = vmatprep.subr.mxu0 0.0
    %8537 = vmatpush2.xpose.msra.mxu0 0.0
    %8538 = vmatprep.subr.mxu0 0.0
    %8539 = vmatpush2.xpose.msra.mxu0 0.0
    %8540 = vmatprep.subr.mxu0 0.0
    %8541 = vmatpush2.xpose.msra.mxu0 0.0
    %8542 = vmatprep.subr.mxu0 0.0
    %8543 = vmatpush2.xpose.msra.mxu0 0.0
    %8544 = vmatprep.subr.mxu0 0.0
    %8545 = vmatpush2.xpose.msra.mxu0 0.0
    %8546 = vmatprep.mubr.f32.mxu0 0.0
    %8547 = vmatmul.mubr.f32.gmra.mxu0 %v8474
    %v8548 = vpop.f32.mrf.mxu0
    %v8549 = vadd.f32 0.0, %v8548
    %v8550 = vpop.f32.mrf.mxu0
    %8551 = vmatprep.mubr.f32.mxu0 0.0
    %8552 = vmatmul.mubr.f32.gmra.mxu0 %v8476
    %v8553 = vpop.f32.mrf.mxu0
    %v8554 = vadd.f32 0.0, %v8553
    %v8555 = vpop.f32.mrf.mxu0
    %8556 = vdwg.mxu0
    %v8557 = vsel %vm875, %v8458, -inf
    %8558 = vmax.xlane.f32.xlu0 %v8557
    %v8559 = vpop.xlane.xlu0 %8558
    %v8560 = vsel %vm879, %v8463, -inf
    %8561 = vmax.xlane.f32.xlu0 %v8560
    %v8562 = vpop.xlane.xlu0 %8561
    %v8563 = vsel %vm875, %v8549, -inf
    %8564 = vmax.xlane.f32.xlu0 %v8563
    %v8565 = vpop.xlane.xlu0 %8564
    %v8566 = vsel %vm879, %v8554, -inf
    %8567 = vmax.xlane.f32.xlu0 %v8566
    %v8568 = vpop.xlane.xlu0 %8567
    %v8569 = vsub.f32 %v8458, %v8559
    %v8570 = vsub.f32 %v8463, %v8562
    %v8571 = vsub.f32 %v8549, %v8565
    %v8572 = vsub.f32 %v8554, %v8568
    %v8573 = vmul.f32 %v8569, 1.442695
    %v8574 = vpow.pop %v8573
    %v8575 = vmul.f32 %v8570, 1.442695
    %v8576 = vpow.pop %v8575
    %v8577 = vmul.f32 %v8571, 1.442695
    %v8578 = vpow.pop %v8577
    %v8579 = vmul.f32 %v8572, 1.442695
    %v8580 = vpow.pop %v8579
    %v8581 = vsel %vm875, %v8574, 0.0
    %8582 = vadd.xlane.f32.xlu0 %v8581
    %v8583 = vpop.xlane.xlu0 %8582
    %v8584 = vsel %vm879, %v8576, 0.0
    %8585 = vadd.xlane.f32.xlu0 %v8584
    %v8586 = vpop.xlane.xlu0 %8585
    %v8587 = vsel %vm875, %v8578, 0.0
    %8588 = vadd.xlane.f32.xlu0 %v8587
    %v8589 = vpop.xlane.xlu0 %8588
    %v8590 = vsel %vm879, %v8580, 0.0
    %8591 = vadd.xlane.f32.xlu0 %v8590
    %v8592 = vpop.xlane.xlu0 %8591
    %v8593 = vrcp.pop %v8583
    %v8594 = vrcp.pop %v8586
    %v8595 = vrcp.pop %v8589
    %v8596 = vrcp.pop %v8592
    %v8597 = vmul.f32 %v8574, %v8593
    %v8598 = vmul.f32 %v8576, %v8594
    %v8599 = vmul.f32 %v8578, %v8595
    %v8600 = vmul.f32 %v8580, %v8596
    %8601 = vrot.lane.b32.xlu0 %v6109, 40
    %v8602 = vpop.permute.xlu0 %8601
    %8603 = vrot.lane.b32.xlu0 %v6123, 40
    %v8604 = vpop.permute.xlu0 %8603
    %v8607 = vsel %vm875, %v8597, 0
    %v8610 = vsel %vm875, %v8598, 0
    %v8612 = vsel %vm79, %v8604, 0
    %8614 = vmatprep.subr.mxu0 0.0
    %8615 = vmatpush1.msra.mxu0 0.0
    %8616 = vmatprep.subr.mxu0 0.0
    %8617 = vmatpush1.msra.mxu0 0.0
    %8618 = vmatprep.subr.mxu0 0.0
    %8619 = vmatpush1.msra.mxu0 0.0
    %8620 = vmatprep.subr.mxu0 0.0
    %8621 = vmatpush1.msra.mxu0 0.0
    %8622 = vmatprep.subr.mxu0 0.0
    %8623 = vmatpush1.msra.mxu0 0.0
    %8624 = vmatprep.subr.mxu0 0.0
    %8625 = vmatpush1.msra.mxu0 0.0
    %8626 = vmatprep.subr.mxu0 0.0
    %8627 = vmatpush1.msra.mxu0 0.0
    %8628 = vmatprep.subr.mxu0 0.0
    %8629 = vmatpush1.msra.mxu0 0.0
    %8630 = vmatprep.subr.mxu0 0.0
    %8631 = vmatpush1.msra.mxu0 0.0
    %8632 = vmatprep.subr.mxu0 0.0
    %8633 = vmatpush1.msra.mxu0 0.0
    %8634 = vmatprep.subr.mxu0 0.0
    %8635 = vmatpush1.msra.mxu0 0.0
    %8636 = vmatprep.subr.mxu0 0.0
    %8637 = vmatpush1.msra.mxu0 0.0
    %8638 = vmatprep.subr.mxu0 0.0
    %8639 = vmatpush1.msra.mxu0 0.0
    %8640 = vmatprep.subr.mxu0 0.0
    %8641 = vmatpush1.msra.mxu0 0.0
    %8642 = vmatprep.subr.mxu0 0.0
    %8643 = vmatpush1.msra.mxu0 %v8612
    %8644 = vmatprep.subr.mxu0 0.0
    %8645 = vmatpush1.msra.mxu0 %v8602
    %8646 = vmatprep.subr.mxu0 0.0
    %8647 = vmatpush2.msra.mxu0 0.0
    %8648 = vmatprep.subr.mxu0 0.0
    %8649 = vmatpush2.msra.mxu0 0.0
    %8650 = vmatprep.subr.mxu0 0.0
    %8651 = vmatpush2.msra.mxu0 0.0
    %8652 = vmatprep.subr.mxu0 0.0
    %8653 = vmatpush2.msra.mxu0 0.0
    %8654 = vmatprep.subr.mxu0 0.0
    %8655 = vmatpush2.msra.mxu0 0.0
    %8656 = vmatprep.subr.mxu0 0.0
    %8657 = vmatpush2.msra.mxu0 0.0
    %8658 = vmatprep.subr.mxu0 0.0
    %8659 = vmatpush2.msra.mxu0 0.0
    %8660 = vmatprep.subr.mxu0 0.0
    %8661 = vmatpush2.msra.mxu0 0.0
    %8662 = vmatprep.subr.mxu0 0.0
    %8663 = vmatpush2.msra.mxu0 0.0
    %8664 = vmatprep.subr.mxu0 0.0
    %8665 = vmatpush2.msra.mxu0 0.0
    %8666 = vmatprep.subr.mxu0 0.0
    %8667 = vmatpush2.msra.mxu0 0.0
    %8668 = vmatprep.subr.mxu0 0.0
    %8669 = vmatpush2.msra.mxu0 0.0
    %8670 = vmatprep.subr.mxu0 0.0
    %8671 = vmatpush2.msra.mxu0 0.0
    %8672 = vmatprep.subr.mxu0 0.0
    %8673 = vmatpush2.msra.mxu0 0.0
    %8674 = vmatprep.subr.mxu0 0.0
    %8675 = vmatpush2.msra.mxu0 0.0
    %8676 = vmatprep.subr.mxu0 0.0
    %8677 = vmatpush2.msra.mxu0 0.0
    %8678 = vmatprep.mubr.f32.mxu0 0.0
    %8679 = vmatmul.mubr.f32.gmra.mxu0 %v8607
    %v8680 = vpop.f32.mrf.mxu0
    %v8681 = vadd.f32 0.0, %v8680
    %v8682 = vpop.f32.mrf.mxu0
    %8683 = vmatprep.mubr.f32.mxu0 0.0
    %8684 = vmatmul.mubr.f32.gmra.mxu0 %v8610
    %v8685 = vpop.f32.mrf.mxu0
    %v8686 = vadd.f32 0.0, %v8685
    %v8687 = vpop.f32.mrf.mxu0
    %8688 = vdwg.mxu0
    %8689 = vrot.lane.b32.xlu0 %v6259, 40
    %v8690 = vpop.permute.xlu0 %8689
    %8691 = vrot.lane.b32.xlu0 %v6273, 40
    %v8692 = vpop.permute.xlu0 %8691
    %v8695 = vsel %vm875, %v8599, 0
    %v8698 = vsel %vm875, %v8600, 0
    %v8700 = vsel %vm79, %v8692, 0
    %8702 = vmatprep.subr.mxu0 0.0
    %8703 = vmatpush1.msra.mxu0 0.0
    %8704 = vmatprep.subr.mxu0 0.0
    %8705 = vmatpush1.msra.mxu0 0.0
    %8706 = vmatprep.subr.mxu0 0.0
    %8707 = vmatpush1.msra.mxu0 0.0
    %8708 = vmatprep.subr.mxu0 0.0
    %8709 = vmatpush1.msra.mxu0 0.0
    %8710 = vmatprep.subr.mxu0 0.0
    %8711 = vmatpush1.msra.mxu0 0.0
    %8712 = vmatprep.subr.mxu0 0.0
    %8713 = vmatpush1.msra.mxu0 0.0
    %8714 = vmatprep.subr.mxu0 0.0
    %8715 = vmatpush1.msra.mxu0 0.0
    %8716 = vmatprep.subr.mxu0 0.0
    %8717 = vmatpush1.msra.mxu0 0.0
    %8718 = vmatprep.subr.mxu0 0.0
    %8719 = vmatpush1.msra.mxu0 0.0
    %8720 = vmatprep.subr.mxu0 0.0
    %8721 = vmatpush1.msra.mxu0 0.0
    %8722 = vmatprep.subr.mxu0 0.0
    %8723 = vmatpush1.msra.mxu0 0.0
    %8724 = vmatprep.subr.mxu0 0.0
    %8725 = vmatpush1.msra.mxu0 0.0
    %8726 = vmatprep.subr.mxu0 0.0
    %8727 = vmatpush1.msra.mxu0 0.0
    %8728 = vmatprep.subr.mxu0 0.0
    %8729 = vmatpush1.msra.mxu0 0.0
    %8730 = vmatprep.subr.mxu0 0.0
    %8731 = vmatpush1.msra.mxu0 %v8700
    %8732 = vmatprep.subr.mxu0 0.0
    %8733 = vmatpush1.msra.mxu0 %v8690
    %8734 = vmatprep.subr.mxu0 0.0
    %8735 = vmatpush2.msra.mxu0 0.0
    %8736 = vmatprep.subr.mxu0 0.0
    %8737 = vmatpush2.msra.mxu0 0.0
    %8738 = vmatprep.subr.mxu0 0.0
    %8739 = vmatpush2.msra.mxu0 0.0
    %8740 = vmatprep.subr.mxu0 0.0
    %8741 = vmatpush2.msra.mxu0 0.0
    %8742 = vmatprep.subr.mxu0 0.0
    %8743 = vmatpush2.msra.mxu0 0.0
    %8744 = vmatprep.subr.mxu0 0.0
    %8745 = vmatpush2.msra.mxu0 0.0
    %8746 = vmatprep.subr.mxu0 0.0
    %8747 = vmatpush2.msra.mxu0 0.0
    %8748 = vmatprep.subr.mxu0 0.0
    %8749 = vmatpush2.msra.mxu0 0.0
    %8750 = vmatprep.subr.mxu0 0.0
    %8751 = vmatpush2.msra.mxu0 0.0
    %8752 = vmatprep.subr.mxu0 0.0
    %8753 = vmatpush2.msra.mxu0 0.0
    %8754 = vmatprep.subr.mxu0 0.0
    %8755 = vmatpush2.msra.mxu0 0.0
    %8756 = vmatprep.subr.mxu0 0.0
    %8757 = vmatpush2.msra.mxu0 0.0
    %8758 = vmatprep.subr.mxu0 0.0
    %8759 = vmatpush2.msra.mxu0 0.0
    %8760 = vmatprep.subr.mxu0 0.0
    %8761 = vmatpush2.msra.mxu0 0.0
    %8762 = vmatprep.subr.mxu0 0.0
    %8763 = vmatpush2.msra.mxu0 0.0
    %8764 = vmatprep.subr.mxu0 0.0
    %8765 = vmatpush2.msra.mxu0 0.0
    %8766 = vmatprep.mubr.f32.mxu0 0.0
    %8767 = vmatmul.mubr.f32.gmra.mxu0 %v8695
    %v8768 = vpop.f32.mrf.mxu0
    %v8769 = vadd.f32 0.0, %v8768
    %v8770 = vpop.f32.mrf.mxu0
    %8771 = vmatprep.mubr.f32.mxu0 0.0
    %8772 = vmatmul.mubr.f32.gmra.mxu0 %v8698
    %v8773 = vpop.f32.mrf.mxu0
    %v8774 = vadd.f32 0.0, %v8773
    %v8775 = vpop.f32.mrf.mxu0
    %8776 = vdwg.mxu0
    %v8781 = vcombine.high %v8681, %v8681
    %v8783 = vunpack.c.l.s4 1966171168
    %v8784 = vunpack.c.0.s8 %v8783
    %v8785 = vlaneseq
    %v8786 = vshrl.u32 %v8785, 7
    %v8787 = vsub.s32 %v8784, %v8786
    %v8788 = vrot.slane %v8681, %v8787
    %v8790 = vunpack.c.l.s4 1966171168
    %v8791 = vunpack.c.0.s8 %v8790
    %v8792 = vlaneseq
    %v8793 = vshrl.u32 %v8792, 7
    %v8794 = vsub.s32 %v8791, %v8793
    %v8795 = vrot.slane %v8781, %v8794
    %v8796 = vcombine.high %v8788, %v8788
    %v8797 = vcombine.high %v8795, %v8795
    %v8799 = vunpack.c.l.s4 1966171168
    %v8800 = vunpack.c.0.s8 %v8799
    %v8801 = vlaneseq
    %v8802 = vshrl.u32 %v8801, 7
    %v8803 = vsub.s32 %v8800, %v8802
    %v8804 = vrot.slane %v8788, %v8803
    %v8806 = vunpack.c.l.s4 1966171168
    %v8807 = vunpack.c.0.s8 %v8806
    %v8808 = vlaneseq
    %v8809 = vshrl.u32 %v8808, 7
    %v8810 = vsub.s32 %v8807, %v8809
    %v8811 = vrot.slane %v8795, %v8810
    %v8813 = vunpack.c.l.s4 1966171168
    %v8814 = vunpack.c.0.s8 %v8813
    %v8815 = vlaneseq
    %v8816 = vshrl.u32 %v8815, 7
    %v8817 = vsub.s32 %v8814, %v8816
    %v8818 = vrot.slane %v8796, %v8817
    %v8820 = vunpack.c.l.s4 1966171168
    %v8821 = vunpack.c.0.s8 %v8820
    %v8822 = vlaneseq
    %v8823 = vshrl.u32 %v8822, 7
    %v8824 = vsub.s32 %v8821, %v8823
    %v8825 = vrot.slane %v8797, %v8824
    %v8826 = vcombine.high %v8804, %v8804
    %v8827 = vcombine.high %v8811, %v8811
    %v8828 = vcombine.high %v8818, %v8818
    %v8829 = vcombine.high %v8825, %v8825
    %v8831 = vunpack.c.l.s4 1966171168
    %v8832 = vunpack.c.0.s8 %v8831
    %v8833 = vlaneseq
    %v8834 = vshrl.u32 %v8833, 7
    %v8835 = vsub.s32 %v8832, %v8834
    %v8836 = vrot.slane %v8686, %v8835
    %v8838 = vunpack.c.l.s4 1966171168
    %v8839 = vunpack.c.0.s8 %v8838
    %v8840 = vlaneseq
    %v8841 = vshrl.u32 %v8840, 7
    %v8842 = vsub.s32 %v8839, %v8841
    %v8843 = vrot.slane %v8836, %v8842
    %v8844 = vcombine.high %v8769, %v8769
    %v8846 = vunpack.c.l.s4 1966171168
    %v8847 = vunpack.c.0.s8 %v8846
    %v8848 = vlaneseq
    %v8849 = vshrl.u32 %v8848, 7
    %v8850 = vsub.s32 %v8847, %v8849
    %v8851 = vrot.slane %v8769, %v8850
    %v8853 = vunpack.c.l.s4 1966171168
    %v8854 = vunpack.c.0.s8 %v8853
    %v8855 = vlaneseq
    %v8856 = vshrl.u32 %v8855, 7
    %v8857 = vsub.s32 %v8854, %v8856
    %v8858 = vrot.slane %v8844, %v8857
    %v8859 = vcombine.high %v8851, %v8851
    %v8860 = vcombine.high %v8858, %v8858
    %v8862 = vunpack.c.l.s4 1966171168
    %v8863 = vunpack.c.0.s8 %v8862
    %v8864 = vlaneseq
    %v8865 = vshrl.u32 %v8864, 7
    %v8866 = vsub.s32 %v8863, %v8865
    %v8867 = vrot.slane %v8851, %v8866
    %v8869 = vunpack.c.l.s4 1966171168
    %v8870 = vunpack.c.0.s8 %v8869
    %v8871 = vlaneseq
    %v8872 = vshrl.u32 %v8871, 7
    %v8873 = vsub.s32 %v8870, %v8872
    %v8874 = vrot.slane %v8858, %v8873
    %v8876 = vunpack.c.l.s4 1966171168
    %v8877 = vunpack.c.0.s8 %v8876
    %v8878 = vlaneseq
    %v8879 = vshrl.u32 %v8878, 7
    %v8880 = vsub.s32 %v8877, %v8879
    %v8881 = vrot.slane %v8859, %v8880
    %v8883 = vunpack.c.l.s4 1966171168
    %v8884 = vunpack.c.0.s8 %v8883
    %v8885 = vlaneseq
    %v8886 = vshrl.u32 %v8885, 7
    %v8887 = vsub.s32 %v8884, %v8886
    %v8888 = vrot.slane %v8860, %v8887
    %v8889 = vcombine.high %v8867, %v8867
    %v8890 = vcombine.high %v8874, %v8874
    %v8891 = vcombine.high %v8881, %v8881
    %v8892 = vcombine.high %v8888, %v8888
    %v8894 = vunpack.c.l.s4 1966171168
    %v8895 = vunpack.c.0.s8 %v8894
    %v8896 = vlaneseq
    %v8897 = vshrl.u32 %v8896, 7
    %v8898 = vsub.s32 %v8895, %v8897
    %v8899 = vrot.slane %v8774, %v8898
    %v8901 = vunpack.c.l.s4 1966171168
    %v8902 = vunpack.c.0.s8 %v8901
    %v8903 = vlaneseq
    %v8904 = vshrl.u32 %v8903, 7
    %v8905 = vsub.s32 %v8902, %v8904
    %v8906 = vrot.slane %v8899, %v8905
    %v8907 = vcombine.low %v8804, %v8818
    %v8908 = vcombine.low %v8826, %v8828
    %v8909 = vcombine.low %v8811, %v8825
    %v8910 = vcombine.low %v8827, %v8829
    %v8912 = vunpack.c.l.s4 1966171168
    %v8913 = vunpack.c.0.s8 %v8912
    %v8914 = vlaneseq
    %v8915 = vshrl.u32 %v8914, 7
    %v8916 = vsub.s32 %v8913, %v8915
    %v8917 = vrot.slane %v8907, %v8916
    %v8919 = vunpack.c.l.s4 1966171168
    %v8920 = vunpack.c.0.s8 %v8919
    %v8921 = vlaneseq
    %v8922 = vshrl.u32 %v8921, 7
    %v8923 = vsub.s32 %v8920, %v8922
    %v8924 = vrot.slane %v8908, %v8923
    %v8926 = vunpack.c.l.s4 1966171168
    %v8927 = vunpack.c.0.s8 %v8926
    %v8928 = vlaneseq
    %v8929 = vshrl.u32 %v8928, 7
    %v8930 = vsub.s32 %v8927, %v8929
    %v8931 = vrot.slane %v8909, %v8930
    %v8933 = vunpack.c.l.s4 1966171168
    %v8934 = vunpack.c.0.s8 %v8933
    %v8935 = vlaneseq
    %v8936 = vshrl.u32 %v8935, 7
    %v8937 = vsub.s32 %v8934, %v8936
    %v8938 = vrot.slane %v8910, %v8937
    %v8939 = vcombine.low %v8917, %v8924
    %v8940 = vcombine.low %v8931, %v8938
    %v8942 = vunpack.c.l.s4 1966171168
    %v8943 = vunpack.c.0.s8 %v8942
    %v8944 = vlaneseq
    %v8945 = vshrl.u32 %v8944, 7
    %v8946 = vsub.s32 %v8943, %v8945
    %v8947 = vrot.slane %v8939, %v8946
    %v8949 = vunpack.c.l.s4 1966171168
    %v8950 = vunpack.c.0.s8 %v8949
    %v8951 = vlaneseq
    %v8952 = vshrl.u32 %v8951, 7
    %v8953 = vsub.s32 %v8950, %v8952
    %v8954 = vrot.slane %v8940, %v8953
    %v8955 = vcombine.low %v8947, %v8954
    %v8956 = vcombine.low %v8843, %v8867
    %v8957 = vcombine.low %v8881, %v8889
    %v8958 = vcombine.low %v8891, %v8874
    %v8959 = vcombine.low %v8888, %v8890
    %v8961 = vunpack.c.l.s4 1966171168
    %v8962 = vunpack.c.0.s8 %v8961
    %v8963 = vlaneseq
    %v8964 = vshrl.u32 %v8963, 7
    %v8965 = vsub.s32 %v8962, %v8964
    %v8966 = vrot.slane %v8956, %v8965
    %v8968 = vunpack.c.l.s4 1966171168
    %v8969 = vunpack.c.0.s8 %v8968
    %v8970 = vlaneseq
    %v8971 = vshrl.u32 %v8970, 7
    %v8972 = vsub.s32 %v8969, %v8971
    %v8973 = vrot.slane %v8957, %v8972
    %v8975 = vunpack.c.l.s4 1966171168
    %v8976 = vunpack.c.0.s8 %v8975
    %v8977 = vlaneseq
    %v8978 = vshrl.u32 %v8977, 7
    %v8979 = vsub.s32 %v8976, %v8978
    %v8980 = vrot.slane %v8958, %v8979
    %v8982 = vunpack.c.l.s4 1966171168
    %v8983 = vunpack.c.0.s8 %v8982
    %v8984 = vlaneseq
    %v8985 = vshrl.u32 %v8984, 7
    %v8986 = vsub.s32 %v8983, %v8985
    %v8987 = vrot.slane %v8959, %v8986
    %v8988 = vcombine.low %v8966, %v8973
    %v8989 = vcombine.low %v8980, %v8987
    %v8991 = vunpack.c.l.s4 1966171168
    %v8992 = vunpack.c.0.s8 %v8991
    %v8993 = vlaneseq
    %v8994 = vshrl.u32 %v8993, 7
    %v8995 = vsub.s32 %v8992, %v8994
    %v8996 = vrot.slane %v8988, %v8995
    %v8998 = vunpack.c.l.s4 1966171168
    %v8999 = vunpack.c.0.s8 %v8998
    %v9000 = vlaneseq
    %v9001 = vshrl.u32 %v9000, 7
    %v9002 = vsub.s32 %v8999, %v9001
    %v9003 = vrot.slane %v8989, %v9002
    %v9004 = vcombine.low %v8996, %v9003
    %v9005 = vcombine.low %v8892, %v8906
    %v9007 = vunpack.c.l.s4 1966171168
    %v9008 = vunpack.c.0.s8 %v9007
    %v9009 = vlaneseq
    %v9010 = vshrl.u32 %v9009, 7
    %v9011 = vsub.s32 %v9008, %v9010
    %v9012 = vrot.slane %v9005, %v9011
    %v9014 = vunpack.c.l.s4 1966171168
    %v9015 = vunpack.c.0.s8 %v9014
    %v9016 = vlaneseq
    %v9017 = vshrl.u32 %v9016, 7
    %v9018 = vsub.s32 %v9015, %v9017
    %v9019 = vrot.slane %v9012, %v9018
    %v9020 = vsel %vm641, %v8955, 0
    %v9022 = vsel %vm641, %v9004, 0
    %v9024 = vsel %vm641, %v9019, 0
    %9026 = vmatprep.subr.mxu0 0.0
    %9027 = vmatpush1.msra.mxu0 0.0
    %9028 = vmatprep.subr.mxu0 0.0
    %9029 = vmatpush1.msra.mxu0 0.0
    %9030 = vmatprep.subr.mxu0 0.0
    %9031 = vmatpush1.msra.mxu0 0.0
    %9032 = vmatprep.subr.mxu0 0.0
    %9033 = vmatpush1.msra.mxu0 0.0
    %9034 = vmatprep.subr.mxu0 0.0
    %9035 = vmatpush1.msra.mxu0 0.0
    %9036 = vmatprep.subr.mxu0 0.0
    %9037 = vmatpush1.msra.mxu0 0.0
    %9038 = vmatprep.subr.mxu0 0.0
    %9039 = vmatpush1.msra.mxu0 0.0
    %9040 = vmatprep.subr.mxu0 0.0
    %9041 = vmatpush1.msra.mxu0 0.0
    %9042 = vmatprep.subr.mxu0 0.0
    %9043 = vmatpush1.msra.mxu0 0.0
    %9044 = vmatprep.subr.mxu0 0.0
    %9045 = vmatpush1.msra.mxu0 0.0
    %9046 = vmatprep.subr.mxu0 0.0
    %9047 = vmatpush1.msra.mxu0 0.0
    %9048 = vmatprep.subr.mxu0 0.0
    %9049 = vmatpush1.msra.mxu0 0.0
    %9050 = vmatprep.subr.mxu0 0.0
    %9051 = vmatpush1.msra.mxu0 0.0
    %9052 = vmatprep.subr.mxu0 0.0
    %9053 = vmatpush1.msra.mxu0 0.0
    %9054 = vmatprep.subr.mxu0 0.0
    %9055 = vmatpush1.msra.mxu0 0.0
    %9056 = vmatprep.subr.mxu0 0.0
    %9057 = vmatpush1.msra.mxu0 %v6060
    %9058 = vmatprep.subr.mxu0 0.0
    %9059 = vmatpush2.msra.mxu0 0.0
    %9060 = vmatprep.subr.mxu0 0.0
    %9061 = vmatpush2.msra.mxu0 0.0
    %9062 = vmatprep.subr.mxu0 0.0
    %9063 = vmatpush2.msra.mxu0 0.0
    %9064 = vmatprep.subr.mxu0 0.0
    %9065 = vmatpush2.msra.mxu0 0.0
    %9066 = vmatprep.subr.mxu0 0.0
    %9067 = vmatpush2.msra.mxu0 0.0
    %9068 = vmatprep.subr.mxu0 0.0
    %9069 = vmatpush2.msra.mxu0 0.0
    %9070 = vmatprep.subr.mxu0 0.0
    %9071 = vmatpush2.msra.mxu0 0.0
    %9072 = vmatprep.subr.mxu0 0.0
    %9073 = vmatpush2.msra.mxu0 0.0
    %9074 = vmatprep.subr.mxu0 0.0
    %9075 = vmatpush2.msra.mxu0 0.0
    %9076 = vmatprep.subr.mxu0 0.0
    %9077 = vmatpush2.msra.mxu0 0.0
    %9078 = vmatprep.subr.mxu0 0.0
    %9079 = vmatpush2.msra.mxu0 0.0
    %9080 = vmatprep.subr.mxu0 0.0
    %9081 = vmatpush2.msra.mxu0 0.0
    %9082 = vmatprep.subr.mxu0 0.0
    %9083 = vmatpush2.msra.mxu0 0.0
    %9084 = vmatprep.subr.mxu0 0.0
    %9085 = vmatpush2.msra.mxu0 0.0
    %9086 = vmatprep.subr.mxu0 0.0
    %9087 = vmatpush2.msra.mxu0 0.0
    %9088 = vmatprep.subr.mxu0 0.0
    %9089 = vmatpush2.msra.mxu0 0.0
    %9090 = vmatprep.mubr.f32.mxu0 0.0
    %9091 = vmatmul.mubr.f32.gmra.mxu0 %v9020
    %v9092 = vpop.f32.mrf.mxu0
    %v9093 = vadd.f32 0.0, %v9092
    %v9094 = vpop.f32.mrf.mxu0
    %9095 = vmatprep.mubr.f32.mxu0 0.0
    %9096 = vmatmul.mubr.f32.gmra.mxu0 %v9022
    %v9097 = vpop.f32.mrf.mxu0
    %v9098 = vadd.f32 0.0, %v9097
    %v9099 = vpop.f32.mrf.mxu0
    %9100 = vmatprep.mubr.f32.mxu0 0.0
    %9101 = vmatmul.mubr.f32.gmra.mxu0 %v9024
    %v9102 = vpop.f32.mrf.mxu0
    %v9103 = vadd.f32 0.0, %v9102
    %v9104 = vpop.f32.mrf.mxu0
    %9105 = vdwg.mxu0
    %v9106 = vadd.f32 %v8372, %v9093
    %v9107 = vadd.f32 %v8373, %v9098
    %v9108 = vadd.f32 %v8374, %v9103
    %s9109 = scalar_lea.vmem %s6, 1
    %v9110 = vld [vmem:[%s9109] sm:$0x1]
    %v9112 = vlaneseq
    %v9113 = vshrl.u32 %v9112, 7
    %v9114 = vsub.s32 0, %v9113
    %v9115 = vrot.slane %v9110, %v9114
    %v9117 = vadd.f32 %v9106, %v9115
    %v9118 = vadd.f32 %v9107, %v9115
    %v9119 = vadd.f32 %v9108, %v9115
    %v9123 = vcombine.high %v9117, %v9117
    %v9125 = vunpack.c.l.s4 1966171168
    %v9126 = vunpack.c.0.s8 %v9125
    %v9127 = vlaneseq
    %v9128 = vshrl.u32 %v9127, 7
    %v9129 = vsub.s32 %v9126, %v9128
    %v9130 = vrot.slane %v9117, %v9129
    %v9132 = vunpack.c.l.s4 1966171168
    %v9133 = vunpack.c.0.s8 %v9132
    %v9134 = vlaneseq
    %v9135 = vshrl.u32 %v9134, 7
    %v9136 = vsub.s32 %v9133, %v9135
    %v9137 = vrot.slane %v9123, %v9136
    %v9138 = vcombine.high %v9130, %v9130
    %v9139 = vcombine.high %v9137, %v9137
    %v9141 = vunpack.c.l.s4 1966171168
    %v9142 = vunpack.c.0.s8 %v9141
    %v9143 = vlaneseq
    %v9144 = vshrl.u32 %v9143, 7
    %v9145 = vsub.s32 %v9142, %v9144
    %v9146 = vrot.slane %v9130, %v9145
    %v9148 = vunpack.c.l.s4 1966171168
    %v9149 = vunpack.c.0.s8 %v9148
    %v9150 = vlaneseq
    %v9151 = vshrl.u32 %v9150, 7
    %v9152 = vsub.s32 %v9149, %v9151
    %v9153 = vrot.slane %v9137, %v9152
    %v9155 = vunpack.c.l.s4 1966171168
    %v9156 = vunpack.c.0.s8 %v9155
    %v9157 = vlaneseq
    %v9158 = vshrl.u32 %v9157, 7
    %v9159 = vsub.s32 %v9156, %v9158
    %v9160 = vrot.slane %v9138, %v9159
    %v9162 = vunpack.c.l.s4 1966171168
    %v9163 = vunpack.c.0.s8 %v9162
    %v9164 = vlaneseq
    %v9165 = vshrl.u32 %v9164, 7
    %v9166 = vsub.s32 %v9163, %v9165
    %v9167 = vrot.slane %v9139, %v9166
    %v9168 = vcombine.high %v9146, %v9146
    %v9169 = vcombine.high %v9153, %v9153
    %v9170 = vcombine.high %v9160, %v9160
    %v9171 = vcombine.high %v9167, %v9167
    %v9172 = vcombine.high %v9118, %v9118
    %v9174 = vunpack.c.l.s4 1966171168
    %v9175 = vunpack.c.0.s8 %v9174
    %v9176 = vlaneseq
    %v9177 = vshrl.u32 %v9176, 7
    %v9178 = vsub.s32 %v9175, %v9177
    %v9179 = vrot.slane %v9118, %v9178
    %v9181 = vunpack.c.l.s4 1966171168
    %v9182 = vunpack.c.0.s8 %v9181
    %v9183 = vlaneseq
    %v9184 = vshrl.u32 %v9183, 7
    %v9185 = vsub.s32 %v9182, %v9184
    %v9186 = vrot.slane %v9172, %v9185
    %v9187 = vcombine.high %v9179, %v9179
    %v9188 = vcombine.high %v9186, %v9186
    %v9190 = vunpack.c.l.s4 1966171168
    %v9191 = vunpack.c.0.s8 %v9190
    %v9192 = vlaneseq
    %v9193 = vshrl.u32 %v9192, 7
    %v9194 = vsub.s32 %v9191, %v9193
    %v9195 = vrot.slane %v9179, %v9194
    %v9197 = vunpack.c.l.s4 1966171168
    %v9198 = vunpack.c.0.s8 %v9197
    %v9199 = vlaneseq
    %v9200 = vshrl.u32 %v9199, 7
    %v9201 = vsub.s32 %v9198, %v9200
    %v9202 = vrot.slane %v9186, %v9201
    %v9204 = vunpack.c.l.s4 1966171168
    %v9205 = vunpack.c.0.s8 %v9204
    %v9206 = vlaneseq
    %v9207 = vshrl.u32 %v9206, 7
    %v9208 = vsub.s32 %v9205, %v9207
    %v9209 = vrot.slane %v9187, %v9208
    %v9211 = vunpack.c.l.s4 1966171168
    %v9212 = vunpack.c.0.s8 %v9211
    %v9213 = vlaneseq
    %v9214 = vshrl.u32 %v9213, 7
    %v9215 = vsub.s32 %v9212, %v9214
    %v9216 = vrot.slane %v9188, %v9215
    %v9217 = vcombine.high %v9195, %v9195
    %v9218 = vcombine.high %v9202, %v9202
    %v9219 = vcombine.high %v9209, %v9209
    %v9220 = vcombine.high %v9216, %v9216
    %v9222 = vunpack.c.l.s4 1966171168
    %v9223 = vunpack.c.0.s8 %v9222
    %v9224 = vlaneseq
    %v9225 = vshrl.u32 %v9224, 7
    %v9226 = vsub.s32 %v9223, %v9225
    %v9227 = vrot.slane %v9119, %v9226
    %v9228 = vcombine.high %v9227, %v9227
    %v9230 = vunpack.c.l.s4 1966171168
    %v9231 = vunpack.c.0.s8 %v9230
    %v9232 = vlaneseq
    %v9233 = vshrl.u32 %v9232, 7
    %v9234 = vsub.s32 %v9231, %v9233
    %v9235 = vrot.slane %v9227, %v9234
    %v9237 = vunpack.c.l.s4 1966171168
    %v9238 = vunpack.c.0.s8 %v9237
    %v9239 = vlaneseq
    %v9240 = vshrl.u32 %v9239, 7
    %v9241 = vsub.s32 %v9238, %v9240
    %v9242 = vrot.slane %v9228, %v9241
    %v9261 = vadd.f32 %v5685, %v9146
    %v9262 = vadd.f32 %v5686, %v9160
    %v9263 = vadd.f32 %v5687, %v9168
    %v9264 = vadd.f32 %v5688, %v9170
    %v9265 = vadd.f32 %v5689, %v9153
    %v9266 = vadd.f32 %v5690, %v9167
    %v9267 = vadd.f32 %v5691, %v9169
    %v9268 = vadd.f32 %v5692, %v9171
    %v9269 = vadd.f32 %v5693, %v9195
    %v9270 = vadd.f32 %v5694, %v9209
    %v9271 = vadd.f32 %v5695, %v9217
    %v9272 = vadd.f32 %v5696, %v9219
    %v9273 = vadd.f32 %v5697, %v9202
    %v9274 = vadd.f32 %v5698, %v9216
    %v9275 = vadd.f32 %v5699, %v9218
    %v9276 = vadd.f32 %v5700, %v9220
    %v9277 = vadd.f32 %v5701, %v9235
    %v9278 = vadd.f32 %v5702, %v9242
    %s9279 = scalar_lea.vmem %s7, 1
    %v9280 = vld [vmem:[%s9279] sm:$0x1]
    %s9281 = scalar_lea.vmem %s8, 1
    %v9282 = vld [vmem:[%s9281] sm:$0x1]
    %v9301 = vcombine.low %v9261, %v9262
    %v9302 = vcombine.low %v9263, %v9264
    %v9303 = vcombine.low %v9265, %v9266
    %v9304 = vcombine.low %v9267, %v9268
    %v9306 = vunpack.c.l.s4 1966171168
    %v9307 = vunpack.c.0.s8 %v9306
    %v9308 = vlaneseq
    %v9309 = vshrl.u32 %v9308, 7
    %v9310 = vsub.s32 %v9307, %v9309
    %v9311 = vrot.slane %v9301, %v9310
    %v9313 = vunpack.c.l.s4 1966171168
    %v9314 = vunpack.c.0.s8 %v9313
    %v9315 = vlaneseq
    %v9316 = vshrl.u32 %v9315, 7
    %v9317 = vsub.s32 %v9314, %v9316
    %v9318 = vrot.slane %v9302, %v9317
    %v9320 = vunpack.c.l.s4 1966171168
    %v9321 = vunpack.c.0.s8 %v9320
    %v9322 = vlaneseq
    %v9323 = vshrl.u32 %v9322, 7
    %v9324 = vsub.s32 %v9321, %v9323
    %v9325 = vrot.slane %v9303, %v9324
    %v9327 = vunpack.c.l.s4 1966171168
    %v9328 = vunpack.c.0.s8 %v9327
    %v9329 = vlaneseq
    %v9330 = vshrl.u32 %v9329, 7
    %v9331 = vsub.s32 %v9328, %v9330
    %v9332 = vrot.slane %v9304, %v9331
    %v9333 = vcombine.low %v9311, %v9318
    %v9334 = vcombine.low %v9325, %v9332
    %v9336 = vunpack.c.l.s4 1966171168
    %v9337 = vunpack.c.0.s8 %v9336
    %v9338 = vlaneseq
    %v9339 = vshrl.u32 %v9338, 7
    %v9340 = vsub.s32 %v9337, %v9339
    %v9341 = vrot.slane %v9333, %v9340
    %v9343 = vunpack.c.l.s4 1966171168
    %v9344 = vunpack.c.0.s8 %v9343
    %v9345 = vlaneseq
    %v9346 = vshrl.u32 %v9345, 7
    %v9347 = vsub.s32 %v9344, %v9346
    %v9348 = vrot.slane %v9334, %v9347
    %v9349 = vcombine.low %v9341, %v9348
    %v9350 = vcombine.low %v9269, %v9270
    %v9351 = vcombine.low %v9271, %v9272
    %v9352 = vcombine.low %v9273, %v9274
    %v9353 = vcombine.low %v9275, %v9276
    %v9355 = vunpack.c.l.s4 1966171168
    %v9356 = vunpack.c.0.s8 %v9355
    %v9357 = vlaneseq
    %v9358 = vshrl.u32 %v9357, 7
    %v9359 = vsub.s32 %v9356, %v9358
    %v9360 = vrot.slane %v9350, %v9359
    %v9362 = vunpack.c.l.s4 1966171168
    %v9363 = vunpack.c.0.s8 %v9362
    %v9364 = vlaneseq
    %v9365 = vshrl.u32 %v9364, 7
    %v9366 = vsub.s32 %v9363, %v9365
    %v9367 = vrot.slane %v9351, %v9366
    %v9369 = vunpack.c.l.s4 1966171168
    %v9370 = vunpack.c.0.s8 %v9369
    %v9371 = vlaneseq
    %v9372 = vshrl.u32 %v9371, 7
    %v9373 = vsub.s32 %v9370, %v9372
    %v9374 = vrot.slane %v9352, %v9373
    %v9376 = vunpack.c.l.s4 1966171168
    %v9377 = vunpack.c.0.s8 %v9376
    %v9378 = vlaneseq
    %v9379 = vshrl.u32 %v9378, 7
    %v9380 = vsub.s32 %v9377, %v9379
    %v9381 = vrot.slane %v9353, %v9380
    %v9382 = vcombine.low %v9360, %v9367
    %v9383 = vcombine.low %v9374, %v9381
    %v9385 = vunpack.c.l.s4 1966171168
    %v9386 = vunpack.c.0.s8 %v9385
    %v9387 = vlaneseq
    %v9388 = vshrl.u32 %v9387, 7
    %v9389 = vsub.s32 %v9386, %v9388
    %v9390 = vrot.slane %v9382, %v9389
    %v9392 = vunpack.c.l.s4 1966171168
    %v9393 = vunpack.c.0.s8 %v9392
    %v9394 = vlaneseq
    %v9395 = vshrl.u32 %v9394, 7
    %v9396 = vsub.s32 %v9393, %v9395
    %v9397 = vrot.slane %v9383, %v9396
    %v9398 = vcombine.low %v9390, %v9397
    %v9399 = vcombine.low %v9277, %v9278
    %v9401 = vunpack.c.l.s4 1966171168
    %v9402 = vunpack.c.0.s8 %v9401
    %v9403 = vlaneseq
    %v9404 = vshrl.u32 %v9403, 7
    %v9405 = vsub.s32 %v9402, %v9404
    %v9406 = vrot.slane %v9399, %v9405
    %v9408 = vunpack.c.l.s4 1966171168
    %v9409 = vunpack.c.0.s8 %v9408
    %v9410 = vlaneseq
    %v9411 = vshrl.u32 %v9410, 7
    %v9412 = vsub.s32 %v9409, %v9411
    %v9413 = vrot.slane %v9406, %v9412
    %v9417 = vsel %vm360, %v9349, 0.0
    %9418 = vadd.xlane.f32.xlu0 %v9417
    %v9419 = vpop.xlane.xlu0 %9418
    %v9420 = vsel %vm360, %v9398, 0.0
    %9421 = vadd.xlane.f32.xlu0 %v9420
    %v9422 = vpop.xlane.xlu0 %9421
    %v9423 = vsel %vm3936, %v9413, 0.0
    %9424 = vadd.xlane.f32.xlu0 %v9423
    %v9425 = vpop.xlane.xlu0 %9424
    %v9426 = vmul.f32 %v9419, %v3940
    %v9427 = vmul.f32 %v9422, %v3940
    %v9428 = vmul.f32 %v9425, %v3940
    %v9432 = vlaneseq
    %v9433 = vshrl.u32 %v9432, 7
    %v9434 = vsub.s32 0, %v9433
    %v9435 = vrot.slane %v9426, %v9434
    %v9436 = vlaneseq
    %v9437 = vshrl.u32 %v9436, 7
    %v9438 = vsub.s32 1, %v9437
    %v9439 = vrot.slane %v9426, %v9438
    %v9440 = vlaneseq
    %v9441 = vshrl.u32 %v9440, 7
    %v9442 = vsub.s32 2, %v9441
    %v9443 = vrot.slane %v9426, %v9442
    %v9444 = vlaneseq
    %v9445 = vshrl.u32 %v9444, 7
    %v9446 = vsub.s32 3, %v9445
    %v9447 = vrot.slane %v9426, %v9446
    %v9448 = vlaneseq
    %v9449 = vshrl.u32 %v9448, 7
    %v9450 = vsub.s32 4, %v9449
    %v9451 = vrot.slane %v9426, %v9450
    %v9452 = vlaneseq
    %v9453 = vshrl.u32 %v9452, 7
    %v9454 = vsub.s32 5, %v9453
    %v9455 = vrot.slane %v9426, %v9454
    %v9456 = vlaneseq
    %v9457 = vshrl.u32 %v9456, 7
    %v9458 = vsub.s32 6, %v9457
    %v9459 = vrot.slane %v9426, %v9458
    %v9460 = vlaneseq
    %v9461 = vshrl.u32 %v9460, 7
    %v9462 = vsub.s32 7, %v9461
    %v9463 = vrot.slane %v9426, %v9462
    %v9464 = vlaneseq
    %v9465 = vshrl.u32 %v9464, 7
    %v9466 = vsub.s32 0, %v9465
    %v9467 = vrot.slane %v9427, %v9466
    %v9468 = vlaneseq
    %v9469 = vshrl.u32 %v9468, 7
    %v9470 = vsub.s32 1, %v9469
    %v9471 = vrot.slane %v9427, %v9470
    %v9472 = vlaneseq
    %v9473 = vshrl.u32 %v9472, 7
    %v9474 = vsub.s32 2, %v9473
    %v9475 = vrot.slane %v9427, %v9474
    %v9476 = vlaneseq
    %v9477 = vshrl.u32 %v9476, 7
    %v9478 = vsub.s32 3, %v9477
    %v9479 = vrot.slane %v9427, %v9478
    %v9480 = vlaneseq
    %v9481 = vshrl.u32 %v9480, 7
    %v9482 = vsub.s32 4, %v9481
    %v9483 = vrot.slane %v9427, %v9482
    %v9484 = vlaneseq
    %v9485 = vshrl.u32 %v9484, 7
    %v9486 = vsub.s32 5, %v9485
    %v9487 = vrot.slane %v9427, %v9486
    %v9488 = vlaneseq
    %v9489 = vshrl.u32 %v9488, 7
    %v9490 = vsub.s32 6, %v9489
    %v9491 = vrot.slane %v9427, %v9490
    %v9492 = vlaneseq
    %v9493 = vshrl.u32 %v9492, 7
    %v9494 = vsub.s32 7, %v9493
    %v9495 = vrot.slane %v9427, %v9494
    %v9496 = vlaneseq
    %v9497 = vshrl.u32 %v9496, 7
    %v9498 = vsub.s32 0, %v9497
    %v9499 = vrot.slane %v9428, %v9498
    %v9500 = vlaneseq
    %v9501 = vshrl.u32 %v9500, 7
    %v9502 = vsub.s32 1, %v9501
    %v9503 = vrot.slane %v9428, %v9502
    %v9522 = vsub.f32 %v9261, %v9435
    %v9523 = vsub.f32 %v9262, %v9439
    %v9524 = vsub.f32 %v9263, %v9443
    %v9525 = vsub.f32 %v9264, %v9447
    %v9526 = vsub.f32 %v9265, %v9451
    %v9527 = vsub.f32 %v9266, %v9455
    %v9528 = vsub.f32 %v9267, %v9459
    %v9529 = vsub.f32 %v9268, %v9463
    %v9530 = vsub.f32 %v9269, %v9467
    %v9531 = vsub.f32 %v9270, %v9471
    %v9532 = vsub.f32 %v9271, %v9475
    %v9533 = vsub.f32 %v9272, %v9479
    %v9534 = vsub.f32 %v9273, %v9483
    %v9535 = vsub.f32 %v9274, %v9487
    %v9536 = vsub.f32 %v9275, %v9491
    %v9537 = vsub.f32 %v9276, %v9495
    %v9538 = vsub.f32 %v9277, %v9499
    %v9539 = vsub.f32 %v9278, %v9503
    %v9540 = vmul.f32 %v9522, %v9522
    %v9541 = vmul.f32 %v9523, %v9523
    %v9542 = vmul.f32 %v9524, %v9524
    %v9543 = vmul.f32 %v9525, %v9525
    %v9544 = vmul.f32 %v9526, %v9526
    %v9545 = vmul.f32 %v9527, %v9527
    %v9546 = vmul.f32 %v9528, %v9528
    %v9547 = vmul.f32 %v9529, %v9529
    %v9548 = vmul.f32 %v9530, %v9530
    %v9549 = vmul.f32 %v9531, %v9531
    %v9550 = vmul.f32 %v9532, %v9532
    %v9551 = vmul.f32 %v9533, %v9533
    %v9552 = vmul.f32 %v9534, %v9534
    %v9553 = vmul.f32 %v9535, %v9535
    %v9554 = vmul.f32 %v9536, %v9536
    %v9555 = vmul.f32 %v9537, %v9537
    %v9556 = vmul.f32 %v9538, %v9538
    %v9557 = vmul.f32 %v9539, %v9539
    %v9576 = vcombine.low %v9540, %v9541
    %v9577 = vcombine.low %v9542, %v9543
    %v9578 = vcombine.low %v9544, %v9545
    %v9579 = vcombine.low %v9546, %v9547
    %v9581 = vunpack.c.l.s4 1966171168
    %v9582 = vunpack.c.0.s8 %v9581
    %v9583 = vlaneseq
    %v9584 = vshrl.u32 %v9583, 7
    %v9585 = vsub.s32 %v9582, %v9584
    %v9586 = vrot.slane %v9576, %v9585
    %v9588 = vunpack.c.l.s4 1966171168
    %v9589 = vunpack.c.0.s8 %v9588
    %v9590 = vlaneseq
    %v9591 = vshrl.u32 %v9590, 7
    %v9592 = vsub.s32 %v9589, %v9591
    %v9593 = vrot.slane %v9577, %v9592
    %v9595 = vunpack.c.l.s4 1966171168
    %v9596 = vunpack.c.0.s8 %v9595
    %v9597 = vlaneseq
    %v9598 = vshrl.u32 %v9597, 7
    %v9599 = vsub.s32 %v9596, %v9598
    %v9600 = vrot.slane %v9578, %v9599
    %v9602 = vunpack.c.l.s4 1966171168
    %v9603 = vunpack.c.0.s8 %v9602
    %v9604 = vlaneseq
    %v9605 = vshrl.u32 %v9604, 7
    %v9606 = vsub.s32 %v9603, %v9605
    %v9607 = vrot.slane %v9579, %v9606
    %v9608 = vcombine.low %v9586, %v9593
    %v9609 = vcombine.low %v9600, %v9607
    %v9611 = vunpack.c.l.s4 1966171168
    %v9612 = vunpack.c.0.s8 %v9611
    %v9613 = vlaneseq
    %v9614 = vshrl.u32 %v9613, 7
    %v9615 = vsub.s32 %v9612, %v9614
    %v9616 = vrot.slane %v9608, %v9615
    %v9618 = vunpack.c.l.s4 1966171168
    %v9619 = vunpack.c.0.s8 %v9618
    %v9620 = vlaneseq
    %v9621 = vshrl.u32 %v9620, 7
    %v9622 = vsub.s32 %v9619, %v9621
    %v9623 = vrot.slane %v9609, %v9622
    %v9624 = vcombine.low %v9616, %v9623
    %v9625 = vcombine.low %v9548, %v9549
    %v9626 = vcombine.low %v9550, %v9551
    %v9627 = vcombine.low %v9552, %v9553
    %v9628 = vcombine.low %v9554, %v9555
    %v9630 = vunpack.c.l.s4 1966171168
    %v9631 = vunpack.c.0.s8 %v9630
    %v9632 = vlaneseq
    %v9633 = vshrl.u32 %v9632, 7
    %v9634 = vsub.s32 %v9631, %v9633
    %v9635 = vrot.slane %v9625, %v9634
    %v9637 = vunpack.c.l.s4 1966171168
    %v9638 = vunpack.c.0.s8 %v9637
    %v9639 = vlaneseq
    %v9640 = vshrl.u32 %v9639, 7
    %v9641 = vsub.s32 %v9638, %v9640
    %v9642 = vrot.slane %v9626, %v9641
    %v9644 = vunpack.c.l.s4 1966171168
    %v9645 = vunpack.c.0.s8 %v9644
    %v9646 = vlaneseq
    %v9647 = vshrl.u32 %v9646, 7
    %v9648 = vsub.s32 %v9645, %v9647
    %v9649 = vrot.slane %v9627, %v9648
    %v9651 = vunpack.c.l.s4 1966171168
    %v9652 = vunpack.c.0.s8 %v9651
    %v9653 = vlaneseq
    %v9654 = vshrl.u32 %v9653, 7
    %v9655 = vsub.s32 %v9652, %v9654
    %v9656 = vrot.slane %v9628, %v9655
    %v9657 = vcombine.low %v9635, %v9642
    %v9658 = vcombine.low %v9649, %v9656
    %v9660 = vunpack.c.l.s4 1966171168
    %v9661 = vunpack.c.0.s8 %v9660
    %v9662 = vlaneseq
    %v9663 = vshrl.u32 %v9662, 7
    %v9664 = vsub.s32 %v9661, %v9663
    %v9665 = vrot.slane %v9657, %v9664
    %v9667 = vunpack.c.l.s4 1966171168
    %v9668 = vunpack.c.0.s8 %v9667
    %v9669 = vlaneseq
    %v9670 = vshrl.u32 %v9669, 7
    %v9671 = vsub.s32 %v9668, %v9670
    %v9672 = vrot.slane %v9658, %v9671
    %v9673 = vcombine.low %v9665, %v9672
    %v9674 = vcombine.low %v9556, %v9557
    %v9676 = vunpack.c.l.s4 1966171168
    %v9677 = vunpack.c.0.s8 %v9676
    %v9678 = vlaneseq
    %v9679 = vshrl.u32 %v9678, 7
    %v9680 = vsub.s32 %v9677, %v9679
    %v9681 = vrot.slane %v9674, %v9680
    %v9683 = vunpack.c.l.s4 1966171168
    %v9684 = vunpack.c.0.s8 %v9683
    %v9685 = vlaneseq
    %v9686 = vshrl.u32 %v9685, 7
    %v9687 = vsub.s32 %v9684, %v9686
    %v9688 = vrot.slane %v9681, %v9687
    %v9692 = vsel %vm360, %v9624, 0.0
    %9693 = vadd.xlane.f32.xlu0 %v9692
    %v9694 = vpop.xlane.xlu0 %9693
    %v9695 = vsel %vm360, %v9673, 0.0
    %9696 = vadd.xlane.f32.xlu0 %v9695
    %v9697 = vpop.xlane.xlu0 %9696
    %v9698 = vsel %vm3936, %v9688, 0.0
    %9699 = vadd.xlane.f32.xlu0 %v9698
    %v9700 = vpop.xlane.xlu0 %9699
    %v9701 = vmul.f32 %v9694, %v3940
    %v9702 = vmul.f32 %v9697, %v3940
    %v9703 = vmul.f32 %v9700, %v3940
    %v9704 = vadd.f32 %v9701, 1e-05
    %v9705 = vadd.f32 %v9702, 1e-05
    %v9706 = vadd.f32 %v9703, 1e-05
    %v9707 = vrsqrt.pop %v9704
    %v9708 = vrsqrt.pop %v9705
    %v9709 = vrsqrt.pop %v9706
    %v9713 = vlaneseq
    %v9714 = vshrl.u32 %v9713, 7
    %v9715 = vsub.s32 0, %v9714
    %v9716 = vrot.slane %v9707, %v9715
    %v9717 = vlaneseq
    %v9718 = vshrl.u32 %v9717, 7
    %v9719 = vsub.s32 1, %v9718
    %v9720 = vrot.slane %v9707, %v9719
    %v9721 = vlaneseq
    %v9722 = vshrl.u32 %v9721, 7
    %v9723 = vsub.s32 2, %v9722
    %v9724 = vrot.slane %v9707, %v9723
    %v9725 = vlaneseq
    %v9726 = vshrl.u32 %v9725, 7
    %v9727 = vsub.s32 3, %v9726
    %v9728 = vrot.slane %v9707, %v9727
    %v9729 = vlaneseq
    %v9730 = vshrl.u32 %v9729, 7
    %v9731 = vsub.s32 4, %v9730
    %v9732 = vrot.slane %v9707, %v9731
    %v9733 = vlaneseq
    %v9734 = vshrl.u32 %v9733, 7
    %v9735 = vsub.s32 5, %v9734
    %v9736 = vrot.slane %v9707, %v9735
    %v9737 = vlaneseq
    %v9738 = vshrl.u32 %v9737, 7
    %v9739 = vsub.s32 6, %v9738
    %v9740 = vrot.slane %v9707, %v9739
    %v9741 = vlaneseq
    %v9742 = vshrl.u32 %v9741, 7
    %v9743 = vsub.s32 7, %v9742
    %v9744 = vrot.slane %v9707, %v9743
    %v9745 = vlaneseq
    %v9746 = vshrl.u32 %v9745, 7
    %v9747 = vsub.s32 0, %v9746
    %v9748 = vrot.slane %v9708, %v9747
    %v9749 = vlaneseq
    %v9750 = vshrl.u32 %v9749, 7
    %v9751 = vsub.s32 1, %v9750
    %v9752 = vrot.slane %v9708, %v9751
    %v9753 = vlaneseq
    %v9754 = vshrl.u32 %v9753, 7
    %v9755 = vsub.s32 2, %v9754
    %v9756 = vrot.slane %v9708, %v9755
    %v9757 = vlaneseq
    %v9758 = vshrl.u32 %v9757, 7
    %v9759 = vsub.s32 3, %v9758
    %v9760 = vrot.slane %v9708, %v9759
    %v9761 = vlaneseq
    %v9762 = vshrl.u32 %v9761, 7
    %v9763 = vsub.s32 4, %v9762
    %v9764 = vrot.slane %v9708, %v9763
    %v9765 = vlaneseq
    %v9766 = vshrl.u32 %v9765, 7
    %v9767 = vsub.s32 5, %v9766
    %v9768 = vrot.slane %v9708, %v9767
    %v9769 = vlaneseq
    %v9770 = vshrl.u32 %v9769, 7
    %v9771 = vsub.s32 6, %v9770
    %v9772 = vrot.slane %v9708, %v9771
    %v9773 = vlaneseq
    %v9774 = vshrl.u32 %v9773, 7
    %v9775 = vsub.s32 7, %v9774
    %v9776 = vrot.slane %v9708, %v9775
    %v9777 = vlaneseq
    %v9778 = vshrl.u32 %v9777, 7
    %v9779 = vsub.s32 0, %v9778
    %v9780 = vrot.slane %v9709, %v9779
    %v9781 = vlaneseq
    %v9782 = vshrl.u32 %v9781, 7
    %v9783 = vsub.s32 1, %v9782
    %v9784 = vrot.slane %v9709, %v9783
    %v9803 = vmul.f32 %v9522, %v9716
    %v9804 = vmul.f32 %v9523, %v9720
    %v9805 = vmul.f32 %v9524, %v9724
    %v9806 = vmul.f32 %v9525, %v9728
    %v9807 = vmul.f32 %v9526, %v9732
    %v9808 = vmul.f32 %v9527, %v9736
    %v9809 = vmul.f32 %v9528, %v9740
    %v9810 = vmul.f32 %v9529, %v9744
    %v9811 = vmul.f32 %v9530, %v9748
    %v9812 = vmul.f32 %v9531, %v9752
    %v9813 = vmul.f32 %v9532, %v9756
    %v9814 = vmul.f32 %v9533, %v9760
    %v9815 = vmul.f32 %v9534, %v9764
    %v9816 = vmul.f32 %v9535, %v9768
    %v9817 = vmul.f32 %v9536, %v9772
    %v9818 = vmul.f32 %v9537, %v9776
    %v9819 = vmul.f32 %v9538, %v9780
    %v9820 = vmul.f32 %v9539, %v9784
    %v9822 = vlaneseq
    %v9823 = vshrl.u32 %v9822, 7
    %v9824 = vsub.s32 0, %v9823
    %v9825 = vrot.slane %v9280, %v9824
    %v9826 = vcombine.high %v9825, %v9825
    %v9828 = vunpack.c.l.s4 1966171168
    %v9829 = vunpack.c.0.s8 %v9828
    %v9830 = vlaneseq
    %v9831 = vshrl.u32 %v9830, 7
    %v9832 = vsub.s32 %v9829, %v9831
    %v9833 = vrot.slane %v9825, %v9832
    %v9835 = vunpack.c.l.s4 1966171168
    %v9836 = vunpack.c.0.s8 %v9835
    %v9837 = vlaneseq
    %v9838 = vshrl.u32 %v9837, 7
    %v9839 = vsub.s32 %v9836, %v9838
    %v9840 = vrot.slane %v9826, %v9839
    %v9841 = vcombine.high %v9833, %v9833
    %v9842 = vcombine.high %v9840, %v9840
    %v9844 = vunpack.c.l.s4 1966171168
    %v9845 = vunpack.c.0.s8 %v9844
    %v9846 = vlaneseq
    %v9847 = vshrl.u32 %v9846, 7
    %v9848 = vsub.s32 %v9845, %v9847
    %v9849 = vrot.slane %v9833, %v9848
    %v9851 = vunpack.c.l.s4 1966171168
    %v9852 = vunpack.c.0.s8 %v9851
    %v9853 = vlaneseq
    %v9854 = vshrl.u32 %v9853, 7
    %v9855 = vsub.s32 %v9852, %v9854
    %v9856 = vrot.slane %v9840, %v9855
    %v9858 = vunpack.c.l.s4 1966171168
    %v9859 = vunpack.c.0.s8 %v9858
    %v9860 = vlaneseq
    %v9861 = vshrl.u32 %v9860, 7
    %v9862 = vsub.s32 %v9859, %v9861
    %v9863 = vrot.slane %v9841, %v9862
    %v9865 = vunpack.c.l.s4 1966171168
    %v9866 = vunpack.c.0.s8 %v9865
    %v9867 = vlaneseq
    %v9868 = vshrl.u32 %v9867, 7
    %v9869 = vsub.s32 %v9866, %v9868
    %v9870 = vrot.slane %v9842, %v9869
    %v9871 = vcombine.high %v9849, %v9849
    %v9872 = vcombine.high %v9856, %v9856
    %v9873 = vcombine.high %v9863, %v9863
    %v9874 = vcombine.high %v9870, %v9870
    %v9883 = vmul.f32 %v9803, %v9849
    %v9884 = vmul.f32 %v9804, %v9863
    %v9885 = vmul.f32 %v9805, %v9871
    %v9886 = vmul.f32 %v9806, %v9873
    %v9887 = vmul.f32 %v9807, %v9856
    %v9888 = vmul.f32 %v9808, %v9870
    %v9889 = vmul.f32 %v9809, %v9872
    %v9890 = vmul.f32 %v9810, %v9874
    %v9891 = vmul.f32 %v9811, %v9849
    %v9892 = vmul.f32 %v9812, %v9863
    %v9893 = vmul.f32 %v9813, %v9871
    %v9894 = vmul.f32 %v9814, %v9873
    %v9895 = vmul.f32 %v9815, %v9856
    %v9896 = vmul.f32 %v9816, %v9870
    %v9897 = vmul.f32 %v9817, %v9872
    %v9898 = vmul.f32 %v9818, %v9874
    %v9899 = vmul.f32 %v9819, %v9849
    %v9900 = vmul.f32 %v9820, %v9863
    %v9902 = vlaneseq
    %v9903 = vshrl.u32 %v9902, 7
    %v9904 = vsub.s32 0, %v9903
    %v9905 = vrot.slane %v9282, %v9904
    %v9906 = vcombine.high %v9905, %v9905
    %v9908 = vunpack.c.l.s4 1966171168
    %v9909 = vunpack.c.0.s8 %v9908
    %v9910 = vlaneseq
    %v9911 = vshrl.u32 %v9910, 7
    %v9912 = vsub.s32 %v9909, %v9911
    %v9913 = vrot.slane %v9905, %v9912
    %v9915 = vunpack.c.l.s4 1966171168
    %v9916 = vunpack.c.0.s8 %v9915
    %v9917 = vlaneseq
    %v9918 = vshrl.u32 %v9917, 7
    %v9919 = vsub.s32 %v9916, %v9918
    %v9920 = vrot.slane %v9906, %v9919
    %v9921 = vcombine.high %v9913, %v9913
    %v9922 = vcombine.high %v9920, %v9920
    %v9924 = vunpack.c.l.s4 1966171168
    %v9925 = vunpack.c.0.s8 %v9924
    %v9926 = vlaneseq
    %v9927 = vshrl.u32 %v9926, 7
    %v9928 = vsub.s32 %v9925, %v9927
    %v9929 = vrot.slane %v9913, %v9928
    %v9931 = vunpack.c.l.s4 1966171168
    %v9932 = vunpack.c.0.s8 %v9931
    %v9933 = vlaneseq
    %v9934 = vshrl.u32 %v9933, 7
    %v9935 = vsub.s32 %v9932, %v9934
    %v9936 = vrot.slane %v9920, %v9935
    %v9938 = vunpack.c.l.s4 1966171168
    %v9939 = vunpack.c.0.s8 %v9938
    %v9940 = vlaneseq
    %v9941 = vshrl.u32 %v9940, 7
    %v9942 = vsub.s32 %v9939, %v9941
    %v9943 = vrot.slane %v9921, %v9942
    %v9945 = vunpack.c.l.s4 1966171168
    %v9946 = vunpack.c.0.s8 %v9945
    %v9947 = vlaneseq
    %v9948 = vshrl.u32 %v9947, 7
    %v9949 = vsub.s32 %v9946, %v9948
    %v9950 = vrot.slane %v9922, %v9949
    %v9951 = vcombine.high %v9929, %v9929
    %v9952 = vcombine.high %v9936, %v9936
    %v9953 = vcombine.high %v9943, %v9943
    %v9954 = vcombine.high %v9950, %v9950
    %v9963 = vadd.f32 %v9883, %v9929
    %v9964 = vadd.f32 %v9884, %v9943
    %v9965 = vadd.f32 %v9885, %v9951
    %v9966 = vadd.f32 %v9886, %v9953
    %v9967 = vadd.f32 %v9887, %v9936
    %v9968 = vadd.f32 %v9888, %v9950
    %v9969 = vadd.f32 %v9889, %v9952
    %v9970 = vadd.f32 %v9890, %v9954
    %v9971 = vadd.f32 %v9891, %v9929
    %v9972 = vadd.f32 %v9892, %v9943
    %v9973 = vadd.f32 %v9893, %v9951
    %v9974 = vadd.f32 %v9894, %v9953
    %v9975 = vadd.f32 %v9895, %v9936
    %v9976 = vadd.f32 %v9896, %v9950
    %v9977 = vadd.f32 %v9897, %v9952
    %v9978 = vadd.f32 %v9898, %v9954
    %v9979 = vadd.f32 %v9899, %v9929
    %v9980 = vadd.f32 %v9900, %v9943
    %s9981 = scalar_lea.vmem %s9, 32
    %v9982 = vld [vmem:[%s9981] sm:$0xff]
    %v9983 = vld [vmem:[%s9981 + $0x8] sm:$0xff]
    %v9984 = vld [vmem:[%s9981 + $0x10] sm:$0xff]
    %v9985 = vld [vmem:[%s9981 + $0x18] sm:$0xff]
    %s9986 = scalar_lea.vmem %s10, 1
    %v9987 = vld [vmem:[%s9986] sm:$0x1]
    %v9989 = vlaneseq
    %v9990 = vshrl.u32 %v9989, 7
    %v9991 = vsub.s32 0, %v9990
    %v9992 = vrot.slane %v9987, %v9991
    %v10012 = vcombine.low %v9963, %v9964
    %v10013 = vcombine.low %v9965, %v9966
    %v10014 = vcombine.low %v9967, %v9968
    %v10015 = vcombine.low %v9969, %v9970
    %v10017 = vunpack.c.l.s4 1966171168
    %v10018 = vunpack.c.0.s8 %v10017
    %v10019 = vlaneseq
    %v10020 = vshrl.u32 %v10019, 7
    %v10021 = vsub.s32 %v10018, %v10020
    %v10022 = vrot.slane %v10012, %v10021
    %v10024 = vunpack.c.l.s4 1966171168
    %v10025 = vunpack.c.0.s8 %v10024
    %v10026 = vlaneseq
    %v10027 = vshrl.u32 %v10026, 7
    %v10028 = vsub.s32 %v10025, %v10027
    %v10029 = vrot.slane %v10013, %v10028
    %v10031 = vunpack.c.l.s4 1966171168
    %v10032 = vunpack.c.0.s8 %v10031
    %v10033 = vlaneseq
    %v10034 = vshrl.u32 %v10033, 7
    %v10035 = vsub.s32 %v10032, %v10034
    %v10036 = vrot.slane %v10014, %v10035
    %v10038 = vunpack.c.l.s4 1966171168
    %v10039 = vunpack.c.0.s8 %v10038
    %v10040 = vlaneseq
    %v10041 = vshrl.u32 %v10040, 7
    %v10042 = vsub.s32 %v10039, %v10041
    %v10043 = vrot.slane %v10015, %v10042
    %v10044 = vcombine.low %v10022, %v10029
    %v10045 = vcombine.low %v10036, %v10043
    %v10047 = vunpack.c.l.s4 1966171168
    %v10048 = vunpack.c.0.s8 %v10047
    %v10049 = vlaneseq
    %v10050 = vshrl.u32 %v10049, 7
    %v10051 = vsub.s32 %v10048, %v10050
    %v10052 = vrot.slane %v10044, %v10051
    %v10054 = vunpack.c.l.s4 1966171168
    %v10055 = vunpack.c.0.s8 %v10054
    %v10056 = vlaneseq
    %v10057 = vshrl.u32 %v10056, 7
    %v10058 = vsub.s32 %v10055, %v10057
    %v10059 = vrot.slane %v10045, %v10058
    %v10060 = vcombine.low %v10052, %v10059
    %v10061 = vcombine.low %v9971, %v9972
    %v10062 = vcombine.low %v9973, %v9974
    %v10063 = vcombine.low %v9975, %v9976
    %v10064 = vcombine.low %v9977, %v9978
    %v10066 = vunpack.c.l.s4 1966171168
    %v10067 = vunpack.c.0.s8 %v10066
    %v10068 = vlaneseq
    %v10069 = vshrl.u32 %v10068, 7
    %v10070 = vsub.s32 %v10067, %v10069
    %v10071 = vrot.slane %v10061, %v10070
    %v10073 = vunpack.c.l.s4 1966171168
    %v10074 = vunpack.c.0.s8 %v10073
    %v10075 = vlaneseq
    %v10076 = vshrl.u32 %v10075, 7
    %v10077 = vsub.s32 %v10074, %v10076
    %v10078 = vrot.slane %v10062, %v10077
    %v10080 = vunpack.c.l.s4 1966171168
    %v10081 = vunpack.c.0.s8 %v10080
    %v10082 = vlaneseq
    %v10083 = vshrl.u32 %v10082, 7
    %v10084 = vsub.s32 %v10081, %v10083
    %v10085 = vrot.slane %v10063, %v10084
    %v10087 = vunpack.c.l.s4 1966171168
    %v10088 = vunpack.c.0.s8 %v10087
    %v10089 = vlaneseq
    %v10090 = vshrl.u32 %v10089, 7
    %v10091 = vsub.s32 %v10088, %v10090
    %v10092 = vrot.slane %v10064, %v10091
    %v10093 = vcombine.low %v10071, %v10078
    %v10094 = vcombine.low %v10085, %v10092
    %v10096 = vunpack.c.l.s4 1966171168
    %v10097 = vunpack.c.0.s8 %v10096
    %v10098 = vlaneseq
    %v10099 = vshrl.u32 %v10098, 7
    %v10100 = vsub.s32 %v10097, %v10099
    %v10101 = vrot.slane %v10093, %v10100
    %v10103 = vunpack.c.l.s4 1966171168
    %v10104 = vunpack.c.0.s8 %v10103
    %v10105 = vlaneseq
    %v10106 = vshrl.u32 %v10105, 7
    %v10107 = vsub.s32 %v10104, %v10106
    %v10108 = vrot.slane %v10094, %v10107
    %v10109 = vcombine.low %v10101, %v10108
    %v10110 = vcombine.low %v9979, %v9980
    %v10112 = vunpack.c.l.s4 1966171168
    %v10113 = vunpack.c.0.s8 %v10112
    %v10114 = vlaneseq
    %v10115 = vshrl.u32 %v10114, 7
    %v10116 = vsub.s32 %v10113, %v10115
    %v10117 = vrot.slane %v10110, %v10116
    %v10119 = vunpack.c.l.s4 1966171168
    %v10120 = vunpack.c.0.s8 %v10119
    %v10121 = vlaneseq
    %v10122 = vshrl.u32 %v10121, 7
    %v10123 = vsub.s32 %v10120, %v10122
    %v10124 = vrot.slane %v10117, %v10123
    %v10125 = vsel %vm360, %v10060, 0
    %v10127 = vsel %vm360, %v10109, 0
    %v10129 = vsel %vm360, %v10124, 0
    %10131 = vmatprep.subr.mxu0 0.0
    %10132 = vmatpush1.msra.mxu0 0.0
    %10133 = vmatprep.subr.mxu0 0.0
    %10134 = vmatpush1.msra.mxu0 0.0
    %10135 = vmatprep.subr.mxu0 0.0
    %10136 = vmatpush1.msra.mxu0 0.0
    %10137 = vmatprep.subr.mxu0 0.0
    %10138 = vmatpush1.msra.mxu0 0.0
    %10139 = vmatprep.subr.mxu0 0.0
    %10140 = vmatpush1.msra.mxu0 0.0
    %10141 = vmatprep.subr.mxu0 0.0
    %10142 = vmatpush1.msra.mxu0 0.0
    %10143 = vmatprep.subr.mxu0 0.0
    %10144 = vmatpush1.msra.mxu0 0.0
    %10145 = vmatprep.subr.mxu0 0.0
    %10146 = vmatpush1.msra.mxu0 0.0
    %10147 = vmatprep.subr.mxu0 0.0
    %10148 = vmatpush1.msra.mxu0 0.0
    %10149 = vmatprep.subr.mxu0 0.0
    %10150 = vmatpush1.msra.mxu0 0.0
    %10151 = vmatprep.subr.mxu0 0.0
    %10152 = vmatpush1.msra.mxu0 0.0
    %10153 = vmatprep.subr.mxu0 0.0
    %10154 = vmatpush1.msra.mxu0 0.0
    %10155 = vmatprep.subr.mxu0 0.0
    %10156 = vmatpush1.msra.mxu0 %v9985
    %10157 = vmatprep.subr.mxu0 0.0
    %10158 = vmatpush1.msra.mxu0 %v9984
    %10159 = vmatprep.subr.mxu0 0.0
    %10160 = vmatpush1.msra.mxu0 %v9983
    %10161 = vmatprep.subr.mxu0 0.0
    %10162 = vmatpush1.msra.mxu0 %v9982
    %10163 = vmatprep.subr.mxu0 0.0
    %10164 = vmatpush2.msra.mxu0 0.0
    %10165 = vmatprep.subr.mxu0 0.0
    %10166 = vmatpush2.msra.mxu0 0.0
    %10167 = vmatprep.subr.mxu0 0.0
    %10168 = vmatpush2.msra.mxu0 0.0
    %10169 = vmatprep.subr.mxu0 0.0
    %10170 = vmatpush2.msra.mxu0 0.0
    %10171 = vmatprep.subr.mxu0 0.0
    %10172 = vmatpush2.msra.mxu0 0.0
    %10173 = vmatprep.subr.mxu0 0.0
    %10174 = vmatpush2.msra.mxu0 0.0
    %10175 = vmatprep.subr.mxu0 0.0
    %10176 = vmatpush2.msra.mxu0 0.0
    %10177 = vmatprep.subr.mxu0 0.0
    %10178 = vmatpush2.msra.mxu0 0.0
    %10179 = vmatprep.subr.mxu0 0.0
    %10180 = vmatpush2.msra.mxu0 0.0
    %10181 = vmatprep.subr.mxu0 0.0
    %10182 = vmatpush2.msra.mxu0 0.0
    %10183 = vmatprep.subr.mxu0 0.0
    %10184 = vmatpush2.msra.mxu0 0.0
    %10185 = vmatprep.subr.mxu0 0.0
    %10186 = vmatpush2.msra.mxu0 0.0
    %10187 = vmatprep.subr.mxu0 0.0
    %10188 = vmatpush2.msra.mxu0 0.0
    %10189 = vmatprep.subr.mxu0 0.0
    %10190 = vmatpush2.msra.mxu0 0.0
    %10191 = vmatprep.subr.mxu0 0.0
    %10192 = vmatpush2.msra.mxu0 0.0
    %10193 = vmatprep.subr.mxu0 0.0
    %10194 = vmatpush2.msra.mxu0 0.0
    %10195 = vmatprep.mubr.f32.mxu0 0.0
    %10196 = vmatmul.mubr.f32.gmra.mxu0 %v10125
    %v10197 = vpop.f32.mrf.mxu0
    %v10198 = vadd.f32 %v9992, %v10197
    %v10199 = vpop.f32.mrf.mxu0
    %10200 = vmatprep.mubr.f32.mxu0 0.0
    %10201 = vmatmul.mubr.f32.gmra.mxu0 %v10127
    %v10202 = vpop.f32.mrf.mxu0
    %v10203 = vadd.f32 %v9992, %v10202
    %v10204 = vpop.f32.mrf.mxu0
    %10205 = vmatprep.mubr.f32.mxu0 0.0
    %10206 = vmatmul.mubr.f32.gmra.mxu0 %v10129
    %v10207 = vpop.f32.mrf.mxu0
    %v10208 = vadd.f32 %v9992, %v10207
    %v10209 = vpop.f32.mrf.mxu0
    %10210 = vdwg.mxu0
    %v10211 = vmul.f32 %v10198, 0.5
    %v10212 = vmul.f32 %v10203, 0.5
    %v10213 = vmul.f32 %v10208, 0.5
    %v10214 = vmul.f32 %v10198, 0.70710677
    %v10215 = vmul.f32 %v10203, 0.70710677
    %v10216 = vmul.f32 %v10208, 0.70710677
    %v10217 = verf.f32.pop %v10214
    %v10218 = verf.f32.pop %v10215
    %v10219 = verf.f32.pop %v10216
    %v10220 = vadd.f32 %v10217, 1.0
    %v10221 = vadd.f32 %v10218, 1.0
    %v10222 = vadd.f32 %v10219, 1.0
    %v10223 = vmul.f32 %v10211, %v10220
    %v10224 = vmul.f32 %v10212, %v10221
    %v10225 = vmul.f32 %v10213, %v10222
    %s10226 = scalar_lea.vmem %s11, 64
    %v10227 = vld [vmem:[%s10226] sm:$0xff]
    %v10228 = vld [vmem:[%s10226 + $0x8] sm:$0xff]
    %v10229 = vld [vmem:[%s10226 + $0x10] sm:$0xff]
    %v10230 = vld [vmem:[%s10226 + $0x18] sm:$0xff]
    %v10231 = vld [vmem:[%s10226 + $0x20] sm:$0xff]
    %v10232 = vld [vmem:[%s10226 + $0x28] sm:$0xff]
    %v10233 = vld [vmem:[%s10226 + $0x30] sm:$0xff]
    %v10234 = vld [vmem:[%s10226 + $0x38] sm:$0xff]
    %s10235 = scalar_lea.vmem %s12, 1
    %v10236 = vld [vmem:[%s10235] sm:$0x1]
    %v10238 = vlaneseq
    %v10239 = vshrl.u32 %v10238, 7
    %v10240 = vsub.s32 0, %v10239
    %v10241 = vrot.slane %v10236, %v10240
    %v10244 = vsel %vm4754, %v10223, 0
    %v10247 = vsel %vm4754, %v10224, 0
    %v10250 = vsel %vm4754, %v10225, 0
    %10252 = vmatprep.subr.mxu0 0.0
    %10253 = vmatpush1.msra.mxu0 0.0
    %10254 = vmatprep.subr.mxu0 0.0
    %10255 = vmatpush1.msra.mxu0 0.0
    %10256 = vmatprep.subr.mxu0 0.0
    %10257 = vmatpush1.msra.mxu0 0.0
    %10258 = vmatprep.subr.mxu0 0.0
    %10259 = vmatpush1.msra.mxu0 0.0
    %10260 = vmatprep.subr.mxu0 0.0
    %10261 = vmatpush1.msra.mxu0 0.0
    %10262 = vmatprep.subr.mxu0 0.0
    %10263 = vmatpush1.msra.mxu0 0.0
    %10264 = vmatprep.subr.mxu0 0.0
    %10265 = vmatpush1.msra.mxu0 0.0
    %10266 = vmatprep.subr.mxu0 0.0
    %10267 = vmatpush1.msra.mxu0 0.0
    %10268 = vmatprep.subr.mxu0 0.0
    %10269 = vmatpush1.msra.mxu0 %v10234
    %10270 = vmatprep.subr.mxu0 0.0
    %10271 = vmatpush1.msra.mxu0 %v10233
    %10272 = vmatprep.subr.mxu0 0.0
    %10273 = vmatpush1.msra.mxu0 %v10232
    %10274 = vmatprep.subr.mxu0 0.0
    %10275 = vmatpush1.msra.mxu0 %v10231
    %10276 = vmatprep.subr.mxu0 0.0
    %10277 = vmatpush1.msra.mxu0 %v10230
    %10278 = vmatprep.subr.mxu0 0.0
    %10279 = vmatpush1.msra.mxu0 %v10229
    %10280 = vmatprep.subr.mxu0 0.0
    %10281 = vmatpush1.msra.mxu0 %v10228
    %10282 = vmatprep.subr.mxu0 0.0
    %10283 = vmatpush1.msra.mxu0 %v10227
    %10284 = vmatprep.subr.mxu0 0.0
    %10285 = vmatpush2.msra.mxu0 0.0
    %10286 = vmatprep.subr.mxu0 0.0
    %10287 = vmatpush2.msra.mxu0 0.0
    %10288 = vmatprep.subr.mxu0 0.0
    %10289 = vmatpush2.msra.mxu0 0.0
    %10290 = vmatprep.subr.mxu0 0.0
    %10291 = vmatpush2.msra.mxu0 0.0
    %10292 = vmatprep.subr.mxu0 0.0
    %10293 = vmatpush2.msra.mxu0 0.0
    %10294 = vmatprep.subr.mxu0 0.0
    %10295 = vmatpush2.msra.mxu0 0.0
    %10296 = vmatprep.subr.mxu0 0.0
    %10297 = vmatpush2.msra.mxu0 0.0
    %10298 = vmatprep.subr.mxu0 0.0
    %10299 = vmatpush2.msra.mxu0 0.0
    %10300 = vmatprep.subr.mxu0 0.0
    %10301 = vmatpush2.msra.mxu0 0.0
    %10302 = vmatprep.subr.mxu0 0.0
    %10303 = vmatpush2.msra.mxu0 0.0
    %10304 = vmatprep.subr.mxu0 0.0
    %10305 = vmatpush2.msra.mxu0 0.0
    %10306 = vmatprep.subr.mxu0 0.0
    %10307 = vmatpush2.msra.mxu0 0.0
    %10308 = vmatprep.subr.mxu0 0.0
    %10309 = vmatpush2.msra.mxu0 0.0
    %10310 = vmatprep.subr.mxu0 0.0
    %10311 = vmatpush2.msra.mxu0 0.0
    %10312 = vmatprep.subr.mxu0 0.0
    %10313 = vmatpush2.msra.mxu0 0.0
    %10314 = vmatprep.subr.mxu0 0.0
    %10315 = vmatpush2.msra.mxu0 0.0
    %10316 = vmatprep.mubr.f32.mxu0 0.0
    %10317 = vmatmul.mubr.f32.gmra.mxu0 %v10244
    %v10318 = vpop.f32.mrf.mxu0
    %v10319 = vadd.f32 %v10241, %v10318
    %v10320 = vpop.f32.mrf.mxu0
    %10321 = vmatprep.mubr.f32.mxu0 0.0
    %10322 = vmatmul.mubr.f32.gmra.mxu0 %v10247
    %v10323 = vpop.f32.mrf.mxu0
    %v10324 = vadd.f32 %v10241, %v10323
    %v10325 = vpop.f32.mrf.mxu0
    %10326 = vmatprep.mubr.f32.mxu0 0.0
    %10327 = vmatmul.mubr.f32.gmra.mxu0 %v10250
    %v10328 = vpop.f32.mrf.mxu0
    %v10329 = vpop.f32.mrf.mxu0
    %10330 = vdwg.mxu0
    %v10333 = vcombine.high %v10319, %v10319
    %v10335 = vunpack.c.l.s4 1966171168
    %v10336 = vunpack.c.0.s8 %v10335
    %v10337 = vlaneseq
    %v10338 = vshrl.u32 %v10337, 7
    %v10339 = vsub.s32 %v10336, %v10338
    %v10340 = vrot.slane %v10319, %v10339
    %v10342 = vunpack.c.l.s4 1966171168
    %v10343 = vunpack.c.0.s8 %v10342
    %v10344 = vlaneseq
    %v10345 = vshrl.u32 %v10344, 7
    %v10346 = vsub.s32 %v10343, %v10345
    %v10347 = vrot.slane %v10333, %v10346
    %v10348 = vcombine.high %v10340, %v10340
    %v10349 = vcombine.high %v10347, %v10347
    %v10351 = vunpack.c.l.s4 1966171168
    %v10352 = vunpack.c.0.s8 %v10351
    %v10353 = vlaneseq
    %v10354 = vshrl.u32 %v10353, 7
    %v10355 = vsub.s32 %v10352, %v10354
    %v10356 = vrot.slane %v10340, %v10355
    %v10358 = vunpack.c.l.s4 1966171168
    %v10359 = vunpack.c.0.s8 %v10358
    %v10360 = vlaneseq
    %v10361 = vshrl.u32 %v10360, 7
    %v10362 = vsub.s32 %v10359, %v10361
    %v10363 = vrot.slane %v10347, %v10362
    %v10365 = vunpack.c.l.s4 1966171168
    %v10366 = vunpack.c.0.s8 %v10365
    %v10367 = vlaneseq
    %v10368 = vshrl.u32 %v10367, 7
    %v10369 = vsub.s32 %v10366, %v10368
    %v10370 = vrot.slane %v10348, %v10369
    %v10372 = vunpack.c.l.s4 1966171168
    %v10373 = vunpack.c.0.s8 %v10372
    %v10374 = vlaneseq
    %v10375 = vshrl.u32 %v10374, 7
    %v10376 = vsub.s32 %v10373, %v10375
    %v10377 = vrot.slane %v10349, %v10376
    %v10378 = vcombine.high %v10356, %v10356
    %v10379 = vcombine.high %v10363, %v10363
    %v10380 = vcombine.high %v10370, %v10370
    %v10381 = vcombine.high %v10377, %v10377
    %v10382 = vcombine.high %v10324, %v10324
    %v10384 = vunpack.c.l.s4 1966171168
    %v10385 = vunpack.c.0.s8 %v10384
    %v10386 = vlaneseq
    %v10387 = vshrl.u32 %v10386, 7
    %v10388 = vsub.s32 %v10385, %v10387
    %v10389 = vrot.slane %v10324, %v10388
    %v10391 = vunpack.c.l.s4 1966171168
    %v10392 = vunpack.c.0.s8 %v10391
    %v10393 = vlaneseq
    %v10394 = vshrl.u32 %v10393, 7
    %v10395 = vsub.s32 %v10392, %v10394
    %v10396 = vrot.slane %v10382, %v10395
    %v10397 = vcombine.high %v10389, %v10389
    %v10398 = vcombine.high %v10396, %v10396
    %v10400 = vunpack.c.l.s4 1966171168
    %v10401 = vunpack.c.0.s8 %v10400
    %v10402 = vlaneseq
    %v10403 = vshrl.u32 %v10402, 7
    %v10404 = vsub.s32 %v10401, %v10403
    %v10405 = vrot.slane %v10389, %v10404
    %v10407 = vunpack.c.l.s4 1966171168
    %v10408 = vunpack.c.0.s8 %v10407
    %v10409 = vlaneseq
    %v10410 = vshrl.u32 %v10409, 7
    %v10411 = vsub.s32 %v10408, %v10410
    %v10412 = vrot.slane %v10396, %v10411
    %v10414 = vunpack.c.l.s4 1966171168
    %v10415 = vunpack.c.0.s8 %v10414
    %v10416 = vlaneseq
    %v10417 = vshrl.u32 %v10416, 7
    %v10418 = vsub.s32 %v10415, %v10417
    %v10419 = vrot.slane %v10397, %v10418
    %v10421 = vunpack.c.l.s4 1966171168
    %v10422 = vunpack.c.0.s8 %v10421
    %v10423 = vlaneseq
    %v10424 = vshrl.u32 %v10423, 7
    %v10425 = vsub.s32 %v10422, %v10424
    %v10426 = vrot.slane %v10398, %v10425
    %v10427 = vcombine.high %v10405, %v10405
    %v10428 = vcombine.high %v10412, %v10412
    %v10429 = vcombine.high %v10419, %v10419
    %v10430 = vcombine.high %v10426, %v10426
    %v10447 = vadd.f32 %v9963, %v10356
    %v10448 = vadd.f32 %v9964, %v10370
    %v10449 = vadd.f32 %v9965, %v10378
    %v10450 = vadd.f32 %v9966, %v10380
    %v10451 = vadd.f32 %v9967, %v10363
    %v10452 = vadd.f32 %v9968, %v10377
    %v10453 = vadd.f32 %v9969, %v10379
    %v10454 = vadd.f32 %v9970, %v10381
    %v10455 = vadd.f32 %v9971, %v10405
    %v10456 = vadd.f32 %v9972, %v10419
    %v10457 = vadd.f32 %v9973, %v10427
    %v10458 = vadd.f32 %v9974, %v10429
    %v10459 = vadd.f32 %v9975, %v10412
    %v10460 = vadd.f32 %v9976, %v10426
    %v10461 = vadd.f32 %v9977, %v10428
    %v10462 = vadd.f32 %v9978, %v10430
    %s10463 = scalar_lea.vmem %s13, 1
    %v10464 = vld [vmem:[%s10463] sm:$0x1]
    %s10465 = scalar_lea.vmem %s14, 1
    %v10466 = vld [vmem:[%s10465] sm:$0x1]
    %v10483 = vcombine.low %v10447, %v10448
    %v10484 = vcombine.low %v10449, %v10450
    %v10485 = vcombine.low %v10451, %v10452
    %v10486 = vcombine.low %v10453, %v10454
    %v10488 = vunpack.c.l.s4 1966171168
    %v10489 = vunpack.c.0.s8 %v10488
    %v10490 = vlaneseq
    %v10491 = vshrl.u32 %v10490, 7
    %v10492 = vsub.s32 %v10489, %v10491
    %v10493 = vrot.slane %v10483, %v10492
    %v10495 = vunpack.c.l.s4 1966171168
    %v10496 = vunpack.c.0.s8 %v10495
    %v10497 = vlaneseq
    %v10498 = vshrl.u32 %v10497, 7
    %v10499 = vsub.s32 %v10496, %v10498
    %v10500 = vrot.slane %v10484, %v10499
    %v10502 = vunpack.c.l.s4 1966171168
    %v10503 = vunpack.c.0.s8 %v10502
    %v10504 = vlaneseq
    %v10505 = vshrl.u32 %v10504, 7
    %v10506 = vsub.s32 %v10503, %v10505
    %v10507 = vrot.slane %v10485, %v10506
    %v10509 = vunpack.c.l.s4 1966171168
    %v10510 = vunpack.c.0.s8 %v10509
    %v10511 = vlaneseq
    %v10512 = vshrl.u32 %v10511, 7
    %v10513 = vsub.s32 %v10510, %v10512
    %v10514 = vrot.slane %v10486, %v10513
    %v10515 = vcombine.low %v10493, %v10500
    %v10516 = vcombine.low %v10507, %v10514
    %v10518 = vunpack.c.l.s4 1966171168
    %v10519 = vunpack.c.0.s8 %v10518
    %v10520 = vlaneseq
    %v10521 = vshrl.u32 %v10520, 7
    %v10522 = vsub.s32 %v10519, %v10521
    %v10523 = vrot.slane %v10515, %v10522
    %v10525 = vunpack.c.l.s4 1966171168
    %v10526 = vunpack.c.0.s8 %v10525
    %v10527 = vlaneseq
    %v10528 = vshrl.u32 %v10527, 7
    %v10529 = vsub.s32 %v10526, %v10528
    %v10530 = vrot.slane %v10516, %v10529
    %v10531 = vcombine.low %v10523, %v10530
    %v10532 = vcombine.low %v10455, %v10456
    %v10533 = vcombine.low %v10457, %v10458
    %v10534 = vcombine.low %v10459, %v10460
    %v10535 = vcombine.low %v10461, %v10462
    %v10537 = vunpack.c.l.s4 1966171168
    %v10538 = vunpack.c.0.s8 %v10537
    %v10539 = vlaneseq
    %v10540 = vshrl.u32 %v10539, 7
    %v10541 = vsub.s32 %v10538, %v10540
    %v10542 = vrot.slane %v10532, %v10541
    %v10544 = vunpack.c.l.s4 1966171168
    %v10545 = vunpack.c.0.s8 %v10544
    %v10546 = vlaneseq
    %v10547 = vshrl.u32 %v10546, 7
    %v10548 = vsub.s32 %v10545, %v10547
    %v10549 = vrot.slane %v10533, %v10548
    %v10551 = vunpack.c.l.s4 1966171168
    %v10552 = vunpack.c.0.s8 %v10551
    %v10553 = vlaneseq
    %v10554 = vshrl.u32 %v10553, 7
    %v10555 = vsub.s32 %v10552, %v10554
    %v10556 = vrot.slane %v10534, %v10555
    %v10558 = vunpack.c.l.s4 1966171168
    %v10559 = vunpack.c.0.s8 %v10558
    %v10560 = vlaneseq
    %v10561 = vshrl.u32 %v10560, 7
    %v10562 = vsub.s32 %v10559, %v10561
    %v10563 = vrot.slane %v10535, %v10562
    %v10564 = vcombine.low %v10542, %v10549
    %v10565 = vcombine.low %v10556, %v10563
    %v10567 = vunpack.c.l.s4 1966171168
    %v10568 = vunpack.c.0.s8 %v10567
    %v10569 = vlaneseq
    %v10570 = vshrl.u32 %v10569, 7
    %v10571 = vsub.s32 %v10568, %v10570
    %v10572 = vrot.slane %v10564, %v10571
    %v10574 = vunpack.c.l.s4 1966171168
    %v10575 = vunpack.c.0.s8 %v10574
    %v10576 = vlaneseq
    %v10577 = vshrl.u32 %v10576, 7
    %v10578 = vsub.s32 %v10575, %v10577
    %v10579 = vrot.slane %v10565, %v10578
    %v10580 = vcombine.low %v10572, %v10579
    %v10583 = vsel %vm360, %v10531, 0.0
    %10584 = vadd.xlane.f32.xlu0 %v10583
    %v10585 = vpop.xlane.xlu0 %10584
    %v10586 = vsel %vm360, %v10580, 0.0
    %10587 = vadd.xlane.f32.xlu0 %v10586
    %v10588 = vpop.xlane.xlu0 %10587
    %v10589 = vmul.f32 %v10585, %v3940
    %v10590 = vmul.f32 %v10588, %v3940
    %v10593 = vlaneseq
    %v10594 = vshrl.u32 %v10593, 7
    %v10595 = vsub.s32 0, %v10594
    %v10596 = vrot.slane %v10589, %v10595
    %v10597 = vlaneseq
    %v10598 = vshrl.u32 %v10597, 7
    %v10599 = vsub.s32 1, %v10598
    %v10600 = vrot.slane %v10589, %v10599
    %v10601 = vlaneseq
    %v10602 = vshrl.u32 %v10601, 7
    %v10603 = vsub.s32 2, %v10602
    %v10604 = vrot.slane %v10589, %v10603
    %v10605 = vlaneseq
    %v10606 = vshrl.u32 %v10605, 7
    %v10607 = vsub.s32 3, %v10606
    %v10608 = vrot.slane %v10589, %v10607
    %v10609 = vlaneseq
    %v10610 = vshrl.u32 %v10609, 7
    %v10611 = vsub.s32 4, %v10610
    %v10612 = vrot.slane %v10589, %v10611
    %v10613 = vlaneseq
    %v10614 = vshrl.u32 %v10613, 7
    %v10615 = vsub.s32 5, %v10614
    %v10616 = vrot.slane %v10589, %v10615
    %v10617 = vlaneseq
    %v10618 = vshrl.u32 %v10617, 7
    %v10619 = vsub.s32 6, %v10618
    %v10620 = vrot.slane %v10589, %v10619
    %v10621 = vlaneseq
    %v10622 = vshrl.u32 %v10621, 7
    %v10623 = vsub.s32 7, %v10622
    %v10624 = vrot.slane %v10589, %v10623
    %v10625 = vlaneseq
    %v10626 = vshrl.u32 %v10625, 7
    %v10627 = vsub.s32 0, %v10626
    %v10628 = vrot.slane %v10590, %v10627
    %v10629 = vlaneseq
    %v10630 = vshrl.u32 %v10629, 7
    %v10631 = vsub.s32 1, %v10630
    %v10632 = vrot.slane %v10590, %v10631
    %v10633 = vlaneseq
    %v10634 = vshrl.u32 %v10633, 7
    %v10635 = vsub.s32 2, %v10634
    %v10636 = vrot.slane %v10590, %v10635
    %v10637 = vlaneseq
    %v10638 = vshrl.u32 %v10637, 7
    %v10639 = vsub.s32 3, %v10638
    %v10640 = vrot.slane %v10590, %v10639
    %v10641 = vlaneseq
    %v10642 = vshrl.u32 %v10641, 7
    %v10643 = vsub.s32 4, %v10642
    %v10644 = vrot.slane %v10590, %v10643
    %v10645 = vlaneseq
    %v10646 = vshrl.u32 %v10645, 7
    %v10647 = vsub.s32 5, %v10646
    %v10648 = vrot.slane %v10590, %v10647
    %v10649 = vlaneseq
    %v10650 = vshrl.u32 %v10649, 7
    %v10651 = vsub.s32 6, %v10650
    %v10652 = vrot.slane %v10590, %v10651
    %v10653 = vlaneseq
    %v10654 = vshrl.u32 %v10653, 7
    %v10655 = vsub.s32 7, %v10654
    %v10656 = vrot.slane %v10590, %v10655
    %v10673 = vsub.f32 %v10447, %v10596
    %v10674 = vsub.f32 %v10448, %v10600
    %v10675 = vsub.f32 %v10449, %v10604
    %v10676 = vsub.f32 %v10450, %v10608
    %v10677 = vsub.f32 %v10451, %v10612
    %v10678 = vsub.f32 %v10452, %v10616
    %v10679 = vsub.f32 %v10453, %v10620
    %v10680 = vsub.f32 %v10454, %v10624
    %v10681 = vsub.f32 %v10455, %v10628
    %v10682 = vsub.f32 %v10456, %v10632
    %v10683 = vsub.f32 %v10457, %v10636
    %v10684 = vsub.f32 %v10458, %v10640
    %v10685 = vsub.f32 %v10459, %v10644
    %v10686 = vsub.f32 %v10460, %v10648
    %v10687 = vsub.f32 %v10461, %v10652
    %v10688 = vsub.f32 %v10462, %v10656
    %v10689 = vmul.f32 %v10673, %v10673
    %v10690 = vmul.f32 %v10674, %v10674
    %v10691 = vmul.f32 %v10675, %v10675
    %v10692 = vmul.f32 %v10676, %v10676
    %v10693 = vmul.f32 %v10677, %v10677
    %v10694 = vmul.f32 %v10678, %v10678
    %v10695 = vmul.f32 %v10679, %v10679
    %v10696 = vmul.f32 %v10680, %v10680
    %v10697 = vmul.f32 %v10681, %v10681
    %v10698 = vmul.f32 %v10682, %v10682
    %v10699 = vmul.f32 %v10683, %v10683
    %v10700 = vmul.f32 %v10684, %v10684
    %v10701 = vmul.f32 %v10685, %v10685
    %v10702 = vmul.f32 %v10686, %v10686
    %v10703 = vmul.f32 %v10687, %v10687
    %v10704 = vmul.f32 %v10688, %v10688
    %v10721 = vcombine.low %v10689, %v10690
    %v10722 = vcombine.low %v10691, %v10692
    %v10723 = vcombine.low %v10693, %v10694
    %v10724 = vcombine.low %v10695, %v10696
    %v10726 = vunpack.c.l.s4 1966171168
    %v10727 = vunpack.c.0.s8 %v10726
    %v10728 = vlaneseq
    %v10729 = vshrl.u32 %v10728, 7
    %v10730 = vsub.s32 %v10727, %v10729
    %v10731 = vrot.slane %v10721, %v10730
    %v10733 = vunpack.c.l.s4 1966171168
    %v10734 = vunpack.c.0.s8 %v10733
    %v10735 = vlaneseq
    %v10736 = vshrl.u32 %v10735, 7
    %v10737 = vsub.s32 %v10734, %v10736
    %v10738 = vrot.slane %v10722, %v10737
    %v10740 = vunpack.c.l.s4 1966171168
    %v10741 = vunpack.c.0.s8 %v10740
    %v10742 = vlaneseq
    %v10743 = vshrl.u32 %v10742, 7
    %v10744 = vsub.s32 %v10741, %v10743
    %v10745 = vrot.slane %v10723, %v10744
    %v10747 = vunpack.c.l.s4 1966171168
    %v10748 = vunpack.c.0.s8 %v10747
    %v10749 = vlaneseq
    %v10750 = vshrl.u32 %v10749, 7
    %v10751 = vsub.s32 %v10748, %v10750
    %v10752 = vrot.slane %v10724, %v10751
    %v10753 = vcombine.low %v10731, %v10738
    %v10754 = vcombine.low %v10745, %v10752
    %v10756 = vunpack.c.l.s4 1966171168
    %v10757 = vunpack.c.0.s8 %v10756
    %v10758 = vlaneseq
    %v10759 = vshrl.u32 %v10758, 7
    %v10760 = vsub.s32 %v10757, %v10759
    %v10761 = vrot.slane %v10753, %v10760
    %v10763 = vunpack.c.l.s4 1966171168
    %v10764 = vunpack.c.0.s8 %v10763
    %v10765 = vlaneseq
    %v10766 = vshrl.u32 %v10765, 7
    %v10767 = vsub.s32 %v10764, %v10766
    %v10768 = vrot.slane %v10754, %v10767
    %v10769 = vcombine.low %v10761, %v10768
    %v10770 = vcombine.low %v10697, %v10698
    %v10771 = vcombine.low %v10699, %v10700
    %v10772 = vcombine.low %v10701, %v10702
    %v10773 = vcombine.low %v10703, %v10704
    %v10775 = vunpack.c.l.s4 1966171168
    %v10776 = vunpack.c.0.s8 %v10775
    %v10777 = vlaneseq
    %v10778 = vshrl.u32 %v10777, 7
    %v10779 = vsub.s32 %v10776, %v10778
    %v10780 = vrot.slane %v10770, %v10779
    %v10782 = vunpack.c.l.s4 1966171168
    %v10783 = vunpack.c.0.s8 %v10782
    %v10784 = vlaneseq
    %v10785 = vshrl.u32 %v10784, 7
    %v10786 = vsub.s32 %v10783, %v10785
    %v10787 = vrot.slane %v10771, %v10786
    %v10789 = vunpack.c.l.s4 1966171168
    %v10790 = vunpack.c.0.s8 %v10789
    %v10791 = vlaneseq
    %v10792 = vshrl.u32 %v10791, 7
    %v10793 = vsub.s32 %v10790, %v10792
    %v10794 = vrot.slane %v10772, %v10793
    %v10796 = vunpack.c.l.s4 1966171168
    %v10797 = vunpack.c.0.s8 %v10796
    %v10798 = vlaneseq
    %v10799 = vshrl.u32 %v10798, 7
    %v10800 = vsub.s32 %v10797, %v10799
    %v10801 = vrot.slane %v10773, %v10800
    %v10802 = vcombine.low %v10780, %v10787
    %v10803 = vcombine.low %v10794, %v10801
    %v10805 = vunpack.c.l.s4 1966171168
    %v10806 = vunpack.c.0.s8 %v10805
    %v10807 = vlaneseq
    %v10808 = vshrl.u32 %v10807, 7
    %v10809 = vsub.s32 %v10806, %v10808
    %v10810 = vrot.slane %v10802, %v10809
    %v10812 = vunpack.c.l.s4 1966171168
    %v10813 = vunpack.c.0.s8 %v10812
    %v10814 = vlaneseq
    %v10815 = vshrl.u32 %v10814, 7
    %v10816 = vsub.s32 %v10813, %v10815
    %v10817 = vrot.slane %v10803, %v10816
    %v10818 = vcombine.low %v10810, %v10817
    %v10821 = vsel %vm360, %v10769, 0.0
    %10822 = vadd.xlane.f32.xlu0 %v10821
    %v10823 = vpop.xlane.xlu0 %10822
    %v10824 = vsel %vm360, %v10818, 0.0
    %10825 = vadd.xlane.f32.xlu0 %v10824
    %v10826 = vpop.xlane.xlu0 %10825
    %v10827 = vmul.f32 %v10823, %v3940
    %v10828 = vmul.f32 %v10826, %v3940
    %v10829 = vadd.f32 %v10827, 1e-05
    %v10830 = vadd.f32 %v10828, 1e-05
    %v10831 = vrsqrt.pop %v10829
    %v10832 = vrsqrt.pop %v10830
    %v10835 = vlaneseq
    %v10836 = vshrl.u32 %v10835, 7
    %v10837 = vsub.s32 0, %v10836
    %v10838 = vrot.slane %v10831, %v10837
    %v10839 = vlaneseq
    %v10840 = vshrl.u32 %v10839, 7
    %v10841 = vsub.s32 1, %v10840
    %v10842 = vrot.slane %v10832, %v10841
    %v10845 = vmul.f32 %v10673, %v10838
    %v10846 = vmul.f32 %v10682, %v10842
    %v10848 = vlaneseq
    %v10849 = vshrl.u32 %v10848, 7
    %v10850 = vsub.s32 0, %v10849
    %v10851 = vrot.slane %v10464, %v10850
    %v10853 = vunpack.c.l.s4 1966171168
    %v10854 = vunpack.c.0.s8 %v10853
    %v10855 = vlaneseq
    %v10856 = vshrl.u32 %v10855, 7
    %v10857 = vsub.s32 %v10854, %v10856
    %v10858 = vrot.slane %v10851, %v10857
    %v10860 = vunpack.c.l.s4 1966171168
    %v10861 = vunpack.c.0.s8 %v10860
    %v10862 = vlaneseq
    %v10863 = vshrl.u32 %v10862, 7
    %v10864 = vsub.s32 %v10861, %v10863
    %v10865 = vrot.slane %v10858, %v10864
    %v10866 = vcombine.high %v10858, %v10858
    %v10868 = vunpack.c.l.s4 1966171168
    %v10869 = vunpack.c.0.s8 %v10868
    %v10870 = vlaneseq
    %v10871 = vshrl.u32 %v10870, 7
    %v10872 = vsub.s32 %v10869, %v10871
    %v10873 = vrot.slane %v10866, %v10872
    %v10876 = vmul.f32 %v10845, %v10865
    %v10877 = vmul.f32 %v10846, %v10873
    %v10879 = vlaneseq
    %v10880 = vshrl.u32 %v10879, 7
    %v10881 = vsub.s32 0, %v10880
    %v10882 = vrot.slane %v10466, %v10881
    %v10884 = vunpack.c.l.s4 1966171168
    %v10885 = vunpack.c.0.s8 %v10884
    %v10886 = vlaneseq
    %v10887 = vshrl.u32 %v10886, 7
    %v10888 = vsub.s32 %v10885, %v10887
    %v10889 = vrot.slane %v10882, %v10888
    %v10891 = vunpack.c.l.s4 1966171168
    %v10892 = vunpack.c.0.s8 %v10891
    %v10893 = vlaneseq
    %v10894 = vshrl.u32 %v10893, 7
    %v10895 = vsub.s32 %v10892, %v10894
    %v10896 = vrot.slane %v10889, %v10895
    %v10897 = vcombine.high %v10889, %v10889
    %v10899 = vunpack.c.l.s4 1966171168
    %v10900 = vunpack.c.0.s8 %v10899
    %v10901 = vlaneseq
    %v10902 = vshrl.u32 %v10901, 7
    %v10903 = vsub.s32 %v10900, %v10902
    %v10904 = vrot.slane %v10897, %v10903
    %v10907 = vadd.f32 %v10876, %v10896
    %v10908 = vadd.f32 %v10877, %v10904
    %v10909 = vld [vmem:[%s15] sm:$0xff]
    %v10910 = vld [vmem:[%s15 + $0x8] sm:$0xff]
    %v10911 = vld [vmem:[%s15 + $0x10] sm:$0xff]
    %v10912 = vld [vmem:[%s15 + $0x18] sm:$0xff]
    %v10913 = vld [vmem:[#allocation2] sm:$0x1]
    %v10915 = vlaneseq
    %v10916 = vshrl.u32 %v10915, 7
    %v10917 = vsub.s32 0, %v10916
    %v10918 = vrot.slane %v10913, %v10917
    %v10922 = vcombine.low %v10907, %v10908
    %v10924 = vunpack.c.l.s4 1966171168
    %v10925 = vunpack.c.0.s8 %v10924
    %v10926 = vlaneseq
    %v10927 = vshrl.u32 %v10926, 7
    %v10928 = vsub.s32 %v10925, %v10927
    %v10929 = vrot.slane %v10922, %v10928
    %v10931 = vunpack.c.l.s4 1966171168
    %v10932 = vunpack.c.0.s8 %v10931
    %v10933 = vlaneseq
    %v10934 = vshrl.u32 %v10933, 7
    %v10935 = vsub.s32 %v10932, %v10934
    %v10936 = vrot.slane %v10929, %v10935
    %v10937 = vsel %vm360, %v10936, 0
    %10939 = vmatprep.subr.mxu0 0.0
    %10940 = vmatpush1.msra.mxu0 0.0
    %10941 = vmatprep.subr.mxu0 0.0
    %10942 = vmatpush1.msra.mxu0 0.0
    %10943 = vmatprep.subr.mxu0 0.0
    %10944 = vmatpush1.msra.mxu0 0.0
    %10945 = vmatprep.subr.mxu0 0.0
    %10946 = vmatpush1.msra.mxu0 0.0
    %10947 = vmatprep.subr.mxu0 0.0
    %10948 = vmatpush1.msra.mxu0 0.0
    %10949 = vmatprep.subr.mxu0 0.0
    %10950 = vmatpush1.msra.mxu0 0.0
    %10951 = vmatprep.subr.mxu0 0.0
    %10952 = vmatpush1.msra.mxu0 0.0
    %10953 = vmatprep.subr.mxu0 0.0
    %10954 = vmatpush1.msra.mxu0 0.0
    %10955 = vmatprep.subr.mxu0 0.0
    %10956 = vmatpush1.msra.mxu0 0.0
    %10957 = vmatprep.subr.mxu0 0.0
    %10958 = vmatpush1.msra.mxu0 0.0
    %10959 = vmatprep.subr.mxu0 0.0
    %10960 = vmatpush1.msra.mxu0 0.0
    %10961 = vmatprep.subr.mxu0 0.0
    %10962 = vmatpush1.msra.mxu0 0.0
    %10963 = vmatprep.subr.mxu0 0.0
    %10964 = vmatpush1.msra.mxu0 %v10912
    %10965 = vmatprep.subr.mxu0 0.0
    %10966 = vmatpush1.msra.mxu0 %v10911
    %10967 = vmatprep.subr.mxu0 0.0
    %10968 = vmatpush1.msra.mxu0 %v10910
    %10969 = vmatprep.subr.mxu0 0.0
    %10970 = vmatpush1.msra.mxu0 %v10909
    %10971 = vmatprep.subr.mxu0 0.0
    %10972 = vmatpush2.msra.mxu0 0.0
    %10973 = vmatprep.subr.mxu0 0.0
    %10974 = vmatpush2.msra.mxu0 0.0
    %10975 = vmatprep.subr.mxu0 0.0
    %10976 = vmatpush2.msra.mxu0 0.0
    %10977 = vmatprep.subr.mxu0 0.0
    %10978 = vmatpush2.msra.mxu0 0.0
    %10979 = vmatprep.subr.mxu0 0.0
    %10980 = vmatpush2.msra.mxu0 0.0
    %10981 = vmatprep.subr.mxu0 0.0
    %10982 = vmatpush2.msra.mxu0 0.0
    %10983 = vmatprep.subr.mxu0 0.0
    %10984 = vmatpush2.msra.mxu0 0.0
    %10985 = vmatprep.subr.mxu0 0.0
    %10986 = vmatpush2.msra.mxu0 0.0
    %10987 = vmatprep.subr.mxu0 0.0
    %10988 = vmatpush2.msra.mxu0 0.0
    %10989 = vmatprep.subr.mxu0 0.0
    %10990 = vmatpush2.msra.mxu0 0.0
    %10991 = vmatprep.subr.mxu0 0.0
    %10992 = vmatpush2.msra.mxu0 0.0
    %10993 = vmatprep.subr.mxu0 0.0
    %10994 = vmatpush2.msra.mxu0 0.0
    %10995 = vmatprep.subr.mxu0 0.0
    %10996 = vmatpush2.msra.mxu0 0.0
    %10997 = vmatprep.subr.mxu0 0.0
    %10998 = vmatpush2.msra.mxu0 0.0
    %10999 = vmatprep.subr.mxu0 0.0
    %11000 = vmatpush2.msra.mxu0 0.0
    %11001 = vmatprep.subr.mxu0 0.0
    %11002 = vmatpush2.msra.mxu0 0.0
    %11003 = vmatprep.mubr.f32.mxu0 0.0
    %11004 = vmatmul.mubr.f32.gmra.mxu0 %v10937
    %v11005 = vpop.f32.mrf.mxu0
    %v11006 = vadd.f32 %v10918, %v11005
    %v11007 = vpop.f32.mrf.mxu0
    %11008 = vdwg.mxu0
    %v11009 = vsub.f32 0.0, %v11006
    %v11010 = vmul.f32 %v11009, 1.442695
    %v11011 = vpow.pop %v11010
    %v11012 = vadd.f32 %v11011, 1.0
    %v11013 = vrcp.pop %v11012
    %v11014 = vmul.f32 1.0, %v11013
    %vm11015 = vcmask 1024
    %11016 = vst.msk [vmem:[%s17] sm:$0x3] %vm11015, %v11014
    // Predicated region
    $region74: #{tpu_custom_call.1} parent=1 // pred_check
      _
    $region75: #{tpu_custom_call.1} parent=1 // pred_check_branch
      %11018 = sbr.rel (0) target = $region77
    $region76: #{tpu_custom_call.1} parent=1 // pred_region
      _
    $region77: #{tpu_custom_call.1} parent=1 // pred_fallthru
      _
    // Predicated region
    $region78: #{tpu_custom_call.1} parent=1 // pred_check
      _
    $region79: #{tpu_custom_call.1} parent=1 // pred_check_branch
      %11020 = sbr.rel (0) target = $region81
    $region80: #{tpu_custom_call.1} parent=1 // pred_region
      _
    $region81: #{tpu_custom_call.1} parent=1 // pred_fallthru
      _
    %11021 = vsyncpa [#allocation4], 1

</llo_original>
